<compile_context>
chip_gen: v6e
topology: v6e:2x2x1
jax: 0.10.0
libtpu: 0.0.40
codegen_flags: <defaults>
</compile_context>

<pallas_src>
import functools

import jax
import jax.numpy as jnp
from jax import lax
from jax.experimental import pallas as pl
from jax.experimental.pallas import tpu as pltpu

EPS = 1e-5                      # nn.BatchNorm3d default
VMEM_LIMIT = 32 * 1024 * 1024   # safe scoped-VMEM budget on v5e/v6e/v7x


def _conv_halo(x, w_ref, *, deltas, tile, c_out):
    """3x3x3 conv over a [C_in, 3*tile] halo window: 27 static-offset MXU matmuls."""
    acc = jnp.zeros((c_out, tile), dtype=jnp.float32)
    for k, d in enumerate(deltas):                       # 27 static taps, unrolled
        win = x[:, tile + d:2 * tile + d]                # [C_in, tile], static slice
        acc = acc + jnp.dot(w_ref[k], win, preferred_element_type=jnp.float32)
    return acc


def _conv_stats_kernel(xl_ref, xc_ref, xr_ref, w_ref, m_ref, y_ref, ss_ref,
                       *, deltas, tile, c_out):
    """Pass A: conv on the raw input, store raw conv output + masked sum / sum-of-squares."""
    t = pl.program_id(0)

    @pl.when(t == 0)
    def _init():
        ss_ref[...] = jnp.zeros_like(ss_ref)

    x = jnp.concatenate([xl_ref[...], xc_ref[...], xr_ref[...]], axis=1)
    y = _conv_halo(x, w_ref, deltas=deltas, tile=tile, c_out=c_out)
    m = m_ref[...]                                       # [1, tile]; 1.0 at real voxels only
    ym = y * m
    ss_ref[:, 0:1] += jnp.sum(ym, axis=1, keepdims=True)
    ss_ref[:, 1:2] += jnp.sum(ym * y, axis=1, keepdims=True)
    y_ref[...] = y.astype(y_ref.dtype)


def _bn_relu_conv_stats_kernel(yl_ref, yc_ref, yr_ref, ml_ref, mc_ref, mr_ref,
                               ss_in_ref, w_ref, y_ref, ss_ref,
                               *, deltas, tile, c_out, compute_dtype):
    """Pass B: BN+ReLU of the previous conv output (halo tiles too) -> conv -> stats."""
    t = pl.program_id(0)

    @pl.when(t == 0)
    def _init():
        ss_ref[...] = jnp.zeros_like(ss_ref)

    scale = ss_in_ref[:, 0:1]
    shift = ss_in_ref[:, 1:2]

    def act(y_part, m_part):
        h = jnp.maximum(y_part[...] * scale + shift, 0.0) * m_part[...]
        return h.astype(compute_dtype)

    x = jnp.concatenate([act(yl_ref, ml_ref), act(yc_ref, mc_ref),
                         act(yr_ref, mr_ref)], axis=1)
    y = _conv_halo(x, w_ref, deltas=deltas, tile=tile, c_out=c_out)
    m = mc_ref[...]
    ym = y * m
    ss_ref[:, 0:1] += jnp.sum(ym, axis=1, keepdims=True)
    ss_ref[:, 1:2] += jnp.sum(ym * y, axis=1, keepdims=True)
    y_ref[...] = y.astype(y_ref.dtype)


def _bn_relu_kernel(y_ref, m_ref, ss_ref, o_ref):
    """Pass C: per-channel scale/shift + ReLU; zero padding / round-up columns."""
    y = y_ref[...] * ss_ref[:, 0:1] + ss_ref[:, 1:2]
    o_ref[...] = (jnp.maximum(y, 0.0) * m_ref[...]).astype(o_ref.dtype)


def _finalize_scale_shift(ss_raw, gamma, beta, count):
    """Tiny [C] epilogue: (sum, sumsq) -> train-mode BN (scale, shift)."""
    inv_n = jnp.float32(1.0 / count)
    mean = ss_raw[:, 0] * inv_n
    var = jnp.maximum(ss_raw[:, 1] * inv_n - mean * mean, 0.0)
    inv_std = lax.rsqrt(var + jnp.float32(EPS))
    scale = gamma.astype(jnp.float32) * inv_std          # gamma / sqrt(var + eps)
    shift = beta.astype(jnp.float32) - mean * scale      # beta - mean * scale
    return jnp.stack([scale, shift], axis=1)             # [C, 2] f32


@functools.partial(jax.jit, static_argnames=("tile", "compute_dtype"))
def basic3d_block(x, w1, b1, gamma1, beta1, w2, b2, gamma2, beta2,
                  *, tile=512, compute_dtype=jnp.float32):
    """Basic3DBlock forward (norm_method='batch', training-mode batch statistics).

    x: [N, C_in, D, H, W]; w1: [C_out, C_in, 3,3,3]; w2: [C_out, C_out, 3,3,3];
    b/gamma/beta: [C_out].  Returns [N, C_out, D, H, W] float32.
    """
    # TODO(synk): norm_method='instance' / 'layer' variants of Basic3DBlock are not
    # implemented (only 'batch' with train-mode statistics); BN running-stat updates are a
    # training side effect and are not produced.
    del b1, b2  # Conv bias is exactly absorbed by the train-mode BN mean subtraction.

    N, Ci, D, H, W = x.shape
    Co = w1.shape[0]
    Dp, Hp, Wp = D + 2, H + 2, W + 2
    Mp = Dp * Hp * Wp
    L = N * Mp
    max_shift = Hp * Wp + Wp + 1            # largest |tap offset| in the flattened volume
    assert tile % 128 == 0 and tile >= max_shift, (
        "tile must be a multiple of 128 and >= the 3x3x3 halo span")

    T = pl.cdiv(L, tile)
    Lp = T * tile

    deltas = tuple((a - 1) * Hp * Wp + (b - 1) * Wp + (c - 1)
                   for a in range(3) for b in range(3) for c in range(3))

    # --- glue in: NCDHW -> channels-on-sublanes, zero-padded flattened volume on lanes ---
    xc = jnp.transpose(x, (1, 0, 2, 3, 4))
    xc = jnp.pad(xc, ((0, 0), (0, 0), (1, 1), (1, 1), (1, 1))).reshape(Ci, L)
    xc = jnp.pad(xc, ((0, 0), (0, Lp - L))).astype(compute_dtype)

    # per-column validity mask (1.0 only where the column is a real output voxel)
    col = jnp.arange(Lp)
    r = col % Mp
    dp = r // (Hp * Wp)
    hp = (r % (Hp * Wp)) // Wp
    wp = r % Wp
    valid = ((col < L) &
             (dp >= 1) & (dp <= D) & (hp >= 1) & (hp <= H) & (wp >= 1) & (wp <= W))
    mask = valid.astype(jnp.float32)[None, :]            # [1, Lp]

    def prep_w(w):
        # [C_out, C_in, 3,3,3] -> [27, C_out, C_in], tap index = a*9+b*3+c (matches deltas)
        return jnp.transpose(w, (2, 3, 4, 0, 1)).reshape(27, w.shape[0], w.shape[1]) \
                  .astype(compute_dtype)

    count = float(N * D * H * W)

    def full_spec(a):
        return pl.BlockSpec(a.shape, lambda t: (0,) * a.ndim)

    def halo_specs(c):
        return [
            pl.BlockSpec((c, tile), lambda t: (0, jnp.maximum(t - 1, 0))),
            pl.BlockSpec((c, tile), lambda t: (0, t)),
            pl.BlockSpec((c, tile), lambda t: (0, jnp.minimum(t + 1, T - 1))),
        ]

    cp_arb = pltpu.CompilerParams(dimension_semantics=("arbitrary",),
                                  vmem_limit_bytes=VMEM_LIMIT)
    cp_par = pltpu.CompilerParams(dimension_semantics=("parallel",),
                                  vmem_limit_bytes=VMEM_LIMIT)

    w1t = prep_w(w1)
    w2t = prep_w(w2)

    # ---- Pass A: conv1 + stats1 ----
    y1, ss1 = pl.pallas_call(
        functools.partial(_conv_stats_kernel, deltas=deltas, tile=tile, c_out=Co),
        out_shape=(jax.ShapeDtypeStruct((Co, Lp), compute_dtype),
                   jax.ShapeDtypeStruct((Co, 2), jnp.float32)),
        grid=(T,),
        in_specs=halo_specs(Ci) + [full_spec(w1t),
                                   pl.BlockSpec((1, tile), lambda t: (0, t))],
        out_specs=(pl.BlockSpec((Co, tile), lambda t: (0, t)),
                   pl.BlockSpec((Co, 2), lambda t: (0, 0))),
        compiler_params=cp_arb,
    )(xc, xc, xc, w1t, mask)
    sc1 = _finalize_scale_shift(ss1, gamma1, beta1, count)

    # ---- Pass B: BN1+ReLU1 (on the fly) + conv2 + stats2 ----
    y2, ss2 = pl.pallas_call(
        functools.partial(_bn_relu_conv_stats_kernel, deltas=deltas, tile=tile,
                          c_out=Co, compute_dtype=compute_dtype),
        out_shape=(jax.ShapeDtypeStruct((Co, Lp), compute_dtype),
                   jax.ShapeDtypeStruct((Co, 2), jnp.float32)),
        grid=(T,),
        in_specs=halo_specs(Co) + halo_specs(1) + [full_spec(sc1), full_spec(w2t)],
        out_specs=(pl.BlockSpec((Co, tile), lambda t: (0, t)),
                   pl.BlockSpec((Co, 2), lambda t: (0, 0))),
        compiler_params=cp_arb,
    )(y1, y1, y1, mask, mask, mask, sc1, w2t)
    sc2 = _finalize_scale_shift(ss2, gamma2, beta2, count)

    # ---- Pass C: BN2+ReLU2, elementwise ----
    out = pl.pallas_call(
        _bn_relu_kernel,
        out_shape=jax.ShapeDtypeStruct((Co, Lp), jnp.float32),
        grid=(T,),
        in_specs=[pl.BlockSpec((Co, tile), lambda t: (0, t)),
                  pl.BlockSpec((1, tile), lambda t: (0, t)),
                  full_spec(sc2)],
        out_specs=pl.BlockSpec((Co, tile), lambda t: (0, t)),
        compiler_params=cp_par,
    )(y2, mask, sc2)

    # --- glue out: flattened padded layout -> NCDHW ---
    y = out[:, :L].reshape(Co, N, Dp, Hp, Wp)[:, :, 1:1 + D, 1:1 + H, 1:1 + W]
    return jnp.transpose(y, (1, 0, 2, 3, 4))


def _reference(x, w1, b1, g1, be1, w2, b2, g2, be2):
    """Pure-JAX reference with PyTorch Basic3DBlock (batch norm, train mode) semantics."""
    def stage(h, w, b, g, be):
        y = lax.conv_general_dilated(h, w, window_strides=(1, 1, 1),
                                     padding=[(1, 1)] * 3,
                                     dimension_numbers=('NCDHW', 'OIDHW', 'NCDHW'),
                                     precision=lax.Precision.HIGHEST)
        y = y + b[None, :, None, None, None]
        mu = y.mean(axis=(0, 2, 3, 4), keepdims=True)
        var = ((y - mu) ** 2).mean(axis=(0, 2, 3, 4), keepdims=True)
        y = (y - mu) * lax.rsqrt(var + EPS)
        y = y * g[None, :, None, None, None] + be[None, :, None, None, None]
        return jnp.maximum(y, 0.0)
    return stage(stage(x, w1, b1, g1, be1), w2, b2, g2, be2)


if __name__ == "__main__":
    key = jax.random.PRNGKey(0)
    ks = jax.random.split(key, 9)

    N, Ci, Co = 2, 4, 8
    D = H = W = 8

    x = jax.random.normal(ks[0], (N, Ci, D, H, W), dtype=jnp.float32)
    w1 = 0.1 * jax.random.normal(ks[1], (Co, Ci, 3, 3, 3), dtype=jnp.float32)
    b1 = 0.1 * jax.random.normal(ks[2], (Co,), dtype=jnp.float32)
    g1 = 1.0 + 0.1 * jax.random.normal(ks[3], (Co,), dtype=jnp.float32)
    be1 = 0.1 * jax.random.normal(ks[4], (Co,), dtype=jnp.float32)
    w2 = 0.1 * jax.random.normal(ks[5], (Co, Co, 3, 3, 3), dtype=jnp.float32)
    b2 = 0.1 * jax.random.normal(ks[6], (Co,), dtype=jnp.float32)
    g2 = 1.0 + 0.1 * jax.random.normal(ks[7], (Co,), dtype=jnp.float32)
    be2 = 0.1 * jax.random.normal(ks[8], (Co,), dtype=jnp.float32)

    ref = jax.block_until_ready(_reference(x, w1, b1, g1, be1, w2, b2, g2, be2))

    # f32 path: tight correctness check against the PyTorch-semantics reference.
    out = jax.block_until_ready(
        basic3d_block(x, w1, b1, g1, be1, w2, b2, g2, be2, compute_dtype=jnp.float32))
    assert out.shape == (N, Co, D, H, W), out.shape
    err = float(jnp.max(jnp.abs(out - ref)))
    assert err < 1e-3, f"f32 path mismatch: max abs err = {err}"

    # bf16 load/matmul path (halves HBM traffic; BN math stays f32): loose sanity check.
    out_bf16 = jax.block_until_ready(
        basic3d_block(x, w1, b1, g1, be1, w2, b2, g2, be2, compute_dtype=jnp.bfloat16))
    err16 = float(jnp.max(jnp.abs(out_bf16 - ref)))
    assert err16 < 0.25, f"bf16 path sanity check failed: max abs err = {err16}"

    print("KERNEL_OK")
</pallas_src>

<mosaic_0001>
module attributes {stable_mosaic.version = 11 : i64} {
  func.func @_conv_stats_kernel(%arg0: i32, %arg1: memref<4x512xf32, #tpu.memory_space<vmem>>, %arg2: memref<4x512xf32, #tpu.memory_space<vmem>>, %arg3: memref<4x512xf32, #tpu.memory_space<vmem>>, %arg4: memref<27x8x4xf32, #tpu.memory_space<vmem>>, %arg5: memref<1x512xf32, #tpu.memory_space<vmem>>, %arg6: memref<8x512xf32, #tpu.memory_space<vmem>>, %arg7: memref<8x2xf32, #tpu.memory_space<vmem>>) attributes {dimension_semantics = [#tpu.dimension_semantics<arbitrary>], iteration_bounds = array<i64: 4>, scalar_prefetch = 0 : i64, scratch_operands = 0 : i64, tpu.core_type = #tpu.core_type<tc>, window_params = [{transform_indices = @transform_0, window_bounds = array<i64: 4, 512>}, {transform_indices = @transform_1, window_bounds = array<i64: 4, 512>}, {transform_indices = @transform_2, window_bounds = array<i64: 4, 512>}, {pipeline_mode = #tpu.pipeline_mode<synchronous>, transform_indices = @transform_3, window_bounds = array<i64: 27, 8, 4>}, {transform_indices = @transform_4, window_bounds = array<i64: 1, 512>}, {transform_indices = @transform_5, window_bounds = array<i64: 8, 512>}, {pipeline_mode = #tpu.pipeline_mode<synchronous>, transform_indices = @transform_6, window_bounds = array<i64: 8, 2>}]} {
    %c0_i32 = arith.constant 0 : i32
    %0 = arith.cmpi eq, %arg0, %c0_i32 : i32
    %1 = arith.extui %0 : i1 to i32
    %c0_i32_0 = arith.constant 0 : i32
    %2 = arith.cmpi ne, %1, %c0_i32_0 : i32
    scf.if %2 {
      %cst_102 = arith.constant 0.000000e+00 : f32
      %158 = vector.broadcast %cst_102 : f32 to vector<8x2xf32>
      %c0_103 = arith.constant 0 : index
      %c0_104 = arith.constant 0 : index
      %159 = vector.load %arg7[%c0_103, %c0_104] : memref<8x2xf32, #tpu.memory_space<vmem>>, vector<8x2xf32>
      tpu.vector_store %arg7[%c0_103, %c0_104], %158 {strides = array<i32>} : memref<8x2xf32, #tpu.memory_space<vmem>>, vector<8x2xf32>,
    } else {
    }
    %c0 = arith.constant 0 : index
    %c0_1 = arith.constant 0 : index
    %3 = vector.load %arg1[%c0, %c0_1] : memref<4x512xf32, #tpu.memory_space<vmem>>, vector<4x512xf32>
    %c0_2 = arith.constant 0 : index
    %c0_3 = arith.constant 0 : index
    %4 = vector.load %arg2[%c0_2, %c0_3] : memref<4x512xf32, #tpu.memory_space<vmem>>, vector<4x512xf32>
    %c0_4 = arith.constant 0 : index
    %c0_5 = arith.constant 0 : index
    %5 = vector.load %arg3[%c0_4, %c0_5] : memref<4x512xf32, #tpu.memory_space<vmem>>, vector<4x512xf32>
    %6 = tpu.concatenate %3, %4, %5 in 1 : vector<4x512xf32>, vector<4x512xf32>, vector<4x512xf32> -> vector<4x1536xf32>
    %cst = arith.constant 0.000000e+00 : f32
    %7 = vector.broadcast %cst : f32 to vector<8x512xf32>
    %8 = vector.extract_strided_slice %6 {offsets = [0, 401], sizes = [4, 512], strides = [1, 1]} : vector<4x1536xf32> to vector<4x512xf32>
    %c0_6 = arith.constant 0 : index
    %c0_7 = arith.constant 0 : index
    %c0_8 = arith.constant 0 : index
    %9 = vector.load %arg4[%c0_6, %c0_7, %c0_8] : memref<27x8x4xf32, #tpu.memory_space<vmem>>, vector<1x8x4xf32>
    %10 = vector.shape_cast %9 : vector<1x8x4xf32> to vector<8x4xf32>
    %cst_9 = arith.constant dense<0.000000e+00> : vector<8x512xf32>
    %11 = tpu.matmul %10, %8, %cst_9 {dimension_numbers = #tpu.dot_dimension_numbers<[1], [0], [0], [1], [0, 0, 1, 1], [], []>} : vector<8x4xf32>, vector<4x512xf32>, vector<8x512xf32> -> vector<8x512xf32>
    %12 = arith.addf %7, %11 : vector<8x512xf32>
    %13 = vector.extract_strided_slice %6 {offsets = [0, 402], sizes = [4, 512], strides = [1, 1]} : vector<4x1536xf32> to vector<4x512xf32>
    %c1 = arith.constant 1 : index
    %c0_10 = arith.constant 0 : index
    %c0_11 = arith.constant 0 : index
    %14 = vector.load %arg4[%c1, %c0_10, %c0_11] : memref<27x8x4xf32, #tpu.memory_space<vmem>>, vector<1x8x4xf32>
    %15 = vector.shape_cast %14 : vector<1x8x4xf32> to vector<8x4xf32>
    %cst_12 = arith.constant dense<0.000000e+00> : vector<8x512xf32>
    %16 = tpu.matmul %15, %13, %cst_12 {dimension_numbers = #tpu.dot_dimension_numbers<[1], [0], [0], [1], [0, 0, 1, 1], [], []>} : vector<8x4xf32>, vector<4x512xf32>, vector<8x512xf32> -> vector<8x512xf32>
    %17 = arith.addf %12, %16 : vector<8x512xf32>
    %18 = vector.extract_strided_slice %6 {offsets = [0, 403], sizes = [4, 512], strides = [1, 1]} : vector<4x1536xf32> to vector<4x512xf32>
    %c2 = arith.constant 2 : index
    %c0_13 = arith.constant 0 : index
    %c0_14 = arith.constant 0 : index
    %19 = vector.load %arg4[%c2, %c0_13, %c0_14] : memref<27x8x4xf32, #tpu.memory_space<vmem>>, vector<1x8x4xf32>
    %20 = vector.shape_cast %19 : vector<1x8x4xf32> to vector<8x4xf32>
    %cst_15 = arith.constant dense<0.000000e+00> : vector<8x512xf32>
    %21 = tpu.matmul %20, %18, %cst_15 {dimension_numbers = #tpu.dot_dimension_numbers<[1], [0], [0], [1], [0, 0, 1, 1], [], []>} : vector<8x4xf32>, vector<4x512xf32>, vector<8x512xf32> -> vector<8x512xf32>
    %22 = arith.addf %17, %21 : vector<8x512xf32>
    %23 = vector.extract_strided_slice %6 {offsets = [0, 411], sizes = [4, 512], strides = [1, 1]} : vector<4x1536xf32> to vector<4x512xf32>
    %c3 = arith.constant 3 : index
    %c0_16 = arith.constant 0 : index
    %c0_17 = arith.constant 0 : index
    %24 = vector.load %arg4[%c3, %c0_16, %c0_17] : memref<27x8x4xf32, #tpu.memory_space<vmem>>, vector<1x8x4xf32>
    %25 = vector.shape_cast %24 : vector<1x8x4xf32> to vector<8x4xf32>
    %cst_18 = arith.constant dense<0.000000e+00> : vector<8x512xf32>
    %26 = tpu.matmul %25, %23, %cst_18 {dimension_numbers = #tpu.dot_dimension_numbers<[1], [0], [0], [1], [0, 0, 1, 1], [], []>} : vector<8x4xf32>, vector<4x512xf32>, vector<8x512xf32> -> vector<8x512xf32>
    %27 = arith.addf %22, %26 : vector<8x512xf32>
    %28 = vector.extract_strided_slice %6 {offsets = [0, 412], sizes = [4, 512], strides = [1, 1]} : vector<4x1536xf32> to vector<4x512xf32>
    %c4 = arith.constant 4 : index
    %c0_19 = arith.constant 0 : index
    %c0_20 = arith.constant 0 : index
    %29 = vector.load %arg4[%c4, %c0_19, %c0_20] : memref<27x8x4xf32, #tpu.memory_space<vmem>>, vector<1x8x4xf32>
    %30 = vector.shape_cast %29 : vector<1x8x4xf32> to vector<8x4xf32>
    %cst_21 = arith.constant dense<0.000000e+00> : vector<8x512xf32>
    %31 = tpu.matmul %30, %28, %cst_21 {dimension_numbers = #tpu.dot_dimension_numbers<[1], [0], [0], [1], [0, 0, 1, 1], [], []>} : vector<8x4xf32>, vector<4x512xf32>, vector<8x512xf32> -> vector<8x512xf32>
    %32 = arith.addf %27, %31 : vector<8x512xf32>
    %33 = vector.extract_strided_slice %6 {offsets = [0, 413], sizes = [4, 512], strides = [1, 1]} : vector<4x1536xf32> to vector<4x512xf32>
    %c5 = arith.constant 5 : index
    %c0_22 = arith.constant 0 : index
    %c0_23 = arith.constant 0 : index
    %34 = vector.load %arg4[%c5, %c0_22, %c0_23] : memref<27x8x4xf32, #tpu.memory_space<vmem>>, vector<1x8x4xf32>
    %35 = vector.shape_cast %34 : vector<1x8x4xf32> to vector<8x4xf32>
    %cst_24 = arith.constant dense<0.000000e+00> : vector<8x512xf32>
    %36 = tpu.matmul %35, %33, %cst_24 {dimension_numbers = #tpu.dot_dimension_numbers<[1], [0], [0], [1], [0, 0, 1, 1], [], []>} : vector<8x4xf32>, vector<4x512xf32>, vector<8x512xf32> -> vector<8x512xf32>
    %37 = arith.addf %32, %36 : vector<8x512xf32>
    %38 = vector.extract_strided_slice %6 {offsets = [0, 421], sizes = [4, 512], strides = [1, 1]} : vector<4x1536xf32> to vector<4x512xf32>
    %c6 = arith.constant 6 : index
    %c0_25 = arith.constant 0 : index
    %c0_26 = arith.constant 0 : index
    %39 = vector.load %arg4[%c6, %c0_25, %c0_26] : memref<27x8x4xf32, #tpu.memory_space<vmem>>, vector<1x8x4xf32>
    %40 = vector.shape_cast %39 : vector<1x8x4xf32> to vector<8x4xf32>
    %cst_27 = arith.constant dense<0.000000e+00> : vector<8x512xf32>
    %41 = tpu.matmul %40, %38, %cst_27 {dimension_numbers = #tpu.dot_dimension_numbers<[1], [0], [0], [1], [0, 0, 1, 1], [], []>} : vector<8x4xf32>, vector<4x512xf32>, vector<8x512xf32> -> vector<8x512xf32>
    %42 = arith.addf %37, %41 : vector<8x512xf32>
    %43 = vector.extract_strided_slice %6 {offsets = [0, 422], sizes = [4, 512], strides = [1, 1]} : vector<4x1536xf32> to vector<4x512xf32>
    %c7 = arith.constant 7 : index
    %c0_28 = arith.constant 0 : index
    %c0_29 = arith.constant 0 : index
    %44 = vector.load %arg4[%c7, %c0_28, %c0_29] : memref<27x8x4xf32, #tpu.memory_space<vmem>>, vector<1x8x4xf32>
    %45 = vector.shape_cast %44 : vector<1x8x4xf32> to vector<8x4xf32>
    %cst_30 = arith.constant dense<0.000000e+00> : vector<8x512xf32>
    %46 = tpu.matmul %45, %43, %cst_30 {dimension_numbers = #tpu.dot_dimension_numbers<[1], [0], [0], [1], [0, 0, 1, 1], [], []>} : vector<8x4xf32>, vector<4x512xf32>, vector<8x512xf32> -> vector<8x512xf32>
    %47 = arith.addf %42, %46 : vector<8x512xf32>
    %48 = vector.extract_strided_slice %6 {offsets = [0, 423], sizes = [4, 512], strides = [1, 1]} : vector<4x1536xf32> to vector<4x512xf32>
    %c8 = arith.constant 8 : index
    %c0_31 = arith.constant 0 : index
    %c0_32 = arith.constant 0 : index
    %49 = vector.load %arg4[%c8, %c0_31, %c0_32] : memref<27x8x4xf32, #tpu.memory_space<vmem>>, vector<1x8x4xf32>
    %50 = vector.shape_cast %49 : vector<1x8x4xf32> to vector<8x4xf32>
    %cst_33 = arith.constant dense<0.000000e+00> : vector<8x512xf32>
    %51 = tpu.matmul %50, %48, %cst_33 {dimension_numbers = #tpu.dot_dimension_numbers<[1], [0], [0], [1], [0, 0, 1, 1], [], []>} : vector<8x4xf32>, vector<4x512xf32>, vector<8x512xf32> -> vector<8x512xf32>
    %52 = arith.addf %47, %51 : vector<8x512xf32>
    %53 = vector.extract_strided_slice %6 {offsets = [0, 501], sizes = [4, 512], strides = [1, 1]} : vector<4x1536xf32> to vector<4x512xf32>
    %c9 = arith.constant 9 : index
    %c0_34 = arith.constant 0 : index
    %c0_35 = arith.constant 0 : index
    %54 = vector.load %arg4[%c9, %c0_34, %c0_35] : memref<27x8x4xf32, #tpu.memory_space<vmem>>, vector<1x8x4xf32>
    %55 = vector.shape_cast %54 : vector<1x8x4xf32> to vector<8x4xf32>
    %cst_36 = arith.constant dense<0.000000e+00> : vector<8x512xf32>
    %56 = tpu.matmul %55, %53, %cst_36 {dimension_numbers = #tpu.dot_dimension_numbers<[1], [0], [0], [1], [0, 0, 1, 1], [], []>} : vector<8x4xf32>, vector<4x512xf32>, vector<8x512xf32> -> vector<8x512xf32>
    %57 = arith.addf %52, %56 : vector<8x512xf32>
    %58 = vector.extract_strided_slice %6 {offsets = [0, 502], sizes = [4, 512], strides = [1, 1]} : vector<4x1536xf32> to vector<4x512xf32>
    %c10 = arith.constant 10 : index
    %c0_37 = arith.constant 0 : index
    %c0_38 = arith.constant 0 : index
    %59 = vector.load %arg4[%c10, %c0_37, %c0_38] : memref<27x8x4xf32, #tpu.memory_space<vmem>>, vector<1x8x4xf32>
    %60 = vector.shape_cast %59 : vector<1x8x4xf32> to vector<8x4xf32>
    %cst_39 = arith.constant dense<0.000000e+00> : vector<8x512xf32>
    %61 = tpu.matmul %60, %58, %cst_39 {dimension_numbers = #tpu.dot_dimension_numbers<[1], [0], [0], [1], [0, 0, 1, 1], [], []>} : vector<8x4xf32>, vector<4x512xf32>, vector<8x512xf32> -> vector<8x512xf32>
    %62 = arith.addf %57, %61 : vector<8x512xf32>
    %63 = vector.extract_strided_slice %6 {offsets = [0, 503], sizes = [4, 512], strides = [1, 1]} : vector<4x1536xf32> to vector<4x512xf32>
    %c11 = arith.constant 11 : index
    %c0_40 = arith.constant 0 : index
    %c0_41 = arith.constant 0 : index
    %64 = vector.load %arg4[%c11, %c0_40, %c0_41] : memref<27x8x4xf32, #tpu.memory_space<vmem>>, vector<1x8x4xf32>
    %65 = vector.shape_cast %64 : vector<1x8x4xf32> to vector<8x4xf32>
    %cst_42 = arith.constant dense<0.000000e+00> : vector<8x512xf32>
    %66 = tpu.matmul %65, %63, %cst_42 {dimension_numbers = #tpu.dot_dimension_numbers<[1], [0], [0], [1], [0, 0, 1, 1], [], []>} : vector<8x4xf32>, vector<4x512xf32>, vector<8x512xf32> -> vector<8x512xf32>
    %67 = arith.addf %62, %66 : vector<8x512xf32>
    %68 = vector.extract_strided_slice %6 {offsets = [0, 511], sizes = [4, 512], strides = [1, 1]} : vector<4x1536xf32> to vector<4x512xf32>
    %c12 = arith.constant 12 : index
    %c0_43 = arith.constant 0 : index
    %c0_44 = arith.constant 0 : index
    %69 = vector.load %arg4[%c12, %c0_43, %c0_44] : memref<27x8x4xf32, #tpu.memory_space<vmem>>, vector<1x8x4xf32>
    %70 = vector.shape_cast %69 : vector<1x8x4xf32> to vector<8x4xf32>
    %cst_45 = arith.constant dense<0.000000e+00> : vector<8x512xf32>
    %71 = tpu.matmul %70, %68, %cst_45 {dimension_numbers = #tpu.dot_dimension_numbers<[1], [0], [0], [1], [0, 0, 1, 1], [], []>} : vector<8x4xf32>, vector<4x512xf32>, vector<8x512xf32> -> vector<8x512xf32>
    %72 = arith.addf %67, %71 : vector<8x512xf32>
    %73 = vector.extract_strided_slice %6 {offsets = [0, 512], sizes = [4, 512], strides = [1, 1]} : vector<4x1536xf32> to vector<4x512xf32>
    %c13 = arith.constant 13 : index
    %c0_46 = arith.constant 0 : index
    %c0_47 = arith.constant 0 : index
    %74 = vector.load %arg4[%c13, %c0_46, %c0_47] : memref<27x8x4xf32, #tpu.memory_space<vmem>>, vector<1x8x4xf32>
    %75 = vector.shape_cast %74 : vector<1x8x4xf32> to vector<8x4xf32>
    %cst_48 = arith.constant dense<0.000000e+00> : vector<8x512xf32>
    %76 = tpu.matmul %75, %73, %cst_48 {dimension_numbers = #tpu.dot_dimension_numbers<[1], [0], [0], [1], [0, 0, 1, 1], [], []>} : vector<8x4xf32>, vector<4x512xf32>, vector<8x512xf32> -> vector<8x512xf32>
    %77 = arith.addf %72, %76 : vector<8x512xf32>
    %78 = vector.extract_strided_slice %6 {offsets = [0, 513], sizes = [4, 512], strides = [1, 1]} : vector<4x1536xf32> to vector<4x512xf32>
    %c14 = arith.constant 14 : index
    %c0_49 = arith.constant 0 : index
    %c0_50 = arith.constant 0 : index
    %79 = vector.load %arg4[%c14, %c0_49, %c0_50] : memref<27x8x4xf32, #tpu.memory_space<vmem>>, vector<1x8x4xf32>
    %80 = vector.shape_cast %79 : vector<1x8x4xf32> to vector<8x4xf32>
    %cst_51 = arith.constant dense<0.000000e+00> : vector<8x512xf32>
    %81 = tpu.matmul %80, %78, %cst_51 {dimension_numbers = #tpu.dot_dimension_numbers<[1], [0], [0], [1], [0, 0, 1, 1], [], []>} : vector<8x4xf32>, vector<4x512xf32>, vector<8x512xf32> -> vector<8x512xf32>
    %82 = arith.addf %77, %81 : vector<8x512xf32>
    %83 = vector.extract_strided_slice %6 {offsets = [0, 521], sizes = [4, 512], strides = [1, 1]} : vector<4x1536xf32> to vector<4x512xf32>
    %c15 = arith.constant 15 : index
    %c0_52 = arith.constant 0 : index
    %c0_53 = arith.constant 0 : index
    %84 = vector.load %arg4[%c15, %c0_52, %c0_53] : memref<27x8x4xf32, #tpu.memory_space<vmem>>, vector<1x8x4xf32>
    %85 = vector.shape_cast %84 : vector<1x8x4xf32> to vector<8x4xf32>
    %cst_54 = arith.constant dense<0.000000e+00> : vector<8x512xf32>
    %86 = tpu.matmul %85, %83, %cst_54 {dimension_numbers = #tpu.dot_dimension_numbers<[1], [0], [0], [1], [0, 0, 1, 1], [], []>} : vector<8x4xf32>, vector<4x512xf32>, vector<8x512xf32> -> vector<8x512xf32>
    %87 = arith.addf %82, %86 : vector<8x512xf32>
    %88 = vector.extract_strided_slice %6 {offsets = [0, 522], sizes = [4, 512], strides = [1, 1]} : vector<4x1536xf32> to vector<4x512xf32>
    %c16 = arith.constant 16 : index
    %c0_55 = arith.constant 0 : index
    %c0_56 = arith.constant 0 : index
    %89 = vector.load %arg4[%c16, %c0_55, %c0_56] : memref<27x8x4xf32, #tpu.memory_space<vmem>>, vector<1x8x4xf32>
    %90 = vector.shape_cast %89 : vector<1x8x4xf32> to vector<8x4xf32>
    %cst_57 = arith.constant dense<0.000000e+00> : vector<8x512xf32>
    %91 = tpu.matmul %90, %88, %cst_57 {dimension_numbers = #tpu.dot_dimension_numbers<[1], [0], [0], [1], [0, 0, 1, 1], [], []>} : vector<8x4xf32>, vector<4x512xf32>, vector<8x512xf32> -> vector<8x512xf32>
    %92 = arith.addf %87, %91 : vector<8x512xf32>
    %93 = vector.extract_strided_slice %6 {offsets = [0, 523], sizes = [4, 512], strides = [1, 1]} : vector<4x1536xf32> to vector<4x512xf32>
    %c17 = arith.constant 17 : index
    %c0_58 = arith.constant 0 : index
    %c0_59 = arith.constant 0 : index
    %94 = vector.load %arg4[%c17, %c0_58, %c0_59] : memref<27x8x4xf32, #tpu.memory_space<vmem>>, vector<1x8x4xf32>
    %95 = vector.shape_cast %94 : vector<1x8x4xf32> to vector<8x4xf32>
    %cst_60 = arith.constant dense<0.000000e+00> : vector<8x512xf32>
    %96 = tpu.matmul %95, %93, %cst_60 {dimension_numbers = #tpu.dot_dimension_numbers<[1], [0], [0], [1], [0, 0, 1, 1], [], []>} : vector<8x4xf32>, vector<4x512xf32>, vector<8x512xf32> -> vector<8x512xf32>
    %97 = arith.addf %92, %96 : vector<8x512xf32>
    %98 = vector.extract_strided_slice %6 {offsets = [0, 601], sizes = [4, 512], strides = [1, 1]} : vector<4x1536xf32> to vector<4x512xf32>
    %c18 = arith.constant 18 : index
    %c0_61 = arith.constant 0 : index
    %c0_62 = arith.constant 0 : index
    %99 = vector.load %arg4[%c18, %c0_61, %c0_62] : memref<27x8x4xf32, #tpu.memory_space<vmem>>, vector<1x8x4xf32>
    %100 = vector.shape_cast %99 : vector<1x8x4xf32> to vector<8x4xf32>
    %cst_63 = arith.constant dense<0.000000e+00> : vector<8x512xf32>
    %101 = tpu.matmul %100, %98, %cst_63 {dimension_numbers = #tpu.dot_dimension_numbers<[1], [0], [0], [1], [0, 0, 1, 1], [], []>} : vector<8x4xf32>, vector<4x512xf32>, vector<8x512xf32> -> vector<8x512xf32>
    %102 = arith.addf %97, %101 : vector<8x512xf32>
    %103 = vector.extract_strided_slice %6 {offsets = [0, 602], sizes = [4, 512], strides = [1, 1]} : vector<4x1536xf32> to vector<4x512xf32>
    %c19 = arith.constant 19 : index
    %c0_64 = arith.constant 0 : index
    %c0_65 = arith.constant 0 : index
    %104 = vector.load %arg4[%c19, %c0_64, %c0_65] : memref<27x8x4xf32, #tpu.memory_space<vmem>>, vector<1x8x4xf32>
    %105 = vector.shape_cast %104 : vector<1x8x4xf32> to vector<8x4xf32>
    %cst_66 = arith.constant dense<0.000000e+00> : vector<8x512xf32>
    %106 = tpu.matmul %105, %103, %cst_66 {dimension_numbers = #tpu.dot_dimension_numbers<[1], [0], [0], [1], [0, 0, 1, 1], [], []>} : vector<8x4xf32>, vector<4x512xf32>, vector<8x512xf32> -> vector<8x512xf32>
    %107 = arith.addf %102, %106 : vector<8x512xf32>
    %108 = vector.extract_strided_slice %6 {offsets = [0, 603], sizes = [4, 512], strides = [1, 1]} : vector<4x1536xf32> to vector<4x512xf32>
    %c20 = arith.constant 20 : index
    %c0_67 = arith.constant 0 : index
    %c0_68 = arith.constant 0 : index
    %109 = vector.load %arg4[%c20, %c0_67, %c0_68] : memref<27x8x4xf32, #tpu.memory_space<vmem>>, vector<1x8x4xf32>
    %110 = vector.shape_cast %109 : vector<1x8x4xf32> to vector<8x4xf32>
    %cst_69 = arith.constant dense<0.000000e+00> : vector<8x512xf32>
    %111 = tpu.matmul %110, %108, %cst_69 {dimension_numbers = #tpu.dot_dimension_numbers<[1], [0], [0], [1], [0, 0, 1, 1], [], []>} : vector<8x4xf32>, vector<4x512xf32>, vector<8x512xf32> -> vector<8x512xf32>
    %112 = arith.addf %107, %111 : vector<8x512xf32>
    %113 = vector.extract_strided_slice %6 {offsets = [0, 611], sizes = [4, 512], strides = [1, 1]} : vector<4x1536xf32> to vector<4x512xf32>
    %c21 = arith.constant 21 : index
    %c0_70 = arith.constant 0 : index
    %c0_71 = arith.constant 0 : index
    %114 = vector.load %arg4[%c21, %c0_70, %c0_71] : memref<27x8x4xf32, #tpu.memory_space<vmem>>, vector<1x8x4xf32>
    %115 = vector.shape_cast %114 : vector<1x8x4xf32> to vector<8x4xf32>
    %cst_72 = arith.constant dense<0.000000e+00> : vector<8x512xf32>
    %116 = tpu.matmul %115, %113, %cst_72 {dimension_numbers = #tpu.dot_dimension_numbers<[1], [0], [0], [1], [0, 0, 1, 1], [], []>} : vector<8x4xf32>, vector<4x512xf32>, vector<8x512xf32> -> vector<8x512xf32>
    %117 = arith.addf %112, %116 : vector<8x512xf32>
    %118 = vector.extract_strided_slice %6 {offsets = [0, 612], sizes = [4, 512], strides = [1, 1]} : vector<4x1536xf32> to vector<4x512xf32>
    %c22 = arith.constant 22 : index
    %c0_73 = arith.constant 0 : index
    %c0_74 = arith.constant 0 : index
    %119 = vector.load %arg4[%c22, %c0_73, %c0_74] : memref<27x8x4xf32, #tpu.memory_space<vmem>>, vector<1x8x4xf32>
    %120 = vector.shape_cast %119 : vector<1x8x4xf32> to vector<8x4xf32>
    %cst_75 = arith.constant dense<0.000000e+00> : vector<8x512xf32>
    %121 = tpu.matmul %120, %118, %cst_75 {dimension_numbers = #tpu.dot_dimension_numbers<[1], [0], [0], [1], [0, 0, 1, 1], [], []>} : vector<8x4xf32>, vector<4x512xf32>, vector<8x512xf32> -> vector<8x512xf32>
    %122 = arith.addf %117, %121 : vector<8x512xf32>
    %123 = vector.extract_strided_slice %6 {offsets = [0, 613], sizes = [4, 512], strides = [1, 1]} : vector<4x1536xf32> to vector<4x512xf32>
    %c23 = arith.constant 23 : index
    %c0_76 = arith.constant 0 : index
    %c0_77 = arith.constant 0 : index
    %124 = vector.load %arg4[%c23, %c0_76, %c0_77] : memref<27x8x4xf32, #tpu.memory_space<vmem>>, vector<1x8x4xf32>
    %125 = vector.shape_cast %124 : vector<1x8x4xf32> to vector<8x4xf32>
    %cst_78 = arith.constant dense<0.000000e+00> : vector<8x512xf32>
    %126 = tpu.matmul %125, %123, %cst_78 {dimension_numbers = #tpu.dot_dimension_numbers<[1], [0], [0], [1], [0, 0, 1, 1], [], []>} : vector<8x4xf32>, vector<4x512xf32>, vector<8x512xf32> -> vector<8x512xf32>
    %127 = arith.addf %122, %126 : vector<8x512xf32>
    %128 = vector.extract_strided_slice %6 {offsets = [0, 621], sizes = [4, 512], strides = [1, 1]} : vector<4x1536xf32> to vector<4x512xf32>
    %c24 = arith.constant 24 : index
    %c0_79 = arith.constant 0 : index
    %c0_80 = arith.constant 0 : index
    %129 = vector.load %arg4[%c24, %c0_79, %c0_80] : memref<27x8x4xf32, #tpu.memory_space<vmem>>, vector<1x8x4xf32>
    %130 = vector.shape_cast %129 : vector<1x8x4xf32> to vector<8x4xf32>
    %cst_81 = arith.constant dense<0.000000e+00> : vector<8x512xf32>
    %131 = tpu.matmul %130, %128, %cst_81 {dimension_numbers = #tpu.dot_dimension_numbers<[1], [0], [0], [1], [0, 0, 1, 1], [], []>} : vector<8x4xf32>, vector<4x512xf32>, vector<8x512xf32> -> vector<8x512xf32>
    %132 = arith.addf %127, %131 : vector<8x512xf32>
    %133 = vector.extract_strided_slice %6 {offsets = [0, 622], sizes = [4, 512], strides = [1, 1]} : vector<4x1536xf32> to vector<4x512xf32>
    %c25 = arith.constant 25 : index
    %c0_82 = arith.constant 0 : index
    %c0_83 = arith.constant 0 : index
    %134 = vector.load %arg4[%c25, %c0_82, %c0_83] : memref<27x8x4xf32, #tpu.memory_space<vmem>>, vector<1x8x4xf32>
    %135 = vector.shape_cast %134 : vector<1x8x4xf32> to vector<8x4xf32>
    %cst_84 = arith.constant dense<0.000000e+00> : vector<8x512xf32>
    %136 = tpu.matmul %135, %133, %cst_84 {dimension_numbers = #tpu.dot_dimension_numbers<[1], [0], [0], [1], [0, 0, 1, 1], [], []>} : vector<8x4xf32>, vector<4x512xf32>, vector<8x512xf32> -> vector<8x512xf32>
    %137 = arith.addf %132, %136 : vector<8x512xf32>
    %138 = vector.extract_strided_slice %6 {offsets = [0, 623], sizes = [4, 512], strides = [1, 1]} : vector<4x1536xf32> to vector<4x512xf32>
    %c26 = arith.constant 26 : index
    %c0_85 = arith.constant 0 : index
    %c0_86 = arith.constant 0 : index
    %139 = vector.load %arg4[%c26, %c0_85, %c0_86] : memref<27x8x4xf32, #tpu.memory_space<vmem>>, vector<1x8x4xf32>
    %140 = vector.shape_cast %139 : vector<1x8x4xf32> to vector<8x4xf32>
    %cst_87 = arith.constant dense<0.000000e+00> : vector<8x512xf32>
    %141 = tpu.matmul %140, %138, %cst_87 {dimension_numbers = #tpu.dot_dimension_numbers<[1], [0], [0], [1], [0, 0, 1, 1], [], []>} : vector<8x4xf32>, vector<4x512xf32>, vector<8x512xf32> -> vector<8x512xf32>
    %142 = arith.addf %137, %141 : vector<8x512xf32>
    %c0_88 = arith.constant 0 : index
    %c0_89 = arith.constant 0 : index
    %143 = vector.load %arg5[%c0_88, %c0_89] : memref<1x512xf32, #tpu.memory_space<vmem>>, vector<1x512xf32>
    %144 = vector.broadcast %143 : vector<1x512xf32> to vector<8x512xf32>
    %145 = arith.mulf %142, %144 : vector<8x512xf32>
    %c0_90 = arith.constant 0 : index
    %c0_91 = arith.constant 0 : index
    %146 = vector.load %arg7[%c0_90, %c0_91] : memref<8x2xf32, #tpu.memory_space<vmem>>, vector<8x1xf32>
    %cst_92 = arith.constant dense<0.000000e+00> : vector<8xf32>
    %147 = vector.multi_reduction <add>, %145, %cst_92 [1] : vector<8x512xf32> to vector<8xf32>
    %148 = vector.shape_cast %147 : vector<8xf32> to vector<8x1xf32>
    %149 = arith.addf %146, %148 : vector<8x1xf32>
    %c0_93 = arith.constant 0 : index
    %c0_94 = arith.constant 0 : index
    %150 = vector.load %arg7[%c0_93, %c0_94] : memref<8x2xf32, #tpu.memory_space<vmem>>, vector<8x1xf32>
    tpu.vector_store %arg7[%c0_93, %c0_94], %149 {strides = array<i32>} : memref<8x2xf32, #tpu.memory_space<vmem>>, vector<8x1xf32>,
    %c0_95 = arith.constant 0 : index
    %c1_96 = arith.constant 1 : index
    %151 = vector.load %arg7[%c0_95, %c1_96] : memref<8x2xf32, #tpu.memory_space<vmem>>, vector<8x1xf32>
    %152 = arith.mulf %145, %142 : vector<8x512xf32>
    %cst_97 = arith.constant dense<0.000000e+00> : vector<8xf32>
    %153 = vector.multi_reduction <add>, %152, %cst_97 [1] : vector<8x512xf32> to vector<8xf32>
    %154 = vector.shape_cast %153 : vector<8xf32> to vector<8x1xf32>
    %155 = arith.addf %151, %154 : vector<8x1xf32>
    %c0_98 = arith.constant 0 : index
    %c1_99 = arith.constant 1 : index
    %156 = vector.load %arg7[%c0_98, %c1_99] : memref<8x2xf32, #tpu.memory_space<vmem>>, vector<8x1xf32>
    tpu.vector_store %arg7[%c0_98, %c1_99], %155 {strides = array<i32>} : memref<8x2xf32, #tpu.memory_space<vmem>>, vector<8x1xf32>,
    %c0_100 = arith.constant 0 : index
    %c0_101 = arith.constant 0 : index
    %157 = vector.load %arg6[%c0_100, %c0_101] : memref<8x512xf32, #tpu.memory_space<vmem>>, vector<8x512xf32>
    tpu.vector_store %arg6[%c0_100, %c0_101], %142 {strides = array<i32>} : memref<8x512xf32, #tpu.memory_space<vmem>>, vector<8x512xf32>,
    return
  }
  func.func @transform_0(%arg0: i32) -> (i32, i32) {
    %c1_i32 = arith.constant 1 : i32
    %0 = arith.subi %arg0, %c1_i32 : i32
    %c0_i32 = arith.constant 0 : i32
    %1 = arith.maxsi %0, %c0_i32 : i32
    %c0_i32_0 = arith.constant 0 : i32
    %c0_i32_1 = arith.constant 0 : i32
    return %c0_i32_0, %1 : i32, i32
  }
  func.func @transform_1(%arg0: i32) -> (i32, i32) {
    %c0_i32 = arith.constant 0 : i32
    %c0_i32_0 = arith.constant 0 : i32
    return %c0_i32, %arg0 : i32, i32
  }
  func.func @transform_2(%arg0: i32) -> (i32, i32) {
    %c1_i32 = arith.constant 1 : i32
    %0 = arith.addi %arg0, %c1_i32 : i32
    %c3_i32 = arith.constant 3 : i32
    %1 = arith.minsi %0, %c3_i32 : i32
    %c0_i32 = arith.constant 0 : i32
    %c0_i32_0 = arith.constant 0 : i32
    return %c0_i32, %1 : i32, i32
  }
  func.func @transform_3(%arg0: i32) -> (i32, i32, i32) {
    %c0_i32 = arith.constant 0 : i32
    %c0_i32_0 = arith.constant 0 : i32
    %c0_i32_1 = arith.constant 0 : i32
    %c0_i32_2 = arith.constant 0 : i32
    return %c0_i32, %c0_i32_0, %c0_i32_1 : i32, i32, i32
  }
  func.func @transform_4(%arg0: i32) -> (i32, i32) {
    %c0_i32 = arith.constant 0 : i32
    %c0_i32_0 = arith.constant 0 : i32
    return %c0_i32, %arg0 : i32, i32
  }
  func.func @transform_5(%arg0: i32) -> (i32, i32) {
    %c0_i32 = arith.constant 0 : i32
    %c0_i32_0 = arith.constant 0 : i32
    return %c0_i32, %arg0 : i32, i32
  }
  func.func @transform_6(%arg0: i32) -> (i32, i32) {
    %c0_i32 = arith.constant 0 : i32
    %c0_i32_0 = arith.constant 0 : i32
    %c0_i32_1 = arith.constant 0 : i32
    return %c0_i32, %c0_i32_0 : i32, i32
  }
}

module attributes {stable_mosaic.version = 11 : i64} {
  func.func @_bn_relu_kernel(%arg0: i32, %arg1: memref<8x512xf32, #tpu.memory_space<vmem>>, %arg2: memref<1x512xf32, #tpu.memory_space<vmem>>, %arg3: memref<8x2xf32, #tpu.memory_space<vmem>>, %arg4: memref<8x512xf32, #tpu.memory_space<vmem>>) attributes {dimension_semantics = [#tpu.dimension_semantics<parallel>], iteration_bounds = array<i64: 4>, scalar_prefetch = 0 : i64, scratch_operands = 0 : i64, tpu.core_type = #tpu.core_type<tc>, window_params = [{transform_indices = @transform_0, window_bounds = array<i64: 8, 512>}, {transform_indices = @transform_1, window_bounds = array<i64: 1, 512>}, {pipeline_mode = #tpu.pipeline_mode<synchronous>, transform_indices = @transform_2, window_bounds = array<i64: 8, 2>}, {transform_indices = @transform_3, window_bounds = array<i64: 8, 512>}]} {
    %c0 = arith.constant 0 : index
    %c0_0 = arith.constant 0 : index
    %0 = vector.load %arg1[%c0, %c0_0] : memref<8x512xf32, #tpu.memory_space<vmem>>, vector<8x512xf32>
    %c0_1 = arith.constant 0 : index
    %c0_2 = arith.constant 0 : index
    %1 = vector.load %arg3[%c0_1, %c0_2] : memref<8x2xf32, #tpu.memory_space<vmem>>, vector<8x1xf32>
    %2 = vector.broadcast %1 : vector<8x1xf32> to vector<8x512xf32>
    %3 = arith.mulf %0, %2 : vector<8x512xf32>
    %c0_3 = arith.constant 0 : index
    %c1 = arith.constant 1 : index
    %4 = vector.load %arg3[%c0_3, %c1] : memref<8x2xf32, #tpu.memory_space<vmem>>, vector<8x1xf32>
    %5 = vector.broadcast %4 : vector<8x1xf32> to vector<8x512xf32>
    %6 = arith.addf %3, %5 : vector<8x512xf32>
    %cst = arith.constant 0.000000e+00 : f32
    %7 = vector.broadcast %cst : f32 to vector<8x512xf32>
    %8 = arith.maximumf %6, %7 : vector<8x512xf32>
    %c0_4 = arith.constant 0 : index
    %c0_5 = arith.constant 0 : index
    %9 = vector.load %arg2[%c0_4, %c0_5] : memref<1x512xf32, #tpu.memory_space<vmem>>, vector<1x512xf32>
    %10 = vector.broadcast %9 : vector<1x512xf32> to vector<8x512xf32>
    %11 = arith.mulf %8, %10 : vector<8x512xf32>
    %c0_6 = arith.constant 0 : index
    %c0_7 = arith.constant 0 : index
    %12 = vector.load %arg4[%c0_6, %c0_7] : memref<8x512xf32, #tpu.memory_space<vmem>>, vector<8x512xf32>
    tpu.vector_store %arg4[%c0_6, %c0_7], %11 {strides = array<i32>} : memref<8x512xf32, #tpu.memory_space<vmem>>, vector<8x512xf32>,
    return
  }
  func.func @transform_0(%arg0: i32) -> (i32, i32) {
    %c0_i32 = arith.constant 0 : i32
    %c0_i32_0 = arith.constant 0 : i32
    return %c0_i32, %arg0 : i32, i32
  }
  func.func @transform_1(%arg0: i32) -> (i32, i32) {
    %c0_i32 = arith.constant 0 : i32
    %c0_i32_0 = arith.constant 0 : i32
    return %c0_i32, %arg0 : i32, i32
  }
  func.func @transform_2(%arg0: i32) -> (i32, i32) {
    %c0_i32 = arith.constant 0 : i32
    %c0_i32_0 = arith.constant 0 : i32
    %c0_i32_1 = arith.constant 0 : i32
    return %c0_i32, %c0_i32_0 : i32, i32
  }
  func.func @transform_3(%arg0: i32) -> (i32, i32) {
    %c0_i32 = arith.constant 0 : i32
    %c0_i32_0 = arith.constant 0 : i32
    return %c0_i32, %arg0 : i32, i32
  }
}

module attributes {stable_mosaic.version = 11 : i64} {
  func.func @_bn_relu_conv_stats_kernel(%arg0: i32, %arg1: memref<8x512xf32, #tpu.memory_space<vmem>>, %arg2: memref<8x512xf32, #tpu.memory_space<vmem>>, %arg3: memref<8x512xf32, #tpu.memory_space<vmem>>, %arg4: memref<1x512xf32, #tpu.memory_space<vmem>>, %arg5: memref<1x512xf32, #tpu.memory_space<vmem>>, %arg6: memref<1x512xf32, #tpu.memory_space<vmem>>, %arg7: memref<8x2xf32, #tpu.memory_space<vmem>>, %arg8: memref<27x8x8xf32, #tpu.memory_space<vmem>>, %arg9: memref<8x512xf32, #tpu.memory_space<vmem>>, %arg10: memref<8x2xf32, #tpu.memory_space<vmem>>) attributes {dimension_semantics = [#tpu.dimension_semantics<arbitrary>], iteration_bounds = array<i64: 4>, scalar_prefetch = 0 : i64, scratch_operands = 0 : i64, tpu.core_type = #tpu.core_type<tc>, window_params = [{transform_indices = @transform_0, window_bounds = array<i64: 8, 512>}, {transform_indices = @transform_1, window_bounds = array<i64: 8, 512>}, {transform_indices = @transform_2, window_bounds = array<i64: 8, 512>}, {transform_indices = @transform_3, window_bounds = array<i64: 1, 512>}, {transform_indices = @transform_4, window_bounds = array<i64: 1, 512>}, {transform_indices = @transform_5, window_bounds = array<i64: 1, 512>}, {pipeline_mode = #tpu.pipeline_mode<synchronous>, transform_indices = @transform_6, window_bounds = array<i64: 8, 2>}, {pipeline_mode = #tpu.pipeline_mode<synchronous>, transform_indices = @transform_7, window_bounds = array<i64: 27, 8, 8>}, {transform_indices = @transform_8, window_bounds = array<i64: 8, 512>}, {pipeline_mode = #tpu.pipeline_mode<synchronous>, transform_indices = @transform_9, window_bounds = array<i64: 8, 2>}]} {
    %c0_i32 = arith.constant 0 : i32
    %0 = arith.cmpi eq, %arg0, %c0_i32 : i32
    %1 = arith.extui %0 : i1 to i32
    %c0_i32_0 = arith.constant 0 : i32
    %2 = arith.cmpi ne, %1, %c0_i32_0 : i32
    scf.if %2 {
      %cst_115 = arith.constant 0.000000e+00 : f32
      %187 = vector.broadcast %cst_115 : f32 to vector<8x2xf32>
      %c0_116 = arith.constant 0 : index
      %c0_117 = arith.constant 0 : index
      %188 = vector.load %arg10[%c0_116, %c0_117] : memref<8x2xf32, #tpu.memory_space<vmem>>, vector<8x2xf32>
      tpu.vector_store %arg10[%c0_116, %c0_117], %187 {strides = array<i32>} : memref<8x2xf32, #tpu.memory_space<vmem>>, vector<8x2xf32>,
    } else {
    }
    %c0 = arith.constant 0 : index
    %c0_1 = arith.constant 0 : index
    %3 = vector.load %arg7[%c0, %c0_1] : memref<8x2xf32, #tpu.memory_space<vmem>>, vector<8x1xf32>
    %c0_2 = arith.constant 0 : index
    %c1 = arith.constant 1 : index
    %4 = vector.load %arg7[%c0_2, %c1] : memref<8x2xf32, #tpu.memory_space<vmem>>, vector<8x1xf32>
    %c0_3 = arith.constant 0 : index
    %c0_4 = arith.constant 0 : index
    %5 = vector.load %arg1[%c0_3, %c0_4] : memref<8x512xf32, #tpu.memory_space<vmem>>, vector<8x512xf32>
    %6 = vector.broadcast %3 : vector<8x1xf32> to vector<8x512xf32>
    %7 = arith.mulf %5, %6 : vector<8x512xf32>
    %8 = vector.broadcast %4 : vector<8x1xf32> to vector<8x512xf32>
    %9 = arith.addf %7, %8 : vector<8x512xf32>
    %cst = arith.constant 0.000000e+00 : f32
    %10 = vector.broadcast %cst : f32 to vector<8x512xf32>
    %11 = arith.maximumf %9, %10 : vector<8x512xf32>
    %c0_5 = arith.constant 0 : index
    %c0_6 = arith.constant 0 : index
    %12 = vector.load %arg4[%c0_5, %c0_6] : memref<1x512xf32, #tpu.memory_space<vmem>>, vector<1x512xf32>
    %13 = vector.broadcast %12 : vector<1x512xf32> to vector<8x512xf32>
    %14 = arith.mulf %11, %13 : vector<8x512xf32>
    %c0_7 = arith.constant 0 : index
    %c0_8 = arith.constant 0 : index
    %15 = vector.load %arg2[%c0_7, %c0_8] : memref<8x512xf32, #tpu.memory_space<vmem>>, vector<8x512xf32>
    %16 = vector.broadcast %3 : vector<8x1xf32> to vector<8x512xf32>
    %17 = arith.mulf %15, %16 : vector<8x512xf32>
    %18 = vector.broadcast %4 : vector<8x1xf32> to vector<8x512xf32>
    %19 = arith.addf %17, %18 : vector<8x512xf32>
    %cst_9 = arith.constant 0.000000e+00 : f32
    %20 = vector.broadcast %cst_9 : f32 to vector<8x512xf32>
    %21 = arith.maximumf %19, %20 : vector<8x512xf32>
    %c0_10 = arith.constant 0 : index
    %c0_11 = arith.constant 0 : index
    %22 = vector.load %arg5[%c0_10, %c0_11] : memref<1x512xf32, #tpu.memory_space<vmem>>, vector<1x512xf32>
    %23 = vector.broadcast %22 : vector<1x512xf32> to vector<8x512xf32>
    %24 = arith.mulf %21, %23 : vector<8x512xf32>
    %c0_12 = arith.constant 0 : index
    %c0_13 = arith.constant 0 : index
    %25 = vector.load %arg3[%c0_12, %c0_13] : memref<8x512xf32, #tpu.memory_space<vmem>>, vector<8x512xf32>
    %26 = vector.broadcast %3 : vector<8x1xf32> to vector<8x512xf32>
    %27 = arith.mulf %25, %26 : vector<8x512xf32>
    %28 = vector.broadcast %4 : vector<8x1xf32> to vector<8x512xf32>
    %29 = arith.addf %27, %28 : vector<8x512xf32>
    %cst_14 = arith.constant 0.000000e+00 : f32
    %30 = vector.broadcast %cst_14 : f32 to vector<8x512xf32>
    %31 = arith.maximumf %29, %30 : vector<8x512xf32>
    %c0_15 = arith.constant 0 : index
    %c0_16 = arith.constant 0 : index
    %32 = vector.load %arg6[%c0_15, %c0_16] : memref<1x512xf32, #tpu.memory_space<vmem>>, vector<1x512xf32>
    %33 = vector.broadcast %32 : vector<1x512xf32> to vector<8x512xf32>
    %34 = arith.mulf %31, %33 : vector<8x512xf32>
    %35 = tpu.concatenate %14, %24, %34 in 1 : vector<8x512xf32>, vector<8x512xf32>, vector<8x512xf32> -> vector<8x1536xf32>
    %cst_17 = arith.constant 0.000000e+00 : f32
    %36 = vector.broadcast %cst_17 : f32 to vector<8x512xf32>
    %37 = vector.extract_strided_slice %35 {offsets = [0, 401], sizes = [8, 512], strides = [1, 1]} : vector<8x1536xf32> to vector<8x512xf32>
    %c0_18 = arith.constant 0 : index
    %c0_19 = arith.constant 0 : index
    %c0_20 = arith.constant 0 : index
    %38 = vector.load %arg8[%c0_18, %c0_19, %c0_20] : memref<27x8x8xf32, #tpu.memory_space<vmem>>, vector<1x8x8xf32>
    %39 = vector.shape_cast %38 : vector<1x8x8xf32> to vector<8x8xf32>
    %cst_21 = arith.constant dense<0.000000e+00> : vector<8x512xf32>
    %40 = tpu.matmul %39, %37, %cst_21 {dimension_numbers = #tpu.dot_dimension_numbers<[1], [0], [0], [1], [0, 0, 1, 1], [], []>} : vector<8x8xf32>, vector<8x512xf32>, vector<8x512xf32> -> vector<8x512xf32>
    %41 = arith.addf %36, %40 : vector<8x512xf32>
    %42 = vector.extract_strided_slice %35 {offsets = [0, 402], sizes = [8, 512], strides = [1, 1]} : vector<8x1536xf32> to vector<8x512xf32>
    %c1_22 = arith.constant 1 : index
    %c0_23 = arith.constant 0 : index
    %c0_24 = arith.constant 0 : index
    %43 = vector.load %arg8[%c1_22, %c0_23, %c0_24] : memref<27x8x8xf32, #tpu.memory_space<vmem>>, vector<1x8x8xf32>
    %44 = vector.shape_cast %43 : vector<1x8x8xf32> to vector<8x8xf32>
    %cst_25 = arith.constant dense<0.000000e+00> : vector<8x512xf32>
    %45 = tpu.matmul %44, %42, %cst_25 {dimension_numbers = #tpu.dot_dimension_numbers<[1], [0], [0], [1], [0, 0, 1, 1], [], []>} : vector<8x8xf32>, vector<8x512xf32>, vector<8x512xf32> -> vector<8x512xf32>
    %46 = arith.addf %41, %45 : vector<8x512xf32>
    %47 = vector.extract_strided_slice %35 {offsets = [0, 403], sizes = [8, 512], strides = [1, 1]} : vector<8x1536xf32> to vector<8x512xf32>
    %c2 = arith.constant 2 : index
    %c0_26 = arith.constant 0 : index
    %c0_27 = arith.constant 0 : index
    %48 = vector.load %arg8[%c2, %c0_26, %c0_27] : memref<27x8x8xf32, #tpu.memory_space<vmem>>, vector<1x8x8xf32>
    %49 = vector.shape_cast %48 : vector<1x8x8xf32> to vector<8x8xf32>
    %cst_28 = arith.constant dense<0.000000e+00> : vector<8x512xf32>
    %50 = tpu.matmul %49, %47, %cst_28 {dimension_numbers = #tpu.dot_dimension_numbers<[1], [0], [0], [1], [0, 0, 1, 1], [], []>} : vector<8x8xf32>, vector<8x512xf32>, vector<8x512xf32> -> vector<8x512xf32>
    %51 = arith.addf %46, %50 : vector<8x512xf32>
    %52 = vector.extract_strided_slice %35 {offsets = [0, 411], sizes = [8, 512], strides = [1, 1]} : vector<8x1536xf32> to vector<8x512xf32>
    %c3 = arith.constant 3 : index
    %c0_29 = arith.constant 0 : index
    %c0_30 = arith.constant 0 : index
    %53 = vector.load %arg8[%c3, %c0_29, %c0_30] : memref<27x8x8xf32, #tpu.memory_space<vmem>>, vector<1x8x8xf32>
    %54 = vector.shape_cast %53 : vector<1x8x8xf32> to vector<8x8xf32>
    %cst_31 = arith.constant dense<0.000000e+00> : vector<8x512xf32>
    %55 = tpu.matmul %54, %52, %cst_31 {dimension_numbers = #tpu.dot_dimension_numbers<[1], [0], [0], [1], [0, 0, 1, 1], [], []>} : vector<8x8xf32>, vector<8x512xf32>, vector<8x512xf32> -> vector<8x512xf32>
    %56 = arith.addf %51, %55 : vector<8x512xf32>
    %57 = vector.extract_strided_slice %35 {offsets = [0, 412], sizes = [8, 512], strides = [1, 1]} : vector<8x1536xf32> to vector<8x512xf32>
    %c4 = arith.constant 4 : index
    %c0_32 = arith.constant 0 : index
    %c0_33 = arith.constant 0 : index
    %58 = vector.load %arg8[%c4, %c0_32, %c0_33] : memref<27x8x8xf32, #tpu.memory_space<vmem>>, vector<1x8x8xf32>
    %59 = vector.shape_cast %58 : vector<1x8x8xf32> to vector<8x8xf32>
    %cst_34 = arith.constant dense<0.000000e+00> : vector<8x512xf32>
    %60 = tpu.matmul %59, %57, %cst_34 {dimension_numbers = #tpu.dot_dimension_numbers<[1], [0], [0], [1], [0, 0, 1, 1], [], []>} : vector<8x8xf32>, vector<8x512xf32>, vector<8x512xf32> -> vector<8x512xf32>
    %61 = arith.addf %56, %60 : vector<8x512xf32>
    %62 = vector.extract_strided_slice %35 {offsets = [0, 413], sizes = [8, 512], strides = [1, 1]} : vector<8x1536xf32> to vector<8x512xf32>
    %c5 = arith.constant 5 : index
    %c0_35 = arith.constant 0 : index
    %c0_36 = arith.constant 0 : index
    %63 = vector.load %arg8[%c5, %c0_35, %c0_36] : memref<27x8x8xf32, #tpu.memory_space<vmem>>, vector<1x8x8xf32>
    %64 = vector.shape_cast %63 : vector<1x8x8xf32> to vector<8x8xf32>
    %cst_37 = arith.constant dense<0.000000e+00> : vector<8x512xf32>
    %65 = tpu.matmul %64, %62, %cst_37 {dimension_numbers = #tpu.dot_dimension_numbers<[1], [0], [0], [1], [0, 0, 1, 1], [], []>} : vector<8x8xf32>, vector<8x512xf32>, vector<8x512xf32> -> vector<8x512xf32>
    %66 = arith.addf %61, %65 : vector<8x512xf32>
    %67 = vector.extract_strided_slice %35 {offsets = [0, 421], sizes = [8, 512], strides = [1, 1]} : vector<8x1536xf32> to vector<8x512xf32>
    %c6 = arith.constant 6 : index
    %c0_38 = arith.constant 0 : index
    %c0_39 = arith.constant 0 : index
    %68 = vector.load %arg8[%c6, %c0_38, %c0_39] : memref<27x8x8xf32, #tpu.memory_space<vmem>>, vector<1x8x8xf32>
    %69 = vector.shape_cast %68 : vector<1x8x8xf32> to vector<8x8xf32>
    %cst_40 = arith.constant dense<0.000000e+00> : vector<8x512xf32>
    %70 = tpu.matmul %69, %67, %cst_40 {dimension_numbers = #tpu.dot_dimension_numbers<[1], [0], [0], [1], [0, 0, 1, 1], [], []>} : vector<8x8xf32>, vector<8x512xf32>, vector<8x512xf32> -> vector<8x512xf32>
    %71 = arith.addf %66, %70 : vector<8x512xf32>
    %72 = vector.extract_strided_slice %35 {offsets = [0, 422], sizes = [8, 512], strides = [1, 1]} : vector<8x1536xf32> to vector<8x512xf32>
    %c7 = arith.constant 7 : index
    %c0_41 = arith.constant 0 : index
    %c0_42 = arith.constant 0 : index
    %73 = vector.load %arg8[%c7, %c0_41, %c0_42] : memref<27x8x8xf32, #tpu.memory_space<vmem>>, vector<1x8x8xf32>
    %74 = vector.shape_cast %73 : vector<1x8x8xf32> to vector<8x8xf32>
    %cst_43 = arith.constant dense<0.000000e+00> : vector<8x512xf32>
    %75 = tpu.matmul %74, %72, %cst_43 {dimension_numbers = #tpu.dot_dimension_numbers<[1], [0], [0], [1], [0, 0, 1, 1], [], []>} : vector<8x8xf32>, vector<8x512xf32>, vector<8x512xf32> -> vector<8x512xf32>
    %76 = arith.addf %71, %75 : vector<8x512xf32>
    %77 = vector.extract_strided_slice %35 {offsets = [0, 423], sizes = [8, 512], strides = [1, 1]} : vector<8x1536xf32> to vector<8x512xf32>
    %c8 = arith.constant 8 : index
    %c0_44 = arith.constant 0 : index
    %c0_45 = arith.constant 0 : index
    %78 = vector.load %arg8[%c8, %c0_44, %c0_45] : memref<27x8x8xf32, #tpu.memory_space<vmem>>, vector<1x8x8xf32>
    %79 = vector.shape_cast %78 : vector<1x8x8xf32> to vector<8x8xf32>
    %cst_46 = arith.constant dense<0.000000e+00> : vector<8x512xf32>
    %80 = tpu.matmul %79, %77, %cst_46 {dimension_numbers = #tpu.dot_dimension_numbers<[1], [0], [0], [1], [0, 0, 1, 1], [], []>} : vector<8x8xf32>, vector<8x512xf32>, vector<8x512xf32> -> vector<8x512xf32>
    %81 = arith.addf %76, %80 : vector<8x512xf32>
    %82 = vector.extract_strided_slice %35 {offsets = [0, 501], sizes = [8, 512], strides = [1, 1]} : vector<8x1536xf32> to vector<8x512xf32>
    %c9 = arith.constant 9 : index
    %c0_47 = arith.constant 0 : index
    %c0_48 = arith.constant 0 : index
    %83 = vector.load %arg8[%c9, %c0_47, %c0_48] : memref<27x8x8xf32, #tpu.memory_space<vmem>>, vector<1x8x8xf32>
    %84 = vector.shape_cast %83 : vector<1x8x8xf32> to vector<8x8xf32>
    %cst_49 = arith.constant dense<0.000000e+00> : vector<8x512xf32>
    %85 = tpu.matmul %84, %82, %cst_49 {dimension_numbers = #tpu.dot_dimension_numbers<[1], [0], [0], [1], [0, 0, 1, 1], [], []>} : vector<8x8xf32>, vector<8x512xf32>, vector<8x512xf32> -> vector<8x512xf32>
    %86 = arith.addf %81, %85 : vector<8x512xf32>
    %87 = vector.extract_strided_slice %35 {offsets = [0, 502], sizes = [8, 512], strides = [1, 1]} : vector<8x1536xf32> to vector<8x512xf32>
    %c10 = arith.constant 10 : index
    %c0_50 = arith.constant 0 : index
    %c0_51 = arith.constant 0 : index
    %88 = vector.load %arg8[%c10, %c0_50, %c0_51] : memref<27x8x8xf32, #tpu.memory_space<vmem>>, vector<1x8x8xf32>
    %89 = vector.shape_cast %88 : vector<1x8x8xf32> to vector<8x8xf32>
    %cst_52 = arith.constant dense<0.000000e+00> : vector<8x512xf32>
    %90 = tpu.matmul %89, %87, %cst_52 {dimension_numbers = #tpu.dot_dimension_numbers<[1], [0], [0], [1], [0, 0, 1, 1], [], []>} : vector<8x8xf32>, vector<8x512xf32>, vector<8x512xf32> -> vector<8x512xf32>
    %91 = arith.addf %86, %90 : vector<8x512xf32>
    %92 = vector.extract_strided_slice %35 {offsets = [0, 503], sizes = [8, 512], strides = [1, 1]} : vector<8x1536xf32> to vector<8x512xf32>
    %c11 = arith.constant 11 : index
    %c0_53 = arith.constant 0 : index
    %c0_54 = arith.constant 0 : index
    %93 = vector.load %arg8[%c11, %c0_53, %c0_54] : memref<27x8x8xf32, #tpu.memory_space<vmem>>, vector<1x8x8xf32>
    %94 = vector.shape_cast %93 : vector<1x8x8xf32> to vector<8x8xf32>
    %cst_55 = arith.constant dense<0.000000e+00> : vector<8x512xf32>
    %95 = tpu.matmul %94, %92, %cst_55 {dimension_numbers = #tpu.dot_dimension_numbers<[1], [0], [0], [1], [0, 0, 1, 1], [], []>} : vector<8x8xf32>, vector<8x512xf32>, vector<8x512xf32> -> vector<8x512xf32>
    %96 = arith.addf %91, %95 : vector<8x512xf32>
    %97 = vector.extract_strided_slice %35 {offsets = [0, 511], sizes = [8, 512], strides = [1, 1]} : vector<8x1536xf32> to vector<8x512xf32>
    %c12 = arith.constant 12 : index
    %c0_56 = arith.constant 0 : index
    %c0_57 = arith.constant 0 : index
    %98 = vector.load %arg8[%c12, %c0_56, %c0_57] : memref<27x8x8xf32, #tpu.memory_space<vmem>>, vector<1x8x8xf32>
    %99 = vector.shape_cast %98 : vector<1x8x8xf32> to vector<8x8xf32>
    %cst_58 = arith.constant dense<0.000000e+00> : vector<8x512xf32>
    %100 = tpu.matmul %99, %97, %cst_58 {dimension_numbers = #tpu.dot_dimension_numbers<[1], [0], [0], [1], [0, 0, 1, 1], [], []>} : vector<8x8xf32>, vector<8x512xf32>, vector<8x512xf32> -> vector<8x512xf32>
    %101 = arith.addf %96, %100 : vector<8x512xf32>
    %102 = vector.extract_strided_slice %35 {offsets = [0, 512], sizes = [8, 512], strides = [1, 1]} : vector<8x1536xf32> to vector<8x512xf32>
    %c13 = arith.constant 13 : index
    %c0_59 = arith.constant 0 : index
    %c0_60 = arith.constant 0 : index
    %103 = vector.load %arg8[%c13, %c0_59, %c0_60] : memref<27x8x8xf32, #tpu.memory_space<vmem>>, vector<1x8x8xf32>
    %104 = vector.shape_cast %103 : vector<1x8x8xf32> to vector<8x8xf32>
    %cst_61 = arith.constant dense<0.000000e+00> : vector<8x512xf32>
    %105 = tpu.matmul %104, %102, %cst_61 {dimension_numbers = #tpu.dot_dimension_numbers<[1], [0], [0], [1], [0, 0, 1, 1], [], []>} : vector<8x8xf32>, vector<8x512xf32>, vector<8x512xf32> -> vector<8x512xf32>
    %106 = arith.addf %101, %105 : vector<8x512xf32>
    %107 = vector.extract_strided_slice %35 {offsets = [0, 513], sizes = [8, 512], strides = [1, 1]} : vector<8x1536xf32> to vector<8x512xf32>
    %c14 = arith.constant 14 : index
    %c0_62 = arith.constant 0 : index
    %c0_63 = arith.constant 0 : index
    %108 = vector.load %arg8[%c14, %c0_62, %c0_63] : memref<27x8x8xf32, #tpu.memory_space<vmem>>, vector<1x8x8xf32>
    %109 = vector.shape_cast %108 : vector<1x8x8xf32> to vector<8x8xf32>
    %cst_64 = arith.constant dense<0.000000e+00> : vector<8x512xf32>
    %110 = tpu.matmul %109, %107, %cst_64 {dimension_numbers = #tpu.dot_dimension_numbers<[1], [0], [0], [1], [0, 0, 1, 1], [], []>} : vector<8x8xf32>, vector<8x512xf32>, vector<8x512xf32> -> vector<8x512xf32>
    %111 = arith.addf %106, %110 : vector<8x512xf32>
    %112 = vector.extract_strided_slice %35 {offsets = [0, 521], sizes = [8, 512], strides = [1, 1]} : vector<8x1536xf32> to vector<8x512xf32>
    %c15 = arith.constant 15 : index
    %c0_65 = arith.constant 0 : index
    %c0_66 = arith.constant 0 : index
    %113 = vector.load %arg8[%c15, %c0_65, %c0_66] : memref<27x8x8xf32, #tpu.memory_space<vmem>>, vector<1x8x8xf32>
    %114 = vector.shape_cast %113 : vector<1x8x8xf32> to vector<8x8xf32>
    %cst_67 = arith.constant dense<0.000000e+00> : vector<8x512xf32>
    %115 = tpu.matmul %114, %112, %cst_67 {dimension_numbers = #tpu.dot_dimension_numbers<[1], [0], [0], [1], [0, 0, 1, 1], [], []>} : vector<8x8xf32>, vector<8x512xf32>, vector<8x512xf32> -> vector<8x512xf32>
    %116 = arith.addf %111, %115 : vector<8x512xf32>
    %117 = vector.extract_strided_slice %35 {offsets = [0, 522], sizes = [8, 512], strides = [1, 1]} : vector<8x1536xf32> to vector<8x512xf32>
    %c16 = arith.constant 16 : index
    %c0_68 = arith.constant 0 : index
    %c0_69 = arith.constant 0 : index
    %118 = vector.load %arg8[%c16, %c0_68, %c0_69] : memref<27x8x8xf32, #tpu.memory_space<vmem>>, vector<1x8x8xf32>
    %119 = vector.shape_cast %118 : vector<1x8x8xf32> to vector<8x8xf32>
    %cst_70 = arith.constant dense<0.000000e+00> : vector<8x512xf32>
    %120 = tpu.matmul %119, %117, %cst_70 {dimension_numbers = #tpu.dot_dimension_numbers<[1], [0], [0], [1], [0, 0, 1, 1], [], []>} : vector<8x8xf32>, vector<8x512xf32>, vector<8x512xf32> -> vector<8x512xf32>
    %121 = arith.addf %116, %120 : vector<8x512xf32>
    %122 = vector.extract_strided_slice %35 {offsets = [0, 523], sizes = [8, 512], strides = [1, 1]} : vector<8x1536xf32> to vector<8x512xf32>
    %c17 = arith.constant 17 : index
    %c0_71 = arith.constant 0 : index
    %c0_72 = arith.constant 0 : index
    %123 = vector.load %arg8[%c17, %c0_71, %c0_72] : memref<27x8x8xf32, #tpu.memory_space<vmem>>, vector<1x8x8xf32>
    %124 = vector.shape_cast %123 : vector<1x8x8xf32> to vector<8x8xf32>
    %cst_73 = arith.constant dense<0.000000e+00> : vector<8x512xf32>
    %125 = tpu.matmul %124, %122, %cst_73 {dimension_numbers = #tpu.dot_dimension_numbers<[1], [0], [0], [1], [0, 0, 1, 1], [], []>} : vector<8x8xf32>, vector<8x512xf32>, vector<8x512xf32> -> vector<8x512xf32>
    %126 = arith.addf %121, %125 : vector<8x512xf32>
    %127 = vector.extract_strided_slice %35 {offsets = [0, 601], sizes = [8, 512], strides = [1, 1]} : vector<8x1536xf32> to vector<8x512xf32>
    %c18 = arith.constant 18 : index
    %c0_74 = arith.constant 0 : index
    %c0_75 = arith.constant 0 : index
    %128 = vector.load %arg8[%c18, %c0_74, %c0_75] : memref<27x8x8xf32, #tpu.memory_space<vmem>>, vector<1x8x8xf32>
    %129 = vector.shape_cast %128 : vector<1x8x8xf32> to vector<8x8xf32>
    %cst_76 = arith.constant dense<0.000000e+00> : vector<8x512xf32>
    %130 = tpu.matmul %129, %127, %cst_76 {dimension_numbers = #tpu.dot_dimension_numbers<[1], [0], [0], [1], [0, 0, 1, 1], [], []>} : vector<8x8xf32>, vector<8x512xf32>, vector<8x512xf32> -> vector<8x512xf32>
    %131 = arith.addf %126, %130 : vector<8x512xf32>
    %132 = vector.extract_strided_slice %35 {offsets = [0, 602], sizes = [8, 512], strides = [1, 1]} : vector<8x1536xf32> to vector<8x512xf32>
    %c19 = arith.constant 19 : index
    %c0_77 = arith.constant 0 : index
    %c0_78 = arith.constant 0 : index
    %133 = vector.load %arg8[%c19, %c0_77, %c0_78] : memref<27x8x8xf32, #tpu.memory_space<vmem>>, vector<1x8x8xf32>
    %134 = vector.shape_cast %133 : vector<1x8x8xf32> to vector<8x8xf32>
    %cst_79 = arith.constant dense<0.000000e+00> : vector<8x512xf32>
    %135 = tpu.matmul %134, %132, %cst_79 {dimension_numbers = #tpu.dot_dimension_numbers<[1], [0], [0], [1], [0, 0, 1, 1], [], []>} : vector<8x8xf32>, vector<8x512xf32>, vector<8x512xf32> -> vector<8x512xf32>
    %136 = arith.addf %131, %135 : vector<8x512xf32>
    %137 = vector.extract_strided_slice %35 {offsets = [0, 603], sizes = [8, 512], strides = [1, 1]} : vector<8x1536xf32> to vector<8x512xf32>
    %c20 = arith.constant 20 : index
    %c0_80 = arith.constant 0 : index
    %c0_81 = arith.constant 0 : index
    %138 = vector.load %arg8[%c20, %c0_80, %c0_81] : memref<27x8x8xf32, #tpu.memory_space<vmem>>, vector<1x8x8xf32>
    %139 = vector.shape_cast %138 : vector<1x8x8xf32> to vector<8x8xf32>
    %cst_82 = arith.constant dense<0.000000e+00> : vector<8x512xf32>
    %140 = tpu.matmul %139, %137, %cst_82 {dimension_numbers = #tpu.dot_dimension_numbers<[1], [0], [0], [1], [0, 0, 1, 1], [], []>} : vector<8x8xf32>, vector<8x512xf32>, vector<8x512xf32> -> vector<8x512xf32>
    %141 = arith.addf %136, %140 : vector<8x512xf32>
    %142 = vector.extract_strided_slice %35 {offsets = [0, 611], sizes = [8, 512], strides = [1, 1]} : vector<8x1536xf32> to vector<8x512xf32>
    %c21 = arith.constant 21 : index
    %c0_83 = arith.constant 0 : index
    %c0_84 = arith.constant 0 : index
    %143 = vector.load %arg8[%c21, %c0_83, %c0_84] : memref<27x8x8xf32, #tpu.memory_space<vmem>>, vector<1x8x8xf32>
    %144 = vector.shape_cast %143 : vector<1x8x8xf32> to vector<8x8xf32>
    %cst_85 = arith.constant dense<0.000000e+00> : vector<8x512xf32>
    %145 = tpu.matmul %144, %142, %cst_85 {dimension_numbers = #tpu.dot_dimension_numbers<[1], [0], [0], [1], [0, 0, 1, 1], [], []>} : vector<8x8xf32>, vector<8x512xf32>, vector<8x512xf32> -> vector<8x512xf32>
    %146 = arith.addf %141, %145 : vector<8x512xf32>
    %147 = vector.extract_strided_slice %35 {offsets = [0, 612], sizes = [8, 512], strides = [1, 1]} : vector<8x1536xf32> to vector<8x512xf32>
    %c22 = arith.constant 22 : index
    %c0_86 = arith.constant 0 : index
    %c0_87 = arith.constant 0 : index
    %148 = vector.load %arg8[%c22, %c0_86, %c0_87] : memref<27x8x8xf32, #tpu.memory_space<vmem>>, vector<1x8x8xf32>
    %149 = vector.shape_cast %148 : vector<1x8x8xf32> to vector<8x8xf32>
    %cst_88 = arith.constant dense<0.000000e+00> : vector<8x512xf32>
    %150 = tpu.matmul %149, %147, %cst_88 {dimension_numbers = #tpu.dot_dimension_numbers<[1], [0], [0], [1], [0, 0, 1, 1], [], []>} : vector<8x8xf32>, vector<8x512xf32>, vector<8x512xf32> -> vector<8x512xf32>
    %151 = arith.addf %146, %150 : vector<8x512xf32>
    %152 = vector.extract_strided_slice %35 {offsets = [0, 613], sizes = [8, 512], strides = [1, 1]} : vector<8x1536xf32> to vector<8x512xf32>
    %c23 = arith.constant 23 : index
    %c0_89 = arith.constant 0 : index
    %c0_90 = arith.constant 0 : index
    %153 = vector.load %arg8[%c23, %c0_89, %c0_90] : memref<27x8x8xf32, #tpu.memory_space<vmem>>, vector<1x8x8xf32>
    %154 = vector.shape_cast %153 : vector<1x8x8xf32> to vector<8x8xf32>
    %cst_91 = arith.constant dense<0.000000e+00> : vector<8x512xf32>
    %155 = tpu.matmul %154, %152, %cst_91 {dimension_numbers = #tpu.dot_dimension_numbers<[1], [0], [0], [1], [0, 0, 1, 1], [], []>} : vector<8x8xf32>, vector<8x512xf32>, vector<8x512xf32> -> vector<8x512xf32>
    %156 = arith.addf %151, %155 : vector<8x512xf32>
    %157 = vector.extract_strided_slice %35 {offsets = [0, 621], sizes = [8, 512], strides = [1, 1]} : vector<8x1536xf32> to vector<8x512xf32>
    %c24 = arith.constant 24 : index
    %c0_92 = arith.constant 0 : index
    %c0_93 = arith.constant 0 : index
    %158 = vector.load %arg8[%c24, %c0_92, %c0_93] : memref<27x8x8xf32, #tpu.memory_space<vmem>>, vector<1x8x8xf32>
    %159 = vector.shape_cast %158 : vector<1x8x8xf32> to vector<8x8xf32>
    %cst_94 = arith.constant dense<0.000000e+00> : vector<8x512xf32>
    %160 = tpu.matmul %159, %157, %cst_94 {dimension_numbers = #tpu.dot_dimension_numbers<[1], [0], [0], [1], [0, 0, 1, 1], [], []>} : vector<8x8xf32>, vector<8x512xf32>, vector<8x512xf32> -> vector<8x512xf32>
    %161 = arith.addf %156, %160 : vector<8x512xf32>
    %162 = vector.extract_strided_slice %35 {offsets = [0, 622], sizes = [8, 512], strides = [1, 1]} : vector<8x1536xf32> to vector<8x512xf32>
    %c25 = arith.constant 25 : index
    %c0_95 = arith.constant 0 : index
    %c0_96 = arith.constant 0 : index
    %163 = vector.load %arg8[%c25, %c0_95, %c0_96] : memref<27x8x8xf32, #tpu.memory_space<vmem>>, vector<1x8x8xf32>
    %164 = vector.shape_cast %163 : vector<1x8x8xf32> to vector<8x8xf32>
    %cst_97 = arith.constant dense<0.000000e+00> : vector<8x512xf32>
    %165 = tpu.matmul %164, %162, %cst_97 {dimension_numbers = #tpu.dot_dimension_numbers<[1], [0], [0], [1], [0, 0, 1, 1], [], []>} : vector<8x8xf32>, vector<8x512xf32>, vector<8x512xf32> -> vector<8x512xf32>
    %166 = arith.addf %161, %165 : vector<8x512xf32>
    %167 = vector.extract_strided_slice %35 {offsets = [0, 623], sizes = [8, 512], strides = [1, 1]} : vector<8x1536xf32> to vector<8x512xf32>
    %c26 = arith.constant 26 : index
    %c0_98 = arith.constant 0 : index
    %c0_99 = arith.constant 0 : index
    %168 = vector.load %arg8[%c26, %c0_98, %c0_99] : memref<27x8x8xf32, #tpu.memory_space<vmem>>, vector<1x8x8xf32>
    %169 = vector.shape_cast %168 : vector<1x8x8xf32> to vector<8x8xf32>
    %cst_100 = arith.constant dense<0.000000e+00> : vector<8x512xf32>
    %170 = tpu.matmul %169, %167, %cst_100 {dimension_numbers = #tpu.dot_dimension_numbers<[1], [0], [0], [1], [0, 0, 1, 1], [], []>} : vector<8x8xf32>, vector<8x512xf32>, vector<8x512xf32> -> vector<8x512xf32>
    %171 = arith.addf %166, %170 : vector<8x512xf32>
    %c0_101 = arith.constant 0 : index
    %c0_102 = arith.constant 0 : index
    %172 = vector.load %arg5[%c0_101, %c0_102] : memref<1x512xf32, #tpu.memory_space<vmem>>, vector<1x512xf32>
    %173 = vector.broadcast %172 : vector<1x512xf32> to vector<8x512xf32>
    %174 = arith.mulf %171, %173 : vector<8x512xf32>
    %c0_103 = arith.constant 0 : index
    %c0_104 = arith.constant 0 : index
    %175 = vector.load %arg10[%c0_103, %c0_104] : memref<8x2xf32, #tpu.memory_space<vmem>>, vector<8x1xf32>
    %cst_105 = arith.constant dense<0.000000e+00> : vector<8xf32>
    %176 = vector.multi_reduction <add>, %174, %cst_105 [1] : vector<8x512xf32> to vector<8xf32>
    %177 = vector.shape_cast %176 : vector<8xf32> to vector<8x1xf32>
    %178 = arith.addf %175, %177 : vector<8x1xf32>
    %c0_106 = arith.constant 0 : index
    %c0_107 = arith.constant 0 : index
    %179 = vector.load %arg10[%c0_106, %c0_107] : memref<8x2xf32, #tpu.memory_space<vmem>>, vector<8x1xf32>
    tpu.vector_store %arg10[%c0_106, %c0_107], %178 {strides = array<i32>} : memref<8x2xf32, #tpu.memory_space<vmem>>, vector<8x1xf32>,
    %c0_108 = arith.constant 0 : index
    %c1_109 = arith.constant 1 : index
    %180 = vector.load %arg10[%c0_108, %c1_109] : memref<8x2xf32, #tpu.memory_space<vmem>>, vector<8x1xf32>
    %181 = arith.mulf %174, %171 : vector<8x512xf32>
    %cst_110 = arith.constant dense<0.000000e+00> : vector<8xf32>
    %182 = vector.multi_reduction <add>, %181, %cst_110 [1] : vector<8x512xf32> to vector<8xf32>
    %183 = vector.shape_cast %182 : vector<8xf32> to vector<8x1xf32>
    %184 = arith.addf %180, %183 : vector<8x1xf32>
    %c0_111 = arith.constant 0 : index
    %c1_112 = arith.constant 1 : index
    %185 = vector.load %arg10[%c0_111, %c1_112] : memref<8x2xf32, #tpu.memory_space<vmem>>, vector<8x1xf32>
    tpu.vector_store %arg10[%c0_111, %c1_112], %184 {strides = array<i32>} : memref<8x2xf32, #tpu.memory_space<vmem>>, vector<8x1xf32>,
    %c0_113 = arith.constant 0 : index
    %c0_114 = arith.constant 0 : index
    %186 = vector.load %arg9[%c0_113, %c0_114] : memref<8x512xf32, #tpu.memory_space<vmem>>, vector<8x512xf32>
    tpu.vector_store %arg9[%c0_113, %c0_114], %171 {strides = array<i32>} : memref<8x512xf32, #tpu.memory_space<vmem>>, vector<8x512xf32>,
    return
  }
  func.func @transform_0(%arg0: i32) -> (i32, i32) {
    %c1_i32 = arith.constant 1 : i32
    %0 = arith.subi %arg0, %c1_i32 : i32
    %c0_i32 = arith.constant 0 : i32
    %1 = arith.maxsi %0, %c0_i32 : i32
    %c0_i32_0 = arith.constant 0 : i32
    %c0_i32_1 = arith.constant 0 : i32
    return %c0_i32_0, %1 : i32, i32
  }
  func.func @transform_1(%arg0: i32) -> (i32, i32) {
    %c0_i32 = arith.constant 0 : i32
    %c0_i32_0 = arith.constant 0 : i32
    return %c0_i32, %arg0 : i32, i32
  }
  func.func @transform_2(%arg0: i32) -> (i32, i32) {
    %c1_i32 = arith.constant 1 : i32
    %0 = arith.addi %arg0, %c1_i32 : i32
    %c3_i32 = arith.constant 3 : i32
    %1 = arith.minsi %0, %c3_i32 : i32
    %c0_i32 = arith.constant 0 : i32
    %c0_i32_0 = arith.constant 0 : i32
    return %c0_i32, %1 : i32, i32
  }
  func.func @transform_3(%arg0: i32) -> (i32, i32) {
    %c1_i32 = arith.constant 1 : i32
    %0 = arith.subi %arg0, %c1_i32 : i32
    %c0_i32 = arith.constant 0 : i32
    %1 = arith.maxsi %0, %c0_i32 : i32
    %c0_i32_0 = arith.constant 0 : i32
    %c0_i32_1 = arith.constant 0 : i32
    return %c0_i32_0, %1 : i32, i32
  }
  func.func @transform_4(%arg0: i32) -> (i32, i32) {
    %c0_i32 = arith.constant 0 : i32
    %c0_i32_0 = arith.constant 0 : i32
    return %c0_i32, %arg0 : i32, i32
  }
  func.func @transform_5(%arg0: i32) -> (i32, i32) {
    %c1_i32 = arith.constant 1 : i32
    %0 = arith.addi %arg0, %c1_i32 : i32
    %c3_i32 = arith.constant 3 : i32
    %1 = arith.minsi %0, %c3_i32 : i32
    %c0_i32 = arith.constant 0 : i32
    %c0_i32_0 = arith.constant 0 : i32
    return %c0_i32, %1 : i32, i32
  }
  func.func @transform_6(%arg0: i32) -> (i32, i32) {
    %c0_i32 = arith.constant 0 : i32
    %c0_i32_0 = arith.constant 0 : i32
    %c0_i32_1 = arith.constant 0 : i32
    return %c0_i32, %c0_i32_0 : i32, i32
  }
  func.func @transform_7(%arg0: i32) -> (i32, i32, i32) {
    %c0_i32 = arith.constant 0 : i32
    %c0_i32_0 = arith.constant 0 : i32
    %c0_i32_1 = arith.constant 0 : i32
    %c0_i32_2 = arith.constant 0 : i32
    return %c0_i32, %c0_i32_0, %c0_i32_1 : i32, i32, i32
  }
  func.func @transform_8(%arg0: i32) -> (i32, i32) {
    %c0_i32 = arith.constant 0 : i32
    %c0_i32_0 = arith.constant 0 : i32
    return %c0_i32, %arg0 : i32, i32
  }
  func.func @transform_9(%arg0: i32) -> (i32, i32) {
    %c0_i32 = arith.constant 0 : i32
    %c0_i32_0 = arith.constant 0 : i32
    %c0_i32_1 = arith.constant 0 : i32
    return %c0_i32, %c0_i32_0 : i32, i32
  }
}

</mosaic_0001>

<llo_original>
// kernel: basic3d_block.5
$region0: #{basic3d_block.5}
  #allocation0 [shape = 'u32[]', space=smem, size = 0x4, offset = 0x4, fixed_abs, tag = 'smem constant byte address 0x4 - core index']
  #allocation1 [shape = 'u32[144,128]{1,0:T(1,128)}', space=vmem, size = 0x12000, scoped, tag = 'internal scratch']
  %s0 = inlined_call_operand.vmem [shape: f32[8,2048], index: 0, kind: input, shape index: {}]
  %s1 = inlined_call_operand.vmem [shape: f32[1,2048], index: 1, kind: input, shape index: {}]
  %s2 = inlined_call_operand.vmem [shape: f32[8,2], index: 2, kind: input, shape index: {}]
  %s3 = inlined_call_operand.vmem [shape: f32[8,2048], index: 3, kind: output, shape index: {}]
  %s4 = sld [smem:[#allocation0]]
  $region45: #{basic3d_block.5} parent=0
    _
  %s6 = ssub.s32 1, %s4
  %s7 = scalar_select 0, %s6, %s4
  loop: start=0, step=1, limit=6
  $region2: #{basic3d_block.5} parent=0 // loop_pre_header
    _
  $region3: #{basic3d_block.5} parent=0 // loop_header
    %s9 = sphi 0, %s13
    %p10 = scmp.ge.s32.totalorder %s9, 6
    %s19 = sphi 0, %s21
    %s22 = sphi 0, %s19
    %s23 = sphi 0, %s22
    %s39 = sphi 0, %s23
    %s45 = sphi 0, %s47
    %s48 = sphi 0, %s45
    %s49 = sphi 0, %s48
    %s65 = sphi 0, %s49
    %s69 = sphi 0, %s69
    %s71 = sphi 0, %s69
    %s72 = sphi 0, %s71
    %s86 = sphi 0, %s72
    %s92 = sphi 0, %s94
    %s95 = sphi 0, %s92
    %s96 = sphi 0, %s95
    %s112 = sphi 0, %s96
  $region4: #{basic3d_block.5} parent=0 // loop_header_branch
    %12 = sbr.rel (%p10) target = $region8
  $region5: #{basic3d_block.5} parent=0 // loop_body
    %s14 = ssub.s32 %s9, 1
    %s15 = ssub.s32 %s9, 2
    %s16 = sadd.s32 %s9, 1
    %s17 = ssub.s32 %s9, %s16
    %p18 = scmp.eq.s32.totalorder %s17, 0
    %s20 = sadd.s32 %s19, 1
    %s21 = scalar_select %p18, %s19, %s20
    %p24 = pneg %p18
    %p25 = scmp.eq.s32.totalorder %s9, 3
    %p26 = por %p24, %p25
    %p27 = scmp.ne.s32.totalorder %s19, %s22
    %p28 = scmp.eq.s32.totalorder %s9, 0
    %p29 = por %p27, %p28
    %p30 = scmp.ne.s32.totalorder %s19, %s22
    %p31 = scmp.eq.s32.totalorder %s14, 3
    %p32 = por %p30, %p31
    %p33 = scmp.ne.s32.totalorder %s22, %s23
    %p34 = scmp.eq.s32.totalorder %s14, 0
    %p35 = por %p33, %p34
    %p36 = scmp.ne.s32.totalorder %s22, %s23
    %p37 = scmp.eq.s32.totalorder %s15, 3
    %p38 = por %p36, %p37
    %p40 = scmp.ne.s32.totalorder %s23, %s39
    %p41 = scmp.eq.s32.totalorder %s15, 0
    %p42 = por %p40, %p41
    %s43 = ssub.s32 %s9, %s16
    %p44 = scmp.eq.s32.totalorder %s43, 0
    %s46 = sadd.s32 %s45, 1
    %s47 = scalar_select %p44, %s45, %s46
    %p50 = pneg %p44
    %p51 = scmp.eq.s32.totalorder %s9, 3
    %p52 = por %p50, %p51
    %p53 = scmp.ne.s32.totalorder %s45, %s48
    %p54 = scmp.eq.s32.totalorder %s9, 0
    %p55 = por %p53, %p54
    %p56 = scmp.ne.s32.totalorder %s45, %s48
    %p57 = scmp.eq.s32.totalorder %s14, 3
    %p58 = por %p56, %p57
    %p59 = scmp.ne.s32.totalorder %s48, %s49
    %p60 = scmp.eq.s32.totalorder %s14, 0
    %p61 = por %p59, %p60
    %p62 = scmp.ne.s32.totalorder %s48, %s49
    %p63 = scmp.eq.s32.totalorder %s15, 3
    %p64 = por %p62, %p63
    %p66 = scmp.ne.s32.totalorder %s49, %s65
    %p67 = scmp.eq.s32.totalorder %s15, 0
    %p68 = por %p66, %p67
    %s70 = sadd.s32 %s69, 1
    %p73 = scmp.eq.s32.totalorder %s9, 3
    %p74 = scmp.ne.s32.totalorder %s69, %s71
    %p75 = scmp.eq.s32.totalorder %s9, 0
    %p76 = por %p74, %p75
    %p77 = scmp.ne.s32.totalorder %s69, %s71
    %p78 = scmp.eq.s32.totalorder %s14, 3
    %p79 = por %p77, %p78
    %p80 = scmp.ne.s32.totalorder %s71, %s72
    %p81 = scmp.eq.s32.totalorder %s14, 0
    %p82 = por %p80, %p81
    %p83 = scmp.ne.s32.totalorder %s71, %s72
    %p84 = scmp.eq.s32.totalorder %s15, 3
    %p85 = por %p83, %p84
    %p87 = scmp.ne.s32.totalorder %s72, %s86
    %p88 = scmp.eq.s32.totalorder %s15, 0
    %p89 = por %p87, %p88
    %s90 = ssub.s32 %s9, %s16
    %p91 = scmp.eq.s32.totalorder %s90, 0
    %s93 = sadd.s32 %s92, 1
    %s94 = scalar_select %p91, %s92, %s93
    %p97 = pneg %p91
    %p98 = scmp.eq.s32.totalorder %s9, 3
    %p99 = por %p97, %p98
    %p100 = scmp.ne.s32.totalorder %s92, %s95
    %p101 = scmp.eq.s32.totalorder %s9, 0
    %p102 = por %p100, %p101
    %p103 = scmp.ne.s32.totalorder %s92, %s95
    %p104 = scmp.eq.s32.totalorder %s14, 3
    %p105 = por %p103, %p104
    %p106 = scmp.ne.s32.totalorder %s95, %s96
    %p107 = scmp.eq.s32.totalorder %s14, 0
    %p108 = por %p106, %p107
    %p109 = scmp.ne.s32.totalorder %s95, %s96
    %p110 = scmp.eq.s32.totalorder %s15, 3
    %p111 = por %p109, %p110
    %p113 = scmp.ne.s32.totalorder %s96, %s112
    %p114 = scmp.eq.s32.totalorder %s15, 0
    %p115 = por %p113, %p114
    %p116 = scmp.le.s32.totalorder 1, %s9
    %p117 = scmp.lt.s32.totalorder %s9, 5
    %p118 = pnand %p116, %p117
    %p119 = pneg %p118
    // Predicated region
    $region9: #{basic3d_block.5} parent=5 // pred_check
      _
    $region10: #{basic3d_block.5} parent=5 // pred_check_branch
      %121 = sbr.rel (%p118) target = $region12
    $region11: #{basic3d_block.5} parent=5 // pred_region
      %s122 = ssub.s32 %s9, 1
      // Predicated region
      $region13: #{basic3d_block.5} parent=11 // pred_check
        %p123 = pneg %p82
      $region14: #{basic3d_block.5} parent=11 // pred_check_branch
        %125 = sbr.rel (%p123) target = $region16
      $region15: #{basic3d_block.5} parent=11 // pred_region
        _
      $region16: #{basic3d_block.5} parent=11 // pred_fallthru
        _
    $region12: #{basic3d_block.5} parent=5 // pred_fallthru
      _
    %p126 = scmp.lt.s32.totalorder %s9, 4
    // Predicated region
    $region17: #{basic3d_block.5} parent=5 // pred_check
      %p127 = pneg %p126
    $region18: #{basic3d_block.5} parent=5 // pred_check_branch
      %129 = sbr.rel (%p127) target = $region20
    $region19: #{basic3d_block.5} parent=5 // pred_region
      // Predicated region
      $region21: #{basic3d_block.5} parent=19 // pred_check
        %p130 = pneg %p29
      $region22: #{basic3d_block.5} parent=19 // pred_check_branch
        %132 = sbr.rel (%p130) target = $region24
      $region23: #{basic3d_block.5} parent=19 // pred_region
        %s133 = smul.u32 4, %s9
        %p134 = scmp.lt.s32.totalorder %s133, 15
        %s135 = scalar_select %p134, %s133, 15
        %s136 = smul.addr %s135, 8
        %s137 = scalar_lea.vmem %s0, %s136
        %s138 = smul.u32 4, %s9
      $region24: #{basic3d_block.5} parent=19 // pred_fallthru
        _
      // Predicated region
      $region25: #{basic3d_block.5} parent=19 // pred_check
        %p139 = pneg %p55
      $region26: #{basic3d_block.5} parent=19 // pred_check_branch
        %141 = sbr.rel (%p139) target = $region28
      $region27: #{basic3d_block.5} parent=19 // pred_region
        %s142 = smul.u32 4, %s9
        %p143 = scmp.lt.s32.totalorder %s142, 15
        %s144 = scalar_select %p143, %s142, 15
        %s145 = scalar_lea.vmem %s1, %s144
        %s146 = smul.u32 4, %s9
      $region28: #{basic3d_block.5} parent=19 // pred_fallthru
        _
    $region20: #{basic3d_block.5} parent=5 // pred_fallthru
      _
    %p147 = scmp.le.s32.totalorder 1, %s9
    %p148 = scmp.lt.s32.totalorder %s9, 5
    %p149 = pnand %p147, %p148
    %p150 = pneg %p149
    // Predicated region
    $region29: #{basic3d_block.5} parent=5 // pred_check
      _
    $region30: #{basic3d_block.5} parent=5 // pred_check_branch
      %152 = sbr.rel (%p149) target = $region32
    $region31: #{basic3d_block.5} parent=5 // pred_region
      %s153 = ssub.s32 %s9, 1
      %s154 = smul.u32 4, %s14
      %p155 = scmp.lt.s32.totalorder %s154, 15
      %s156 = scalar_select %p155, %s154, 15
      %s157 = smul.addr %s156, 8
      %s158 = scalar_lea.vmem %s0, %s157
      %p159 = pneg %p35
      %p160 = pneg %p32
      %s161 = smul.u32 4, %s14
      %p162 = scmp.lt.s32.totalorder %s161, 15
      %s163 = scalar_select %p162, %s161, 15
      %s164 = scalar_lea.vmem %s1, %s163
      %p165 = pneg %p61
      %p166 = pneg %p58
      %p167 = pneg %p82
      %p168 = pneg %p79
      %p169 = pneg %p108
      %p170 = pneg %p105
      %s171 = smul.u32 4, %s14
      %p172 = scmp.lt.s32.totalorder %s171, 15
      %s173 = scalar_select %p172, %s171, 15
      %s174 = smul.addr %s173, 8
      %s175 = scalar_lea.vmem %s3, %s174
      %s176 = smul.u32 4, %s14
      %p177 = scmp.lt.s32.totalorder %s176, 15
      %s178 = scalar_select %p177, %s176, 15
      %s179 = smul.addr %s178, 8
      %s180 = scalar_lea.vmem %s0, %s179
      %s181 = smul.u32 4, %s14
      %s182 = smul.u32 4, %s14
      %p183 = scmp.lt.s32.totalorder %s182, 15
      %s184 = scalar_select %p183, %s182, 15
      %s185 = scalar_lea.vmem %s1, %s184
      %s186 = smul.u32 4, %s14
      %s187 = smul.u32 4, %s14
      %p188 = scmp.lt.s32.totalorder %s187, 15
      %s189 = scalar_select %p188, %s187, 15
      %s190 = smul.addr %s189, 8
      %s191 = scalar_lea.vmem %s3, %s190
      %s192 = smul.u32 4, %s14
      %v193 = vld [vmem:[%s180] sm:$0xff]
      %v194 = vld [vmem:[%s180 + $0x8] sm:$0xff]
      %v195 = vld [vmem:[%s180 + $0x10] sm:$0xff]
      %v196 = vld [vmem:[%s180 + $0x18] sm:$0xff]
      %v197 = vld [vmem:[%s2] sm:$0xff]
      %199 = vset.pattern.permute.xlu0 0
      %200 = vperm.xlu0 %199, %v197
      %v201 = vpop.permute.xlu0 %200
      %v203 = vmul.f32 %v193, %v201
      %v204 = vmul.f32 %v194, %v201
      %v205 = vmul.f32 %v195, %v201
      %v206 = vmul.f32 %v196, %v201
      %207 = vset.pattern.permute.xlu0 1
      %208 = vperm.xlu0 %207, %v197
      %v209 = vpop.permute.xlu0 %208
      %v211 = vadd.f32 %v203, %v209
      %v212 = vadd.f32 %v204, %v209
      %v213 = vadd.f32 %v205, %v209
      %v214 = vadd.f32 %v206, %v209
      %v215 = vmax.f32 %v211, 0.0
      %v216 = vmax.f32 %v212, 0.0
      %v217 = vmax.f32 %v213, 0.0
      %v218 = vmax.f32 %v214, 0.0
      %v219 = vld [vmem:[%s185] sm:$0xf]
      %v221 = vlaneseq
      %v222 = vshrl.u32 %v221, 7
      %v223 = vsub.s32 0, %v222
      %v224 = vrot.slane %v219, %v223
      %v225 = vlaneseq
      %v226 = vshrl.u32 %v225, 7
      %v227 = vsub.s32 1, %v226
      %v228 = vrot.slane %v219, %v227
      %v229 = vlaneseq
      %v230 = vshrl.u32 %v229, 7
      %v231 = vsub.s32 2, %v230
      %v232 = vrot.slane %v219, %v231
      %v233 = vlaneseq
      %v234 = vshrl.u32 %v233, 7
      %v235 = vsub.s32 3, %v234
      %v236 = vrot.slane %v219, %v235
      %v241 = vmul.f32 %v215, %v224
      %v242 = vmul.f32 %v216, %v228
      %v243 = vmul.f32 %v217, %v232
      %v244 = vmul.f32 %v218, %v236
      %245 = vst [vmem:[%s191] sm:$0xff] %v241
      %246 = vst [vmem:[%s191 + $0x8] sm:$0xff] %v242
      %247 = vst [vmem:[%s191 + $0x10] sm:$0xff] %v243
      %248 = vst [vmem:[%s191 + $0x18] sm:$0xff] %v244
      %s249 = smul.u32 4, %s14
      %p250 = scmp.lt.s32.totalorder %s249, 15
      %s251 = scalar_select %p250, %s249, 15
      %s252 = smul.addr %s251, 8
      %s253 = scalar_lea.vmem %s3, %s252
      // Predicated region
      $region33: #{basic3d_block.5} parent=31 // pred_check
        %p254 = pneg %p105
      $region34: #{basic3d_block.5} parent=31 // pred_check_branch
        %256 = sbr.rel (%p254) target = $region36
      $region35: #{basic3d_block.5} parent=31 // pred_region
        %s257 = smul.u32 4, %s14
      $region36: #{basic3d_block.5} parent=31 // pred_fallthru
        _
    $region32: #{basic3d_block.5} parent=5 // pred_fallthru
      _
    %p258 = scmp.le.s32.totalorder 2, %s9
    // Predicated region
    $region37: #{basic3d_block.5} parent=5 // pred_check
      %p259 = pneg %p258
    $region38: #{basic3d_block.5} parent=5 // pred_check_branch
      %261 = sbr.rel (%p259) target = $region40
    $region39: #{basic3d_block.5} parent=5 // pred_region
      %s262 = ssub.s32 %s9, 2
      // Predicated region
      $region41: #{basic3d_block.5} parent=39 // pred_check
        %p263 = pneg %p111
      $region42: #{basic3d_block.5} parent=39 // pred_check_branch
        %265 = sbr.rel (%p263) target = $region44
      $region43: #{basic3d_block.5} parent=39 // pred_region
        %s266 = smul.u32 4, %s15
        %p267 = scmp.lt.s32.totalorder %s266, 15
        %s268 = scalar_select %p267, %s266, 15
        %s269 = smul.addr %s268, 8
        %s270 = scalar_lea.vmem %s3, %s269
      $region44: #{basic3d_block.5} parent=39 // pred_fallthru
        _
    $region40: #{basic3d_block.5} parent=5 // pred_fallthru
      _
  $region6: #{basic3d_block.5} parent=0 // loop_footer
    %s13 = sadd.s32 1, %s9
  $region7: #{basic3d_block.5} parent=0 // loop_footer_branch
    %8 = sbr.rel target = $region3
  $region8: #{basic3d_block.5} parent=0 // loop_exit
    _

// kernel: basic3d_block.3
$region0: #{basic3d_block.3}
  #allocation0 [shape = 'u32[]', space=smem, size = 0x4, offset = 0x4, fixed_abs, tag = 'smem constant byte address 0x4 - core index']
  #allocation1 [shape = 'u32[144,128]{1,0:T(1,128)}', space=vmem, size = 0x12000, scoped, tag = 'internal scratch']
  %s0 = inlined_call_operand.vmem [shape: f32[4,2048], index: 0, kind: input, shape index: {}, may-alias: {0,1,2}]
  %s1 = inlined_call_operand.vmem [shape: f32[4,2048], index: 1, kind: input, shape index: {}, may-alias: {0,1,2}]
  %s2 = inlined_call_operand.vmem [shape: f32[4,2048], index: 2, kind: input, shape index: {}, may-alias: {0,1,2}]
  %s3 = inlined_call_operand.vmem [shape: f32[27,8,4], index: 3, kind: input, shape index: {}]
  %s4 = inlined_call_operand.vmem [shape: f32[1,2048], index: 4, kind: input, shape index: {}]
  %s5 = inlined_call_operand.vmem [shape: f32[8,2048], index: 5, kind: output, shape index: {0}]
  %s6 = inlined_call_operand.vmem [shape: f32[8,2], index: 6, kind: output, shape index: {1}]
  %7 = xla_tuple %s5, %s6
  %s8 = sld [smem:[#allocation0]]
  $region65: #{basic3d_block.3} parent=0
    _
  %s10 = ssub.s32 1, %s8
  %s11 = scalar_select 0, %s10, %s8
  loop: start=0, step=1, limit=6
  $region2: #{basic3d_block.3} parent=0 // loop_pre_header
    _
  $region3: #{basic3d_block.3} parent=0 // loop_header
    %s13 = sphi 0, %s17
    %p14 = scmp.ge.s32.totalorder %s13, 6
    %s29 = sphi 0, %s31
    %s32 = sphi 0, %s29
    %s33 = sphi 0, %s32
    %s49 = sphi 0, %s33
    %s55 = sphi 0, %s57
    %s58 = sphi 0, %s55
    %s59 = sphi 0, %s58
    %s75 = sphi 0, %s59
    %s87 = sphi 0, %s89
    %s90 = sphi 0, %s87
    %s91 = sphi 0, %s90
    %s107 = sphi 0, %s91
    %s111 = sphi 0, %s111
    %s113 = sphi 0, %s111
    %s114 = sphi 0, %s113
    %s128 = sphi 0, %s114
    %s134 = sphi 0, %s136
    %s137 = sphi 0, %s134
    %s138 = sphi 0, %s137
    %s154 = sphi 0, %s138
    %s160 = sphi 0, %s162
    %s163 = sphi 0, %s160
    %s164 = sphi 0, %s163
    %s180 = sphi 0, %s164
    %s184 = sphi 0, %s184
    %s186 = sphi 0, %s184
    %s187 = sphi 0, %s186
    %s201 = sphi 0, %s187
  $region4: #{basic3d_block.3} parent=0 // loop_header_branch
    %16 = sbr.rel (%p14) target = $region8
  $region5: #{basic3d_block.3} parent=0 // loop_body
    %s18 = ssub.s32 %s13, 1
    %s19 = ssub.s32 %s13, 2
    %s20 = sadd.s32 %s13, 1
    %s21 = ssub.s32 %s13, 1
    %p22 = scmp.gt.s32.totalorder %s21, 0
    %s23 = scalar_select %p22, %s21, 0
    %s24 = ssub.s32 %s20, 1
    %p25 = scmp.gt.s32.totalorder %s24, 0
    %s26 = scalar_select %p25, %s24, 0
    %s27 = ssub.s32 %s23, %s26
    %p28 = scmp.eq.s32.totalorder %s27, 0
    %s30 = sadd.s32 %s29, 1
    %s31 = scalar_select %p28, %s29, %s30
    %p34 = pneg %p28
    %p35 = scmp.eq.s32.totalorder %s13, 3
    %p36 = por %p34, %p35
    %p37 = scmp.ne.s32.totalorder %s29, %s32
    %p38 = scmp.eq.s32.totalorder %s13, 0
    %p39 = por %p37, %p38
    %p40 = scmp.ne.s32.totalorder %s29, %s32
    %p41 = scmp.eq.s32.totalorder %s18, 3
    %p42 = por %p40, %p41
    %p43 = scmp.ne.s32.totalorder %s32, %s33
    %p44 = scmp.eq.s32.totalorder %s18, 0
    %p45 = por %p43, %p44
    %p46 = scmp.ne.s32.totalorder %s32, %s33
    %p47 = scmp.eq.s32.totalorder %s19, 3
    %p48 = por %p46, %p47
    %p50 = scmp.ne.s32.totalorder %s33, %s49
    %p51 = scmp.eq.s32.totalorder %s19, 0
    %p52 = por %p50, %p51
    %s53 = ssub.s32 %s13, %s20
    %p54 = scmp.eq.s32.totalorder %s53, 0
    %s56 = sadd.s32 %s55, 1
    %s57 = scalar_select %p54, %s55, %s56
    %p60 = pneg %p54
    %p61 = scmp.eq.s32.totalorder %s13, 3
    %p62 = por %p60, %p61
    %p63 = scmp.ne.s32.totalorder %s55, %s58
    %p64 = scmp.eq.s32.totalorder %s13, 0
    %p65 = por %p63, %p64
    %p66 = scmp.ne.s32.totalorder %s55, %s58
    %p67 = scmp.eq.s32.totalorder %s18, 3
    %p68 = por %p66, %p67
    %p69 = scmp.ne.s32.totalorder %s58, %s59
    %p70 = scmp.eq.s32.totalorder %s18, 0
    %p71 = por %p69, %p70
    %p72 = scmp.ne.s32.totalorder %s58, %s59
    %p73 = scmp.eq.s32.totalorder %s19, 3
    %p74 = por %p72, %p73
    %p76 = scmp.ne.s32.totalorder %s59, %s75
    %p77 = scmp.eq.s32.totalorder %s19, 0
    %p78 = por %p76, %p77
    %s79 = sadd.s32 %s13, 1
    %p80 = scmp.lt.s32.totalorder %s79, 3
    %s81 = scalar_select %p80, %s79, 3
    %s82 = sadd.s32 %s20, 1
    %p83 = scmp.lt.s32.totalorder %s82, 3
    %s84 = scalar_select %p83, %s82, 3
    %s85 = ssub.s32 %s81, %s84
    %p86 = scmp.eq.s32.totalorder %s85, 0
    %s88 = sadd.s32 %s87, 1
    %s89 = scalar_select %p86, %s87, %s88
    %p92 = pneg %p86
    %p93 = scmp.eq.s32.totalorder %s13, 3
    %p94 = por %p92, %p93
    %p95 = scmp.ne.s32.totalorder %s87, %s90
    %p96 = scmp.eq.s32.totalorder %s13, 0
    %p97 = por %p95, %p96
    %p98 = scmp.ne.s32.totalorder %s87, %s90
    %p99 = scmp.eq.s32.totalorder %s18, 3
    %p100 = por %p98, %p99
    %p101 = scmp.ne.s32.totalorder %s90, %s91
    %p102 = scmp.eq.s32.totalorder %s18, 0
    %p103 = por %p101, %p102
    %p104 = scmp.ne.s32.totalorder %s90, %s91
    %p105 = scmp.eq.s32.totalorder %s19, 3
    %p106 = por %p104, %p105
    %p108 = scmp.ne.s32.totalorder %s91, %s107
    %p109 = scmp.eq.s32.totalorder %s19, 0
    %p110 = por %p108, %p109
    %s112 = sadd.s32 %s111, 1
    %p115 = scmp.eq.s32.totalorder %s13, 3
    %p116 = scmp.ne.s32.totalorder %s111, %s113
    %p117 = scmp.eq.s32.totalorder %s13, 0
    %p118 = por %p116, %p117
    %p119 = scmp.ne.s32.totalorder %s111, %s113
    %p120 = scmp.eq.s32.totalorder %s18, 3
    %p121 = por %p119, %p120
    %p122 = scmp.ne.s32.totalorder %s113, %s114
    %p123 = scmp.eq.s32.totalorder %s18, 0
    %p124 = por %p122, %p123
    %p125 = scmp.ne.s32.totalorder %s113, %s114
    %p126 = scmp.eq.s32.totalorder %s19, 3
    %p127 = por %p125, %p126
    %p129 = scmp.ne.s32.totalorder %s114, %s128
    %p130 = scmp.eq.s32.totalorder %s19, 0
    %p131 = por %p129, %p130
    %s132 = ssub.s32 %s13, %s20
    %p133 = scmp.eq.s32.totalorder %s132, 0
    %s135 = sadd.s32 %s134, 1
    %s136 = scalar_select %p133, %s134, %s135
    %p139 = pneg %p133
    %p140 = scmp.eq.s32.totalorder %s13, 3
    %p141 = por %p139, %p140
    %p142 = scmp.ne.s32.totalorder %s134, %s137
    %p143 = scmp.eq.s32.totalorder %s13, 0
    %p144 = por %p142, %p143
    %p145 = scmp.ne.s32.totalorder %s134, %s137
    %p146 = scmp.eq.s32.totalorder %s18, 3
    %p147 = por %p145, %p146
    %p148 = scmp.ne.s32.totalorder %s137, %s138
    %p149 = scmp.eq.s32.totalorder %s18, 0
    %p150 = por %p148, %p149
    %p151 = scmp.ne.s32.totalorder %s137, %s138
    %p152 = scmp.eq.s32.totalorder %s19, 3
    %p153 = por %p151, %p152
    %p155 = scmp.ne.s32.totalorder %s138, %s154
    %p156 = scmp.eq.s32.totalorder %s19, 0
    %p157 = por %p155, %p156
    %s158 = ssub.s32 %s13, %s20
    %p159 = scmp.eq.s32.totalorder %s158, 0
    %s161 = sadd.s32 %s160, 1
    %s162 = scalar_select %p159, %s160, %s161
    %p165 = pneg %p159
    %p166 = scmp.eq.s32.totalorder %s13, 3
    %p167 = por %p165, %p166
    %p168 = scmp.ne.s32.totalorder %s160, %s163
    %p169 = scmp.eq.s32.totalorder %s13, 0
    %p170 = por %p168, %p169
    %p171 = scmp.ne.s32.totalorder %s160, %s163
    %p172 = scmp.eq.s32.totalorder %s18, 3
    %p173 = por %p171, %p172
    %p174 = scmp.ne.s32.totalorder %s163, %s164
    %p175 = scmp.eq.s32.totalorder %s18, 0
    %p176 = por %p174, %p175
    %p177 = scmp.ne.s32.totalorder %s163, %s164
    %p178 = scmp.eq.s32.totalorder %s19, 3
    %p179 = por %p177, %p178
    %p181 = scmp.ne.s32.totalorder %s164, %s180
    %p182 = scmp.eq.s32.totalorder %s19, 0
    %p183 = por %p181, %p182
    %s185 = sadd.s32 %s184, 1
    %p188 = scmp.eq.s32.totalorder %s13, 3
    %p189 = scmp.ne.s32.totalorder %s184, %s186
    %p190 = scmp.eq.s32.totalorder %s13, 0
    %p191 = por %p189, %p190
    %p192 = scmp.ne.s32.totalorder %s184, %s186
    %p193 = scmp.eq.s32.totalorder %s18, 3
    %p194 = por %p192, %p193
    %p195 = scmp.ne.s32.totalorder %s186, %s187
    %p196 = scmp.eq.s32.totalorder %s18, 0
    %p197 = por %p195, %p196
    %p198 = scmp.ne.s32.totalorder %s186, %s187
    %p199 = scmp.eq.s32.totalorder %s19, 3
    %p200 = por %p198, %p199
    %p202 = scmp.ne.s32.totalorder %s187, %s201
    %p203 = scmp.eq.s32.totalorder %s19, 0
    %p204 = por %p202, %p203
    %p205 = scmp.le.s32.totalorder 1, %s13
    %p206 = scmp.lt.s32.totalorder %s13, 5
    %p207 = pnand %p205, %p206
    %p208 = pneg %p207
    // Predicated region
    $region9: #{basic3d_block.3} parent=5 // pred_check
      _
    $region10: #{basic3d_block.3} parent=5 // pred_check_branch
      %210 = sbr.rel (%p207) target = $region12
    $region11: #{basic3d_block.3} parent=5 // pred_region
      %s211 = ssub.s32 %s13, 1
      // Predicated region
      $region13: #{basic3d_block.3} parent=11 // pred_check
        %p212 = pneg %p124
      $region14: #{basic3d_block.3} parent=11 // pred_check_branch
        %214 = sbr.rel (%p212) target = $region16
      $region15: #{basic3d_block.3} parent=11 // pred_region
        _
      $region16: #{basic3d_block.3} parent=11 // pred_fallthru
        _
    $region12: #{basic3d_block.3} parent=5 // pred_fallthru
      _
    %p215 = scmp.lt.s32.totalorder %s13, 4
    // Predicated region
    $region17: #{basic3d_block.3} parent=5 // pred_check
      %p216 = pneg %p215
    $region18: #{basic3d_block.3} parent=5 // pred_check_branch
      %218 = sbr.rel (%p216) target = $region20
    $region19: #{basic3d_block.3} parent=5 // pred_region
      // Predicated region
      $region21: #{basic3d_block.3} parent=19 // pred_check
        %p219 = pneg %p39
      $region22: #{basic3d_block.3} parent=19 // pred_check_branch
        %221 = sbr.rel (%p219) target = $region24
      $region23: #{basic3d_block.3} parent=19 // pred_region
        %s222 = ssub.s32 %s13, 1
        %p223 = scmp.gt.s32.totalorder %s222, 0
        %s224 = scalar_select %p223, %s222, 0
        %s225 = smul.u32 4, %s224
        %p226 = scmp.lt.s32.totalorder %s225, 15
        %s227 = scalar_select %p226, %s225, 15
        %s228 = smul.addr %s227, 4
        %s229 = scalar_lea.vmem %s0, %s228
        %s230 = ssub.s32 %s13, 1
        %p231 = scmp.gt.s32.totalorder %s230, 0
        %s232 = scalar_select %p231, %s230, 0
        %s233 = smul.u32 4, %s232
      $region24: #{basic3d_block.3} parent=19 // pred_fallthru
        _
      // Predicated region
      $region25: #{basic3d_block.3} parent=19 // pred_check
        %p234 = pneg %p65
      $region26: #{basic3d_block.3} parent=19 // pred_check_branch
        %236 = sbr.rel (%p234) target = $region28
      $region27: #{basic3d_block.3} parent=19 // pred_region
        %s237 = smul.u32 4, %s13
        %p238 = scmp.lt.s32.totalorder %s237, 15
        %s239 = scalar_select %p238, %s237, 15
        %s240 = smul.addr %s239, 4
        %s241 = scalar_lea.vmem %s1, %s240
        %s242 = smul.u32 4, %s13
      $region28: #{basic3d_block.3} parent=19 // pred_fallthru
        _
      // Predicated region
      $region29: #{basic3d_block.3} parent=19 // pred_check
        %p243 = pneg %p97
      $region30: #{basic3d_block.3} parent=19 // pred_check_branch
        %245 = sbr.rel (%p243) target = $region32
      $region31: #{basic3d_block.3} parent=19 // pred_region
        %s246 = sadd.s32 %s13, 1
        %p247 = scmp.lt.s32.totalorder %s246, 3
        %s248 = scalar_select %p247, %s246, 3
        %s249 = smul.u32 4, %s248
        %p250 = scmp.lt.s32.totalorder %s249, 15
        %s251 = scalar_select %p250, %s249, 15
        %s252 = smul.addr %s251, 4
        %s253 = scalar_lea.vmem %s2, %s252
        %s254 = sadd.s32 %s13, 1
        %p255 = scmp.lt.s32.totalorder %s254, 3
        %s256 = scalar_select %p255, %s254, 3
        %s257 = smul.u32 4, %s256
      $region32: #{basic3d_block.3} parent=19 // pred_fallthru
        _
      // Predicated region
      $region33: #{basic3d_block.3} parent=19 // pred_check
        %p258 = pneg %p144
      $region34: #{basic3d_block.3} parent=19 // pred_check_branch
        %260 = sbr.rel (%p258) target = $region36
      $region35: #{basic3d_block.3} parent=19 // pred_region
        %s261 = smul.u32 4, %s13
        %p262 = scmp.lt.s32.totalorder %s261, 15
        %s263 = scalar_select %p262, %s261, 15
        %s264 = scalar_lea.vmem %s4, %s263
        %s265 = smul.u32 4, %s13
      $region36: #{basic3d_block.3} parent=19 // pred_fallthru
        _
    $region20: #{basic3d_block.3} parent=5 // pred_fallthru
      _
    %p266 = scmp.le.s32.totalorder 1, %s13
    %p267 = scmp.lt.s32.totalorder %s13, 5
    %p268 = pnand %p266, %p267
    %p269 = pneg %p268
    // Predicated region
    $region37: #{basic3d_block.3} parent=5 // pred_check
      _
    $region38: #{basic3d_block.3} parent=5 // pred_check_branch
      %271 = sbr.rel (%p268) target = $region40
    $region39: #{basic3d_block.3} parent=5 // pred_region
      %s272 = ssub.s32 %s13, 1
      %s273 = ssub.s32 %s18, 1
      %p274 = scmp.gt.s32.totalorder %s273, 0
      %s275 = scalar_select %p274, %s273, 0
      %s276 = smul.u32 4, %s275
      %p277 = scmp.lt.s32.totalorder %s276, 15
      %s278 = scalar_select %p277, %s276, 15
      %s279 = smul.addr %s278, 4
      %s280 = scalar_lea.vmem %s0, %s279
      %p281 = pneg %p45
      %p282 = pneg %p42
      %s283 = smul.u32 4, %s18
      %p284 = scmp.lt.s32.totalorder %s283, 15
      %s285 = scalar_select %p284, %s283, 15
      %s286 = smul.addr %s285, 4
      %s287 = scalar_lea.vmem %s1, %s286
      %p288 = pneg %p71
      %p289 = pneg %p68
      %s290 = sadd.s32 %s18, 1
      %p291 = scmp.lt.s32.totalorder %s290, 3
      %s292 = scalar_select %p291, %s290, 3
      %s293 = smul.u32 4, %s292
      %p294 = scmp.lt.s32.totalorder %s293, 15
      %s295 = scalar_select %p294, %s293, 15
      %s296 = smul.addr %s295, 4
      %s297 = scalar_lea.vmem %s2, %s296
      %p298 = pneg %p103
      %p299 = pneg %p100
      %p300 = pneg %p124
      %p301 = pneg %p121
      %s302 = smul.u32 4, %s18
      %p303 = scmp.lt.s32.totalorder %s302, 15
      %s304 = scalar_select %p303, %s302, 15
      %s305 = scalar_lea.vmem %s4, %s304
      %p306 = pneg %p150
      %p307 = pneg %p147
      %p308 = pneg %p176
      %p309 = pneg %p173
      %s310 = smul.u32 4, %s18
      %p311 = scmp.lt.s32.totalorder %s310, 15
      %s312 = scalar_select %p311, %s310, 15
      %s313 = smul.addr %s312, 8
      %s314 = scalar_lea.vmem %s5, %s313
      %p315 = pneg %p197
      %p316 = pneg %p194
      %s317 = ssub.s32 %s18, 1
      %p318 = scmp.gt.s32.totalorder %s317, 0
      %s319 = scalar_select %p318, %s317, 0
      %s320 = smul.u32 4, %s319
      %p321 = scmp.lt.s32.totalorder %s320, 15
      %s322 = scalar_select %p321, %s320, 15
      %s323 = smul.addr %s322, 4
      %s324 = scalar_lea.vmem %s0, %s323
      %s325 = ssub.s32 %s18, 1
      %p326 = scmp.gt.s32.totalorder %s325, 0
      %s327 = scalar_select %p326, %s325, 0
      %s328 = smul.u32 4, %s327
      %s329 = smul.u32 4, %s18
      %p330 = scmp.lt.s32.totalorder %s329, 15
      %s331 = scalar_select %p330, %s329, 15
      %s332 = smul.addr %s331, 4
      %s333 = scalar_lea.vmem %s1, %s332
      %s334 = smul.u32 4, %s18
      %s335 = sadd.s32 %s18, 1
      %p336 = scmp.lt.s32.totalorder %s335, 3
      %s337 = scalar_select %p336, %s335, 3
      %s338 = smul.u32 4, %s337
      %p339 = scmp.lt.s32.totalorder %s338, 15
      %s340 = scalar_select %p339, %s338, 15
      %s341 = smul.addr %s340, 4
      %s342 = scalar_lea.vmem %s2, %s341
      %s343 = sadd.s32 %s18, 1
      %p344 = scmp.lt.s32.totalorder %s343, 3
      %s345 = scalar_select %p344, %s343, 3
      %s346 = smul.u32 4, %s345
      %s347 = smul.u32 4, %s18
      %p348 = scmp.lt.s32.totalorder %s347, 15
      %s349 = scalar_select %p348, %s347, 15
      %s350 = scalar_lea.vmem %s4, %s349
      %s351 = smul.u32 4, %s18
      %s352 = smul.u32 4, %s18
      %p353 = scmp.lt.s32.totalorder %s352, 15
      %s354 = scalar_select %p353, %s352, 15
      %s355 = smul.addr %s354, 8
      %s356 = scalar_lea.vmem %s5, %s355
      %s357 = smul.u32 4, %s18
      %p358 = scmp.eq.s32.totalorder %s18, 0
      // Predicated region
      $region41: #{basic3d_block.3} parent=39 // pred_check
        %p359 = pneg %p358
      $region42: #{basic3d_block.3} parent=39 // pred_check_branch
        %361 = sbr.rel (%p359) target = $region44
      $region43: #{basic3d_block.3} parent=39 // pred_region
        %vm362 = vcmask 15360
        %363 = vst.msk [vmem:[%s6] sm:$0xff] %vm362, 0.0
      $region44: #{basic3d_block.3} parent=39 // pred_fallthru
        _
      %v364 = vld [vmem:[%s324 + $0x8] sm:$0xff]
      %v365 = vld [vmem:[%s333] sm:$0xff]
      %v366 = vld [vmem:[%s333 + $0x8] sm:$0xff]
      %v367 = vld [vmem:[%s342] sm:$0xff]
      %v369 = vcombine.high %v364, %v364
      %v372 = vcombine.high %v365, %v365
      %v373 = vcombine.high %v366, %v366
      %v375 = vld [vmem:[%s3] sm:$0xff]
      %s376 = scalar_lea.vmem %s3, 8
      %v377 = vld [vmem:[%s376] sm:$0xff]
      %378 = vrot.lane.b32.xlu0 %v369, 110
      %v379 = vpop.permute.xlu0 %378
      %380 = vrot.lane.b32.xlu0 %v365, 110
      %v381 = vpop.permute.xlu0 %380
      %382 = vrot.lane.b32.xlu0 %v372, 110
      %v383 = vpop.permute.xlu0 %382
      %384 = vrot.lane.b32.xlu0 %v366, 110
      %v385 = vpop.permute.xlu0 %384
      %386 = vrot.lane.b32.xlu0 %v373, 110
      %v387 = vpop.permute.xlu0 %386
      %vm388 = vcmask 900096
      %v389 = vsel %vm388, %v379, %v381
      %v390 = vsel %vm388, %v381, %v383
      %v391 = vsel %vm388, %v383, %v385
      %v392 = vsel %vm388, %v385, %v387
      %vm393 = vcmask 31744
      %v395 = vsel %vm393, %v377, 0
      %vm397 = vcmask 1043456
      %v398 = vsel %vm397, %v389, 0
      %v400 = vsel %vm397, %v390, 0
      %v402 = vsel %vm397, %v391, 0
      %v404 = vsel %vm397, %v392, 0
      %406 = vmatprep.subr.mxu0 0.0
      %407 = vmatpush1.msra.mxu0 0.0
      %408 = vmatprep.subr.mxu0 0.0
      %409 = vmatpush1.msra.mxu0 0.0
      %410 = vmatprep.subr.mxu0 0.0
      %411 = vmatpush1.msra.mxu0 0.0
      %412 = vmatprep.subr.mxu0 0.0
      %413 = vmatpush1.msra.mxu0 0.0
      %414 = vmatprep.subr.mxu0 0.0
      %415 = vmatpush1.msra.mxu0 0.0
      %416 = vmatprep.subr.mxu0 0.0
      %417 = vmatpush1.msra.mxu0 0.0
      %418 = vmatprep.subr.mxu0 0.0
      %419 = vmatpush1.msra.mxu0 0.0
      %420 = vmatprep.subr.mxu0 0.0
      %421 = vmatpush1.msra.mxu0 0.0
      %422 = vmatprep.subr.mxu0 0.0
      %423 = vmatpush1.msra.mxu0 0.0
      %424 = vmatprep.subr.mxu0 0.0
      %425 = vmatpush1.msra.mxu0 0.0
      %426 = vmatprep.subr.mxu0 0.0
      %427 = vmatpush1.msra.mxu0 0.0
      %428 = vmatprep.subr.mxu0 0.0
      %429 = vmatpush1.msra.mxu0 0.0
      %430 = vmatprep.subr.mxu0 0.0
      %431 = vmatpush1.msra.mxu0 0.0
      %432 = vmatprep.subr.mxu0 0.0
      %433 = vmatpush1.msra.mxu0 0.0
      %434 = vmatprep.subr.mxu0 0.0
      %435 = vmatpush1.msra.mxu0 0.0
      %436 = vmatprep.subr.mxu0 %v400
      %437 = vmatpush1.msra.mxu0 %v398
      %438 = vmatprep.subr.mxu0 0.0
      %439 = vmatpush2.msra.mxu0 0.0
      %440 = vmatprep.subr.mxu0 0.0
      %441 = vmatpush2.msra.mxu0 0.0
      %442 = vmatprep.subr.mxu0 0.0
      %443 = vmatpush2.msra.mxu0 0.0
      %444 = vmatprep.subr.mxu0 0.0
      %445 = vmatpush2.msra.mxu0 0.0
      %446 = vmatprep.subr.mxu0 0.0
      %447 = vmatpush2.msra.mxu0 0.0
      %448 = vmatprep.subr.mxu0 0.0
      %449 = vmatpush2.msra.mxu0 0.0
      %450 = vmatprep.subr.mxu0 0.0
      %451 = vmatpush2.msra.mxu0 0.0
      %452 = vmatprep.subr.mxu0 0.0
      %453 = vmatpush2.msra.mxu0 0.0
      %454 = vmatprep.subr.mxu0 0.0
      %455 = vmatpush2.msra.mxu0 0.0
      %456 = vmatprep.subr.mxu0 0.0
      %457 = vmatpush2.msra.mxu0 0.0
      %458 = vmatprep.subr.mxu0 0.0
      %459 = vmatpush2.msra.mxu0 0.0
      %460 = vmatprep.subr.mxu0 0.0
      %461 = vmatpush2.msra.mxu0 0.0
      %462 = vmatprep.subr.mxu0 0.0
      %463 = vmatpush2.msra.mxu0 0.0
      %464 = vmatprep.subr.mxu0 0.0
      %465 = vmatpush2.msra.mxu0 0.0
      %466 = vmatprep.subr.mxu0 0.0
      %467 = vmatpush2.msra.mxu0 0.0
      %468 = vmatprep.subr.mxu0 0.0
      %469 = vmatpush2.msra.mxu0 0.0
      %470 = vmatprep.mubr.f32.mxu0 0.0
      %471 = vmatmul.mubr.f32.gmra.mxu0 %v395
      %v472 = vpop.f32.mrf.mxu0
      %v473 = vadd.f32 0.0, %v472
      %v474 = vpop.f32.mrf.mxu0
      %v475 = vadd.f32 0.0, %v474
      %476 = vdwg.mxu0
      %477 = vmatprep.subr.mxu0 0.0
      %478 = vmatpush1.msra.mxu0 0.0
      %479 = vmatprep.subr.mxu0 0.0
      %480 = vmatpush1.msra.mxu0 0.0
      %481 = vmatprep.subr.mxu0 0.0
      %482 = vmatpush1.msra.mxu0 0.0
      %483 = vmatprep.subr.mxu0 0.0
      %484 = vmatpush1.msra.mxu0 0.0
      %485 = vmatprep.subr.mxu0 0.0
      %486 = vmatpush1.msra.mxu0 0.0
      %487 = vmatprep.subr.mxu0 0.0
      %488 = vmatpush1.msra.mxu0 0.0
      %489 = vmatprep.subr.mxu0 0.0
      %490 = vmatpush1.msra.mxu0 0.0
      %491 = vmatprep.subr.mxu0 0.0
      %492 = vmatpush1.msra.mxu0 0.0
      %493 = vmatprep.subr.mxu0 0.0
      %494 = vmatpush1.msra.mxu0 0.0
      %495 = vmatprep.subr.mxu0 0.0
      %496 = vmatpush1.msra.mxu0 0.0
      %497 = vmatprep.subr.mxu0 0.0
      %498 = vmatpush1.msra.mxu0 0.0
      %499 = vmatprep.subr.mxu0 0.0
      %500 = vmatpush1.msra.mxu0 0.0
      %501 = vmatprep.subr.mxu0 0.0
      %502 = vmatpush1.msra.mxu0 0.0
      %503 = vmatprep.subr.mxu0 0.0
      %504 = vmatpush1.msra.mxu0 0.0
      %505 = vmatprep.subr.mxu0 0.0
      %506 = vmatpush1.msra.mxu0 0.0
      %507 = vmatprep.subr.mxu0 %v404
      %508 = vmatpush1.msra.mxu0 %v402
      %509 = vmatprep.subr.mxu0 0.0
      %510 = vmatpush2.msra.mxu0 0.0
      %511 = vmatprep.subr.mxu0 0.0
      %512 = vmatpush2.msra.mxu0 0.0
      %513 = vmatprep.subr.mxu0 0.0
      %514 = vmatpush2.msra.mxu0 0.0
      %515 = vmatprep.subr.mxu0 0.0
      %516 = vmatpush2.msra.mxu0 0.0
      %517 = vmatprep.subr.mxu0 0.0
      %518 = vmatpush2.msra.mxu0 0.0
      %519 = vmatprep.subr.mxu0 0.0
      %520 = vmatpush2.msra.mxu0 0.0
      %521 = vmatprep.subr.mxu0 0.0
      %522 = vmatpush2.msra.mxu0 0.0
      %523 = vmatprep.subr.mxu0 0.0
      %524 = vmatpush2.msra.mxu0 0.0
      %525 = vmatprep.subr.mxu0 0.0
      %526 = vmatpush2.msra.mxu0 0.0
      %527 = vmatprep.subr.mxu0 0.0
      %528 = vmatpush2.msra.mxu0 0.0
      %529 = vmatprep.subr.mxu0 0.0
      %530 = vmatpush2.msra.mxu0 0.0
      %531 = vmatprep.subr.mxu0 0.0
      %532 = vmatpush2.msra.mxu0 0.0
      %533 = vmatprep.subr.mxu0 0.0
      %534 = vmatpush2.msra.mxu0 0.0
      %535 = vmatprep.subr.mxu0 0.0
      %536 = vmatpush2.msra.mxu0 0.0
      %537 = vmatprep.subr.mxu0 0.0
      %538 = vmatpush2.msra.mxu0 0.0
      %539 = vmatprep.subr.mxu0 0.0
      %540 = vmatpush2.msra.mxu0 0.0
      %541 = vmatprep.mubr.f32.mxu0 0.0
      %542 = vmatmul.mubr.f32.gmra.mxu0 %v395
      %v543 = vpop.f32.mrf.mxu0
      %v544 = vadd.f32 0.0, %v543
      %v545 = vpop.f32.mrf.mxu0
      %v546 = vadd.f32 0.0, %v545
      %547 = vdwg.mxu0
      %548 = vrot.lane.b32.xlu0 %v369, 111
      %v549 = vpop.permute.xlu0 %548
      %550 = vrot.lane.b32.xlu0 %v365, 111
      %v551 = vpop.permute.xlu0 %550
      %552 = vrot.lane.b32.xlu0 %v372, 111
      %v553 = vpop.permute.xlu0 %552
      %554 = vrot.lane.b32.xlu0 %v366, 111
      %v555 = vpop.permute.xlu0 %554
      %556 = vrot.lane.b32.xlu0 %v373, 111
      %v557 = vpop.permute.xlu0 %556
      %vm558 = vcmask 908288
      %v559 = vsel %vm558, %v549, %v551
      %v560 = vsel %vm558, %v551, %v553
      %v561 = vsel %vm558, %v553, %v555
      %v562 = vsel %vm558, %v555, %v557
      %v564 = vsel %vm393, %v375, 0
      %v566 = vsel %vm397, %v559, 0
      %v568 = vsel %vm397, %v560, 0
      %v570 = vsel %vm397, %v561, 0
      %v572 = vsel %vm397, %v562, 0
      %574 = vmatprep.subr.mxu0 0.0
      %575 = vmatpush1.msra.mxu0 0.0
      %576 = vmatprep.subr.mxu0 0.0
      %577 = vmatpush1.msra.mxu0 0.0
      %578 = vmatprep.subr.mxu0 0.0
      %579 = vmatpush1.msra.mxu0 0.0
      %580 = vmatprep.subr.mxu0 0.0
      %581 = vmatpush1.msra.mxu0 0.0
      %582 = vmatprep.subr.mxu0 0.0
      %583 = vmatpush1.msra.mxu0 0.0
      %584 = vmatprep.subr.mxu0 0.0
      %585 = vmatpush1.msra.mxu0 0.0
      %586 = vmatprep.subr.mxu0 0.0
      %587 = vmatpush1.msra.mxu0 0.0
      %588 = vmatprep.subr.mxu0 0.0
      %589 = vmatpush1.msra.mxu0 0.0
      %590 = vmatprep.subr.mxu0 0.0
      %591 = vmatpush1.msra.mxu0 0.0
      %592 = vmatprep.subr.mxu0 0.0
      %593 = vmatpush1.msra.mxu0 0.0
      %594 = vmatprep.subr.mxu0 0.0
      %595 = vmatpush1.msra.mxu0 0.0
      %596 = vmatprep.subr.mxu0 0.0
      %597 = vmatpush1.msra.mxu0 0.0
      %598 = vmatprep.subr.mxu0 0.0
      %599 = vmatpush1.msra.mxu0 0.0
      %600 = vmatprep.subr.mxu0 0.0
      %601 = vmatpush1.msra.mxu0 0.0
      %602 = vmatprep.subr.mxu0 0.0
      %603 = vmatpush1.msra.mxu0 0.0
      %604 = vmatprep.subr.mxu0 %v568
      %605 = vmatpush1.msra.mxu0 %v566
      %606 = vmatprep.subr.mxu0 0.0
      %607 = vmatpush2.msra.mxu0 0.0
      %608 = vmatprep.subr.mxu0 0.0
      %609 = vmatpush2.msra.mxu0 0.0
      %610 = vmatprep.subr.mxu0 0.0
      %611 = vmatpush2.msra.mxu0 0.0
      %612 = vmatprep.subr.mxu0 0.0
      %613 = vmatpush2.msra.mxu0 0.0
      %614 = vmatprep.subr.mxu0 0.0
      %615 = vmatpush2.msra.mxu0 0.0
      %616 = vmatprep.subr.mxu0 0.0
      %617 = vmatpush2.msra.mxu0 0.0
      %618 = vmatprep.subr.mxu0 0.0
      %619 = vmatpush2.msra.mxu0 0.0
      %620 = vmatprep.subr.mxu0 0.0
      %621 = vmatpush2.msra.mxu0 0.0
      %622 = vmatprep.subr.mxu0 0.0
      %623 = vmatpush2.msra.mxu0 0.0
      %624 = vmatprep.subr.mxu0 0.0
      %625 = vmatpush2.msra.mxu0 0.0
      %626 = vmatprep.subr.mxu0 0.0
      %627 = vmatpush2.msra.mxu0 0.0
      %628 = vmatprep.subr.mxu0 0.0
      %629 = vmatpush2.msra.mxu0 0.0
      %630 = vmatprep.subr.mxu0 0.0
      %631 = vmatpush2.msra.mxu0 0.0
      %632 = vmatprep.subr.mxu0 0.0
      %633 = vmatpush2.msra.mxu0 0.0
      %634 = vmatprep.subr.mxu0 0.0
      %635 = vmatpush2.msra.mxu0 0.0
      %636 = vmatprep.subr.mxu0 0.0
      %637 = vmatpush2.msra.mxu0 0.0
      %638 = vmatprep.mubr.f32.mxu0 0.0
      %639 = vmatmul.mubr.f32.gmra.mxu0 %v564
      %v640 = vpop.f32.mrf.mxu0
      %v641 = vadd.f32 %v473, %v640
      %v642 = vpop.f32.mrf.mxu0
      %v643 = vadd.f32 %v475, %v642
      %644 = vdwg.mxu0
      %645 = vmatprep.subr.mxu0 0.0
      %646 = vmatpush1.msra.mxu0 0.0
      %647 = vmatprep.subr.mxu0 0.0
      %648 = vmatpush1.msra.mxu0 0.0
      %649 = vmatprep.subr.mxu0 0.0
      %650 = vmatpush1.msra.mxu0 0.0
      %651 = vmatprep.subr.mxu0 0.0
      %652 = vmatpush1.msra.mxu0 0.0
      %653 = vmatprep.subr.mxu0 0.0
      %654 = vmatpush1.msra.mxu0 0.0
      %655 = vmatprep.subr.mxu0 0.0
      %656 = vmatpush1.msra.mxu0 0.0
      %657 = vmatprep.subr.mxu0 0.0
      %658 = vmatpush1.msra.mxu0 0.0
      %659 = vmatprep.subr.mxu0 0.0
      %660 = vmatpush1.msra.mxu0 0.0
      %661 = vmatprep.subr.mxu0 0.0
      %662 = vmatpush1.msra.mxu0 0.0
      %663 = vmatprep.subr.mxu0 0.0
      %664 = vmatpush1.msra.mxu0 0.0
      %665 = vmatprep.subr.mxu0 0.0
      %666 = vmatpush1.msra.mxu0 0.0
      %667 = vmatprep.subr.mxu0 0.0
      %668 = vmatpush1.msra.mxu0 0.0
      %669 = vmatprep.subr.mxu0 0.0
      %670 = vmatpush1.msra.mxu0 0.0
      %671 = vmatprep.subr.mxu0 0.0
      %672 = vmatpush1.msra.mxu0 0.0
      %673 = vmatprep.subr.mxu0 0.0
      %674 = vmatpush1.msra.mxu0 0.0
      %675 = vmatprep.subr.mxu0 %v572
      %676 = vmatpush1.msra.mxu0 %v570
      %677 = vmatprep.subr.mxu0 0.0
      %678 = vmatpush2.msra.mxu0 0.0
      %679 = vmatprep.subr.mxu0 0.0
      %680 = vmatpush2.msra.mxu0 0.0
      %681 = vmatprep.subr.mxu0 0.0
      %682 = vmatpush2.msra.mxu0 0.0
      %683 = vmatprep.subr.mxu0 0.0
      %684 = vmatpush2.msra.mxu0 0.0
      %685 = vmatprep.subr.mxu0 0.0
      %686 = vmatpush2.msra.mxu0 0.0
      %687 = vmatprep.subr.mxu0 0.0
      %688 = vmatpush2.msra.mxu0 0.0
      %689 = vmatprep.subr.mxu0 0.0
      %690 = vmatpush2.msra.mxu0 0.0
      %691 = vmatprep.subr.mxu0 0.0
      %692 = vmatpush2.msra.mxu0 0.0
      %693 = vmatprep.subr.mxu0 0.0
      %694 = vmatpush2.msra.mxu0 0.0
      %695 = vmatprep.subr.mxu0 0.0
      %696 = vmatpush2.msra.mxu0 0.0
      %697 = vmatprep.subr.mxu0 0.0
      %698 = vmatpush2.msra.mxu0 0.0
      %699 = vmatprep.subr.mxu0 0.0
      %700 = vmatpush2.msra.mxu0 0.0
      %701 = vmatprep.subr.mxu0 0.0
      %702 = vmatpush2.msra.mxu0 0.0
      %703 = vmatprep.subr.mxu0 0.0
      %704 = vmatpush2.msra.mxu0 0.0
      %705 = vmatprep.subr.mxu0 0.0
      %706 = vmatpush2.msra.mxu0 0.0
      %707 = vmatprep.subr.mxu0 0.0
      %708 = vmatpush2.msra.mxu0 0.0
      %709 = vmatprep.mubr.f32.mxu0 0.0
      %710 = vmatmul.mubr.f32.gmra.mxu0 %v564
      %v711 = vpop.f32.mrf.mxu0
      %v712 = vadd.f32 %v544, %v711
      %v713 = vpop.f32.mrf.mxu0
      %v714 = vadd.f32 %v546, %v713
      %715 = vdwg.mxu0
      %s716 = scalar_lea.vmem %s3, 16
      %v717 = vld [vmem:[%s716] sm:$0xff]
      %718 = vrot.lane.b32.xlu0 %v369, 109
      %v719 = vpop.permute.xlu0 %718
      %720 = vrot.lane.b32.xlu0 %v365, 109
      %v721 = vpop.permute.xlu0 %720
      %722 = vrot.lane.b32.xlu0 %v372, 109
      %v723 = vpop.permute.xlu0 %722
      %724 = vrot.lane.b32.xlu0 %v366, 109
      %v725 = vpop.permute.xlu0 %724
      %726 = vrot.lane.b32.xlu0 %v373, 109
      %v727 = vpop.permute.xlu0 %726
      %vm728 = vcmask 891904
      %v729 = vsel %vm728, %v719, %v721
      %v730 = vsel %vm728, %v721, %v723
      %v731 = vsel %vm728, %v723, %v725
      %v732 = vsel %vm728, %v725, %v727
      %v734 = vsel %vm393, %v717, 0
      %v736 = vsel %vm397, %v729, 0
      %v738 = vsel %vm397, %v730, 0
      %v740 = vsel %vm397, %v731, 0
      %v742 = vsel %vm397, %v732, 0
      %744 = vmatprep.subr.mxu0 0.0
      %745 = vmatpush1.msra.mxu0 0.0
      %746 = vmatprep.subr.mxu0 0.0
      %747 = vmatpush1.msra.mxu0 0.0
      %748 = vmatprep.subr.mxu0 0.0
      %749 = vmatpush1.msra.mxu0 0.0
      %750 = vmatprep.subr.mxu0 0.0
      %751 = vmatpush1.msra.mxu0 0.0
      %752 = vmatprep.subr.mxu0 0.0
      %753 = vmatpush1.msra.mxu0 0.0
      %754 = vmatprep.subr.mxu0 0.0
      %755 = vmatpush1.msra.mxu0 0.0
      %756 = vmatprep.subr.mxu0 0.0
      %757 = vmatpush1.msra.mxu0 0.0
      %758 = vmatprep.subr.mxu0 0.0
      %759 = vmatpush1.msra.mxu0 0.0
      %760 = vmatprep.subr.mxu0 0.0
      %761 = vmatpush1.msra.mxu0 0.0
      %762 = vmatprep.subr.mxu0 0.0
      %763 = vmatpush1.msra.mxu0 0.0
      %764 = vmatprep.subr.mxu0 0.0
      %765 = vmatpush1.msra.mxu0 0.0
      %766 = vmatprep.subr.mxu0 0.0
      %767 = vmatpush1.msra.mxu0 0.0
      %768 = vmatprep.subr.mxu0 0.0
      %769 = vmatpush1.msra.mxu0 0.0
      %770 = vmatprep.subr.mxu0 0.0
      %771 = vmatpush1.msra.mxu0 0.0
      %772 = vmatprep.subr.mxu0 0.0
      %773 = vmatpush1.msra.mxu0 0.0
      %774 = vmatprep.subr.mxu0 %v738
      %775 = vmatpush1.msra.mxu0 %v736
      %776 = vmatprep.subr.mxu0 0.0
      %777 = vmatpush2.msra.mxu0 0.0
      %778 = vmatprep.subr.mxu0 0.0
      %779 = vmatpush2.msra.mxu0 0.0
      %780 = vmatprep.subr.mxu0 0.0
      %781 = vmatpush2.msra.mxu0 0.0
      %782 = vmatprep.subr.mxu0 0.0
      %783 = vmatpush2.msra.mxu0 0.0
      %784 = vmatprep.subr.mxu0 0.0
      %785 = vmatpush2.msra.mxu0 0.0
      %786 = vmatprep.subr.mxu0 0.0
      %787 = vmatpush2.msra.mxu0 0.0
      %788 = vmatprep.subr.mxu0 0.0
      %789 = vmatpush2.msra.mxu0 0.0
      %790 = vmatprep.subr.mxu0 0.0
      %791 = vmatpush2.msra.mxu0 0.0
      %792 = vmatprep.subr.mxu0 0.0
      %793 = vmatpush2.msra.mxu0 0.0
      %794 = vmatprep.subr.mxu0 0.0
      %795 = vmatpush2.msra.mxu0 0.0
      %796 = vmatprep.subr.mxu0 0.0
      %797 = vmatpush2.msra.mxu0 0.0
      %798 = vmatprep.subr.mxu0 0.0
      %799 = vmatpush2.msra.mxu0 0.0
      %800 = vmatprep.subr.mxu0 0.0
      %801 = vmatpush2.msra.mxu0 0.0
      %802 = vmatprep.subr.mxu0 0.0
      %803 = vmatpush2.msra.mxu0 0.0
      %804 = vmatprep.subr.mxu0 0.0
      %805 = vmatpush2.msra.mxu0 0.0
      %806 = vmatprep.subr.mxu0 0.0
      %807 = vmatpush2.msra.mxu0 0.0
      %808 = vmatprep.mubr.f32.mxu0 0.0
      %809 = vmatmul.mubr.f32.gmra.mxu0 %v734
      %v810 = vpop.f32.mrf.mxu0
      %v811 = vadd.f32 0.0, %v810
      %v812 = vpop.f32.mrf.mxu0
      %v813 = vadd.f32 0.0, %v812
      %814 = vdwg.mxu0
      %815 = vmatprep.subr.mxu0 0.0
      %816 = vmatpush1.msra.mxu0 0.0
      %817 = vmatprep.subr.mxu0 0.0
      %818 = vmatpush1.msra.mxu0 0.0
      %819 = vmatprep.subr.mxu0 0.0
      %820 = vmatpush1.msra.mxu0 0.0
      %821 = vmatprep.subr.mxu0 0.0
      %822 = vmatpush1.msra.mxu0 0.0
      %823 = vmatprep.subr.mxu0 0.0
      %824 = vmatpush1.msra.mxu0 0.0
      %825 = vmatprep.subr.mxu0 0.0
      %826 = vmatpush1.msra.mxu0 0.0
      %827 = vmatprep.subr.mxu0 0.0
      %828 = vmatpush1.msra.mxu0 0.0
      %829 = vmatprep.subr.mxu0 0.0
      %830 = vmatpush1.msra.mxu0 0.0
      %831 = vmatprep.subr.mxu0 0.0
      %832 = vmatpush1.msra.mxu0 0.0
      %833 = vmatprep.subr.mxu0 0.0
      %834 = vmatpush1.msra.mxu0 0.0
      %835 = vmatprep.subr.mxu0 0.0
      %836 = vmatpush1.msra.mxu0 0.0
      %837 = vmatprep.subr.mxu0 0.0
      %838 = vmatpush1.msra.mxu0 0.0
      %839 = vmatprep.subr.mxu0 0.0
      %840 = vmatpush1.msra.mxu0 0.0
      %841 = vmatprep.subr.mxu0 0.0
      %842 = vmatpush1.msra.mxu0 0.0
      %843 = vmatprep.subr.mxu0 0.0
      %844 = vmatpush1.msra.mxu0 0.0
      %845 = vmatprep.subr.mxu0 %v742
      %846 = vmatpush1.msra.mxu0 %v740
      %847 = vmatprep.subr.mxu0 0.0
      %848 = vmatpush2.msra.mxu0 0.0
      %849 = vmatprep.subr.mxu0 0.0
      %850 = vmatpush2.msra.mxu0 0.0
      %851 = vmatprep.subr.mxu0 0.0
      %852 = vmatpush2.msra.mxu0 0.0
      %853 = vmatprep.subr.mxu0 0.0
      %854 = vmatpush2.msra.mxu0 0.0
      %855 = vmatprep.subr.mxu0 0.0
      %856 = vmatpush2.msra.mxu0 0.0
      %857 = vmatprep.subr.mxu0 0.0
      %858 = vmatpush2.msra.mxu0 0.0
      %859 = vmatprep.subr.mxu0 0.0
      %860 = vmatpush2.msra.mxu0 0.0
      %861 = vmatprep.subr.mxu0 0.0
      %862 = vmatpush2.msra.mxu0 0.0
      %863 = vmatprep.subr.mxu0 0.0
      %864 = vmatpush2.msra.mxu0 0.0
      %865 = vmatprep.subr.mxu0 0.0
      %866 = vmatpush2.msra.mxu0 0.0
      %867 = vmatprep.subr.mxu0 0.0
      %868 = vmatpush2.msra.mxu0 0.0
      %869 = vmatprep.subr.mxu0 0.0
      %870 = vmatpush2.msra.mxu0 0.0
      %871 = vmatprep.subr.mxu0 0.0
      %872 = vmatpush2.msra.mxu0 0.0
      %873 = vmatprep.subr.mxu0 0.0
      %874 = vmatpush2.msra.mxu0 0.0
      %875 = vmatprep.subr.mxu0 0.0
      %876 = vmatpush2.msra.mxu0 0.0
      %877 = vmatprep.subr.mxu0 0.0
      %878 = vmatpush2.msra.mxu0 0.0
      %879 = vmatprep.mubr.f32.mxu0 0.0
      %880 = vmatmul.mubr.f32.gmra.mxu0 %v734
      %v881 = vpop.f32.mrf.mxu0
      %v882 = vadd.f32 0.0, %v881
      %v883 = vpop.f32.mrf.mxu0
      %v884 = vadd.f32 0.0, %v883
      %885 = vdwg.mxu0
      %v886 = vadd.f32 %v641, %v811
      %v887 = vadd.f32 %v643, %v813
      %v888 = vadd.f32 %v712, %v882
      %v889 = vadd.f32 %v714, %v884
      %s890 = scalar_lea.vmem %s3, 24
      %v891 = vld [vmem:[%s890] sm:$0xff]
      %892 = vrot.lane.b32.xlu0 %v369, 101
      %v893 = vpop.permute.xlu0 %892
      %894 = vrot.lane.b32.xlu0 %v365, 101
      %v895 = vpop.permute.xlu0 %894
      %896 = vrot.lane.b32.xlu0 %v372, 101
      %v897 = vpop.permute.xlu0 %896
      %898 = vrot.lane.b32.xlu0 %v366, 101
      %v899 = vpop.permute.xlu0 %898
      %900 = vrot.lane.b32.xlu0 %v373, 101
      %v901 = vpop.permute.xlu0 %900
      %vm902 = vcmask 826368
      %v903 = vsel %vm902, %v893, %v895
      %v904 = vsel %vm902, %v895, %v897
      %v905 = vsel %vm902, %v897, %v899
      %v906 = vsel %vm902, %v899, %v901
      %v908 = vsel %vm393, %v891, 0
      %v910 = vsel %vm397, %v903, 0
      %v912 = vsel %vm397, %v904, 0
      %v914 = vsel %vm397, %v905, 0
      %v916 = vsel %vm397, %v906, 0
      %918 = vmatprep.subr.mxu0 0.0
      %919 = vmatpush1.msra.mxu0 0.0
      %920 = vmatprep.subr.mxu0 0.0
      %921 = vmatpush1.msra.mxu0 0.0
      %922 = vmatprep.subr.mxu0 0.0
      %923 = vmatpush1.msra.mxu0 0.0
      %924 = vmatprep.subr.mxu0 0.0
      %925 = vmatpush1.msra.mxu0 0.0
      %926 = vmatprep.subr.mxu0 0.0
      %927 = vmatpush1.msra.mxu0 0.0
      %928 = vmatprep.subr.mxu0 0.0
      %929 = vmatpush1.msra.mxu0 0.0
      %930 = vmatprep.subr.mxu0 0.0
      %931 = vmatpush1.msra.mxu0 0.0
      %932 = vmatprep.subr.mxu0 0.0
      %933 = vmatpush1.msra.mxu0 0.0
      %934 = vmatprep.subr.mxu0 0.0
      %935 = vmatpush1.msra.mxu0 0.0
      %936 = vmatprep.subr.mxu0 0.0
      %937 = vmatpush1.msra.mxu0 0.0
      %938 = vmatprep.subr.mxu0 0.0
      %939 = vmatpush1.msra.mxu0 0.0
      %940 = vmatprep.subr.mxu0 0.0
      %941 = vmatpush1.msra.mxu0 0.0
      %942 = vmatprep.subr.mxu0 0.0
      %943 = vmatpush1.msra.mxu0 0.0
      %944 = vmatprep.subr.mxu0 0.0
      %945 = vmatpush1.msra.mxu0 0.0
      %946 = vmatprep.subr.mxu0 0.0
      %947 = vmatpush1.msra.mxu0 0.0
      %948 = vmatprep.subr.mxu0 %v912
      %949 = vmatpush1.msra.mxu0 %v910
      %950 = vmatprep.subr.mxu0 0.0
      %951 = vmatpush2.msra.mxu0 0.0
      %952 = vmatprep.subr.mxu0 0.0
      %953 = vmatpush2.msra.mxu0 0.0
      %954 = vmatprep.subr.mxu0 0.0
      %955 = vmatpush2.msra.mxu0 0.0
      %956 = vmatprep.subr.mxu0 0.0
      %957 = vmatpush2.msra.mxu0 0.0
      %958 = vmatprep.subr.mxu0 0.0
      %959 = vmatpush2.msra.mxu0 0.0
      %960 = vmatprep.subr.mxu0 0.0
      %961 = vmatpush2.msra.mxu0 0.0
      %962 = vmatprep.subr.mxu0 0.0
      %963 = vmatpush2.msra.mxu0 0.0
      %964 = vmatprep.subr.mxu0 0.0
      %965 = vmatpush2.msra.mxu0 0.0
      %966 = vmatprep.subr.mxu0 0.0
      %967 = vmatpush2.msra.mxu0 0.0
      %968 = vmatprep.subr.mxu0 0.0
      %969 = vmatpush2.msra.mxu0 0.0
      %970 = vmatprep.subr.mxu0 0.0
      %971 = vmatpush2.msra.mxu0 0.0
      %972 = vmatprep.subr.mxu0 0.0
      %973 = vmatpush2.msra.mxu0 0.0
      %974 = vmatprep.subr.mxu0 0.0
      %975 = vmatpush2.msra.mxu0 0.0
      %976 = vmatprep.subr.mxu0 0.0
      %977 = vmatpush2.msra.mxu0 0.0
      %978 = vmatprep.subr.mxu0 0.0
      %979 = vmatpush2.msra.mxu0 0.0
      %980 = vmatprep.subr.mxu0 0.0
      %981 = vmatpush2.msra.mxu0 0.0
      %982 = vmatprep.mubr.f32.mxu0 0.0
      %983 = vmatmul.mubr.f32.gmra.mxu0 %v908
      %v984 = vpop.f32.mrf.mxu0
      %v985 = vadd.f32 0.0, %v984
      %v986 = vpop.f32.mrf.mxu0
      %v987 = vadd.f32 0.0, %v986
      %988 = vdwg.mxu0
      %989 = vmatprep.subr.mxu0 0.0
      %990 = vmatpush1.msra.mxu0 0.0
      %991 = vmatprep.subr.mxu0 0.0
      %992 = vmatpush1.msra.mxu0 0.0
      %993 = vmatprep.subr.mxu0 0.0
      %994 = vmatpush1.msra.mxu0 0.0
      %995 = vmatprep.subr.mxu0 0.0
      %996 = vmatpush1.msra.mxu0 0.0
      %997 = vmatprep.subr.mxu0 0.0
      %998 = vmatpush1.msra.mxu0 0.0
      %999 = vmatprep.subr.mxu0 0.0
      %1000 = vmatpush1.msra.mxu0 0.0
      %1001 = vmatprep.subr.mxu0 0.0
      %1002 = vmatpush1.msra.mxu0 0.0
      %1003 = vmatprep.subr.mxu0 0.0
      %1004 = vmatpush1.msra.mxu0 0.0
      %1005 = vmatprep.subr.mxu0 0.0
      %1006 = vmatpush1.msra.mxu0 0.0
      %1007 = vmatprep.subr.mxu0 0.0
      %1008 = vmatpush1.msra.mxu0 0.0
      %1009 = vmatprep.subr.mxu0 0.0
      %1010 = vmatpush1.msra.mxu0 0.0
      %1011 = vmatprep.subr.mxu0 0.0
      %1012 = vmatpush1.msra.mxu0 0.0
      %1013 = vmatprep.subr.mxu0 0.0
      %1014 = vmatpush1.msra.mxu0 0.0
      %1015 = vmatprep.subr.mxu0 0.0
      %1016 = vmatpush1.msra.mxu0 0.0
      %1017 = vmatprep.subr.mxu0 0.0
      %1018 = vmatpush1.msra.mxu0 0.0
      %1019 = vmatprep.subr.mxu0 %v916
      %1020 = vmatpush1.msra.mxu0 %v914
      %1021 = vmatprep.subr.mxu0 0.0
      %1022 = vmatpush2.msra.mxu0 0.0
      %1023 = vmatprep.subr.mxu0 0.0
      %1024 = vmatpush2.msra.mxu0 0.0
      %1025 = vmatprep.subr.mxu0 0.0
      %1026 = vmatpush2.msra.mxu0 0.0
      %1027 = vmatprep.subr.mxu0 0.0
      %1028 = vmatpush2.msra.mxu0 0.0
      %1029 = vmatprep.subr.mxu0 0.0
      %1030 = vmatpush2.msra.mxu0 0.0
      %1031 = vmatprep.subr.mxu0 0.0
      %1032 = vmatpush2.msra.mxu0 0.0
      %1033 = vmatprep.subr.mxu0 0.0
      %1034 = vmatpush2.msra.mxu0 0.0
      %1035 = vmatprep.subr.mxu0 0.0
      %1036 = vmatpush2.msra.mxu0 0.0
      %1037 = vmatprep.subr.mxu0 0.0
      %1038 = vmatpush2.msra.mxu0 0.0
      %1039 = vmatprep.subr.mxu0 0.0
      %1040 = vmatpush2.msra.mxu0 0.0
      %1041 = vmatprep.subr.mxu0 0.0
      %1042 = vmatpush2.msra.mxu0 0.0
      %1043 = vmatprep.subr.mxu0 0.0
      %1044 = vmatpush2.msra.mxu0 0.0
      %1045 = vmatprep.subr.mxu0 0.0
      %1046 = vmatpush2.msra.mxu0 0.0
      %1047 = vmatprep.subr.mxu0 0.0
      %1048 = vmatpush2.msra.mxu0 0.0
      %1049 = vmatprep.subr.mxu0 0.0
      %1050 = vmatpush2.msra.mxu0 0.0
      %1051 = vmatprep.subr.mxu0 0.0
      %1052 = vmatpush2.msra.mxu0 0.0
      %1053 = vmatprep.mubr.f32.mxu0 0.0
      %1054 = vmatmul.mubr.f32.gmra.mxu0 %v908
      %v1055 = vpop.f32.mrf.mxu0
      %v1056 = vadd.f32 0.0, %v1055
      %v1057 = vpop.f32.mrf.mxu0
      %v1058 = vadd.f32 0.0, %v1057
      %1059 = vdwg.mxu0
      %v1060 = vadd.f32 %v886, %v985
      %v1061 = vadd.f32 %v887, %v987
      %v1062 = vadd.f32 %v888, %v1056
      %v1063 = vadd.f32 %v889, %v1058
      %s1064 = scalar_lea.vmem %s3, 32
      %v1065 = vld [vmem:[%s1064] sm:$0xff]
      %1066 = vrot.lane.b32.xlu0 %v369, 100
      %v1067 = vpop.permute.xlu0 %1066
      %1068 = vrot.lane.b32.xlu0 %v365, 100
      %v1069 = vpop.permute.xlu0 %1068
      %1070 = vrot.lane.b32.xlu0 %v372, 100
      %v1071 = vpop.permute.xlu0 %1070
      %1072 = vrot.lane.b32.xlu0 %v366, 100
      %v1073 = vpop.permute.xlu0 %1072
      %1074 = vrot.lane.b32.xlu0 %v373, 100
      %v1075 = vpop.permute.xlu0 %1074
      %vm1076 = vcmask 818176
      %v1077 = vsel %vm1076, %v1067, %v1069
      %v1078 = vsel %vm1076, %v1069, %v1071
      %v1079 = vsel %vm1076, %v1071, %v1073
      %v1080 = vsel %vm1076, %v1073, %v1075
      %v1082 = vsel %vm393, %v1065, 0
      %v1084 = vsel %vm397, %v1077, 0
      %v1086 = vsel %vm397, %v1078, 0
      %v1088 = vsel %vm397, %v1079, 0
      %v1090 = vsel %vm397, %v1080, 0
      %1092 = vmatprep.subr.mxu0 0.0
      %1093 = vmatpush1.msra.mxu0 0.0
      %1094 = vmatprep.subr.mxu0 0.0
      %1095 = vmatpush1.msra.mxu0 0.0
      %1096 = vmatprep.subr.mxu0 0.0
      %1097 = vmatpush1.msra.mxu0 0.0
      %1098 = vmatprep.subr.mxu0 0.0
      %1099 = vmatpush1.msra.mxu0 0.0
      %1100 = vmatprep.subr.mxu0 0.0
      %1101 = vmatpush1.msra.mxu0 0.0
      %1102 = vmatprep.subr.mxu0 0.0
      %1103 = vmatpush1.msra.mxu0 0.0
      %1104 = vmatprep.subr.mxu0 0.0
      %1105 = vmatpush1.msra.mxu0 0.0
      %1106 = vmatprep.subr.mxu0 0.0
      %1107 = vmatpush1.msra.mxu0 0.0
      %1108 = vmatprep.subr.mxu0 0.0
      %1109 = vmatpush1.msra.mxu0 0.0
      %1110 = vmatprep.subr.mxu0 0.0
      %1111 = vmatpush1.msra.mxu0 0.0
      %1112 = vmatprep.subr.mxu0 0.0
      %1113 = vmatpush1.msra.mxu0 0.0
      %1114 = vmatprep.subr.mxu0 0.0
      %1115 = vmatpush1.msra.mxu0 0.0
      %1116 = vmatprep.subr.mxu0 0.0
      %1117 = vmatpush1.msra.mxu0 0.0
      %1118 = vmatprep.subr.mxu0 0.0
      %1119 = vmatpush1.msra.mxu0 0.0
      %1120 = vmatprep.subr.mxu0 0.0
      %1121 = vmatpush1.msra.mxu0 0.0
      %1122 = vmatprep.subr.mxu0 %v1086
      %1123 = vmatpush1.msra.mxu0 %v1084
      %1124 = vmatprep.subr.mxu0 0.0
      %1125 = vmatpush2.msra.mxu0 0.0
      %1126 = vmatprep.subr.mxu0 0.0
      %1127 = vmatpush2.msra.mxu0 0.0
      %1128 = vmatprep.subr.mxu0 0.0
      %1129 = vmatpush2.msra.mxu0 0.0
      %1130 = vmatprep.subr.mxu0 0.0
      %1131 = vmatpush2.msra.mxu0 0.0
      %1132 = vmatprep.subr.mxu0 0.0
      %1133 = vmatpush2.msra.mxu0 0.0
      %1134 = vmatprep.subr.mxu0 0.0
      %1135 = vmatpush2.msra.mxu0 0.0
      %1136 = vmatprep.subr.mxu0 0.0
      %1137 = vmatpush2.msra.mxu0 0.0
      %1138 = vmatprep.subr.mxu0 0.0
      %1139 = vmatpush2.msra.mxu0 0.0
      %1140 = vmatprep.subr.mxu0 0.0
      %1141 = vmatpush2.msra.mxu0 0.0
      %1142 = vmatprep.subr.mxu0 0.0
      %1143 = vmatpush2.msra.mxu0 0.0
      %1144 = vmatprep.subr.mxu0 0.0
      %1145 = vmatpush2.msra.mxu0 0.0
      %1146 = vmatprep.subr.mxu0 0.0
      %1147 = vmatpush2.msra.mxu0 0.0
      %1148 = vmatprep.subr.mxu0 0.0
      %1149 = vmatpush2.msra.mxu0 0.0
      %1150 = vmatprep.subr.mxu0 0.0
      %1151 = vmatpush2.msra.mxu0 0.0
      %1152 = vmatprep.subr.mxu0 0.0
      %1153 = vmatpush2.msra.mxu0 0.0
      %1154 = vmatprep.subr.mxu0 0.0
      %1155 = vmatpush2.msra.mxu0 0.0
      %1156 = vmatprep.mubr.f32.mxu0 0.0
      %1157 = vmatmul.mubr.f32.gmra.mxu0 %v1082
      %v1158 = vpop.f32.mrf.mxu0
      %v1159 = vadd.f32 0.0, %v1158
      %v1160 = vpop.f32.mrf.mxu0
      %v1161 = vadd.f32 0.0, %v1160
      %1162 = vdwg.mxu0
      %1163 = vmatprep.subr.mxu0 0.0
      %1164 = vmatpush1.msra.mxu0 0.0
      %1165 = vmatprep.subr.mxu0 0.0
      %1166 = vmatpush1.msra.mxu0 0.0
      %1167 = vmatprep.subr.mxu0 0.0
      %1168 = vmatpush1.msra.mxu0 0.0
      %1169 = vmatprep.subr.mxu0 0.0
      %1170 = vmatpush1.msra.mxu0 0.0
      %1171 = vmatprep.subr.mxu0 0.0
      %1172 = vmatpush1.msra.mxu0 0.0
      %1173 = vmatprep.subr.mxu0 0.0
      %1174 = vmatpush1.msra.mxu0 0.0
      %1175 = vmatprep.subr.mxu0 0.0
      %1176 = vmatpush1.msra.mxu0 0.0
      %1177 = vmatprep.subr.mxu0 0.0
      %1178 = vmatpush1.msra.mxu0 0.0
      %1179 = vmatprep.subr.mxu0 0.0
      %1180 = vmatpush1.msra.mxu0 0.0
      %1181 = vmatprep.subr.mxu0 0.0
      %1182 = vmatpush1.msra.mxu0 0.0
      %1183 = vmatprep.subr.mxu0 0.0
      %1184 = vmatpush1.msra.mxu0 0.0
      %1185 = vmatprep.subr.mxu0 0.0
      %1186 = vmatpush1.msra.mxu0 0.0
      %1187 = vmatprep.subr.mxu0 0.0
      %1188 = vmatpush1.msra.mxu0 0.0
      %1189 = vmatprep.subr.mxu0 0.0
      %1190 = vmatpush1.msra.mxu0 0.0
      %1191 = vmatprep.subr.mxu0 0.0
      %1192 = vmatpush1.msra.mxu0 0.0
      %1193 = vmatprep.subr.mxu0 %v1090
      %1194 = vmatpush1.msra.mxu0 %v1088
      %1195 = vmatprep.subr.mxu0 0.0
      %1196 = vmatpush2.msra.mxu0 0.0
      %1197 = vmatprep.subr.mxu0 0.0
      %1198 = vmatpush2.msra.mxu0 0.0
      %1199 = vmatprep.subr.mxu0 0.0
      %1200 = vmatpush2.msra.mxu0 0.0
      %1201 = vmatprep.subr.mxu0 0.0
      %1202 = vmatpush2.msra.mxu0 0.0
      %1203 = vmatprep.subr.mxu0 0.0
      %1204 = vmatpush2.msra.mxu0 0.0
      %1205 = vmatprep.subr.mxu0 0.0
      %1206 = vmatpush2.msra.mxu0 0.0
      %1207 = vmatprep.subr.mxu0 0.0
      %1208 = vmatpush2.msra.mxu0 0.0
      %1209 = vmatprep.subr.mxu0 0.0
      %1210 = vmatpush2.msra.mxu0 0.0
      %1211 = vmatprep.subr.mxu0 0.0
      %1212 = vmatpush2.msra.mxu0 0.0
      %1213 = vmatprep.subr.mxu0 0.0
      %1214 = vmatpush2.msra.mxu0 0.0
      %1215 = vmatprep.subr.mxu0 0.0
      %1216 = vmatpush2.msra.mxu0 0.0
      %1217 = vmatprep.subr.mxu0 0.0
      %1218 = vmatpush2.msra.mxu0 0.0
      %1219 = vmatprep.subr.mxu0 0.0
      %1220 = vmatpush2.msra.mxu0 0.0
      %1221 = vmatprep.subr.mxu0 0.0
      %1222 = vmatpush2.msra.mxu0 0.0
      %1223 = vmatprep.subr.mxu0 0.0
      %1224 = vmatpush2.msra.mxu0 0.0
      %1225 = vmatprep.subr.mxu0 0.0
      %1226 = vmatpush2.msra.mxu0 0.0
      %1227 = vmatprep.mubr.f32.mxu0 0.0
      %1228 = vmatmul.mubr.f32.gmra.mxu0 %v1082
      %v1229 = vpop.f32.mrf.mxu0
      %v1230 = vadd.f32 0.0, %v1229
      %v1231 = vpop.f32.mrf.mxu0
      %v1232 = vadd.f32 0.0, %v1231
      %1233 = vdwg.mxu0
      %v1234 = vadd.f32 %v1060, %v1159
      %v1235 = vadd.f32 %v1061, %v1161
      %v1236 = vadd.f32 %v1062, %v1230
      %v1237 = vadd.f32 %v1063, %v1232
      %s1238 = scalar_lea.vmem %s3, 40
      %v1239 = vld [vmem:[%s1238] sm:$0xff]
      %1240 = vrot.lane.b32.xlu0 %v369, 99
      %v1241 = vpop.permute.xlu0 %1240
      %1242 = vrot.lane.b32.xlu0 %v365, 99
      %v1243 = vpop.permute.xlu0 %1242
      %1244 = vrot.lane.b32.xlu0 %v372, 99
      %v1245 = vpop.permute.xlu0 %1244
      %1246 = vrot.lane.b32.xlu0 %v366, 99
      %v1247 = vpop.permute.xlu0 %1246
      %1248 = vrot.lane.b32.xlu0 %v373, 99
      %v1249 = vpop.permute.xlu0 %1248
      %vm1250 = vcmask 809984
      %v1251 = vsel %vm1250, %v1241, %v1243
      %v1252 = vsel %vm1250, %v1243, %v1245
      %v1253 = vsel %vm1250, %v1245, %v1247
      %v1254 = vsel %vm1250, %v1247, %v1249
      %v1256 = vsel %vm393, %v1239, 0
      %v1258 = vsel %vm397, %v1251, 0
      %v1260 = vsel %vm397, %v1252, 0
      %v1262 = vsel %vm397, %v1253, 0
      %v1264 = vsel %vm397, %v1254, 0
      %1266 = vmatprep.subr.mxu0 0.0
      %1267 = vmatpush1.msra.mxu0 0.0
      %1268 = vmatprep.subr.mxu0 0.0
      %1269 = vmatpush1.msra.mxu0 0.0
      %1270 = vmatprep.subr.mxu0 0.0
      %1271 = vmatpush1.msra.mxu0 0.0
      %1272 = vmatprep.subr.mxu0 0.0
      %1273 = vmatpush1.msra.mxu0 0.0
      %1274 = vmatprep.subr.mxu0 0.0
      %1275 = vmatpush1.msra.mxu0 0.0
      %1276 = vmatprep.subr.mxu0 0.0
      %1277 = vmatpush1.msra.mxu0 0.0
      %1278 = vmatprep.subr.mxu0 0.0
      %1279 = vmatpush1.msra.mxu0 0.0
      %1280 = vmatprep.subr.mxu0 0.0
      %1281 = vmatpush1.msra.mxu0 0.0
      %1282 = vmatprep.subr.mxu0 0.0
      %1283 = vmatpush1.msra.mxu0 0.0
      %1284 = vmatprep.subr.mxu0 0.0
      %1285 = vmatpush1.msra.mxu0 0.0
      %1286 = vmatprep.subr.mxu0 0.0
      %1287 = vmatpush1.msra.mxu0 0.0
      %1288 = vmatprep.subr.mxu0 0.0
      %1289 = vmatpush1.msra.mxu0 0.0
      %1290 = vmatprep.subr.mxu0 0.0
      %1291 = vmatpush1.msra.mxu0 0.0
      %1292 = vmatprep.subr.mxu0 0.0
      %1293 = vmatpush1.msra.mxu0 0.0
      %1294 = vmatprep.subr.mxu0 0.0
      %1295 = vmatpush1.msra.mxu0 0.0
      %1296 = vmatprep.subr.mxu0 %v1260
      %1297 = vmatpush1.msra.mxu0 %v1258
      %1298 = vmatprep.subr.mxu0 0.0
      %1299 = vmatpush2.msra.mxu0 0.0
      %1300 = vmatprep.subr.mxu0 0.0
      %1301 = vmatpush2.msra.mxu0 0.0
      %1302 = vmatprep.subr.mxu0 0.0
      %1303 = vmatpush2.msra.mxu0 0.0
      %1304 = vmatprep.subr.mxu0 0.0
      %1305 = vmatpush2.msra.mxu0 0.0
      %1306 = vmatprep.subr.mxu0 0.0
      %1307 = vmatpush2.msra.mxu0 0.0
      %1308 = vmatprep.subr.mxu0 0.0
      %1309 = vmatpush2.msra.mxu0 0.0
      %1310 = vmatprep.subr.mxu0 0.0
      %1311 = vmatpush2.msra.mxu0 0.0
      %1312 = vmatprep.subr.mxu0 0.0
      %1313 = vmatpush2.msra.mxu0 0.0
      %1314 = vmatprep.subr.mxu0 0.0
      %1315 = vmatpush2.msra.mxu0 0.0
      %1316 = vmatprep.subr.mxu0 0.0
      %1317 = vmatpush2.msra.mxu0 0.0
      %1318 = vmatprep.subr.mxu0 0.0
      %1319 = vmatpush2.msra.mxu0 0.0
      %1320 = vmatprep.subr.mxu0 0.0
      %1321 = vmatpush2.msra.mxu0 0.0
      %1322 = vmatprep.subr.mxu0 0.0
      %1323 = vmatpush2.msra.mxu0 0.0
      %1324 = vmatprep.subr.mxu0 0.0
      %1325 = vmatpush2.msra.mxu0 0.0
      %1326 = vmatprep.subr.mxu0 0.0
      %1327 = vmatpush2.msra.mxu0 0.0
      %1328 = vmatprep.subr.mxu0 0.0
      %1329 = vmatpush2.msra.mxu0 0.0
      %1330 = vmatprep.mubr.f32.mxu0 0.0
      %1331 = vmatmul.mubr.f32.gmra.mxu0 %v1256
      %v1332 = vpop.f32.mrf.mxu0
      %v1333 = vadd.f32 0.0, %v1332
      %v1334 = vpop.f32.mrf.mxu0
      %v1335 = vadd.f32 0.0, %v1334
      %1336 = vdwg.mxu0
      %1337 = vmatprep.subr.mxu0 0.0
      %1338 = vmatpush1.msra.mxu0 0.0
      %1339 = vmatprep.subr.mxu0 0.0
      %1340 = vmatpush1.msra.mxu0 0.0
      %1341 = vmatprep.subr.mxu0 0.0
      %1342 = vmatpush1.msra.mxu0 0.0
      %1343 = vmatprep.subr.mxu0 0.0
      %1344 = vmatpush1.msra.mxu0 0.0
      %1345 = vmatprep.subr.mxu0 0.0
      %1346 = vmatpush1.msra.mxu0 0.0
      %1347 = vmatprep.subr.mxu0 0.0
      %1348 = vmatpush1.msra.mxu0 0.0
      %1349 = vmatprep.subr.mxu0 0.0
      %1350 = vmatpush1.msra.mxu0 0.0
      %1351 = vmatprep.subr.mxu0 0.0
      %1352 = vmatpush1.msra.mxu0 0.0
      %1353 = vmatprep.subr.mxu0 0.0
      %1354 = vmatpush1.msra.mxu0 0.0
      %1355 = vmatprep.subr.mxu0 0.0
      %1356 = vmatpush1.msra.mxu0 0.0
      %1357 = vmatprep.subr.mxu0 0.0
      %1358 = vmatpush1.msra.mxu0 0.0
      %1359 = vmatprep.subr.mxu0 0.0
      %1360 = vmatpush1.msra.mxu0 0.0
      %1361 = vmatprep.subr.mxu0 0.0
      %1362 = vmatpush1.msra.mxu0 0.0
      %1363 = vmatprep.subr.mxu0 0.0
      %1364 = vmatpush1.msra.mxu0 0.0
      %1365 = vmatprep.subr.mxu0 0.0
      %1366 = vmatpush1.msra.mxu0 0.0
      %1367 = vmatprep.subr.mxu0 %v1264
      %1368 = vmatpush1.msra.mxu0 %v1262
      %1369 = vmatprep.subr.mxu0 0.0
      %1370 = vmatpush2.msra.mxu0 0.0
      %1371 = vmatprep.subr.mxu0 0.0
      %1372 = vmatpush2.msra.mxu0 0.0
      %1373 = vmatprep.subr.mxu0 0.0
      %1374 = vmatpush2.msra.mxu0 0.0
      %1375 = vmatprep.subr.mxu0 0.0
      %1376 = vmatpush2.msra.mxu0 0.0
      %1377 = vmatprep.subr.mxu0 0.0
      %1378 = vmatpush2.msra.mxu0 0.0
      %1379 = vmatprep.subr.mxu0 0.0
      %1380 = vmatpush2.msra.mxu0 0.0
      %1381 = vmatprep.subr.mxu0 0.0
      %1382 = vmatpush2.msra.mxu0 0.0
      %1383 = vmatprep.subr.mxu0 0.0
      %1384 = vmatpush2.msra.mxu0 0.0
      %1385 = vmatprep.subr.mxu0 0.0
      %1386 = vmatpush2.msra.mxu0 0.0
      %1387 = vmatprep.subr.mxu0 0.0
      %1388 = vmatpush2.msra.mxu0 0.0
      %1389 = vmatprep.subr.mxu0 0.0
      %1390 = vmatpush2.msra.mxu0 0.0
      %1391 = vmatprep.subr.mxu0 0.0
      %1392 = vmatpush2.msra.mxu0 0.0
      %1393 = vmatprep.subr.mxu0 0.0
      %1394 = vmatpush2.msra.mxu0 0.0
      %1395 = vmatprep.subr.mxu0 0.0
      %1396 = vmatpush2.msra.mxu0 0.0
      %1397 = vmatprep.subr.mxu0 0.0
      %1398 = vmatpush2.msra.mxu0 0.0
      %1399 = vmatprep.subr.mxu0 0.0
      %1400 = vmatpush2.msra.mxu0 0.0
      %1401 = vmatprep.mubr.f32.mxu0 0.0
      %1402 = vmatmul.mubr.f32.gmra.mxu0 %v1256
      %v1403 = vpop.f32.mrf.mxu0
      %v1404 = vadd.f32 0.0, %v1403
      %v1405 = vpop.f32.mrf.mxu0
      %v1406 = vadd.f32 0.0, %v1405
      %1407 = vdwg.mxu0
      %v1408 = vadd.f32 %v1234, %v1333
      %v1409 = vadd.f32 %v1235, %v1335
      %v1410 = vadd.f32 %v1236, %v1404
      %v1411 = vadd.f32 %v1237, %v1406
      %s1412 = scalar_lea.vmem %s3, 48
      %v1413 = vld [vmem:[%s1412] sm:$0xff]
      %1414 = vrot.lane.b32.xlu0 %v369, 91
      %v1415 = vpop.permute.xlu0 %1414
      %1416 = vrot.lane.b32.xlu0 %v365, 91
      %v1417 = vpop.permute.xlu0 %1416
      %1418 = vrot.lane.b32.xlu0 %v372, 91
      %v1419 = vpop.permute.xlu0 %1418
      %1420 = vrot.lane.b32.xlu0 %v366, 91
      %v1421 = vpop.permute.xlu0 %1420
      %1422 = vrot.lane.b32.xlu0 %v373, 91
      %v1423 = vpop.permute.xlu0 %1422
      %vm1424 = vcmask 744448
      %v1425 = vsel %vm1424, %v1415, %v1417
      %v1426 = vsel %vm1424, %v1417, %v1419
      %v1427 = vsel %vm1424, %v1419, %v1421
      %v1428 = vsel %vm1424, %v1421, %v1423
      %v1430 = vsel %vm393, %v1413, 0
      %v1432 = vsel %vm397, %v1425, 0
      %v1434 = vsel %vm397, %v1426, 0
      %v1436 = vsel %vm397, %v1427, 0
      %v1438 = vsel %vm397, %v1428, 0
      %1440 = vmatprep.subr.mxu0 0.0
      %1441 = vmatpush1.msra.mxu0 0.0
      %1442 = vmatprep.subr.mxu0 0.0
      %1443 = vmatpush1.msra.mxu0 0.0
      %1444 = vmatprep.subr.mxu0 0.0
      %1445 = vmatpush1.msra.mxu0 0.0
      %1446 = vmatprep.subr.mxu0 0.0
      %1447 = vmatpush1.msra.mxu0 0.0
      %1448 = vmatprep.subr.mxu0 0.0
      %1449 = vmatpush1.msra.mxu0 0.0
      %1450 = vmatprep.subr.mxu0 0.0
      %1451 = vmatpush1.msra.mxu0 0.0
      %1452 = vmatprep.subr.mxu0 0.0
      %1453 = vmatpush1.msra.mxu0 0.0
      %1454 = vmatprep.subr.mxu0 0.0
      %1455 = vmatpush1.msra.mxu0 0.0
      %1456 = vmatprep.subr.mxu0 0.0
      %1457 = vmatpush1.msra.mxu0 0.0
      %1458 = vmatprep.subr.mxu0 0.0
      %1459 = vmatpush1.msra.mxu0 0.0
      %1460 = vmatprep.subr.mxu0 0.0
      %1461 = vmatpush1.msra.mxu0 0.0
      %1462 = vmatprep.subr.mxu0 0.0
      %1463 = vmatpush1.msra.mxu0 0.0
      %1464 = vmatprep.subr.mxu0 0.0
      %1465 = vmatpush1.msra.mxu0 0.0
      %1466 = vmatprep.subr.mxu0 0.0
      %1467 = vmatpush1.msra.mxu0 0.0
      %1468 = vmatprep.subr.mxu0 0.0
      %1469 = vmatpush1.msra.mxu0 0.0
      %1470 = vmatprep.subr.mxu0 %v1434
      %1471 = vmatpush1.msra.mxu0 %v1432
      %1472 = vmatprep.subr.mxu0 0.0
      %1473 = vmatpush2.msra.mxu0 0.0
      %1474 = vmatprep.subr.mxu0 0.0
      %1475 = vmatpush2.msra.mxu0 0.0
      %1476 = vmatprep.subr.mxu0 0.0
      %1477 = vmatpush2.msra.mxu0 0.0
      %1478 = vmatprep.subr.mxu0 0.0
      %1479 = vmatpush2.msra.mxu0 0.0
      %1480 = vmatprep.subr.mxu0 0.0
      %1481 = vmatpush2.msra.mxu0 0.0
      %1482 = vmatprep.subr.mxu0 0.0
      %1483 = vmatpush2.msra.mxu0 0.0
      %1484 = vmatprep.subr.mxu0 0.0
      %1485 = vmatpush2.msra.mxu0 0.0
      %1486 = vmatprep.subr.mxu0 0.0
      %1487 = vmatpush2.msra.mxu0 0.0
      %1488 = vmatprep.subr.mxu0 0.0
      %1489 = vmatpush2.msra.mxu0 0.0
      %1490 = vmatprep.subr.mxu0 0.0
      %1491 = vmatpush2.msra.mxu0 0.0
      %1492 = vmatprep.subr.mxu0 0.0
      %1493 = vmatpush2.msra.mxu0 0.0
      %1494 = vmatprep.subr.mxu0 0.0
      %1495 = vmatpush2.msra.mxu0 0.0
      %1496 = vmatprep.subr.mxu0 0.0
      %1497 = vmatpush2.msra.mxu0 0.0
      %1498 = vmatprep.subr.mxu0 0.0
      %1499 = vmatpush2.msra.mxu0 0.0
      %1500 = vmatprep.subr.mxu0 0.0
      %1501 = vmatpush2.msra.mxu0 0.0
      %1502 = vmatprep.subr.mxu0 0.0
      %1503 = vmatpush2.msra.mxu0 0.0
      %1504 = vmatprep.mubr.f32.mxu0 0.0
      %1505 = vmatmul.mubr.f32.gmra.mxu0 %v1430
      %v1506 = vpop.f32.mrf.mxu0
      %v1507 = vadd.f32 0.0, %v1506
      %v1508 = vpop.f32.mrf.mxu0
      %v1509 = vadd.f32 0.0, %v1508
      %1510 = vdwg.mxu0
      %1511 = vmatprep.subr.mxu0 0.0
      %1512 = vmatpush1.msra.mxu0 0.0
      %1513 = vmatprep.subr.mxu0 0.0
      %1514 = vmatpush1.msra.mxu0 0.0
      %1515 = vmatprep.subr.mxu0 0.0
      %1516 = vmatpush1.msra.mxu0 0.0
      %1517 = vmatprep.subr.mxu0 0.0
      %1518 = vmatpush1.msra.mxu0 0.0
      %1519 = vmatprep.subr.mxu0 0.0
      %1520 = vmatpush1.msra.mxu0 0.0
      %1521 = vmatprep.subr.mxu0 0.0
      %1522 = vmatpush1.msra.mxu0 0.0
      %1523 = vmatprep.subr.mxu0 0.0
      %1524 = vmatpush1.msra.mxu0 0.0
      %1525 = vmatprep.subr.mxu0 0.0
      %1526 = vmatpush1.msra.mxu0 0.0
      %1527 = vmatprep.subr.mxu0 0.0
      %1528 = vmatpush1.msra.mxu0 0.0
      %1529 = vmatprep.subr.mxu0 0.0
      %1530 = vmatpush1.msra.mxu0 0.0
      %1531 = vmatprep.subr.mxu0 0.0
      %1532 = vmatpush1.msra.mxu0 0.0
      %1533 = vmatprep.subr.mxu0 0.0
      %1534 = vmatpush1.msra.mxu0 0.0
      %1535 = vmatprep.subr.mxu0 0.0
      %1536 = vmatpush1.msra.mxu0 0.0
      %1537 = vmatprep.subr.mxu0 0.0
      %1538 = vmatpush1.msra.mxu0 0.0
      %1539 = vmatprep.subr.mxu0 0.0
      %1540 = vmatpush1.msra.mxu0 0.0
      %1541 = vmatprep.subr.mxu0 %v1438
      %1542 = vmatpush1.msra.mxu0 %v1436
      %1543 = vmatprep.subr.mxu0 0.0
      %1544 = vmatpush2.msra.mxu0 0.0
      %1545 = vmatprep.subr.mxu0 0.0
      %1546 = vmatpush2.msra.mxu0 0.0
      %1547 = vmatprep.subr.mxu0 0.0
      %1548 = vmatpush2.msra.mxu0 0.0
      %1549 = vmatprep.subr.mxu0 0.0
      %1550 = vmatpush2.msra.mxu0 0.0
      %1551 = vmatprep.subr.mxu0 0.0
      %1552 = vmatpush2.msra.mxu0 0.0
      %1553 = vmatprep.subr.mxu0 0.0
      %1554 = vmatpush2.msra.mxu0 0.0
      %1555 = vmatprep.subr.mxu0 0.0
      %1556 = vmatpush2.msra.mxu0 0.0
      %1557 = vmatprep.subr.mxu0 0.0
      %1558 = vmatpush2.msra.mxu0 0.0
      %1559 = vmatprep.subr.mxu0 0.0
      %1560 = vmatpush2.msra.mxu0 0.0
      %1561 = vmatprep.subr.mxu0 0.0
      %1562 = vmatpush2.msra.mxu0 0.0
      %1563 = vmatprep.subr.mxu0 0.0
      %1564 = vmatpush2.msra.mxu0 0.0
      %1565 = vmatprep.subr.mxu0 0.0
      %1566 = vmatpush2.msra.mxu0 0.0
      %1567 = vmatprep.subr.mxu0 0.0
      %1568 = vmatpush2.msra.mxu0 0.0
      %1569 = vmatprep.subr.mxu0 0.0
      %1570 = vmatpush2.msra.mxu0 0.0
      %1571 = vmatprep.subr.mxu0 0.0
      %1572 = vmatpush2.msra.mxu0 0.0
      %1573 = vmatprep.subr.mxu0 0.0
      %1574 = vmatpush2.msra.mxu0 0.0
      %1575 = vmatprep.mubr.f32.mxu0 0.0
      %1576 = vmatmul.mubr.f32.gmra.mxu0 %v1430
      %v1577 = vpop.f32.mrf.mxu0
      %v1578 = vadd.f32 0.0, %v1577
      %v1579 = vpop.f32.mrf.mxu0
      %v1580 = vadd.f32 0.0, %v1579
      %1581 = vdwg.mxu0
      %v1582 = vadd.f32 %v1408, %v1507
      %v1583 = vadd.f32 %v1409, %v1509
      %v1584 = vadd.f32 %v1410, %v1578
      %v1585 = vadd.f32 %v1411, %v1580
      %s1586 = scalar_lea.vmem %s3, 56
      %v1587 = vld [vmem:[%s1586] sm:$0xff]
      %1588 = vrot.lane.b32.xlu0 %v369, 90
      %v1589 = vpop.permute.xlu0 %1588
      %1590 = vrot.lane.b32.xlu0 %v365, 90
      %v1591 = vpop.permute.xlu0 %1590
      %1592 = vrot.lane.b32.xlu0 %v372, 90
      %v1593 = vpop.permute.xlu0 %1592
      %1594 = vrot.lane.b32.xlu0 %v366, 90
      %v1595 = vpop.permute.xlu0 %1594
      %1596 = vrot.lane.b32.xlu0 %v373, 90
      %v1597 = vpop.permute.xlu0 %1596
      %vm1598 = vcmask 736256
      %v1599 = vsel %vm1598, %v1589, %v1591
      %v1600 = vsel %vm1598, %v1591, %v1593
      %v1601 = vsel %vm1598, %v1593, %v1595
      %v1602 = vsel %vm1598, %v1595, %v1597
      %v1604 = vsel %vm393, %v1587, 0
      %v1606 = vsel %vm397, %v1599, 0
      %v1608 = vsel %vm397, %v1600, 0
      %v1610 = vsel %vm397, %v1601, 0
      %v1612 = vsel %vm397, %v1602, 0
      %1614 = vmatprep.subr.mxu0 0.0
      %1615 = vmatpush1.msra.mxu0 0.0
      %1616 = vmatprep.subr.mxu0 0.0
      %1617 = vmatpush1.msra.mxu0 0.0
      %1618 = vmatprep.subr.mxu0 0.0
      %1619 = vmatpush1.msra.mxu0 0.0
      %1620 = vmatprep.subr.mxu0 0.0
      %1621 = vmatpush1.msra.mxu0 0.0
      %1622 = vmatprep.subr.mxu0 0.0
      %1623 = vmatpush1.msra.mxu0 0.0
      %1624 = vmatprep.subr.mxu0 0.0
      %1625 = vmatpush1.msra.mxu0 0.0
      %1626 = vmatprep.subr.mxu0 0.0
      %1627 = vmatpush1.msra.mxu0 0.0
      %1628 = vmatprep.subr.mxu0 0.0
      %1629 = vmatpush1.msra.mxu0 0.0
      %1630 = vmatprep.subr.mxu0 0.0
      %1631 = vmatpush1.msra.mxu0 0.0
      %1632 = vmatprep.subr.mxu0 0.0
      %1633 = vmatpush1.msra.mxu0 0.0
      %1634 = vmatprep.subr.mxu0 0.0
      %1635 = vmatpush1.msra.mxu0 0.0
      %1636 = vmatprep.subr.mxu0 0.0
      %1637 = vmatpush1.msra.mxu0 0.0
      %1638 = vmatprep.subr.mxu0 0.0
      %1639 = vmatpush1.msra.mxu0 0.0
      %1640 = vmatprep.subr.mxu0 0.0
      %1641 = vmatpush1.msra.mxu0 0.0
      %1642 = vmatprep.subr.mxu0 0.0
      %1643 = vmatpush1.msra.mxu0 0.0
      %1644 = vmatprep.subr.mxu0 %v1608
      %1645 = vmatpush1.msra.mxu0 %v1606
      %1646 = vmatprep.subr.mxu0 0.0
      %1647 = vmatpush2.msra.mxu0 0.0
      %1648 = vmatprep.subr.mxu0 0.0
      %1649 = vmatpush2.msra.mxu0 0.0
      %1650 = vmatprep.subr.mxu0 0.0
      %1651 = vmatpush2.msra.mxu0 0.0
      %1652 = vmatprep.subr.mxu0 0.0
      %1653 = vmatpush2.msra.mxu0 0.0
      %1654 = vmatprep.subr.mxu0 0.0
      %1655 = vmatpush2.msra.mxu0 0.0
      %1656 = vmatprep.subr.mxu0 0.0
      %1657 = vmatpush2.msra.mxu0 0.0
      %1658 = vmatprep.subr.mxu0 0.0
      %1659 = vmatpush2.msra.mxu0 0.0
      %1660 = vmatprep.subr.mxu0 0.0
      %1661 = vmatpush2.msra.mxu0 0.0
      %1662 = vmatprep.subr.mxu0 0.0
      %1663 = vmatpush2.msra.mxu0 0.0
      %1664 = vmatprep.subr.mxu0 0.0
      %1665 = vmatpush2.msra.mxu0 0.0
      %1666 = vmatprep.subr.mxu0 0.0
      %1667 = vmatpush2.msra.mxu0 0.0
      %1668 = vmatprep.subr.mxu0 0.0
      %1669 = vmatpush2.msra.mxu0 0.0
      %1670 = vmatprep.subr.mxu0 0.0
      %1671 = vmatpush2.msra.mxu0 0.0
      %1672 = vmatprep.subr.mxu0 0.0
      %1673 = vmatpush2.msra.mxu0 0.0
      %1674 = vmatprep.subr.mxu0 0.0
      %1675 = vmatpush2.msra.mxu0 0.0
      %1676 = vmatprep.subr.mxu0 0.0
      %1677 = vmatpush2.msra.mxu0 0.0
      %1678 = vmatprep.mubr.f32.mxu0 0.0
      %1679 = vmatmul.mubr.f32.gmra.mxu0 %v1604
      %v1680 = vpop.f32.mrf.mxu0
      %v1681 = vadd.f32 0.0, %v1680
      %v1682 = vpop.f32.mrf.mxu0
      %v1683 = vadd.f32 0.0, %v1682
      %1684 = vdwg.mxu0
      %1685 = vmatprep.subr.mxu0 0.0
      %1686 = vmatpush1.msra.mxu0 0.0
      %1687 = vmatprep.subr.mxu0 0.0
      %1688 = vmatpush1.msra.mxu0 0.0
      %1689 = vmatprep.subr.mxu0 0.0
      %1690 = vmatpush1.msra.mxu0 0.0
      %1691 = vmatprep.subr.mxu0 0.0
      %1692 = vmatpush1.msra.mxu0 0.0
      %1693 = vmatprep.subr.mxu0 0.0
      %1694 = vmatpush1.msra.mxu0 0.0
      %1695 = vmatprep.subr.mxu0 0.0
      %1696 = vmatpush1.msra.mxu0 0.0
      %1697 = vmatprep.subr.mxu0 0.0
      %1698 = vmatpush1.msra.mxu0 0.0
      %1699 = vmatprep.subr.mxu0 0.0
      %1700 = vmatpush1.msra.mxu0 0.0
      %1701 = vmatprep.subr.mxu0 0.0
      %1702 = vmatpush1.msra.mxu0 0.0
      %1703 = vmatprep.subr.mxu0 0.0
      %1704 = vmatpush1.msra.mxu0 0.0
      %1705 = vmatprep.subr.mxu0 0.0
      %1706 = vmatpush1.msra.mxu0 0.0
      %1707 = vmatprep.subr.mxu0 0.0
      %1708 = vmatpush1.msra.mxu0 0.0
      %1709 = vmatprep.subr.mxu0 0.0
      %1710 = vmatpush1.msra.mxu0 0.0
      %1711 = vmatprep.subr.mxu0 0.0
      %1712 = vmatpush1.msra.mxu0 0.0
      %1713 = vmatprep.subr.mxu0 0.0
      %1714 = vmatpush1.msra.mxu0 0.0
      %1715 = vmatprep.subr.mxu0 %v1612
      %1716 = vmatpush1.msra.mxu0 %v1610
      %1717 = vmatprep.subr.mxu0 0.0
      %1718 = vmatpush2.msra.mxu0 0.0
      %1719 = vmatprep.subr.mxu0 0.0
      %1720 = vmatpush2.msra.mxu0 0.0
      %1721 = vmatprep.subr.mxu0 0.0
      %1722 = vmatpush2.msra.mxu0 0.0
      %1723 = vmatprep.subr.mxu0 0.0
      %1724 = vmatpush2.msra.mxu0 0.0
      %1725 = vmatprep.subr.mxu0 0.0
      %1726 = vmatpush2.msra.mxu0 0.0
      %1727 = vmatprep.subr.mxu0 0.0
      %1728 = vmatpush2.msra.mxu0 0.0
      %1729 = vmatprep.subr.mxu0 0.0
      %1730 = vmatpush2.msra.mxu0 0.0
      %1731 = vmatprep.subr.mxu0 0.0
      %1732 = vmatpush2.msra.mxu0 0.0
      %1733 = vmatprep.subr.mxu0 0.0
      %1734 = vmatpush2.msra.mxu0 0.0
      %1735 = vmatprep.subr.mxu0 0.0
      %1736 = vmatpush2.msra.mxu0 0.0
      %1737 = vmatprep.subr.mxu0 0.0
      %1738 = vmatpush2.msra.mxu0 0.0
      %1739 = vmatprep.subr.mxu0 0.0
      %1740 = vmatpush2.msra.mxu0 0.0
      %1741 = vmatprep.subr.mxu0 0.0
      %1742 = vmatpush2.msra.mxu0 0.0
      %1743 = vmatprep.subr.mxu0 0.0
      %1744 = vmatpush2.msra.mxu0 0.0
      %1745 = vmatprep.subr.mxu0 0.0
      %1746 = vmatpush2.msra.mxu0 0.0
      %1747 = vmatprep.subr.mxu0 0.0
      %1748 = vmatpush2.msra.mxu0 0.0
      %1749 = vmatprep.mubr.f32.mxu0 0.0
      %1750 = vmatmul.mubr.f32.gmra.mxu0 %v1604
      %v1751 = vpop.f32.mrf.mxu0
      %v1752 = vadd.f32 0.0, %v1751
      %v1753 = vpop.f32.mrf.mxu0
      %v1754 = vadd.f32 0.0, %v1753
      %1755 = vdwg.mxu0
      %v1756 = vadd.f32 %v1582, %v1681
      %v1757 = vadd.f32 %v1583, %v1683
      %v1758 = vadd.f32 %v1584, %v1752
      %v1759 = vadd.f32 %v1585, %v1754
      %s1760 = scalar_lea.vmem %s3, 64
      %v1761 = vld [vmem:[%s1760] sm:$0xff]
      %1762 = vrot.lane.b32.xlu0 %v369, 89
      %v1763 = vpop.permute.xlu0 %1762
      %1764 = vrot.lane.b32.xlu0 %v365, 89
      %v1765 = vpop.permute.xlu0 %1764
      %1766 = vrot.lane.b32.xlu0 %v372, 89
      %v1767 = vpop.permute.xlu0 %1766
      %1768 = vrot.lane.b32.xlu0 %v366, 89
      %v1769 = vpop.permute.xlu0 %1768
      %1770 = vrot.lane.b32.xlu0 %v373, 89
      %v1771 = vpop.permute.xlu0 %1770
      %vm1772 = vcmask 728064
      %v1773 = vsel %vm1772, %v1763, %v1765
      %v1774 = vsel %vm1772, %v1765, %v1767
      %v1775 = vsel %vm1772, %v1767, %v1769
      %v1776 = vsel %vm1772, %v1769, %v1771
      %v1778 = vsel %vm393, %v1761, 0
      %v1780 = vsel %vm397, %v1773, 0
      %v1782 = vsel %vm397, %v1774, 0
      %v1784 = vsel %vm397, %v1775, 0
      %v1786 = vsel %vm397, %v1776, 0
      %1788 = vmatprep.subr.mxu0 0.0
      %1789 = vmatpush1.msra.mxu0 0.0
      %1790 = vmatprep.subr.mxu0 0.0
      %1791 = vmatpush1.msra.mxu0 0.0
      %1792 = vmatprep.subr.mxu0 0.0
      %1793 = vmatpush1.msra.mxu0 0.0
      %1794 = vmatprep.subr.mxu0 0.0
      %1795 = vmatpush1.msra.mxu0 0.0
      %1796 = vmatprep.subr.mxu0 0.0
      %1797 = vmatpush1.msra.mxu0 0.0
      %1798 = vmatprep.subr.mxu0 0.0
      %1799 = vmatpush1.msra.mxu0 0.0
      %1800 = vmatprep.subr.mxu0 0.0
      %1801 = vmatpush1.msra.mxu0 0.0
      %1802 = vmatprep.subr.mxu0 0.0
      %1803 = vmatpush1.msra.mxu0 0.0
      %1804 = vmatprep.subr.mxu0 0.0
      %1805 = vmatpush1.msra.mxu0 0.0
      %1806 = vmatprep.subr.mxu0 0.0
      %1807 = vmatpush1.msra.mxu0 0.0
      %1808 = vmatprep.subr.mxu0 0.0
      %1809 = vmatpush1.msra.mxu0 0.0
      %1810 = vmatprep.subr.mxu0 0.0
      %1811 = vmatpush1.msra.mxu0 0.0
      %1812 = vmatprep.subr.mxu0 0.0
      %1813 = vmatpush1.msra.mxu0 0.0
      %1814 = vmatprep.subr.mxu0 0.0
      %1815 = vmatpush1.msra.mxu0 0.0
      %1816 = vmatprep.subr.mxu0 0.0
      %1817 = vmatpush1.msra.mxu0 0.0
      %1818 = vmatprep.subr.mxu0 %v1782
      %1819 = vmatpush1.msra.mxu0 %v1780
      %1820 = vmatprep.subr.mxu0 0.0
      %1821 = vmatpush2.msra.mxu0 0.0
      %1822 = vmatprep.subr.mxu0 0.0
      %1823 = vmatpush2.msra.mxu0 0.0
      %1824 = vmatprep.subr.mxu0 0.0
      %1825 = vmatpush2.msra.mxu0 0.0
      %1826 = vmatprep.subr.mxu0 0.0
      %1827 = vmatpush2.msra.mxu0 0.0
      %1828 = vmatprep.subr.mxu0 0.0
      %1829 = vmatpush2.msra.mxu0 0.0
      %1830 = vmatprep.subr.mxu0 0.0
      %1831 = vmatpush2.msra.mxu0 0.0
      %1832 = vmatprep.subr.mxu0 0.0
      %1833 = vmatpush2.msra.mxu0 0.0
      %1834 = vmatprep.subr.mxu0 0.0
      %1835 = vmatpush2.msra.mxu0 0.0
      %1836 = vmatprep.subr.mxu0 0.0
      %1837 = vmatpush2.msra.mxu0 0.0
      %1838 = vmatprep.subr.mxu0 0.0
      %1839 = vmatpush2.msra.mxu0 0.0
      %1840 = vmatprep.subr.mxu0 0.0
      %1841 = vmatpush2.msra.mxu0 0.0
      %1842 = vmatprep.subr.mxu0 0.0
      %1843 = vmatpush2.msra.mxu0 0.0
      %1844 = vmatprep.subr.mxu0 0.0
      %1845 = vmatpush2.msra.mxu0 0.0
      %1846 = vmatprep.subr.mxu0 0.0
      %1847 = vmatpush2.msra.mxu0 0.0
      %1848 = vmatprep.subr.mxu0 0.0
      %1849 = vmatpush2.msra.mxu0 0.0
      %1850 = vmatprep.subr.mxu0 0.0
      %1851 = vmatpush2.msra.mxu0 0.0
      %1852 = vmatprep.mubr.f32.mxu0 0.0
      %1853 = vmatmul.mubr.f32.gmra.mxu0 %v1778
      %v1854 = vpop.f32.mrf.mxu0
      %v1855 = vadd.f32 0.0, %v1854
      %v1856 = vpop.f32.mrf.mxu0
      %v1857 = vadd.f32 0.0, %v1856
      %1858 = vdwg.mxu0
      %1859 = vmatprep.subr.mxu0 0.0
      %1860 = vmatpush1.msra.mxu0 0.0
      %1861 = vmatprep.subr.mxu0 0.0
      %1862 = vmatpush1.msra.mxu0 0.0
      %1863 = vmatprep.subr.mxu0 0.0
      %1864 = vmatpush1.msra.mxu0 0.0
      %1865 = vmatprep.subr.mxu0 0.0
      %1866 = vmatpush1.msra.mxu0 0.0
      %1867 = vmatprep.subr.mxu0 0.0
      %1868 = vmatpush1.msra.mxu0 0.0
      %1869 = vmatprep.subr.mxu0 0.0
      %1870 = vmatpush1.msra.mxu0 0.0
      %1871 = vmatprep.subr.mxu0 0.0
      %1872 = vmatpush1.msra.mxu0 0.0
      %1873 = vmatprep.subr.mxu0 0.0
      %1874 = vmatpush1.msra.mxu0 0.0
      %1875 = vmatprep.subr.mxu0 0.0
      %1876 = vmatpush1.msra.mxu0 0.0
      %1877 = vmatprep.subr.mxu0 0.0
      %1878 = vmatpush1.msra.mxu0 0.0
      %1879 = vmatprep.subr.mxu0 0.0
      %1880 = vmatpush1.msra.mxu0 0.0
      %1881 = vmatprep.subr.mxu0 0.0
      %1882 = vmatpush1.msra.mxu0 0.0
      %1883 = vmatprep.subr.mxu0 0.0
      %1884 = vmatpush1.msra.mxu0 0.0
      %1885 = vmatprep.subr.mxu0 0.0
      %1886 = vmatpush1.msra.mxu0 0.0
      %1887 = vmatprep.subr.mxu0 0.0
      %1888 = vmatpush1.msra.mxu0 0.0
      %1889 = vmatprep.subr.mxu0 %v1786
      %1890 = vmatpush1.msra.mxu0 %v1784
      %1891 = vmatprep.subr.mxu0 0.0
      %1892 = vmatpush2.msra.mxu0 0.0
      %1893 = vmatprep.subr.mxu0 0.0
      %1894 = vmatpush2.msra.mxu0 0.0
      %1895 = vmatprep.subr.mxu0 0.0
      %1896 = vmatpush2.msra.mxu0 0.0
      %1897 = vmatprep.subr.mxu0 0.0
      %1898 = vmatpush2.msra.mxu0 0.0
      %1899 = vmatprep.subr.mxu0 0.0
      %1900 = vmatpush2.msra.mxu0 0.0
      %1901 = vmatprep.subr.mxu0 0.0
      %1902 = vmatpush2.msra.mxu0 0.0
      %1903 = vmatprep.subr.mxu0 0.0
      %1904 = vmatpush2.msra.mxu0 0.0
      %1905 = vmatprep.subr.mxu0 0.0
      %1906 = vmatpush2.msra.mxu0 0.0
      %1907 = vmatprep.subr.mxu0 0.0
      %1908 = vmatpush2.msra.mxu0 0.0
      %1909 = vmatprep.subr.mxu0 0.0
      %1910 = vmatpush2.msra.mxu0 0.0
      %1911 = vmatprep.subr.mxu0 0.0
      %1912 = vmatpush2.msra.mxu0 0.0
      %1913 = vmatprep.subr.mxu0 0.0
      %1914 = vmatpush2.msra.mxu0 0.0
      %1915 = vmatprep.subr.mxu0 0.0
      %1916 = vmatpush2.msra.mxu0 0.0
      %1917 = vmatprep.subr.mxu0 0.0
      %1918 = vmatpush2.msra.mxu0 0.0
      %1919 = vmatprep.subr.mxu0 0.0
      %1920 = vmatpush2.msra.mxu0 0.0
      %1921 = vmatprep.subr.mxu0 0.0
      %1922 = vmatpush2.msra.mxu0 0.0
      %1923 = vmatprep.mubr.f32.mxu0 0.0
      %1924 = vmatmul.mubr.f32.gmra.mxu0 %v1778
      %v1925 = vpop.f32.mrf.mxu0
      %v1926 = vadd.f32 0.0, %v1925
      %v1927 = vpop.f32.mrf.mxu0
      %v1928 = vadd.f32 0.0, %v1927
      %1929 = vdwg.mxu0
      %v1930 = vadd.f32 %v1756, %v1855
      %v1931 = vadd.f32 %v1757, %v1857
      %v1932 = vadd.f32 %v1758, %v1926
      %v1933 = vadd.f32 %v1759, %v1928
      %s1934 = scalar_lea.vmem %s3, 72
      %v1935 = vld [vmem:[%s1934] sm:$0xff]
      %1936 = vrot.lane.b32.xlu0 %v369, 11
      %v1937 = vpop.permute.xlu0 %1936
      %1938 = vrot.lane.b32.xlu0 %v365, 11
      %v1939 = vpop.permute.xlu0 %1938
      %1940 = vrot.lane.b32.xlu0 %v372, 11
      %v1941 = vpop.permute.xlu0 %1940
      %1942 = vrot.lane.b32.xlu0 %v366, 11
      %v1943 = vpop.permute.xlu0 %1942
      %1944 = vrot.lane.b32.xlu0 %v373, 11
      %v1945 = vpop.permute.xlu0 %1944
      %vm1946 = vcmask 89088
      %v1947 = vsel %vm1946, %v1937, %v1939
      %v1948 = vsel %vm1946, %v1939, %v1941
      %v1949 = vsel %vm1946, %v1941, %v1943
      %v1950 = vsel %vm1946, %v1943, %v1945
      %v1952 = vsel %vm393, %v1935, 0
      %v1954 = vsel %vm397, %v1947, 0
      %v1956 = vsel %vm397, %v1948, 0
      %v1958 = vsel %vm397, %v1949, 0
      %v1960 = vsel %vm397, %v1950, 0
      %1962 = vmatprep.subr.mxu0 0.0
      %1963 = vmatpush1.msra.mxu0 0.0
      %1964 = vmatprep.subr.mxu0 0.0
      %1965 = vmatpush1.msra.mxu0 0.0
      %1966 = vmatprep.subr.mxu0 0.0
      %1967 = vmatpush1.msra.mxu0 0.0
      %1968 = vmatprep.subr.mxu0 0.0
      %1969 = vmatpush1.msra.mxu0 0.0
      %1970 = vmatprep.subr.mxu0 0.0
      %1971 = vmatpush1.msra.mxu0 0.0
      %1972 = vmatprep.subr.mxu0 0.0
      %1973 = vmatpush1.msra.mxu0 0.0
      %1974 = vmatprep.subr.mxu0 0.0
      %1975 = vmatpush1.msra.mxu0 0.0
      %1976 = vmatprep.subr.mxu0 0.0
      %1977 = vmatpush1.msra.mxu0 0.0
      %1978 = vmatprep.subr.mxu0 0.0
      %1979 = vmatpush1.msra.mxu0 0.0
      %1980 = vmatprep.subr.mxu0 0.0
      %1981 = vmatpush1.msra.mxu0 0.0
      %1982 = vmatprep.subr.mxu0 0.0
      %1983 = vmatpush1.msra.mxu0 0.0
      %1984 = vmatprep.subr.mxu0 0.0
      %1985 = vmatpush1.msra.mxu0 0.0
      %1986 = vmatprep.subr.mxu0 0.0
      %1987 = vmatpush1.msra.mxu0 0.0
      %1988 = vmatprep.subr.mxu0 0.0
      %1989 = vmatpush1.msra.mxu0 0.0
      %1990 = vmatprep.subr.mxu0 0.0
      %1991 = vmatpush1.msra.mxu0 0.0
      %1992 = vmatprep.subr.mxu0 %v1956
      %1993 = vmatpush1.msra.mxu0 %v1954
      %1994 = vmatprep.subr.mxu0 0.0
      %1995 = vmatpush2.msra.mxu0 0.0
      %1996 = vmatprep.subr.mxu0 0.0
      %1997 = vmatpush2.msra.mxu0 0.0
      %1998 = vmatprep.subr.mxu0 0.0
      %1999 = vmatpush2.msra.mxu0 0.0
      %2000 = vmatprep.subr.mxu0 0.0
      %2001 = vmatpush2.msra.mxu0 0.0
      %2002 = vmatprep.subr.mxu0 0.0
      %2003 = vmatpush2.msra.mxu0 0.0
      %2004 = vmatprep.subr.mxu0 0.0
      %2005 = vmatpush2.msra.mxu0 0.0
      %2006 = vmatprep.subr.mxu0 0.0
      %2007 = vmatpush2.msra.mxu0 0.0
      %2008 = vmatprep.subr.mxu0 0.0
      %2009 = vmatpush2.msra.mxu0 0.0
      %2010 = vmatprep.subr.mxu0 0.0
      %2011 = vmatpush2.msra.mxu0 0.0
      %2012 = vmatprep.subr.mxu0 0.0
      %2013 = vmatpush2.msra.mxu0 0.0
      %2014 = vmatprep.subr.mxu0 0.0
      %2015 = vmatpush2.msra.mxu0 0.0
      %2016 = vmatprep.subr.mxu0 0.0
      %2017 = vmatpush2.msra.mxu0 0.0
      %2018 = vmatprep.subr.mxu0 0.0
      %2019 = vmatpush2.msra.mxu0 0.0
      %2020 = vmatprep.subr.mxu0 0.0
      %2021 = vmatpush2.msra.mxu0 0.0
      %2022 = vmatprep.subr.mxu0 0.0
      %2023 = vmatpush2.msra.mxu0 0.0
      %2024 = vmatprep.subr.mxu0 0.0
      %2025 = vmatpush2.msra.mxu0 0.0
      %2026 = vmatprep.mubr.f32.mxu0 0.0
      %2027 = vmatmul.mubr.f32.gmra.mxu0 %v1952
      %v2028 = vpop.f32.mrf.mxu0
      %v2029 = vadd.f32 0.0, %v2028
      %v2030 = vpop.f32.mrf.mxu0
      %v2031 = vadd.f32 0.0, %v2030
      %2032 = vdwg.mxu0
      %2033 = vmatprep.subr.mxu0 0.0
      %2034 = vmatpush1.msra.mxu0 0.0
      %2035 = vmatprep.subr.mxu0 0.0
      %2036 = vmatpush1.msra.mxu0 0.0
      %2037 = vmatprep.subr.mxu0 0.0
      %2038 = vmatpush1.msra.mxu0 0.0
      %2039 = vmatprep.subr.mxu0 0.0
      %2040 = vmatpush1.msra.mxu0 0.0
      %2041 = vmatprep.subr.mxu0 0.0
      %2042 = vmatpush1.msra.mxu0 0.0
      %2043 = vmatprep.subr.mxu0 0.0
      %2044 = vmatpush1.msra.mxu0 0.0
      %2045 = vmatprep.subr.mxu0 0.0
      %2046 = vmatpush1.msra.mxu0 0.0
      %2047 = vmatprep.subr.mxu0 0.0
      %2048 = vmatpush1.msra.mxu0 0.0
      %2049 = vmatprep.subr.mxu0 0.0
      %2050 = vmatpush1.msra.mxu0 0.0
      %2051 = vmatprep.subr.mxu0 0.0
      %2052 = vmatpush1.msra.mxu0 0.0
      %2053 = vmatprep.subr.mxu0 0.0
      %2054 = vmatpush1.msra.mxu0 0.0
      %2055 = vmatprep.subr.mxu0 0.0
      %2056 = vmatpush1.msra.mxu0 0.0
      %2057 = vmatprep.subr.mxu0 0.0
      %2058 = vmatpush1.msra.mxu0 0.0
      %2059 = vmatprep.subr.mxu0 0.0
      %2060 = vmatpush1.msra.mxu0 0.0
      %2061 = vmatprep.subr.mxu0 0.0
      %2062 = vmatpush1.msra.mxu0 0.0
      %2063 = vmatprep.subr.mxu0 %v1960
      %2064 = vmatpush1.msra.mxu0 %v1958
      %2065 = vmatprep.subr.mxu0 0.0
      %2066 = vmatpush2.msra.mxu0 0.0
      %2067 = vmatprep.subr.mxu0 0.0
      %2068 = vmatpush2.msra.mxu0 0.0
      %2069 = vmatprep.subr.mxu0 0.0
      %2070 = vmatpush2.msra.mxu0 0.0
      %2071 = vmatprep.subr.mxu0 0.0
      %2072 = vmatpush2.msra.mxu0 0.0
      %2073 = vmatprep.subr.mxu0 0.0
      %2074 = vmatpush2.msra.mxu0 0.0
      %2075 = vmatprep.subr.mxu0 0.0
      %2076 = vmatpush2.msra.mxu0 0.0
      %2077 = vmatprep.subr.mxu0 0.0
      %2078 = vmatpush2.msra.mxu0 0.0
      %2079 = vmatprep.subr.mxu0 0.0
      %2080 = vmatpush2.msra.mxu0 0.0
      %2081 = vmatprep.subr.mxu0 0.0
      %2082 = vmatpush2.msra.mxu0 0.0
      %2083 = vmatprep.subr.mxu0 0.0
      %2084 = vmatpush2.msra.mxu0 0.0
      %2085 = vmatprep.subr.mxu0 0.0
      %2086 = vmatpush2.msra.mxu0 0.0
      %2087 = vmatprep.subr.mxu0 0.0
      %2088 = vmatpush2.msra.mxu0 0.0
      %2089 = vmatprep.subr.mxu0 0.0
      %2090 = vmatpush2.msra.mxu0 0.0
      %2091 = vmatprep.subr.mxu0 0.0
      %2092 = vmatpush2.msra.mxu0 0.0
      %2093 = vmatprep.subr.mxu0 0.0
      %2094 = vmatpush2.msra.mxu0 0.0
      %2095 = vmatprep.subr.mxu0 0.0
      %2096 = vmatpush2.msra.mxu0 0.0
      %2097 = vmatprep.mubr.f32.mxu0 0.0
      %2098 = vmatmul.mubr.f32.gmra.mxu0 %v1952
      %v2099 = vpop.f32.mrf.mxu0
      %v2100 = vadd.f32 0.0, %v2099
      %v2101 = vpop.f32.mrf.mxu0
      %v2102 = vadd.f32 0.0, %v2101
      %2103 = vdwg.mxu0
      %v2104 = vadd.f32 %v1930, %v2029
      %v2105 = vadd.f32 %v1931, %v2031
      %v2106 = vadd.f32 %v1932, %v2100
      %v2107 = vadd.f32 %v1933, %v2102
      %s2108 = scalar_lea.vmem %s3, 80
      %v2109 = vld [vmem:[%s2108] sm:$0xff]
      %2110 = vrot.lane.b32.xlu0 %v369, 10
      %v2111 = vpop.permute.xlu0 %2110
      %2112 = vrot.lane.b32.xlu0 %v365, 10
      %v2113 = vpop.permute.xlu0 %2112
      %2114 = vrot.lane.b32.xlu0 %v372, 10
      %v2115 = vpop.permute.xlu0 %2114
      %2116 = vrot.lane.b32.xlu0 %v366, 10
      %v2117 = vpop.permute.xlu0 %2116
      %2118 = vrot.lane.b32.xlu0 %v373, 10
      %v2119 = vpop.permute.xlu0 %2118
      %vm2120 = vcmask 80896
      %v2121 = vsel %vm2120, %v2111, %v2113
      %v2122 = vsel %vm2120, %v2113, %v2115
      %v2123 = vsel %vm2120, %v2115, %v2117
      %v2124 = vsel %vm2120, %v2117, %v2119
      %v2126 = vsel %vm393, %v2109, 0
      %v2128 = vsel %vm397, %v2121, 0
      %v2130 = vsel %vm397, %v2122, 0
      %v2132 = vsel %vm397, %v2123, 0
      %v2134 = vsel %vm397, %v2124, 0
      %2136 = vmatprep.subr.mxu0 0.0
      %2137 = vmatpush1.msra.mxu0 0.0
      %2138 = vmatprep.subr.mxu0 0.0
      %2139 = vmatpush1.msra.mxu0 0.0
      %2140 = vmatprep.subr.mxu0 0.0
      %2141 = vmatpush1.msra.mxu0 0.0
      %2142 = vmatprep.subr.mxu0 0.0
      %2143 = vmatpush1.msra.mxu0 0.0
      %2144 = vmatprep.subr.mxu0 0.0
      %2145 = vmatpush1.msra.mxu0 0.0
      %2146 = vmatprep.subr.mxu0 0.0
      %2147 = vmatpush1.msra.mxu0 0.0
      %2148 = vmatprep.subr.mxu0 0.0
      %2149 = vmatpush1.msra.mxu0 0.0
      %2150 = vmatprep.subr.mxu0 0.0
      %2151 = vmatpush1.msra.mxu0 0.0
      %2152 = vmatprep.subr.mxu0 0.0
      %2153 = vmatpush1.msra.mxu0 0.0
      %2154 = vmatprep.subr.mxu0 0.0
      %2155 = vmatpush1.msra.mxu0 0.0
      %2156 = vmatprep.subr.mxu0 0.0
      %2157 = vmatpush1.msra.mxu0 0.0
      %2158 = vmatprep.subr.mxu0 0.0
      %2159 = vmatpush1.msra.mxu0 0.0
      %2160 = vmatprep.subr.mxu0 0.0
      %2161 = vmatpush1.msra.mxu0 0.0
      %2162 = vmatprep.subr.mxu0 0.0
      %2163 = vmatpush1.msra.mxu0 0.0
      %2164 = vmatprep.subr.mxu0 0.0
      %2165 = vmatpush1.msra.mxu0 0.0
      %2166 = vmatprep.subr.mxu0 %v2130
      %2167 = vmatpush1.msra.mxu0 %v2128
      %2168 = vmatprep.subr.mxu0 0.0
      %2169 = vmatpush2.msra.mxu0 0.0
      %2170 = vmatprep.subr.mxu0 0.0
      %2171 = vmatpush2.msra.mxu0 0.0
      %2172 = vmatprep.subr.mxu0 0.0
      %2173 = vmatpush2.msra.mxu0 0.0
      %2174 = vmatprep.subr.mxu0 0.0
      %2175 = vmatpush2.msra.mxu0 0.0
      %2176 = vmatprep.subr.mxu0 0.0
      %2177 = vmatpush2.msra.mxu0 0.0
      %2178 = vmatprep.subr.mxu0 0.0
      %2179 = vmatpush2.msra.mxu0 0.0
      %2180 = vmatprep.subr.mxu0 0.0
      %2181 = vmatpush2.msra.mxu0 0.0
      %2182 = vmatprep.subr.mxu0 0.0
      %2183 = vmatpush2.msra.mxu0 0.0
      %2184 = vmatprep.subr.mxu0 0.0
      %2185 = vmatpush2.msra.mxu0 0.0
      %2186 = vmatprep.subr.mxu0 0.0
      %2187 = vmatpush2.msra.mxu0 0.0
      %2188 = vmatprep.subr.mxu0 0.0
      %2189 = vmatpush2.msra.mxu0 0.0
      %2190 = vmatprep.subr.mxu0 0.0
      %2191 = vmatpush2.msra.mxu0 0.0
      %2192 = vmatprep.subr.mxu0 0.0
      %2193 = vmatpush2.msra.mxu0 0.0
      %2194 = vmatprep.subr.mxu0 0.0
      %2195 = vmatpush2.msra.mxu0 0.0
      %2196 = vmatprep.subr.mxu0 0.0
      %2197 = vmatpush2.msra.mxu0 0.0
      %2198 = vmatprep.subr.mxu0 0.0
      %2199 = vmatpush2.msra.mxu0 0.0
      %2200 = vmatprep.mubr.f32.mxu0 0.0
      %2201 = vmatmul.mubr.f32.gmra.mxu0 %v2126
      %v2202 = vpop.f32.mrf.mxu0
      %v2203 = vadd.f32 0.0, %v2202
      %v2204 = vpop.f32.mrf.mxu0
      %v2205 = vadd.f32 0.0, %v2204
      %2206 = vdwg.mxu0
      %2207 = vmatprep.subr.mxu0 0.0
      %2208 = vmatpush1.msra.mxu0 0.0
      %2209 = vmatprep.subr.mxu0 0.0
      %2210 = vmatpush1.msra.mxu0 0.0
      %2211 = vmatprep.subr.mxu0 0.0
      %2212 = vmatpush1.msra.mxu0 0.0
      %2213 = vmatprep.subr.mxu0 0.0
      %2214 = vmatpush1.msra.mxu0 0.0
      %2215 = vmatprep.subr.mxu0 0.0
      %2216 = vmatpush1.msra.mxu0 0.0
      %2217 = vmatprep.subr.mxu0 0.0
      %2218 = vmatpush1.msra.mxu0 0.0
      %2219 = vmatprep.subr.mxu0 0.0
      %2220 = vmatpush1.msra.mxu0 0.0
      %2221 = vmatprep.subr.mxu0 0.0
      %2222 = vmatpush1.msra.mxu0 0.0
      %2223 = vmatprep.subr.mxu0 0.0
      %2224 = vmatpush1.msra.mxu0 0.0
      %2225 = vmatprep.subr.mxu0 0.0
      %2226 = vmatpush1.msra.mxu0 0.0
      %2227 = vmatprep.subr.mxu0 0.0
      %2228 = vmatpush1.msra.mxu0 0.0
      %2229 = vmatprep.subr.mxu0 0.0
      %2230 = vmatpush1.msra.mxu0 0.0
      %2231 = vmatprep.subr.mxu0 0.0
      %2232 = vmatpush1.msra.mxu0 0.0
      %2233 = vmatprep.subr.mxu0 0.0
      %2234 = vmatpush1.msra.mxu0 0.0
      %2235 = vmatprep.subr.mxu0 0.0
      %2236 = vmatpush1.msra.mxu0 0.0
      %2237 = vmatprep.subr.mxu0 %v2134
      %2238 = vmatpush1.msra.mxu0 %v2132
      %2239 = vmatprep.subr.mxu0 0.0
      %2240 = vmatpush2.msra.mxu0 0.0
      %2241 = vmatprep.subr.mxu0 0.0
      %2242 = vmatpush2.msra.mxu0 0.0
      %2243 = vmatprep.subr.mxu0 0.0
      %2244 = vmatpush2.msra.mxu0 0.0
      %2245 = vmatprep.subr.mxu0 0.0
      %2246 = vmatpush2.msra.mxu0 0.0
      %2247 = vmatprep.subr.mxu0 0.0
      %2248 = vmatpush2.msra.mxu0 0.0
      %2249 = vmatprep.subr.mxu0 0.0
      %2250 = vmatpush2.msra.mxu0 0.0
      %2251 = vmatprep.subr.mxu0 0.0
      %2252 = vmatpush2.msra.mxu0 0.0
      %2253 = vmatprep.subr.mxu0 0.0
      %2254 = vmatpush2.msra.mxu0 0.0
      %2255 = vmatprep.subr.mxu0 0.0
      %2256 = vmatpush2.msra.mxu0 0.0
      %2257 = vmatprep.subr.mxu0 0.0
      %2258 = vmatpush2.msra.mxu0 0.0
      %2259 = vmatprep.subr.mxu0 0.0
      %2260 = vmatpush2.msra.mxu0 0.0
      %2261 = vmatprep.subr.mxu0 0.0
      %2262 = vmatpush2.msra.mxu0 0.0
      %2263 = vmatprep.subr.mxu0 0.0
      %2264 = vmatpush2.msra.mxu0 0.0
      %2265 = vmatprep.subr.mxu0 0.0
      %2266 = vmatpush2.msra.mxu0 0.0
      %2267 = vmatprep.subr.mxu0 0.0
      %2268 = vmatpush2.msra.mxu0 0.0
      %2269 = vmatprep.subr.mxu0 0.0
      %2270 = vmatpush2.msra.mxu0 0.0
      %2271 = vmatprep.mubr.f32.mxu0 0.0
      %2272 = vmatmul.mubr.f32.gmra.mxu0 %v2126
      %v2273 = vpop.f32.mrf.mxu0
      %v2274 = vadd.f32 0.0, %v2273
      %v2275 = vpop.f32.mrf.mxu0
      %v2276 = vadd.f32 0.0, %v2275
      %2277 = vdwg.mxu0
      %v2278 = vadd.f32 %v2104, %v2203
      %v2279 = vadd.f32 %v2105, %v2205
      %v2280 = vadd.f32 %v2106, %v2274
      %v2281 = vadd.f32 %v2107, %v2276
      %s2282 = scalar_lea.vmem %s3, 88
      %v2283 = vld [vmem:[%s2282] sm:$0xff]
      %2284 = vrot.lane.b32.xlu0 %v369, 9
      %v2285 = vpop.permute.xlu0 %2284
      %2286 = vrot.lane.b32.xlu0 %v365, 9
      %v2287 = vpop.permute.xlu0 %2286
      %2288 = vrot.lane.b32.xlu0 %v372, 9
      %v2289 = vpop.permute.xlu0 %2288
      %2290 = vrot.lane.b32.xlu0 %v366, 9
      %v2291 = vpop.permute.xlu0 %2290
      %2292 = vrot.lane.b32.xlu0 %v373, 9
      %v2293 = vpop.permute.xlu0 %2292
      %vm2294 = vcmask 72704
      %v2295 = vsel %vm2294, %v2285, %v2287
      %v2296 = vsel %vm2294, %v2287, %v2289
      %v2297 = vsel %vm2294, %v2289, %v2291
      %v2298 = vsel %vm2294, %v2291, %v2293
      %v2300 = vsel %vm393, %v2283, 0
      %v2302 = vsel %vm397, %v2295, 0
      %v2304 = vsel %vm397, %v2296, 0
      %v2306 = vsel %vm397, %v2297, 0
      %v2308 = vsel %vm397, %v2298, 0
      %2310 = vmatprep.subr.mxu0 0.0
      %2311 = vmatpush1.msra.mxu0 0.0
      %2312 = vmatprep.subr.mxu0 0.0
      %2313 = vmatpush1.msra.mxu0 0.0
      %2314 = vmatprep.subr.mxu0 0.0
      %2315 = vmatpush1.msra.mxu0 0.0
      %2316 = vmatprep.subr.mxu0 0.0
      %2317 = vmatpush1.msra.mxu0 0.0
      %2318 = vmatprep.subr.mxu0 0.0
      %2319 = vmatpush1.msra.mxu0 0.0
      %2320 = vmatprep.subr.mxu0 0.0
      %2321 = vmatpush1.msra.mxu0 0.0
      %2322 = vmatprep.subr.mxu0 0.0
      %2323 = vmatpush1.msra.mxu0 0.0
      %2324 = vmatprep.subr.mxu0 0.0
      %2325 = vmatpush1.msra.mxu0 0.0
      %2326 = vmatprep.subr.mxu0 0.0
      %2327 = vmatpush1.msra.mxu0 0.0
      %2328 = vmatprep.subr.mxu0 0.0
      %2329 = vmatpush1.msra.mxu0 0.0
      %2330 = vmatprep.subr.mxu0 0.0
      %2331 = vmatpush1.msra.mxu0 0.0
      %2332 = vmatprep.subr.mxu0 0.0
      %2333 = vmatpush1.msra.mxu0 0.0
      %2334 = vmatprep.subr.mxu0 0.0
      %2335 = vmatpush1.msra.mxu0 0.0
      %2336 = vmatprep.subr.mxu0 0.0
      %2337 = vmatpush1.msra.mxu0 0.0
      %2338 = vmatprep.subr.mxu0 0.0
      %2339 = vmatpush1.msra.mxu0 0.0
      %2340 = vmatprep.subr.mxu0 %v2304
      %2341 = vmatpush1.msra.mxu0 %v2302
      %2342 = vmatprep.subr.mxu0 0.0
      %2343 = vmatpush2.msra.mxu0 0.0
      %2344 = vmatprep.subr.mxu0 0.0
      %2345 = vmatpush2.msra.mxu0 0.0
      %2346 = vmatprep.subr.mxu0 0.0
      %2347 = vmatpush2.msra.mxu0 0.0
      %2348 = vmatprep.subr.mxu0 0.0
      %2349 = vmatpush2.msra.mxu0 0.0
      %2350 = vmatprep.subr.mxu0 0.0
      %2351 = vmatpush2.msra.mxu0 0.0
      %2352 = vmatprep.subr.mxu0 0.0
      %2353 = vmatpush2.msra.mxu0 0.0
      %2354 = vmatprep.subr.mxu0 0.0
      %2355 = vmatpush2.msra.mxu0 0.0
      %2356 = vmatprep.subr.mxu0 0.0
      %2357 = vmatpush2.msra.mxu0 0.0
      %2358 = vmatprep.subr.mxu0 0.0
      %2359 = vmatpush2.msra.mxu0 0.0
      %2360 = vmatprep.subr.mxu0 0.0
      %2361 = vmatpush2.msra.mxu0 0.0
      %2362 = vmatprep.subr.mxu0 0.0
      %2363 = vmatpush2.msra.mxu0 0.0
      %2364 = vmatprep.subr.mxu0 0.0
      %2365 = vmatpush2.msra.mxu0 0.0
      %2366 = vmatprep.subr.mxu0 0.0
      %2367 = vmatpush2.msra.mxu0 0.0
      %2368 = vmatprep.subr.mxu0 0.0
      %2369 = vmatpush2.msra.mxu0 0.0
      %2370 = vmatprep.subr.mxu0 0.0
      %2371 = vmatpush2.msra.mxu0 0.0
      %2372 = vmatprep.subr.mxu0 0.0
      %2373 = vmatpush2.msra.mxu0 0.0
      %2374 = vmatprep.mubr.f32.mxu0 0.0
      %2375 = vmatmul.mubr.f32.gmra.mxu0 %v2300
      %v2376 = vpop.f32.mrf.mxu0
      %v2377 = vadd.f32 0.0, %v2376
      %v2378 = vpop.f32.mrf.mxu0
      %v2379 = vadd.f32 0.0, %v2378
      %2380 = vdwg.mxu0
      %2381 = vmatprep.subr.mxu0 0.0
      %2382 = vmatpush1.msra.mxu0 0.0
      %2383 = vmatprep.subr.mxu0 0.0
      %2384 = vmatpush1.msra.mxu0 0.0
      %2385 = vmatprep.subr.mxu0 0.0
      %2386 = vmatpush1.msra.mxu0 0.0
      %2387 = vmatprep.subr.mxu0 0.0
      %2388 = vmatpush1.msra.mxu0 0.0
      %2389 = vmatprep.subr.mxu0 0.0
      %2390 = vmatpush1.msra.mxu0 0.0
      %2391 = vmatprep.subr.mxu0 0.0
      %2392 = vmatpush1.msra.mxu0 0.0
      %2393 = vmatprep.subr.mxu0 0.0
      %2394 = vmatpush1.msra.mxu0 0.0
      %2395 = vmatprep.subr.mxu0 0.0
      %2396 = vmatpush1.msra.mxu0 0.0
      %2397 = vmatprep.subr.mxu0 0.0
      %2398 = vmatpush1.msra.mxu0 0.0
      %2399 = vmatprep.subr.mxu0 0.0
      %2400 = vmatpush1.msra.mxu0 0.0
      %2401 = vmatprep.subr.mxu0 0.0
      %2402 = vmatpush1.msra.mxu0 0.0
      %2403 = vmatprep.subr.mxu0 0.0
      %2404 = vmatpush1.msra.mxu0 0.0
      %2405 = vmatprep.subr.mxu0 0.0
      %2406 = vmatpush1.msra.mxu0 0.0
      %2407 = vmatprep.subr.mxu0 0.0
      %2408 = vmatpush1.msra.mxu0 0.0
      %2409 = vmatprep.subr.mxu0 0.0
      %2410 = vmatpush1.msra.mxu0 0.0
      %2411 = vmatprep.subr.mxu0 %v2308
      %2412 = vmatpush1.msra.mxu0 %v2306
      %2413 = vmatprep.subr.mxu0 0.0
      %2414 = vmatpush2.msra.mxu0 0.0
      %2415 = vmatprep.subr.mxu0 0.0
      %2416 = vmatpush2.msra.mxu0 0.0
      %2417 = vmatprep.subr.mxu0 0.0
      %2418 = vmatpush2.msra.mxu0 0.0
      %2419 = vmatprep.subr.mxu0 0.0
      %2420 = vmatpush2.msra.mxu0 0.0
      %2421 = vmatprep.subr.mxu0 0.0
      %2422 = vmatpush2.msra.mxu0 0.0
      %2423 = vmatprep.subr.mxu0 0.0
      %2424 = vmatpush2.msra.mxu0 0.0
      %2425 = vmatprep.subr.mxu0 0.0
      %2426 = vmatpush2.msra.mxu0 0.0
      %2427 = vmatprep.subr.mxu0 0.0
      %2428 = vmatpush2.msra.mxu0 0.0
      %2429 = vmatprep.subr.mxu0 0.0
      %2430 = vmatpush2.msra.mxu0 0.0
      %2431 = vmatprep.subr.mxu0 0.0
      %2432 = vmatpush2.msra.mxu0 0.0
      %2433 = vmatprep.subr.mxu0 0.0
      %2434 = vmatpush2.msra.mxu0 0.0
      %2435 = vmatprep.subr.mxu0 0.0
      %2436 = vmatpush2.msra.mxu0 0.0
      %2437 = vmatprep.subr.mxu0 0.0
      %2438 = vmatpush2.msra.mxu0 0.0
      %2439 = vmatprep.subr.mxu0 0.0
      %2440 = vmatpush2.msra.mxu0 0.0
      %2441 = vmatprep.subr.mxu0 0.0
      %2442 = vmatpush2.msra.mxu0 0.0
      %2443 = vmatprep.subr.mxu0 0.0
      %2444 = vmatpush2.msra.mxu0 0.0
      %2445 = vmatprep.mubr.f32.mxu0 0.0
      %2446 = vmatmul.mubr.f32.gmra.mxu0 %v2300
      %v2447 = vpop.f32.mrf.mxu0
      %v2448 = vadd.f32 0.0, %v2447
      %v2449 = vpop.f32.mrf.mxu0
      %v2450 = vadd.f32 0.0, %v2449
      %2451 = vdwg.mxu0
      %v2452 = vadd.f32 %v2278, %v2377
      %v2453 = vadd.f32 %v2279, %v2379
      %v2454 = vadd.f32 %v2280, %v2448
      %v2455 = vadd.f32 %v2281, %v2450
      %s2456 = scalar_lea.vmem %s3, 96
      %v2457 = vld [vmem:[%s2456] sm:$0xff]
      %2458 = vrot.lane.b32.xlu0 %v369, 1
      %v2459 = vpop.permute.xlu0 %2458
      %2460 = vrot.lane.b32.xlu0 %v365, 1
      %v2461 = vpop.permute.xlu0 %2460
      %2462 = vrot.lane.b32.xlu0 %v372, 1
      %v2463 = vpop.permute.xlu0 %2462
      %2464 = vrot.lane.b32.xlu0 %v366, 1
      %v2465 = vpop.permute.xlu0 %2464
      %2466 = vrot.lane.b32.xlu0 %v373, 1
      %v2467 = vpop.permute.xlu0 %2466
      %vm2468 = vcmask 7168
      %v2469 = vsel %vm2468, %v2459, %v2461
      %v2470 = vsel %vm2468, %v2461, %v2463
      %v2471 = vsel %vm2468, %v2463, %v2465
      %v2472 = vsel %vm2468, %v2465, %v2467
      %v2474 = vsel %vm393, %v2457, 0
      %v2476 = vsel %vm397, %v2469, 0
      %v2478 = vsel %vm397, %v2470, 0
      %v2480 = vsel %vm397, %v2471, 0
      %v2482 = vsel %vm397, %v2472, 0
      %2484 = vmatprep.subr.mxu0 0.0
      %2485 = vmatpush1.msra.mxu0 0.0
      %2486 = vmatprep.subr.mxu0 0.0
      %2487 = vmatpush1.msra.mxu0 0.0
      %2488 = vmatprep.subr.mxu0 0.0
      %2489 = vmatpush1.msra.mxu0 0.0
      %2490 = vmatprep.subr.mxu0 0.0
      %2491 = vmatpush1.msra.mxu0 0.0
      %2492 = vmatprep.subr.mxu0 0.0
      %2493 = vmatpush1.msra.mxu0 0.0
      %2494 = vmatprep.subr.mxu0 0.0
      %2495 = vmatpush1.msra.mxu0 0.0
      %2496 = vmatprep.subr.mxu0 0.0
      %2497 = vmatpush1.msra.mxu0 0.0
      %2498 = vmatprep.subr.mxu0 0.0
      %2499 = vmatpush1.msra.mxu0 0.0
      %2500 = vmatprep.subr.mxu0 0.0
      %2501 = vmatpush1.msra.mxu0 0.0
      %2502 = vmatprep.subr.mxu0 0.0
      %2503 = vmatpush1.msra.mxu0 0.0
      %2504 = vmatprep.subr.mxu0 0.0
      %2505 = vmatpush1.msra.mxu0 0.0
      %2506 = vmatprep.subr.mxu0 0.0
      %2507 = vmatpush1.msra.mxu0 0.0
      %2508 = vmatprep.subr.mxu0 0.0
      %2509 = vmatpush1.msra.mxu0 0.0
      %2510 = vmatprep.subr.mxu0 0.0
      %2511 = vmatpush1.msra.mxu0 0.0
      %2512 = vmatprep.subr.mxu0 0.0
      %2513 = vmatpush1.msra.mxu0 0.0
      %2514 = vmatprep.subr.mxu0 %v2478
      %2515 = vmatpush1.msra.mxu0 %v2476
      %2516 = vmatprep.subr.mxu0 0.0
      %2517 = vmatpush2.msra.mxu0 0.0
      %2518 = vmatprep.subr.mxu0 0.0
      %2519 = vmatpush2.msra.mxu0 0.0
      %2520 = vmatprep.subr.mxu0 0.0
      %2521 = vmatpush2.msra.mxu0 0.0
      %2522 = vmatprep.subr.mxu0 0.0
      %2523 = vmatpush2.msra.mxu0 0.0
      %2524 = vmatprep.subr.mxu0 0.0
      %2525 = vmatpush2.msra.mxu0 0.0
      %2526 = vmatprep.subr.mxu0 0.0
      %2527 = vmatpush2.msra.mxu0 0.0
      %2528 = vmatprep.subr.mxu0 0.0
      %2529 = vmatpush2.msra.mxu0 0.0
      %2530 = vmatprep.subr.mxu0 0.0
      %2531 = vmatpush2.msra.mxu0 0.0
      %2532 = vmatprep.subr.mxu0 0.0
      %2533 = vmatpush2.msra.mxu0 0.0
      %2534 = vmatprep.subr.mxu0 0.0
      %2535 = vmatpush2.msra.mxu0 0.0
      %2536 = vmatprep.subr.mxu0 0.0
      %2537 = vmatpush2.msra.mxu0 0.0
      %2538 = vmatprep.subr.mxu0 0.0
      %2539 = vmatpush2.msra.mxu0 0.0
      %2540 = vmatprep.subr.mxu0 0.0
      %2541 = vmatpush2.msra.mxu0 0.0
      %2542 = vmatprep.subr.mxu0 0.0
      %2543 = vmatpush2.msra.mxu0 0.0
      %2544 = vmatprep.subr.mxu0 0.0
      %2545 = vmatpush2.msra.mxu0 0.0
      %2546 = vmatprep.subr.mxu0 0.0
      %2547 = vmatpush2.msra.mxu0 0.0
      %2548 = vmatprep.mubr.f32.mxu0 0.0
      %2549 = vmatmul.mubr.f32.gmra.mxu0 %v2474
      %v2550 = vpop.f32.mrf.mxu0
      %v2551 = vadd.f32 0.0, %v2550
      %v2552 = vpop.f32.mrf.mxu0
      %v2553 = vadd.f32 0.0, %v2552
      %2554 = vdwg.mxu0
      %2555 = vmatprep.subr.mxu0 0.0
      %2556 = vmatpush1.msra.mxu0 0.0
      %2557 = vmatprep.subr.mxu0 0.0
      %2558 = vmatpush1.msra.mxu0 0.0
      %2559 = vmatprep.subr.mxu0 0.0
      %2560 = vmatpush1.msra.mxu0 0.0
      %2561 = vmatprep.subr.mxu0 0.0
      %2562 = vmatpush1.msra.mxu0 0.0
      %2563 = vmatprep.subr.mxu0 0.0
      %2564 = vmatpush1.msra.mxu0 0.0
      %2565 = vmatprep.subr.mxu0 0.0
      %2566 = vmatpush1.msra.mxu0 0.0
      %2567 = vmatprep.subr.mxu0 0.0
      %2568 = vmatpush1.msra.mxu0 0.0
      %2569 = vmatprep.subr.mxu0 0.0
      %2570 = vmatpush1.msra.mxu0 0.0
      %2571 = vmatprep.subr.mxu0 0.0
      %2572 = vmatpush1.msra.mxu0 0.0
      %2573 = vmatprep.subr.mxu0 0.0
      %2574 = vmatpush1.msra.mxu0 0.0
      %2575 = vmatprep.subr.mxu0 0.0
      %2576 = vmatpush1.msra.mxu0 0.0
      %2577 = vmatprep.subr.mxu0 0.0
      %2578 = vmatpush1.msra.mxu0 0.0
      %2579 = vmatprep.subr.mxu0 0.0
      %2580 = vmatpush1.msra.mxu0 0.0
      %2581 = vmatprep.subr.mxu0 0.0
      %2582 = vmatpush1.msra.mxu0 0.0
      %2583 = vmatprep.subr.mxu0 0.0
      %2584 = vmatpush1.msra.mxu0 0.0
      %2585 = vmatprep.subr.mxu0 %v2482
      %2586 = vmatpush1.msra.mxu0 %v2480
      %2587 = vmatprep.subr.mxu0 0.0
      %2588 = vmatpush2.msra.mxu0 0.0
      %2589 = vmatprep.subr.mxu0 0.0
      %2590 = vmatpush2.msra.mxu0 0.0
      %2591 = vmatprep.subr.mxu0 0.0
      %2592 = vmatpush2.msra.mxu0 0.0
      %2593 = vmatprep.subr.mxu0 0.0
      %2594 = vmatpush2.msra.mxu0 0.0
      %2595 = vmatprep.subr.mxu0 0.0
      %2596 = vmatpush2.msra.mxu0 0.0
      %2597 = vmatprep.subr.mxu0 0.0
      %2598 = vmatpush2.msra.mxu0 0.0
      %2599 = vmatprep.subr.mxu0 0.0
      %2600 = vmatpush2.msra.mxu0 0.0
      %2601 = vmatprep.subr.mxu0 0.0
      %2602 = vmatpush2.msra.mxu0 0.0
      %2603 = vmatprep.subr.mxu0 0.0
      %2604 = vmatpush2.msra.mxu0 0.0
      %2605 = vmatprep.subr.mxu0 0.0
      %2606 = vmatpush2.msra.mxu0 0.0
      %2607 = vmatprep.subr.mxu0 0.0
      %2608 = vmatpush2.msra.mxu0 0.0
      %2609 = vmatprep.subr.mxu0 0.0
      %2610 = vmatpush2.msra.mxu0 0.0
      %2611 = vmatprep.subr.mxu0 0.0
      %2612 = vmatpush2.msra.mxu0 0.0
      %2613 = vmatprep.subr.mxu0 0.0
      %2614 = vmatpush2.msra.mxu0 0.0
      %2615 = vmatprep.subr.mxu0 0.0
      %2616 = vmatpush2.msra.mxu0 0.0
      %2617 = vmatprep.subr.mxu0 0.0
      %2618 = vmatpush2.msra.mxu0 0.0
      %2619 = vmatprep.mubr.f32.mxu0 0.0
      %2620 = vmatmul.mubr.f32.gmra.mxu0 %v2474
      %v2621 = vpop.f32.mrf.mxu0
      %v2622 = vadd.f32 0.0, %v2621
      %v2623 = vpop.f32.mrf.mxu0
      %v2624 = vadd.f32 0.0, %v2623
      %2625 = vdwg.mxu0
      %v2626 = vadd.f32 %v2452, %v2551
      %v2627 = vadd.f32 %v2453, %v2553
      %v2628 = vadd.f32 %v2454, %v2622
      %v2629 = vadd.f32 %v2455, %v2624
      %s2630 = scalar_lea.vmem %s3, 104
      %v2631 = vld [vmem:[%s2630] sm:$0xff]
      %v2633 = vsel %vm393, %v2631, 0
      %v2635 = vsel %vm397, %v365, 0
      %v2637 = vsel %vm397, %v372, 0
      %v2639 = vsel %vm397, %v366, 0
      %v2641 = vsel %vm397, %v373, 0
      %2643 = vmatprep.subr.mxu0 0.0
      %2644 = vmatpush1.msra.mxu0 0.0
      %2645 = vmatprep.subr.mxu0 0.0
      %2646 = vmatpush1.msra.mxu0 0.0
      %2647 = vmatprep.subr.mxu0 0.0
      %2648 = vmatpush1.msra.mxu0 0.0
      %2649 = vmatprep.subr.mxu0 0.0
      %2650 = vmatpush1.msra.mxu0 0.0
      %2651 = vmatprep.subr.mxu0 0.0
      %2652 = vmatpush1.msra.mxu0 0.0
      %2653 = vmatprep.subr.mxu0 0.0
      %2654 = vmatpush1.msra.mxu0 0.0
      %2655 = vmatprep.subr.mxu0 0.0
      %2656 = vmatpush1.msra.mxu0 0.0
      %2657 = vmatprep.subr.mxu0 0.0
      %2658 = vmatpush1.msra.mxu0 0.0
      %2659 = vmatprep.subr.mxu0 0.0
      %2660 = vmatpush1.msra.mxu0 0.0
      %2661 = vmatprep.subr.mxu0 0.0
      %2662 = vmatpush1.msra.mxu0 0.0
      %2663 = vmatprep.subr.mxu0 0.0
      %2664 = vmatpush1.msra.mxu0 0.0
      %2665 = vmatprep.subr.mxu0 0.0
      %2666 = vmatpush1.msra.mxu0 0.0
      %2667 = vmatprep.subr.mxu0 0.0
      %2668 = vmatpush1.msra.mxu0 0.0
      %2669 = vmatprep.subr.mxu0 0.0
      %2670 = vmatpush1.msra.mxu0 0.0
      %2671 = vmatprep.subr.mxu0 0.0
      %2672 = vmatpush1.msra.mxu0 0.0
      %2673 = vmatprep.subr.mxu0 %v2637
      %2674 = vmatpush1.msra.mxu0 %v2635
      %2675 = vmatprep.subr.mxu0 0.0
      %2676 = vmatpush2.msra.mxu0 0.0
      %2677 = vmatprep.subr.mxu0 0.0
      %2678 = vmatpush2.msra.mxu0 0.0
      %2679 = vmatprep.subr.mxu0 0.0
      %2680 = vmatpush2.msra.mxu0 0.0
      %2681 = vmatprep.subr.mxu0 0.0
      %2682 = vmatpush2.msra.mxu0 0.0
      %2683 = vmatprep.subr.mxu0 0.0
      %2684 = vmatpush2.msra.mxu0 0.0
      %2685 = vmatprep.subr.mxu0 0.0
      %2686 = vmatpush2.msra.mxu0 0.0
      %2687 = vmatprep.subr.mxu0 0.0
      %2688 = vmatpush2.msra.mxu0 0.0
      %2689 = vmatprep.subr.mxu0 0.0
      %2690 = vmatpush2.msra.mxu0 0.0
      %2691 = vmatprep.subr.mxu0 0.0
      %2692 = vmatpush2.msra.mxu0 0.0
      %2693 = vmatprep.subr.mxu0 0.0
      %2694 = vmatpush2.msra.mxu0 0.0
      %2695 = vmatprep.subr.mxu0 0.0
      %2696 = vmatpush2.msra.mxu0 0.0
      %2697 = vmatprep.subr.mxu0 0.0
      %2698 = vmatpush2.msra.mxu0 0.0
      %2699 = vmatprep.subr.mxu0 0.0
      %2700 = vmatpush2.msra.mxu0 0.0
      %2701 = vmatprep.subr.mxu0 0.0
      %2702 = vmatpush2.msra.mxu0 0.0
      %2703 = vmatprep.subr.mxu0 0.0
      %2704 = vmatpush2.msra.mxu0 0.0
      %2705 = vmatprep.subr.mxu0 0.0
      %2706 = vmatpush2.msra.mxu0 0.0
      %2707 = vmatprep.mubr.f32.mxu0 0.0
      %2708 = vmatmul.mubr.f32.gmra.mxu0 %v2633
      %v2709 = vpop.f32.mrf.mxu0
      %v2710 = vadd.f32 0.0, %v2709
      %v2711 = vpop.f32.mrf.mxu0
      %v2712 = vadd.f32 0.0, %v2711
      %2713 = vdwg.mxu0
      %2714 = vmatprep.subr.mxu0 0.0
      %2715 = vmatpush1.msra.mxu0 0.0
      %2716 = vmatprep.subr.mxu0 0.0
      %2717 = vmatpush1.msra.mxu0 0.0
      %2718 = vmatprep.subr.mxu0 0.0
      %2719 = vmatpush1.msra.mxu0 0.0
      %2720 = vmatprep.subr.mxu0 0.0
      %2721 = vmatpush1.msra.mxu0 0.0
      %2722 = vmatprep.subr.mxu0 0.0
      %2723 = vmatpush1.msra.mxu0 0.0
      %2724 = vmatprep.subr.mxu0 0.0
      %2725 = vmatpush1.msra.mxu0 0.0
      %2726 = vmatprep.subr.mxu0 0.0
      %2727 = vmatpush1.msra.mxu0 0.0
      %2728 = vmatprep.subr.mxu0 0.0
      %2729 = vmatpush1.msra.mxu0 0.0
      %2730 = vmatprep.subr.mxu0 0.0
      %2731 = vmatpush1.msra.mxu0 0.0
      %2732 = vmatprep.subr.mxu0 0.0
      %2733 = vmatpush1.msra.mxu0 0.0
      %2734 = vmatprep.subr.mxu0 0.0
      %2735 = vmatpush1.msra.mxu0 0.0
      %2736 = vmatprep.subr.mxu0 0.0
      %2737 = vmatpush1.msra.mxu0 0.0
      %2738 = vmatprep.subr.mxu0 0.0
      %2739 = vmatpush1.msra.mxu0 0.0
      %2740 = vmatprep.subr.mxu0 0.0
      %2741 = vmatpush1.msra.mxu0 0.0
      %2742 = vmatprep.subr.mxu0 0.0
      %2743 = vmatpush1.msra.mxu0 0.0
      %2744 = vmatprep.subr.mxu0 %v2641
      %2745 = vmatpush1.msra.mxu0 %v2639
      %2746 = vmatprep.subr.mxu0 0.0
      %2747 = vmatpush2.msra.mxu0 0.0
      %2748 = vmatprep.subr.mxu0 0.0
      %2749 = vmatpush2.msra.mxu0 0.0
      %2750 = vmatprep.subr.mxu0 0.0
      %2751 = vmatpush2.msra.mxu0 0.0
      %2752 = vmatprep.subr.mxu0 0.0
      %2753 = vmatpush2.msra.mxu0 0.0
      %2754 = vmatprep.subr.mxu0 0.0
      %2755 = vmatpush2.msra.mxu0 0.0
      %2756 = vmatprep.subr.mxu0 0.0
      %2757 = vmatpush2.msra.mxu0 0.0
      %2758 = vmatprep.subr.mxu0 0.0
      %2759 = vmatpush2.msra.mxu0 0.0
      %2760 = vmatprep.subr.mxu0 0.0
      %2761 = vmatpush2.msra.mxu0 0.0
      %2762 = vmatprep.subr.mxu0 0.0
      %2763 = vmatpush2.msra.mxu0 0.0
      %2764 = vmatprep.subr.mxu0 0.0
      %2765 = vmatpush2.msra.mxu0 0.0
      %2766 = vmatprep.subr.mxu0 0.0
      %2767 = vmatpush2.msra.mxu0 0.0
      %2768 = vmatprep.subr.mxu0 0.0
      %2769 = vmatpush2.msra.mxu0 0.0
      %2770 = vmatprep.subr.mxu0 0.0
      %2771 = vmatpush2.msra.mxu0 0.0
      %2772 = vmatprep.subr.mxu0 0.0
      %2773 = vmatpush2.msra.mxu0 0.0
      %2774 = vmatprep.subr.mxu0 0.0
      %2775 = vmatpush2.msra.mxu0 0.0
      %2776 = vmatprep.subr.mxu0 0.0
      %2777 = vmatpush2.msra.mxu0 0.0
      %2778 = vmatprep.mubr.f32.mxu0 0.0
      %2779 = vmatmul.mubr.f32.gmra.mxu0 %v2633
      %v2780 = vpop.f32.mrf.mxu0
      %v2781 = vadd.f32 0.0, %v2780
      %v2782 = vpop.f32.mrf.mxu0
      %v2783 = vadd.f32 0.0, %v2782
      %2784 = vdwg.mxu0
      %v2785 = vadd.f32 %v2626, %v2710
      %v2786 = vadd.f32 %v2627, %v2712
      %v2787 = vadd.f32 %v2628, %v2781
      %v2788 = vadd.f32 %v2629, %v2783
      %s2789 = scalar_lea.vmem %s3, 112
      %v2790 = vld [vmem:[%s2789] sm:$0xff]
      %2791 = vrot.lane.b32.xlu0 %v365, 127
      %v2792 = vpop.permute.xlu0 %2791
      %2793 = vrot.lane.b32.xlu0 %v372, 127
      %v2794 = vpop.permute.xlu0 %2793
      %2795 = vrot.lane.b32.xlu0 %v366, 127
      %v2796 = vpop.permute.xlu0 %2795
      %2797 = vrot.lane.b32.xlu0 %v373, 127
      %v2798 = vpop.permute.xlu0 %2797
      %2799 = vrot.lane.b32.xlu0 %v367, 127
      %v2800 = vpop.permute.xlu0 %2799
      %vm2801 = vcmask 1039360
      %v2802 = vsel %vm2801, %v2792, %v2794
      %v2803 = vsel %vm2801, %v2794, %v2796
      %v2804 = vsel %vm2801, %v2796, %v2798
      %v2805 = vsel %vm2801, %v2798, %v2800
      %v2807 = vsel %vm393, %v2790, 0
      %v2809 = vsel %vm397, %v2802, 0
      %v2811 = vsel %vm397, %v2803, 0
      %v2813 = vsel %vm397, %v2804, 0
      %v2815 = vsel %vm397, %v2805, 0
      %2817 = vmatprep.subr.mxu0 0.0
      %2818 = vmatpush1.msra.mxu0 0.0
      %2819 = vmatprep.subr.mxu0 0.0
      %2820 = vmatpush1.msra.mxu0 0.0
      %2821 = vmatprep.subr.mxu0 0.0
      %2822 = vmatpush1.msra.mxu0 0.0
      %2823 = vmatprep.subr.mxu0 0.0
      %2824 = vmatpush1.msra.mxu0 0.0
      %2825 = vmatprep.subr.mxu0 0.0
      %2826 = vmatpush1.msra.mxu0 0.0
      %2827 = vmatprep.subr.mxu0 0.0
      %2828 = vmatpush1.msra.mxu0 0.0
      %2829 = vmatprep.subr.mxu0 0.0
      %2830 = vmatpush1.msra.mxu0 0.0
      %2831 = vmatprep.subr.mxu0 0.0
      %2832 = vmatpush1.msra.mxu0 0.0
      %2833 = vmatprep.subr.mxu0 0.0
      %2834 = vmatpush1.msra.mxu0 0.0
      %2835 = vmatprep.subr.mxu0 0.0
      %2836 = vmatpush1.msra.mxu0 0.0
      %2837 = vmatprep.subr.mxu0 0.0
      %2838 = vmatpush1.msra.mxu0 0.0
      %2839 = vmatprep.subr.mxu0 0.0
      %2840 = vmatpush1.msra.mxu0 0.0
      %2841 = vmatprep.subr.mxu0 0.0
      %2842 = vmatpush1.msra.mxu0 0.0
      %2843 = vmatprep.subr.mxu0 0.0
      %2844 = vmatpush1.msra.mxu0 0.0
      %2845 = vmatprep.subr.mxu0 0.0
      %2846 = vmatpush1.msra.mxu0 0.0
      %2847 = vmatprep.subr.mxu0 %v2811
      %2848 = vmatpush1.msra.mxu0 %v2809
      %2849 = vmatprep.subr.mxu0 0.0
      %2850 = vmatpush2.msra.mxu0 0.0
      %2851 = vmatprep.subr.mxu0 0.0
      %2852 = vmatpush2.msra.mxu0 0.0
      %2853 = vmatprep.subr.mxu0 0.0
      %2854 = vmatpush2.msra.mxu0 0.0
      %2855 = vmatprep.subr.mxu0 0.0
      %2856 = vmatpush2.msra.mxu0 0.0
      %2857 = vmatprep.subr.mxu0 0.0
      %2858 = vmatpush2.msra.mxu0 0.0
      %2859 = vmatprep.subr.mxu0 0.0
      %2860 = vmatpush2.msra.mxu0 0.0
      %2861 = vmatprep.subr.mxu0 0.0
      %2862 = vmatpush2.msra.mxu0 0.0
      %2863 = vmatprep.subr.mxu0 0.0
      %2864 = vmatpush2.msra.mxu0 0.0
      %2865 = vmatprep.subr.mxu0 0.0
      %2866 = vmatpush2.msra.mxu0 0.0
      %2867 = vmatprep.subr.mxu0 0.0
      %2868 = vmatpush2.msra.mxu0 0.0
      %2869 = vmatprep.subr.mxu0 0.0
      %2870 = vmatpush2.msra.mxu0 0.0
      %2871 = vmatprep.subr.mxu0 0.0
      %2872 = vmatpush2.msra.mxu0 0.0
      %2873 = vmatprep.subr.mxu0 0.0
      %2874 = vmatpush2.msra.mxu0 0.0
      %2875 = vmatprep.subr.mxu0 0.0
      %2876 = vmatpush2.msra.mxu0 0.0
      %2877 = vmatprep.subr.mxu0 0.0
      %2878 = vmatpush2.msra.mxu0 0.0
      %2879 = vmatprep.subr.mxu0 0.0
      %2880 = vmatpush2.msra.mxu0 0.0
      %2881 = vmatprep.mubr.f32.mxu0 0.0
      %2882 = vmatmul.mubr.f32.gmra.mxu0 %v2807
      %v2883 = vpop.f32.mrf.mxu0
      %v2884 = vadd.f32 0.0, %v2883
      %v2885 = vpop.f32.mrf.mxu0
      %v2886 = vadd.f32 0.0, %v2885
      %2887 = vdwg.mxu0
      %2888 = vmatprep.subr.mxu0 0.0
      %2889 = vmatpush1.msra.mxu0 0.0
      %2890 = vmatprep.subr.mxu0 0.0
      %2891 = vmatpush1.msra.mxu0 0.0
      %2892 = vmatprep.subr.mxu0 0.0
      %2893 = vmatpush1.msra.mxu0 0.0
      %2894 = vmatprep.subr.mxu0 0.0
      %2895 = vmatpush1.msra.mxu0 0.0
      %2896 = vmatprep.subr.mxu0 0.0
      %2897 = vmatpush1.msra.mxu0 0.0
      %2898 = vmatprep.subr.mxu0 0.0
      %2899 = vmatpush1.msra.mxu0 0.0
      %2900 = vmatprep.subr.mxu0 0.0
      %2901 = vmatpush1.msra.mxu0 0.0
      %2902 = vmatprep.subr.mxu0 0.0
      %2903 = vmatpush1.msra.mxu0 0.0
      %2904 = vmatprep.subr.mxu0 0.0
      %2905 = vmatpush1.msra.mxu0 0.0
      %2906 = vmatprep.subr.mxu0 0.0
      %2907 = vmatpush1.msra.mxu0 0.0
      %2908 = vmatprep.subr.mxu0 0.0
      %2909 = vmatpush1.msra.mxu0 0.0
      %2910 = vmatprep.subr.mxu0 0.0
      %2911 = vmatpush1.msra.mxu0 0.0
      %2912 = vmatprep.subr.mxu0 0.0
      %2913 = vmatpush1.msra.mxu0 0.0
      %2914 = vmatprep.subr.mxu0 0.0
      %2915 = vmatpush1.msra.mxu0 0.0
      %2916 = vmatprep.subr.mxu0 0.0
      %2917 = vmatpush1.msra.mxu0 0.0
      %2918 = vmatprep.subr.mxu0 %v2815
      %2919 = vmatpush1.msra.mxu0 %v2813
      %2920 = vmatprep.subr.mxu0 0.0
      %2921 = vmatpush2.msra.mxu0 0.0
      %2922 = vmatprep.subr.mxu0 0.0
      %2923 = vmatpush2.msra.mxu0 0.0
      %2924 = vmatprep.subr.mxu0 0.0
      %2925 = vmatpush2.msra.mxu0 0.0
      %2926 = vmatprep.subr.mxu0 0.0
      %2927 = vmatpush2.msra.mxu0 0.0
      %2928 = vmatprep.subr.mxu0 0.0
      %2929 = vmatpush2.msra.mxu0 0.0
      %2930 = vmatprep.subr.mxu0 0.0
      %2931 = vmatpush2.msra.mxu0 0.0
      %2932 = vmatprep.subr.mxu0 0.0
      %2933 = vmatpush2.msra.mxu0 0.0
      %2934 = vmatprep.subr.mxu0 0.0
      %2935 = vmatpush2.msra.mxu0 0.0
      %2936 = vmatprep.subr.mxu0 0.0
      %2937 = vmatpush2.msra.mxu0 0.0
      %2938 = vmatprep.subr.mxu0 0.0
      %2939 = vmatpush2.msra.mxu0 0.0
      %2940 = vmatprep.subr.mxu0 0.0
      %2941 = vmatpush2.msra.mxu0 0.0
      %2942 = vmatprep.subr.mxu0 0.0
      %2943 = vmatpush2.msra.mxu0 0.0
      %2944 = vmatprep.subr.mxu0 0.0
      %2945 = vmatpush2.msra.mxu0 0.0
      %2946 = vmatprep.subr.mxu0 0.0
      %2947 = vmatpush2.msra.mxu0 0.0
      %2948 = vmatprep.subr.mxu0 0.0
      %2949 = vmatpush2.msra.mxu0 0.0
      %2950 = vmatprep.subr.mxu0 0.0
      %2951 = vmatpush2.msra.mxu0 0.0
      %2952 = vmatprep.mubr.f32.mxu0 0.0
      %2953 = vmatmul.mubr.f32.gmra.mxu0 %v2807
      %v2954 = vpop.f32.mrf.mxu0
      %v2955 = vadd.f32 0.0, %v2954
      %v2956 = vpop.f32.mrf.mxu0
      %v2957 = vadd.f32 0.0, %v2956
      %2958 = vdwg.mxu0
      %v2959 = vadd.f32 %v2785, %v2884
      %v2960 = vadd.f32 %v2786, %v2886
      %v2961 = vadd.f32 %v2787, %v2955
      %v2962 = vadd.f32 %v2788, %v2957
      %s2963 = scalar_lea.vmem %s3, 120
      %v2964 = vld [vmem:[%s2963] sm:$0xff]
      %2965 = vrot.lane.b32.xlu0 %v365, 119
      %v2966 = vpop.permute.xlu0 %2965
      %2967 = vrot.lane.b32.xlu0 %v372, 119
      %v2968 = vpop.permute.xlu0 %2967
      %2969 = vrot.lane.b32.xlu0 %v366, 119
      %v2970 = vpop.permute.xlu0 %2969
      %2971 = vrot.lane.b32.xlu0 %v373, 119
      %v2972 = vpop.permute.xlu0 %2971
      %2973 = vrot.lane.b32.xlu0 %v367, 119
      %v2974 = vpop.permute.xlu0 %2973
      %vm2975 = vcmask 973824
      %v2976 = vsel %vm2975, %v2966, %v2968
      %v2977 = vsel %vm2975, %v2968, %v2970
      %v2978 = vsel %vm2975, %v2970, %v2972
      %v2979 = vsel %vm2975, %v2972, %v2974
      %v2981 = vsel %vm393, %v2964, 0
      %v2983 = vsel %vm397, %v2976, 0
      %v2985 = vsel %vm397, %v2977, 0
      %v2987 = vsel %vm397, %v2978, 0
      %v2989 = vsel %vm397, %v2979, 0
      %2991 = vmatprep.subr.mxu0 0.0
      %2992 = vmatpush1.msra.mxu0 0.0
      %2993 = vmatprep.subr.mxu0 0.0
      %2994 = vmatpush1.msra.mxu0 0.0
      %2995 = vmatprep.subr.mxu0 0.0
      %2996 = vmatpush1.msra.mxu0 0.0
      %2997 = vmatprep.subr.mxu0 0.0
      %2998 = vmatpush1.msra.mxu0 0.0
      %2999 = vmatprep.subr.mxu0 0.0
      %3000 = vmatpush1.msra.mxu0 0.0
      %3001 = vmatprep.subr.mxu0 0.0
      %3002 = vmatpush1.msra.mxu0 0.0
      %3003 = vmatprep.subr.mxu0 0.0
      %3004 = vmatpush1.msra.mxu0 0.0
      %3005 = vmatprep.subr.mxu0 0.0
      %3006 = vmatpush1.msra.mxu0 0.0
      %3007 = vmatprep.subr.mxu0 0.0
      %3008 = vmatpush1.msra.mxu0 0.0
      %3009 = vmatprep.subr.mxu0 0.0
      %3010 = vmatpush1.msra.mxu0 0.0
      %3011 = vmatprep.subr.mxu0 0.0
      %3012 = vmatpush1.msra.mxu0 0.0
      %3013 = vmatprep.subr.mxu0 0.0
      %3014 = vmatpush1.msra.mxu0 0.0
      %3015 = vmatprep.subr.mxu0 0.0
      %3016 = vmatpush1.msra.mxu0 0.0
      %3017 = vmatprep.subr.mxu0 0.0
      %3018 = vmatpush1.msra.mxu0 0.0
      %3019 = vmatprep.subr.mxu0 0.0
      %3020 = vmatpush1.msra.mxu0 0.0
      %3021 = vmatprep.subr.mxu0 %v2985
      %3022 = vmatpush1.msra.mxu0 %v2983
      %3023 = vmatprep.subr.mxu0 0.0
      %3024 = vmatpush2.msra.mxu0 0.0
      %3025 = vmatprep.subr.mxu0 0.0
      %3026 = vmatpush2.msra.mxu0 0.0
      %3027 = vmatprep.subr.mxu0 0.0
      %3028 = vmatpush2.msra.mxu0 0.0
      %3029 = vmatprep.subr.mxu0 0.0
      %3030 = vmatpush2.msra.mxu0 0.0
      %3031 = vmatprep.subr.mxu0 0.0
      %3032 = vmatpush2.msra.mxu0 0.0
      %3033 = vmatprep.subr.mxu0 0.0
      %3034 = vmatpush2.msra.mxu0 0.0
      %3035 = vmatprep.subr.mxu0 0.0
      %3036 = vmatpush2.msra.mxu0 0.0
      %3037 = vmatprep.subr.mxu0 0.0
      %3038 = vmatpush2.msra.mxu0 0.0
      %3039 = vmatprep.subr.mxu0 0.0
      %3040 = vmatpush2.msra.mxu0 0.0
      %3041 = vmatprep.subr.mxu0 0.0
      %3042 = vmatpush2.msra.mxu0 0.0
      %3043 = vmatprep.subr.mxu0 0.0
      %3044 = vmatpush2.msra.mxu0 0.0
      %3045 = vmatprep.subr.mxu0 0.0
      %3046 = vmatpush2.msra.mxu0 0.0
      %3047 = vmatprep.subr.mxu0 0.0
      %3048 = vmatpush2.msra.mxu0 0.0
      %3049 = vmatprep.subr.mxu0 0.0
      %3050 = vmatpush2.msra.mxu0 0.0
      %3051 = vmatprep.subr.mxu0 0.0
      %3052 = vmatpush2.msra.mxu0 0.0
      %3053 = vmatprep.subr.mxu0 0.0
      %3054 = vmatpush2.msra.mxu0 0.0
      %3055 = vmatprep.mubr.f32.mxu0 0.0
      %3056 = vmatmul.mubr.f32.gmra.mxu0 %v2981
      %v3057 = vpop.f32.mrf.mxu0
      %v3058 = vadd.f32 0.0, %v3057
      %v3059 = vpop.f32.mrf.mxu0
      %v3060 = vadd.f32 0.0, %v3059
      %3061 = vdwg.mxu0
      %3062 = vmatprep.subr.mxu0 0.0
      %3063 = vmatpush1.msra.mxu0 0.0
      %3064 = vmatprep.subr.mxu0 0.0
      %3065 = vmatpush1.msra.mxu0 0.0
      %3066 = vmatprep.subr.mxu0 0.0
      %3067 = vmatpush1.msra.mxu0 0.0
      %3068 = vmatprep.subr.mxu0 0.0
      %3069 = vmatpush1.msra.mxu0 0.0
      %3070 = vmatprep.subr.mxu0 0.0
      %3071 = vmatpush1.msra.mxu0 0.0
      %3072 = vmatprep.subr.mxu0 0.0
      %3073 = vmatpush1.msra.mxu0 0.0
      %3074 = vmatprep.subr.mxu0 0.0
      %3075 = vmatpush1.msra.mxu0 0.0
      %3076 = vmatprep.subr.mxu0 0.0
      %3077 = vmatpush1.msra.mxu0 0.0
      %3078 = vmatprep.subr.mxu0 0.0
      %3079 = vmatpush1.msra.mxu0 0.0
      %3080 = vmatprep.subr.mxu0 0.0
      %3081 = vmatpush1.msra.mxu0 0.0
      %3082 = vmatprep.subr.mxu0 0.0
      %3083 = vmatpush1.msra.mxu0 0.0
      %3084 = vmatprep.subr.mxu0 0.0
      %3085 = vmatpush1.msra.mxu0 0.0
      %3086 = vmatprep.subr.mxu0 0.0
      %3087 = vmatpush1.msra.mxu0 0.0
      %3088 = vmatprep.subr.mxu0 0.0
      %3089 = vmatpush1.msra.mxu0 0.0
      %3090 = vmatprep.subr.mxu0 0.0
      %3091 = vmatpush1.msra.mxu0 0.0
      %3092 = vmatprep.subr.mxu0 %v2989
      %3093 = vmatpush1.msra.mxu0 %v2987
      %3094 = vmatprep.subr.mxu0 0.0
      %3095 = vmatpush2.msra.mxu0 0.0
      %3096 = vmatprep.subr.mxu0 0.0
      %3097 = vmatpush2.msra.mxu0 0.0
      %3098 = vmatprep.subr.mxu0 0.0
      %3099 = vmatpush2.msra.mxu0 0.0
      %3100 = vmatprep.subr.mxu0 0.0
      %3101 = vmatpush2.msra.mxu0 0.0
      %3102 = vmatprep.subr.mxu0 0.0
      %3103 = vmatpush2.msra.mxu0 0.0
      %3104 = vmatprep.subr.mxu0 0.0
      %3105 = vmatpush2.msra.mxu0 0.0
      %3106 = vmatprep.subr.mxu0 0.0
      %3107 = vmatpush2.msra.mxu0 0.0
      %3108 = vmatprep.subr.mxu0 0.0
      %3109 = vmatpush2.msra.mxu0 0.0
      %3110 = vmatprep.subr.mxu0 0.0
      %3111 = vmatpush2.msra.mxu0 0.0
      %3112 = vmatprep.subr.mxu0 0.0
      %3113 = vmatpush2.msra.mxu0 0.0
      %3114 = vmatprep.subr.mxu0 0.0
      %3115 = vmatpush2.msra.mxu0 0.0
      %3116 = vmatprep.subr.mxu0 0.0
      %3117 = vmatpush2.msra.mxu0 0.0
      %3118 = vmatprep.subr.mxu0 0.0
      %3119 = vmatpush2.msra.mxu0 0.0
      %3120 = vmatprep.subr.mxu0 0.0
      %3121 = vmatpush2.msra.mxu0 0.0
      %3122 = vmatprep.subr.mxu0 0.0
      %3123 = vmatpush2.msra.mxu0 0.0
      %3124 = vmatprep.subr.mxu0 0.0
      %3125 = vmatpush2.msra.mxu0 0.0
      %3126 = vmatprep.mubr.f32.mxu0 0.0
      %3127 = vmatmul.mubr.f32.gmra.mxu0 %v2981
      %v3128 = vpop.f32.mrf.mxu0
      %v3129 = vadd.f32 0.0, %v3128
      %v3130 = vpop.f32.mrf.mxu0
      %v3131 = vadd.f32 0.0, %v3130
      %3132 = vdwg.mxu0
      %v3133 = vadd.f32 %v2959, %v3058
      %v3134 = vadd.f32 %v2960, %v3060
      %v3135 = vadd.f32 %v2961, %v3129
      %v3136 = vadd.f32 %v2962, %v3131
      %s3137 = scalar_lea.vmem %s3, 128
      %v3138 = vld [vmem:[%s3137] sm:$0xff]
      %3139 = vrot.lane.b32.xlu0 %v365, 118
      %v3140 = vpop.permute.xlu0 %3139
      %3141 = vrot.lane.b32.xlu0 %v372, 118
      %v3142 = vpop.permute.xlu0 %3141
      %3143 = vrot.lane.b32.xlu0 %v366, 118
      %v3144 = vpop.permute.xlu0 %3143
      %3145 = vrot.lane.b32.xlu0 %v373, 118
      %v3146 = vpop.permute.xlu0 %3145
      %3147 = vrot.lane.b32.xlu0 %v367, 118
      %v3148 = vpop.permute.xlu0 %3147
      %vm3149 = vcmask 965632
      %v3150 = vsel %vm3149, %v3140, %v3142
      %v3151 = vsel %vm3149, %v3142, %v3144
      %v3152 = vsel %vm3149, %v3144, %v3146
      %v3153 = vsel %vm3149, %v3146, %v3148
      %v3155 = vsel %vm393, %v3138, 0
      %v3157 = vsel %vm397, %v3150, 0
      %v3159 = vsel %vm397, %v3151, 0
      %v3161 = vsel %vm397, %v3152, 0
      %v3163 = vsel %vm397, %v3153, 0
      %3165 = vmatprep.subr.mxu0 0.0
      %3166 = vmatpush1.msra.mxu0 0.0
      %3167 = vmatprep.subr.mxu0 0.0
      %3168 = vmatpush1.msra.mxu0 0.0
      %3169 = vmatprep.subr.mxu0 0.0
      %3170 = vmatpush1.msra.mxu0 0.0
      %3171 = vmatprep.subr.mxu0 0.0
      %3172 = vmatpush1.msra.mxu0 0.0
      %3173 = vmatprep.subr.mxu0 0.0
      %3174 = vmatpush1.msra.mxu0 0.0
      %3175 = vmatprep.subr.mxu0 0.0
      %3176 = vmatpush1.msra.mxu0 0.0
      %3177 = vmatprep.subr.mxu0 0.0
      %3178 = vmatpush1.msra.mxu0 0.0
      %3179 = vmatprep.subr.mxu0 0.0
      %3180 = vmatpush1.msra.mxu0 0.0
      %3181 = vmatprep.subr.mxu0 0.0
      %3182 = vmatpush1.msra.mxu0 0.0
      %3183 = vmatprep.subr.mxu0 0.0
      %3184 = vmatpush1.msra.mxu0 0.0
      %3185 = vmatprep.subr.mxu0 0.0
      %3186 = vmatpush1.msra.mxu0 0.0
      %3187 = vmatprep.subr.mxu0 0.0
      %3188 = vmatpush1.msra.mxu0 0.0
      %3189 = vmatprep.subr.mxu0 0.0
      %3190 = vmatpush1.msra.mxu0 0.0
      %3191 = vmatprep.subr.mxu0 0.0
      %3192 = vmatpush1.msra.mxu0 0.0
      %3193 = vmatprep.subr.mxu0 0.0
      %3194 = vmatpush1.msra.mxu0 0.0
      %3195 = vmatprep.subr.mxu0 %v3159
      %3196 = vmatpush1.msra.mxu0 %v3157
      %3197 = vmatprep.subr.mxu0 0.0
      %3198 = vmatpush2.msra.mxu0 0.0
      %3199 = vmatprep.subr.mxu0 0.0
      %3200 = vmatpush2.msra.mxu0 0.0
      %3201 = vmatprep.subr.mxu0 0.0
      %3202 = vmatpush2.msra.mxu0 0.0
      %3203 = vmatprep.subr.mxu0 0.0
      %3204 = vmatpush2.msra.mxu0 0.0
      %3205 = vmatprep.subr.mxu0 0.0
      %3206 = vmatpush2.msra.mxu0 0.0
      %3207 = vmatprep.subr.mxu0 0.0
      %3208 = vmatpush2.msra.mxu0 0.0
      %3209 = vmatprep.subr.mxu0 0.0
      %3210 = vmatpush2.msra.mxu0 0.0
      %3211 = vmatprep.subr.mxu0 0.0
      %3212 = vmatpush2.msra.mxu0 0.0
      %3213 = vmatprep.subr.mxu0 0.0
      %3214 = vmatpush2.msra.mxu0 0.0
      %3215 = vmatprep.subr.mxu0 0.0
      %3216 = vmatpush2.msra.mxu0 0.0
      %3217 = vmatprep.subr.mxu0 0.0
      %3218 = vmatpush2.msra.mxu0 0.0
      %3219 = vmatprep.subr.mxu0 0.0
      %3220 = vmatpush2.msra.mxu0 0.0
      %3221 = vmatprep.subr.mxu0 0.0
      %3222 = vmatpush2.msra.mxu0 0.0
      %3223 = vmatprep.subr.mxu0 0.0
      %3224 = vmatpush2.msra.mxu0 0.0
      %3225 = vmatprep.subr.mxu0 0.0
      %3226 = vmatpush2.msra.mxu0 0.0
      %3227 = vmatprep.subr.mxu0 0.0
      %3228 = vmatpush2.msra.mxu0 0.0
      %3229 = vmatprep.mubr.f32.mxu0 0.0
      %3230 = vmatmul.mubr.f32.gmra.mxu0 %v3155
      %v3231 = vpop.f32.mrf.mxu0
      %v3232 = vadd.f32 0.0, %v3231
      %v3233 = vpop.f32.mrf.mxu0
      %v3234 = vadd.f32 0.0, %v3233
      %3235 = vdwg.mxu0
      %3236 = vmatprep.subr.mxu0 0.0
      %3237 = vmatpush1.msra.mxu0 0.0
      %3238 = vmatprep.subr.mxu0 0.0
      %3239 = vmatpush1.msra.mxu0 0.0
      %3240 = vmatprep.subr.mxu0 0.0
      %3241 = vmatpush1.msra.mxu0 0.0
      %3242 = vmatprep.subr.mxu0 0.0
      %3243 = vmatpush1.msra.mxu0 0.0
      %3244 = vmatprep.subr.mxu0 0.0
      %3245 = vmatpush1.msra.mxu0 0.0
      %3246 = vmatprep.subr.mxu0 0.0
      %3247 = vmatpush1.msra.mxu0 0.0
      %3248 = vmatprep.subr.mxu0 0.0
      %3249 = vmatpush1.msra.mxu0 0.0
      %3250 = vmatprep.subr.mxu0 0.0
      %3251 = vmatpush1.msra.mxu0 0.0
      %3252 = vmatprep.subr.mxu0 0.0
      %3253 = vmatpush1.msra.mxu0 0.0
      %3254 = vmatprep.subr.mxu0 0.0
      %3255 = vmatpush1.msra.mxu0 0.0
      %3256 = vmatprep.subr.mxu0 0.0
      %3257 = vmatpush1.msra.mxu0 0.0
      %3258 = vmatprep.subr.mxu0 0.0
      %3259 = vmatpush1.msra.mxu0 0.0
      %3260 = vmatprep.subr.mxu0 0.0
      %3261 = vmatpush1.msra.mxu0 0.0
      %3262 = vmatprep.subr.mxu0 0.0
      %3263 = vmatpush1.msra.mxu0 0.0
      %3264 = vmatprep.subr.mxu0 0.0
      %3265 = vmatpush1.msra.mxu0 0.0
      %3266 = vmatprep.subr.mxu0 %v3163
      %3267 = vmatpush1.msra.mxu0 %v3161
      %3268 = vmatprep.subr.mxu0 0.0
      %3269 = vmatpush2.msra.mxu0 0.0
      %3270 = vmatprep.subr.mxu0 0.0
      %3271 = vmatpush2.msra.mxu0 0.0
      %3272 = vmatprep.subr.mxu0 0.0
      %3273 = vmatpush2.msra.mxu0 0.0
      %3274 = vmatprep.subr.mxu0 0.0
      %3275 = vmatpush2.msra.mxu0 0.0
      %3276 = vmatprep.subr.mxu0 0.0
      %3277 = vmatpush2.msra.mxu0 0.0
      %3278 = vmatprep.subr.mxu0 0.0
      %3279 = vmatpush2.msra.mxu0 0.0
      %3280 = vmatprep.subr.mxu0 0.0
      %3281 = vmatpush2.msra.mxu0 0.0
      %3282 = vmatprep.subr.mxu0 0.0
      %3283 = vmatpush2.msra.mxu0 0.0
      %3284 = vmatprep.subr.mxu0 0.0
      %3285 = vmatpush2.msra.mxu0 0.0
      %3286 = vmatprep.subr.mxu0 0.0
      %3287 = vmatpush2.msra.mxu0 0.0
      %3288 = vmatprep.subr.mxu0 0.0
      %3289 = vmatpush2.msra.mxu0 0.0
      %3290 = vmatprep.subr.mxu0 0.0
      %3291 = vmatpush2.msra.mxu0 0.0
      %3292 = vmatprep.subr.mxu0 0.0
      %3293 = vmatpush2.msra.mxu0 0.0
      %3294 = vmatprep.subr.mxu0 0.0
      %3295 = vmatpush2.msra.mxu0 0.0
      %3296 = vmatprep.subr.mxu0 0.0
      %3297 = vmatpush2.msra.mxu0 0.0
      %3298 = vmatprep.subr.mxu0 0.0
      %3299 = vmatpush2.msra.mxu0 0.0
      %3300 = vmatprep.mubr.f32.mxu0 0.0
      %3301 = vmatmul.mubr.f32.gmra.mxu0 %v3155
      %v3302 = vpop.f32.mrf.mxu0
      %v3303 = vadd.f32 0.0, %v3302
      %v3304 = vpop.f32.mrf.mxu0
      %v3305 = vadd.f32 0.0, %v3304
      %3306 = vdwg.mxu0
      %v3307 = vadd.f32 %v3133, %v3232
      %v3308 = vadd.f32 %v3134, %v3234
      %v3309 = vadd.f32 %v3135, %v3303
      %v3310 = vadd.f32 %v3136, %v3305
      %s3311 = scalar_lea.vmem %s3, 136
      %v3312 = vld [vmem:[%s3311] sm:$0xff]
      %3313 = vrot.lane.b32.xlu0 %v365, 117
      %v3314 = vpop.permute.xlu0 %3313
      %3315 = vrot.lane.b32.xlu0 %v372, 117
      %v3316 = vpop.permute.xlu0 %3315
      %3317 = vrot.lane.b32.xlu0 %v366, 117
      %v3318 = vpop.permute.xlu0 %3317
      %3319 = vrot.lane.b32.xlu0 %v373, 117
      %v3320 = vpop.permute.xlu0 %3319
      %3321 = vrot.lane.b32.xlu0 %v367, 117
      %v3322 = vpop.permute.xlu0 %3321
      %vm3323 = vcmask 957440
      %v3324 = vsel %vm3323, %v3314, %v3316
      %v3325 = vsel %vm3323, %v3316, %v3318
      %v3326 = vsel %vm3323, %v3318, %v3320
      %v3327 = vsel %vm3323, %v3320, %v3322
      %v3329 = vsel %vm393, %v3312, 0
      %v3331 = vsel %vm397, %v3324, 0
      %v3333 = vsel %vm397, %v3325, 0
      %v3335 = vsel %vm397, %v3326, 0
      %v3337 = vsel %vm397, %v3327, 0
      %3339 = vmatprep.subr.mxu0 0.0
      %3340 = vmatpush1.msra.mxu0 0.0
      %3341 = vmatprep.subr.mxu0 0.0
      %3342 = vmatpush1.msra.mxu0 0.0
      %3343 = vmatprep.subr.mxu0 0.0
      %3344 = vmatpush1.msra.mxu0 0.0
      %3345 = vmatprep.subr.mxu0 0.0
      %3346 = vmatpush1.msra.mxu0 0.0
      %3347 = vmatprep.subr.mxu0 0.0
      %3348 = vmatpush1.msra.mxu0 0.0
      %3349 = vmatprep.subr.mxu0 0.0
      %3350 = vmatpush1.msra.mxu0 0.0
      %3351 = vmatprep.subr.mxu0 0.0
      %3352 = vmatpush1.msra.mxu0 0.0
      %3353 = vmatprep.subr.mxu0 0.0
      %3354 = vmatpush1.msra.mxu0 0.0
      %3355 = vmatprep.subr.mxu0 0.0
      %3356 = vmatpush1.msra.mxu0 0.0
      %3357 = vmatprep.subr.mxu0 0.0
      %3358 = vmatpush1.msra.mxu0 0.0
      %3359 = vmatprep.subr.mxu0 0.0
      %3360 = vmatpush1.msra.mxu0 0.0
      %3361 = vmatprep.subr.mxu0 0.0
      %3362 = vmatpush1.msra.mxu0 0.0
      %3363 = vmatprep.subr.mxu0 0.0
      %3364 = vmatpush1.msra.mxu0 0.0
      %3365 = vmatprep.subr.mxu0 0.0
      %3366 = vmatpush1.msra.mxu0 0.0
      %3367 = vmatprep.subr.mxu0 0.0
      %3368 = vmatpush1.msra.mxu0 0.0
      %3369 = vmatprep.subr.mxu0 %v3333
      %3370 = vmatpush1.msra.mxu0 %v3331
      %3371 = vmatprep.subr.mxu0 0.0
      %3372 = vmatpush2.msra.mxu0 0.0
      %3373 = vmatprep.subr.mxu0 0.0
      %3374 = vmatpush2.msra.mxu0 0.0
      %3375 = vmatprep.subr.mxu0 0.0
      %3376 = vmatpush2.msra.mxu0 0.0
      %3377 = vmatprep.subr.mxu0 0.0
      %3378 = vmatpush2.msra.mxu0 0.0
      %3379 = vmatprep.subr.mxu0 0.0
      %3380 = vmatpush2.msra.mxu0 0.0
      %3381 = vmatprep.subr.mxu0 0.0
      %3382 = vmatpush2.msra.mxu0 0.0
      %3383 = vmatprep.subr.mxu0 0.0
      %3384 = vmatpush2.msra.mxu0 0.0
      %3385 = vmatprep.subr.mxu0 0.0
      %3386 = vmatpush2.msra.mxu0 0.0
      %3387 = vmatprep.subr.mxu0 0.0
      %3388 = vmatpush2.msra.mxu0 0.0
      %3389 = vmatprep.subr.mxu0 0.0
      %3390 = vmatpush2.msra.mxu0 0.0
      %3391 = vmatprep.subr.mxu0 0.0
      %3392 = vmatpush2.msra.mxu0 0.0
      %3393 = vmatprep.subr.mxu0 0.0
      %3394 = vmatpush2.msra.mxu0 0.0
      %3395 = vmatprep.subr.mxu0 0.0
      %3396 = vmatpush2.msra.mxu0 0.0
      %3397 = vmatprep.subr.mxu0 0.0
      %3398 = vmatpush2.msra.mxu0 0.0
      %3399 = vmatprep.subr.mxu0 0.0
      %3400 = vmatpush2.msra.mxu0 0.0
      %3401 = vmatprep.subr.mxu0 0.0
      %3402 = vmatpush2.msra.mxu0 0.0
      %3403 = vmatprep.mubr.f32.mxu0 0.0
      %3404 = vmatmul.mubr.f32.gmra.mxu0 %v3329
      %v3405 = vpop.f32.mrf.mxu0
      %v3406 = vadd.f32 0.0, %v3405
      %v3407 = vpop.f32.mrf.mxu0
      %v3408 = vadd.f32 0.0, %v3407
      %3409 = vdwg.mxu0
      %3410 = vmatprep.subr.mxu0 0.0
      %3411 = vmatpush1.msra.mxu0 0.0
      %3412 = vmatprep.subr.mxu0 0.0
      %3413 = vmatpush1.msra.mxu0 0.0
      %3414 = vmatprep.subr.mxu0 0.0
      %3415 = vmatpush1.msra.mxu0 0.0
      %3416 = vmatprep.subr.mxu0 0.0
      %3417 = vmatpush1.msra.mxu0 0.0
      %3418 = vmatprep.subr.mxu0 0.0
      %3419 = vmatpush1.msra.mxu0 0.0
      %3420 = vmatprep.subr.mxu0 0.0
      %3421 = vmatpush1.msra.mxu0 0.0
      %3422 = vmatprep.subr.mxu0 0.0
      %3423 = vmatpush1.msra.mxu0 0.0
      %3424 = vmatprep.subr.mxu0 0.0
      %3425 = vmatpush1.msra.mxu0 0.0
      %3426 = vmatprep.subr.mxu0 0.0
      %3427 = vmatpush1.msra.mxu0 0.0
      %3428 = vmatprep.subr.mxu0 0.0
      %3429 = vmatpush1.msra.mxu0 0.0
      %3430 = vmatprep.subr.mxu0 0.0
      %3431 = vmatpush1.msra.mxu0 0.0
      %3432 = vmatprep.subr.mxu0 0.0
      %3433 = vmatpush1.msra.mxu0 0.0
      %3434 = vmatprep.subr.mxu0 0.0
      %3435 = vmatpush1.msra.mxu0 0.0
      %3436 = vmatprep.subr.mxu0 0.0
      %3437 = vmatpush1.msra.mxu0 0.0
      %3438 = vmatprep.subr.mxu0 0.0
      %3439 = vmatpush1.msra.mxu0 0.0
      %3440 = vmatprep.subr.mxu0 %v3337
      %3441 = vmatpush1.msra.mxu0 %v3335
      %3442 = vmatprep.subr.mxu0 0.0
      %3443 = vmatpush2.msra.mxu0 0.0
      %3444 = vmatprep.subr.mxu0 0.0
      %3445 = vmatpush2.msra.mxu0 0.0
      %3446 = vmatprep.subr.mxu0 0.0
      %3447 = vmatpush2.msra.mxu0 0.0
      %3448 = vmatprep.subr.mxu0 0.0
      %3449 = vmatpush2.msra.mxu0 0.0
      %3450 = vmatprep.subr.mxu0 0.0
      %3451 = vmatpush2.msra.mxu0 0.0
      %3452 = vmatprep.subr.mxu0 0.0
      %3453 = vmatpush2.msra.mxu0 0.0
      %3454 = vmatprep.subr.mxu0 0.0
      %3455 = vmatpush2.msra.mxu0 0.0
      %3456 = vmatprep.subr.mxu0 0.0
      %3457 = vmatpush2.msra.mxu0 0.0
      %3458 = vmatprep.subr.mxu0 0.0
      %3459 = vmatpush2.msra.mxu0 0.0
      %3460 = vmatprep.subr.mxu0 0.0
      %3461 = vmatpush2.msra.mxu0 0.0
      %3462 = vmatprep.subr.mxu0 0.0
      %3463 = vmatpush2.msra.mxu0 0.0
      %3464 = vmatprep.subr.mxu0 0.0
      %3465 = vmatpush2.msra.mxu0 0.0
      %3466 = vmatprep.subr.mxu0 0.0
      %3467 = vmatpush2.msra.mxu0 0.0
      %3468 = vmatprep.subr.mxu0 0.0
      %3469 = vmatpush2.msra.mxu0 0.0
      %3470 = vmatprep.subr.mxu0 0.0
      %3471 = vmatpush2.msra.mxu0 0.0
      %3472 = vmatprep.subr.mxu0 0.0
      %3473 = vmatpush2.msra.mxu0 0.0
      %3474 = vmatprep.mubr.f32.mxu0 0.0
      %3475 = vmatmul.mubr.f32.gmra.mxu0 %v3329
      %v3476 = vpop.f32.mrf.mxu0
      %v3477 = vadd.f32 0.0, %v3476
      %v3478 = vpop.f32.mrf.mxu0
      %v3479 = vadd.f32 0.0, %v3478
      %3480 = vdwg.mxu0
      %v3481 = vadd.f32 %v3307, %v3406
      %v3482 = vadd.f32 %v3308, %v3408
      %v3483 = vadd.f32 %v3309, %v3477
      %v3484 = vadd.f32 %v3310, %v3479
      %s3485 = scalar_lea.vmem %s3, 144
      %v3486 = vld [vmem:[%s3485] sm:$0xff]
      %3487 = vrot.lane.b32.xlu0 %v365, 39
      %v3488 = vpop.permute.xlu0 %3487
      %3489 = vrot.lane.b32.xlu0 %v372, 39
      %v3490 = vpop.permute.xlu0 %3489
      %3491 = vrot.lane.b32.xlu0 %v366, 39
      %v3492 = vpop.permute.xlu0 %3491
      %3493 = vrot.lane.b32.xlu0 %v373, 39
      %v3494 = vpop.permute.xlu0 %3493
      %3495 = vrot.lane.b32.xlu0 %v367, 39
      %v3496 = vpop.permute.xlu0 %3495
      %vm3497 = vcmask 318464
      %v3498 = vsel %vm3497, %v3488, %v3490
      %v3499 = vsel %vm3497, %v3490, %v3492
      %v3500 = vsel %vm3497, %v3492, %v3494
      %v3501 = vsel %vm3497, %v3494, %v3496
      %v3503 = vsel %vm393, %v3486, 0
      %v3505 = vsel %vm397, %v3498, 0
      %v3507 = vsel %vm397, %v3499, 0
      %v3509 = vsel %vm397, %v3500, 0
      %v3511 = vsel %vm397, %v3501, 0
      %3513 = vmatprep.subr.mxu0 0.0
      %3514 = vmatpush1.msra.mxu0 0.0
      %3515 = vmatprep.subr.mxu0 0.0
      %3516 = vmatpush1.msra.mxu0 0.0
      %3517 = vmatprep.subr.mxu0 0.0
      %3518 = vmatpush1.msra.mxu0 0.0
      %3519 = vmatprep.subr.mxu0 0.0
      %3520 = vmatpush1.msra.mxu0 0.0
      %3521 = vmatprep.subr.mxu0 0.0
      %3522 = vmatpush1.msra.mxu0 0.0
      %3523 = vmatprep.subr.mxu0 0.0
      %3524 = vmatpush1.msra.mxu0 0.0
      %3525 = vmatprep.subr.mxu0 0.0
      %3526 = vmatpush1.msra.mxu0 0.0
      %3527 = vmatprep.subr.mxu0 0.0
      %3528 = vmatpush1.msra.mxu0 0.0
      %3529 = vmatprep.subr.mxu0 0.0
      %3530 = vmatpush1.msra.mxu0 0.0
      %3531 = vmatprep.subr.mxu0 0.0
      %3532 = vmatpush1.msra.mxu0 0.0
      %3533 = vmatprep.subr.mxu0 0.0
      %3534 = vmatpush1.msra.mxu0 0.0
      %3535 = vmatprep.subr.mxu0 0.0
      %3536 = vmatpush1.msra.mxu0 0.0
      %3537 = vmatprep.subr.mxu0 0.0
      %3538 = vmatpush1.msra.mxu0 0.0
      %3539 = vmatprep.subr.mxu0 0.0
      %3540 = vmatpush1.msra.mxu0 0.0
      %3541 = vmatprep.subr.mxu0 0.0
      %3542 = vmatpush1.msra.mxu0 0.0
      %3543 = vmatprep.subr.mxu0 %v3507
      %3544 = vmatpush1.msra.mxu0 %v3505
      %3545 = vmatprep.subr.mxu0 0.0
      %3546 = vmatpush2.msra.mxu0 0.0
      %3547 = vmatprep.subr.mxu0 0.0
      %3548 = vmatpush2.msra.mxu0 0.0
      %3549 = vmatprep.subr.mxu0 0.0
      %3550 = vmatpush2.msra.mxu0 0.0
      %3551 = vmatprep.subr.mxu0 0.0
      %3552 = vmatpush2.msra.mxu0 0.0
      %3553 = vmatprep.subr.mxu0 0.0
      %3554 = vmatpush2.msra.mxu0 0.0
      %3555 = vmatprep.subr.mxu0 0.0
      %3556 = vmatpush2.msra.mxu0 0.0
      %3557 = vmatprep.subr.mxu0 0.0
      %3558 = vmatpush2.msra.mxu0 0.0
      %3559 = vmatprep.subr.mxu0 0.0
      %3560 = vmatpush2.msra.mxu0 0.0
      %3561 = vmatprep.subr.mxu0 0.0
      %3562 = vmatpush2.msra.mxu0 0.0
      %3563 = vmatprep.subr.mxu0 0.0
      %3564 = vmatpush2.msra.mxu0 0.0
      %3565 = vmatprep.subr.mxu0 0.0
      %3566 = vmatpush2.msra.mxu0 0.0
      %3567 = vmatprep.subr.mxu0 0.0
      %3568 = vmatpush2.msra.mxu0 0.0
      %3569 = vmatprep.subr.mxu0 0.0
      %3570 = vmatpush2.msra.mxu0 0.0
      %3571 = vmatprep.subr.mxu0 0.0
      %3572 = vmatpush2.msra.mxu0 0.0
      %3573 = vmatprep.subr.mxu0 0.0
      %3574 = vmatpush2.msra.mxu0 0.0
      %3575 = vmatprep.subr.mxu0 0.0
      %3576 = vmatpush2.msra.mxu0 0.0
      %3577 = vmatprep.mubr.f32.mxu0 0.0
      %3578 = vmatmul.mubr.f32.gmra.mxu0 %v3503
      %v3579 = vpop.f32.mrf.mxu0
      %v3580 = vadd.f32 0.0, %v3579
      %v3581 = vpop.f32.mrf.mxu0
      %v3582 = vadd.f32 0.0, %v3581
      %3583 = vdwg.mxu0
      %3584 = vmatprep.subr.mxu0 0.0
      %3585 = vmatpush1.msra.mxu0 0.0
      %3586 = vmatprep.subr.mxu0 0.0
      %3587 = vmatpush1.msra.mxu0 0.0
      %3588 = vmatprep.subr.mxu0 0.0
      %3589 = vmatpush1.msra.mxu0 0.0
      %3590 = vmatprep.subr.mxu0 0.0
      %3591 = vmatpush1.msra.mxu0 0.0
      %3592 = vmatprep.subr.mxu0 0.0
      %3593 = vmatpush1.msra.mxu0 0.0
      %3594 = vmatprep.subr.mxu0 0.0
      %3595 = vmatpush1.msra.mxu0 0.0
      %3596 = vmatprep.subr.mxu0 0.0
      %3597 = vmatpush1.msra.mxu0 0.0
      %3598 = vmatprep.subr.mxu0 0.0
      %3599 = vmatpush1.msra.mxu0 0.0
      %3600 = vmatprep.subr.mxu0 0.0
      %3601 = vmatpush1.msra.mxu0 0.0
      %3602 = vmatprep.subr.mxu0 0.0
      %3603 = vmatpush1.msra.mxu0 0.0
      %3604 = vmatprep.subr.mxu0 0.0
      %3605 = vmatpush1.msra.mxu0 0.0
      %3606 = vmatprep.subr.mxu0 0.0
      %3607 = vmatpush1.msra.mxu0 0.0
      %3608 = vmatprep.subr.mxu0 0.0
      %3609 = vmatpush1.msra.mxu0 0.0
      %3610 = vmatprep.subr.mxu0 0.0
      %3611 = vmatpush1.msra.mxu0 0.0
      %3612 = vmatprep.subr.mxu0 0.0
      %3613 = vmatpush1.msra.mxu0 0.0
      %3614 = vmatprep.subr.mxu0 %v3511
      %3615 = vmatpush1.msra.mxu0 %v3509
      %3616 = vmatprep.subr.mxu0 0.0
      %3617 = vmatpush2.msra.mxu0 0.0
      %3618 = vmatprep.subr.mxu0 0.0
      %3619 = vmatpush2.msra.mxu0 0.0
      %3620 = vmatprep.subr.mxu0 0.0
      %3621 = vmatpush2.msra.mxu0 0.0
      %3622 = vmatprep.subr.mxu0 0.0
      %3623 = vmatpush2.msra.mxu0 0.0
      %3624 = vmatprep.subr.mxu0 0.0
      %3625 = vmatpush2.msra.mxu0 0.0
      %3626 = vmatprep.subr.mxu0 0.0
      %3627 = vmatpush2.msra.mxu0 0.0
      %3628 = vmatprep.subr.mxu0 0.0
      %3629 = vmatpush2.msra.mxu0 0.0
      %3630 = vmatprep.subr.mxu0 0.0
      %3631 = vmatpush2.msra.mxu0 0.0
      %3632 = vmatprep.subr.mxu0 0.0
      %3633 = vmatpush2.msra.mxu0 0.0
      %3634 = vmatprep.subr.mxu0 0.0
      %3635 = vmatpush2.msra.mxu0 0.0
      %3636 = vmatprep.subr.mxu0 0.0
      %3637 = vmatpush2.msra.mxu0 0.0
      %3638 = vmatprep.subr.mxu0 0.0
      %3639 = vmatpush2.msra.mxu0 0.0
      %3640 = vmatprep.subr.mxu0 0.0
      %3641 = vmatpush2.msra.mxu0 0.0
      %3642 = vmatprep.subr.mxu0 0.0
      %3643 = vmatpush2.msra.mxu0 0.0
      %3644 = vmatprep.subr.mxu0 0.0
      %3645 = vmatpush2.msra.mxu0 0.0
      %3646 = vmatprep.subr.mxu0 0.0
      %3647 = vmatpush2.msra.mxu0 0.0
      %3648 = vmatprep.mubr.f32.mxu0 0.0
      %3649 = vmatmul.mubr.f32.gmra.mxu0 %v3503
      %v3650 = vpop.f32.mrf.mxu0
      %v3651 = vadd.f32 0.0, %v3650
      %v3652 = vpop.f32.mrf.mxu0
      %v3653 = vadd.f32 0.0, %v3652
      %3654 = vdwg.mxu0
      %v3655 = vadd.f32 %v3481, %v3580
      %v3656 = vadd.f32 %v3482, %v3582
      %v3657 = vadd.f32 %v3483, %v3651
      %v3658 = vadd.f32 %v3484, %v3653
      %s3659 = scalar_lea.vmem %s3, 152
      %v3660 = vld [vmem:[%s3659] sm:$0xff]
      %3661 = vrot.lane.b32.xlu0 %v365, 38
      %v3662 = vpop.permute.xlu0 %3661
      %3663 = vrot.lane.b32.xlu0 %v372, 38
      %v3664 = vpop.permute.xlu0 %3663
      %3665 = vrot.lane.b32.xlu0 %v366, 38
      %v3666 = vpop.permute.xlu0 %3665
      %3667 = vrot.lane.b32.xlu0 %v373, 38
      %v3668 = vpop.permute.xlu0 %3667
      %3669 = vrot.lane.b32.xlu0 %v367, 38
      %v3670 = vpop.permute.xlu0 %3669
      %vm3671 = vcmask 310272
      %v3672 = vsel %vm3671, %v3662, %v3664
      %v3673 = vsel %vm3671, %v3664, %v3666
      %v3674 = vsel %vm3671, %v3666, %v3668
      %v3675 = vsel %vm3671, %v3668, %v3670
      %v3677 = vsel %vm393, %v3660, 0
      %v3679 = vsel %vm397, %v3672, 0
      %v3681 = vsel %vm397, %v3673, 0
      %v3683 = vsel %vm397, %v3674, 0
      %v3685 = vsel %vm397, %v3675, 0
      %3687 = vmatprep.subr.mxu0 0.0
      %3688 = vmatpush1.msra.mxu0 0.0
      %3689 = vmatprep.subr.mxu0 0.0
      %3690 = vmatpush1.msra.mxu0 0.0
      %3691 = vmatprep.subr.mxu0 0.0
      %3692 = vmatpush1.msra.mxu0 0.0
      %3693 = vmatprep.subr.mxu0 0.0
      %3694 = vmatpush1.msra.mxu0 0.0
      %3695 = vmatprep.subr.mxu0 0.0
      %3696 = vmatpush1.msra.mxu0 0.0
      %3697 = vmatprep.subr.mxu0 0.0
      %3698 = vmatpush1.msra.mxu0 0.0
      %3699 = vmatprep.subr.mxu0 0.0
      %3700 = vmatpush1.msra.mxu0 0.0
      %3701 = vmatprep.subr.mxu0 0.0
      %3702 = vmatpush1.msra.mxu0 0.0
      %3703 = vmatprep.subr.mxu0 0.0
      %3704 = vmatpush1.msra.mxu0 0.0
      %3705 = vmatprep.subr.mxu0 0.0
      %3706 = vmatpush1.msra.mxu0 0.0
      %3707 = vmatprep.subr.mxu0 0.0
      %3708 = vmatpush1.msra.mxu0 0.0
      %3709 = vmatprep.subr.mxu0 0.0
      %3710 = vmatpush1.msra.mxu0 0.0
      %3711 = vmatprep.subr.mxu0 0.0
      %3712 = vmatpush1.msra.mxu0 0.0
      %3713 = vmatprep.subr.mxu0 0.0
      %3714 = vmatpush1.msra.mxu0 0.0
      %3715 = vmatprep.subr.mxu0 0.0
      %3716 = vmatpush1.msra.mxu0 0.0
      %3717 = vmatprep.subr.mxu0 %v3681
      %3718 = vmatpush1.msra.mxu0 %v3679
      %3719 = vmatprep.subr.mxu0 0.0
      %3720 = vmatpush2.msra.mxu0 0.0
      %3721 = vmatprep.subr.mxu0 0.0
      %3722 = vmatpush2.msra.mxu0 0.0
      %3723 = vmatprep.subr.mxu0 0.0
      %3724 = vmatpush2.msra.mxu0 0.0
      %3725 = vmatprep.subr.mxu0 0.0
      %3726 = vmatpush2.msra.mxu0 0.0
      %3727 = vmatprep.subr.mxu0 0.0
      %3728 = vmatpush2.msra.mxu0 0.0
      %3729 = vmatprep.subr.mxu0 0.0
      %3730 = vmatpush2.msra.mxu0 0.0
      %3731 = vmatprep.subr.mxu0 0.0
      %3732 = vmatpush2.msra.mxu0 0.0
      %3733 = vmatprep.subr.mxu0 0.0
      %3734 = vmatpush2.msra.mxu0 0.0
      %3735 = vmatprep.subr.mxu0 0.0
      %3736 = vmatpush2.msra.mxu0 0.0
      %3737 = vmatprep.subr.mxu0 0.0
      %3738 = vmatpush2.msra.mxu0 0.0
      %3739 = vmatprep.subr.mxu0 0.0
      %3740 = vmatpush2.msra.mxu0 0.0
      %3741 = vmatprep.subr.mxu0 0.0
      %3742 = vmatpush2.msra.mxu0 0.0
      %3743 = vmatprep.subr.mxu0 0.0
      %3744 = vmatpush2.msra.mxu0 0.0
      %3745 = vmatprep.subr.mxu0 0.0
      %3746 = vmatpush2.msra.mxu0 0.0
      %3747 = vmatprep.subr.mxu0 0.0
      %3748 = vmatpush2.msra.mxu0 0.0
      %3749 = vmatprep.subr.mxu0 0.0
      %3750 = vmatpush2.msra.mxu0 0.0
      %3751 = vmatprep.mubr.f32.mxu0 0.0
      %3752 = vmatmul.mubr.f32.gmra.mxu0 %v3677
      %v3753 = vpop.f32.mrf.mxu0
      %v3754 = vadd.f32 0.0, %v3753
      %v3755 = vpop.f32.mrf.mxu0
      %v3756 = vadd.f32 0.0, %v3755
      %3757 = vdwg.mxu0
      %3758 = vmatprep.subr.mxu0 0.0
      %3759 = vmatpush1.msra.mxu0 0.0
      %3760 = vmatprep.subr.mxu0 0.0
      %3761 = vmatpush1.msra.mxu0 0.0
      %3762 = vmatprep.subr.mxu0 0.0
      %3763 = vmatpush1.msra.mxu0 0.0
      %3764 = vmatprep.subr.mxu0 0.0
      %3765 = vmatpush1.msra.mxu0 0.0
      %3766 = vmatprep.subr.mxu0 0.0
      %3767 = vmatpush1.msra.mxu0 0.0
      %3768 = vmatprep.subr.mxu0 0.0
      %3769 = vmatpush1.msra.mxu0 0.0
      %3770 = vmatprep.subr.mxu0 0.0
      %3771 = vmatpush1.msra.mxu0 0.0
      %3772 = vmatprep.subr.mxu0 0.0
      %3773 = vmatpush1.msra.mxu0 0.0
      %3774 = vmatprep.subr.mxu0 0.0
      %3775 = vmatpush1.msra.mxu0 0.0
      %3776 = vmatprep.subr.mxu0 0.0
      %3777 = vmatpush1.msra.mxu0 0.0
      %3778 = vmatprep.subr.mxu0 0.0
      %3779 = vmatpush1.msra.mxu0 0.0
      %3780 = vmatprep.subr.mxu0 0.0
      %3781 = vmatpush1.msra.mxu0 0.0
      %3782 = vmatprep.subr.mxu0 0.0
      %3783 = vmatpush1.msra.mxu0 0.0
      %3784 = vmatprep.subr.mxu0 0.0
      %3785 = vmatpush1.msra.mxu0 0.0
      %3786 = vmatprep.subr.mxu0 0.0
      %3787 = vmatpush1.msra.mxu0 0.0
      %3788 = vmatprep.subr.mxu0 %v3685
      %3789 = vmatpush1.msra.mxu0 %v3683
      %3790 = vmatprep.subr.mxu0 0.0
      %3791 = vmatpush2.msra.mxu0 0.0
      %3792 = vmatprep.subr.mxu0 0.0
      %3793 = vmatpush2.msra.mxu0 0.0
      %3794 = vmatprep.subr.mxu0 0.0
      %3795 = vmatpush2.msra.mxu0 0.0
      %3796 = vmatprep.subr.mxu0 0.0
      %3797 = vmatpush2.msra.mxu0 0.0
      %3798 = vmatprep.subr.mxu0 0.0
      %3799 = vmatpush2.msra.mxu0 0.0
      %3800 = vmatprep.subr.mxu0 0.0
      %3801 = vmatpush2.msra.mxu0 0.0
      %3802 = vmatprep.subr.mxu0 0.0
      %3803 = vmatpush2.msra.mxu0 0.0
      %3804 = vmatprep.subr.mxu0 0.0
      %3805 = vmatpush2.msra.mxu0 0.0
      %3806 = vmatprep.subr.mxu0 0.0
      %3807 = vmatpush2.msra.mxu0 0.0
      %3808 = vmatprep.subr.mxu0 0.0
      %3809 = vmatpush2.msra.mxu0 0.0
      %3810 = vmatprep.subr.mxu0 0.0
      %3811 = vmatpush2.msra.mxu0 0.0
      %3812 = vmatprep.subr.mxu0 0.0
      %3813 = vmatpush2.msra.mxu0 0.0
      %3814 = vmatprep.subr.mxu0 0.0
      %3815 = vmatpush2.msra.mxu0 0.0
      %3816 = vmatprep.subr.mxu0 0.0
      %3817 = vmatpush2.msra.mxu0 0.0
      %3818 = vmatprep.subr.mxu0 0.0
      %3819 = vmatpush2.msra.mxu0 0.0
      %3820 = vmatprep.subr.mxu0 0.0
      %3821 = vmatpush2.msra.mxu0 0.0
      %3822 = vmatprep.mubr.f32.mxu0 0.0
      %3823 = vmatmul.mubr.f32.gmra.mxu0 %v3677
      %v3824 = vpop.f32.mrf.mxu0
      %v3825 = vadd.f32 0.0, %v3824
      %v3826 = vpop.f32.mrf.mxu0
      %v3827 = vadd.f32 0.0, %v3826
      %3828 = vdwg.mxu0
      %v3829 = vadd.f32 %v3655, %v3754
      %v3830 = vadd.f32 %v3656, %v3756
      %v3831 = vadd.f32 %v3657, %v3825
      %v3832 = vadd.f32 %v3658, %v3827
      %s3833 = scalar_lea.vmem %s3, 160
      %v3834 = vld [vmem:[%s3833] sm:$0xff]
      %3835 = vrot.lane.b32.xlu0 %v365, 37
      %v3836 = vpop.permute.xlu0 %3835
      %3837 = vrot.lane.b32.xlu0 %v372, 37
      %v3838 = vpop.permute.xlu0 %3837
      %3839 = vrot.lane.b32.xlu0 %v366, 37
      %v3840 = vpop.permute.xlu0 %3839
      %3841 = vrot.lane.b32.xlu0 %v373, 37
      %v3842 = vpop.permute.xlu0 %3841
      %3843 = vrot.lane.b32.xlu0 %v367, 37
      %v3844 = vpop.permute.xlu0 %3843
      %vm3845 = vcmask 302080
      %v3846 = vsel %vm3845, %v3836, %v3838
      %v3847 = vsel %vm3845, %v3838, %v3840
      %v3848 = vsel %vm3845, %v3840, %v3842
      %v3849 = vsel %vm3845, %v3842, %v3844
      %v3851 = vsel %vm393, %v3834, 0
      %v3853 = vsel %vm397, %v3846, 0
      %v3855 = vsel %vm397, %v3847, 0
      %v3857 = vsel %vm397, %v3848, 0
      %v3859 = vsel %vm397, %v3849, 0
      %3861 = vmatprep.subr.mxu0 0.0
      %3862 = vmatpush1.msra.mxu0 0.0
      %3863 = vmatprep.subr.mxu0 0.0
      %3864 = vmatpush1.msra.mxu0 0.0
      %3865 = vmatprep.subr.mxu0 0.0
      %3866 = vmatpush1.msra.mxu0 0.0
      %3867 = vmatprep.subr.mxu0 0.0
      %3868 = vmatpush1.msra.mxu0 0.0
      %3869 = vmatprep.subr.mxu0 0.0
      %3870 = vmatpush1.msra.mxu0 0.0
      %3871 = vmatprep.subr.mxu0 0.0
      %3872 = vmatpush1.msra.mxu0 0.0
      %3873 = vmatprep.subr.mxu0 0.0
      %3874 = vmatpush1.msra.mxu0 0.0
      %3875 = vmatprep.subr.mxu0 0.0
      %3876 = vmatpush1.msra.mxu0 0.0
      %3877 = vmatprep.subr.mxu0 0.0
      %3878 = vmatpush1.msra.mxu0 0.0
      %3879 = vmatprep.subr.mxu0 0.0
      %3880 = vmatpush1.msra.mxu0 0.0
      %3881 = vmatprep.subr.mxu0 0.0
      %3882 = vmatpush1.msra.mxu0 0.0
      %3883 = vmatprep.subr.mxu0 0.0
      %3884 = vmatpush1.msra.mxu0 0.0
      %3885 = vmatprep.subr.mxu0 0.0
      %3886 = vmatpush1.msra.mxu0 0.0
      %3887 = vmatprep.subr.mxu0 0.0
      %3888 = vmatpush1.msra.mxu0 0.0
      %3889 = vmatprep.subr.mxu0 0.0
      %3890 = vmatpush1.msra.mxu0 0.0
      %3891 = vmatprep.subr.mxu0 %v3855
      %3892 = vmatpush1.msra.mxu0 %v3853
      %3893 = vmatprep.subr.mxu0 0.0
      %3894 = vmatpush2.msra.mxu0 0.0
      %3895 = vmatprep.subr.mxu0 0.0
      %3896 = vmatpush2.msra.mxu0 0.0
      %3897 = vmatprep.subr.mxu0 0.0
      %3898 = vmatpush2.msra.mxu0 0.0
      %3899 = vmatprep.subr.mxu0 0.0
      %3900 = vmatpush2.msra.mxu0 0.0
      %3901 = vmatprep.subr.mxu0 0.0
      %3902 = vmatpush2.msra.mxu0 0.0
      %3903 = vmatprep.subr.mxu0 0.0
      %3904 = vmatpush2.msra.mxu0 0.0
      %3905 = vmatprep.subr.mxu0 0.0
      %3906 = vmatpush2.msra.mxu0 0.0
      %3907 = vmatprep.subr.mxu0 0.0
      %3908 = vmatpush2.msra.mxu0 0.0
      %3909 = vmatprep.subr.mxu0 0.0
      %3910 = vmatpush2.msra.mxu0 0.0
      %3911 = vmatprep.subr.mxu0 0.0
      %3912 = vmatpush2.msra.mxu0 0.0
      %3913 = vmatprep.subr.mxu0 0.0
      %3914 = vmatpush2.msra.mxu0 0.0
      %3915 = vmatprep.subr.mxu0 0.0
      %3916 = vmatpush2.msra.mxu0 0.0
      %3917 = vmatprep.subr.mxu0 0.0
      %3918 = vmatpush2.msra.mxu0 0.0
      %3919 = vmatprep.subr.mxu0 0.0
      %3920 = vmatpush2.msra.mxu0 0.0
      %3921 = vmatprep.subr.mxu0 0.0
      %3922 = vmatpush2.msra.mxu0 0.0
      %3923 = vmatprep.subr.mxu0 0.0
      %3924 = vmatpush2.msra.mxu0 0.0
      %3925 = vmatprep.mubr.f32.mxu0 0.0
      %3926 = vmatmul.mubr.f32.gmra.mxu0 %v3851
      %v3927 = vpop.f32.mrf.mxu0
      %v3928 = vadd.f32 0.0, %v3927
      %v3929 = vpop.f32.mrf.mxu0
      %v3930 = vadd.f32 0.0, %v3929
      %3931 = vdwg.mxu0
      %3932 = vmatprep.subr.mxu0 0.0
      %3933 = vmatpush1.msra.mxu0 0.0
      %3934 = vmatprep.subr.mxu0 0.0
      %3935 = vmatpush1.msra.mxu0 0.0
      %3936 = vmatprep.subr.mxu0 0.0
      %3937 = vmatpush1.msra.mxu0 0.0
      %3938 = vmatprep.subr.mxu0 0.0
      %3939 = vmatpush1.msra.mxu0 0.0
      %3940 = vmatprep.subr.mxu0 0.0
      %3941 = vmatpush1.msra.mxu0 0.0
      %3942 = vmatprep.subr.mxu0 0.0
      %3943 = vmatpush1.msra.mxu0 0.0
      %3944 = vmatprep.subr.mxu0 0.0
      %3945 = vmatpush1.msra.mxu0 0.0
      %3946 = vmatprep.subr.mxu0 0.0
      %3947 = vmatpush1.msra.mxu0 0.0
      %3948 = vmatprep.subr.mxu0 0.0
      %3949 = vmatpush1.msra.mxu0 0.0
      %3950 = vmatprep.subr.mxu0 0.0
      %3951 = vmatpush1.msra.mxu0 0.0
      %3952 = vmatprep.subr.mxu0 0.0
      %3953 = vmatpush1.msra.mxu0 0.0
      %3954 = vmatprep.subr.mxu0 0.0
      %3955 = vmatpush1.msra.mxu0 0.0
      %3956 = vmatprep.subr.mxu0 0.0
      %3957 = vmatpush1.msra.mxu0 0.0
      %3958 = vmatprep.subr.mxu0 0.0
      %3959 = vmatpush1.msra.mxu0 0.0
      %3960 = vmatprep.subr.mxu0 0.0
      %3961 = vmatpush1.msra.mxu0 0.0
      %3962 = vmatprep.subr.mxu0 %v3859
      %3963 = vmatpush1.msra.mxu0 %v3857
      %3964 = vmatprep.subr.mxu0 0.0
      %3965 = vmatpush2.msra.mxu0 0.0
      %3966 = vmatprep.subr.mxu0 0.0
      %3967 = vmatpush2.msra.mxu0 0.0
      %3968 = vmatprep.subr.mxu0 0.0
      %3969 = vmatpush2.msra.mxu0 0.0
      %3970 = vmatprep.subr.mxu0 0.0
      %3971 = vmatpush2.msra.mxu0 0.0
      %3972 = vmatprep.subr.mxu0 0.0
      %3973 = vmatpush2.msra.mxu0 0.0
      %3974 = vmatprep.subr.mxu0 0.0
      %3975 = vmatpush2.msra.mxu0 0.0
      %3976 = vmatprep.subr.mxu0 0.0
      %3977 = vmatpush2.msra.mxu0 0.0
      %3978 = vmatprep.subr.mxu0 0.0
      %3979 = vmatpush2.msra.mxu0 0.0
      %3980 = vmatprep.subr.mxu0 0.0
      %3981 = vmatpush2.msra.mxu0 0.0
      %3982 = vmatprep.subr.mxu0 0.0
      %3983 = vmatpush2.msra.mxu0 0.0
      %3984 = vmatprep.subr.mxu0 0.0
      %3985 = vmatpush2.msra.mxu0 0.0
      %3986 = vmatprep.subr.mxu0 0.0
      %3987 = vmatpush2.msra.mxu0 0.0
      %3988 = vmatprep.subr.mxu0 0.0
      %3989 = vmatpush2.msra.mxu0 0.0
      %3990 = vmatprep.subr.mxu0 0.0
      %3991 = vmatpush2.msra.mxu0 0.0
      %3992 = vmatprep.subr.mxu0 0.0
      %3993 = vmatpush2.msra.mxu0 0.0
      %3994 = vmatprep.subr.mxu0 0.0
      %3995 = vmatpush2.msra.mxu0 0.0
      %3996 = vmatprep.mubr.f32.mxu0 0.0
      %3997 = vmatmul.mubr.f32.gmra.mxu0 %v3851
      %v3998 = vpop.f32.mrf.mxu0
      %v3999 = vadd.f32 0.0, %v3998
      %v4000 = vpop.f32.mrf.mxu0
      %v4001 = vadd.f32 0.0, %v4000
      %4002 = vdwg.mxu0
      %v4003 = vadd.f32 %v3829, %v3928
      %v4004 = vadd.f32 %v3830, %v3930
      %v4005 = vadd.f32 %v3831, %v3999
      %v4006 = vadd.f32 %v3832, %v4001
      %s4007 = scalar_lea.vmem %s3, 168
      %v4008 = vld [vmem:[%s4007] sm:$0xff]
      %4009 = vrot.lane.b32.xlu0 %v365, 29
      %v4010 = vpop.permute.xlu0 %4009
      %4011 = vrot.lane.b32.xlu0 %v372, 29
      %v4012 = vpop.permute.xlu0 %4011
      %4013 = vrot.lane.b32.xlu0 %v366, 29
      %v4014 = vpop.permute.xlu0 %4013
      %4015 = vrot.lane.b32.xlu0 %v373, 29
      %v4016 = vpop.permute.xlu0 %4015
      %4017 = vrot.lane.b32.xlu0 %v367, 29
      %v4018 = vpop.permute.xlu0 %4017
      %vm4019 = vcmask 236544
      %v4020 = vsel %vm4019, %v4010, %v4012
      %v4021 = vsel %vm4019, %v4012, %v4014
      %v4022 = vsel %vm4019, %v4014, %v4016
      %v4023 = vsel %vm4019, %v4016, %v4018
      %v4025 = vsel %vm393, %v4008, 0
      %v4027 = vsel %vm397, %v4020, 0
      %v4029 = vsel %vm397, %v4021, 0
      %v4031 = vsel %vm397, %v4022, 0
      %v4033 = vsel %vm397, %v4023, 0
      %4035 = vmatprep.subr.mxu0 0.0
      %4036 = vmatpush1.msra.mxu0 0.0
      %4037 = vmatprep.subr.mxu0 0.0
      %4038 = vmatpush1.msra.mxu0 0.0
      %4039 = vmatprep.subr.mxu0 0.0
      %4040 = vmatpush1.msra.mxu0 0.0
      %4041 = vmatprep.subr.mxu0 0.0
      %4042 = vmatpush1.msra.mxu0 0.0
      %4043 = vmatprep.subr.mxu0 0.0
      %4044 = vmatpush1.msra.mxu0 0.0
      %4045 = vmatprep.subr.mxu0 0.0
      %4046 = vmatpush1.msra.mxu0 0.0
      %4047 = vmatprep.subr.mxu0 0.0
      %4048 = vmatpush1.msra.mxu0 0.0
      %4049 = vmatprep.subr.mxu0 0.0
      %4050 = vmatpush1.msra.mxu0 0.0
      %4051 = vmatprep.subr.mxu0 0.0
      %4052 = vmatpush1.msra.mxu0 0.0
      %4053 = vmatprep.subr.mxu0 0.0
      %4054 = vmatpush1.msra.mxu0 0.0
      %4055 = vmatprep.subr.mxu0 0.0
      %4056 = vmatpush1.msra.mxu0 0.0
      %4057 = vmatprep.subr.mxu0 0.0
      %4058 = vmatpush1.msra.mxu0 0.0
      %4059 = vmatprep.subr.mxu0 0.0
      %4060 = vmatpush1.msra.mxu0 0.0
      %4061 = vmatprep.subr.mxu0 0.0
      %4062 = vmatpush1.msra.mxu0 0.0
      %4063 = vmatprep.subr.mxu0 0.0
      %4064 = vmatpush1.msra.mxu0 0.0
      %4065 = vmatprep.subr.mxu0 %v4029
      %4066 = vmatpush1.msra.mxu0 %v4027
      %4067 = vmatprep.subr.mxu0 0.0
      %4068 = vmatpush2.msra.mxu0 0.0
      %4069 = vmatprep.subr.mxu0 0.0
      %4070 = vmatpush2.msra.mxu0 0.0
      %4071 = vmatprep.subr.mxu0 0.0
      %4072 = vmatpush2.msra.mxu0 0.0
      %4073 = vmatprep.subr.mxu0 0.0
      %4074 = vmatpush2.msra.mxu0 0.0
      %4075 = vmatprep.subr.mxu0 0.0
      %4076 = vmatpush2.msra.mxu0 0.0
      %4077 = vmatprep.subr.mxu0 0.0
      %4078 = vmatpush2.msra.mxu0 0.0
      %4079 = vmatprep.subr.mxu0 0.0
      %4080 = vmatpush2.msra.mxu0 0.0
      %4081 = vmatprep.subr.mxu0 0.0
      %4082 = vmatpush2.msra.mxu0 0.0
      %4083 = vmatprep.subr.mxu0 0.0
      %4084 = vmatpush2.msra.mxu0 0.0
      %4085 = vmatprep.subr.mxu0 0.0
      %4086 = vmatpush2.msra.mxu0 0.0
      %4087 = vmatprep.subr.mxu0 0.0
      %4088 = vmatpush2.msra.mxu0 0.0
      %4089 = vmatprep.subr.mxu0 0.0
      %4090 = vmatpush2.msra.mxu0 0.0
      %4091 = vmatprep.subr.mxu0 0.0
      %4092 = vmatpush2.msra.mxu0 0.0
      %4093 = vmatprep.subr.mxu0 0.0
      %4094 = vmatpush2.msra.mxu0 0.0
      %4095 = vmatprep.subr.mxu0 0.0
      %4096 = vmatpush2.msra.mxu0 0.0
      %4097 = vmatprep.subr.mxu0 0.0
      %4098 = vmatpush2.msra.mxu0 0.0
      %4099 = vmatprep.mubr.f32.mxu0 0.0
      %4100 = vmatmul.mubr.f32.gmra.mxu0 %v4025
      %v4101 = vpop.f32.mrf.mxu0
      %v4102 = vadd.f32 0.0, %v4101
      %v4103 = vpop.f32.mrf.mxu0
      %v4104 = vadd.f32 0.0, %v4103
      %4105 = vdwg.mxu0
      %4106 = vmatprep.subr.mxu0 0.0
      %4107 = vmatpush1.msra.mxu0 0.0
      %4108 = vmatprep.subr.mxu0 0.0
      %4109 = vmatpush1.msra.mxu0 0.0
      %4110 = vmatprep.subr.mxu0 0.0
      %4111 = vmatpush1.msra.mxu0 0.0
      %4112 = vmatprep.subr.mxu0 0.0
      %4113 = vmatpush1.msra.mxu0 0.0
      %4114 = vmatprep.subr.mxu0 0.0
      %4115 = vmatpush1.msra.mxu0 0.0
      %4116 = vmatprep.subr.mxu0 0.0
      %4117 = vmatpush1.msra.mxu0 0.0
      %4118 = vmatprep.subr.mxu0 0.0
      %4119 = vmatpush1.msra.mxu0 0.0
      %4120 = vmatprep.subr.mxu0 0.0
      %4121 = vmatpush1.msra.mxu0 0.0
      %4122 = vmatprep.subr.mxu0 0.0
      %4123 = vmatpush1.msra.mxu0 0.0
      %4124 = vmatprep.subr.mxu0 0.0
      %4125 = vmatpush1.msra.mxu0 0.0
      %4126 = vmatprep.subr.mxu0 0.0
      %4127 = vmatpush1.msra.mxu0 0.0
      %4128 = vmatprep.subr.mxu0 0.0
      %4129 = vmatpush1.msra.mxu0 0.0
      %4130 = vmatprep.subr.mxu0 0.0
      %4131 = vmatpush1.msra.mxu0 0.0
      %4132 = vmatprep.subr.mxu0 0.0
      %4133 = vmatpush1.msra.mxu0 0.0
      %4134 = vmatprep.subr.mxu0 0.0
      %4135 = vmatpush1.msra.mxu0 0.0
      %4136 = vmatprep.subr.mxu0 %v4033
      %4137 = vmatpush1.msra.mxu0 %v4031
      %4138 = vmatprep.subr.mxu0 0.0
      %4139 = vmatpush2.msra.mxu0 0.0
      %4140 = vmatprep.subr.mxu0 0.0
      %4141 = vmatpush2.msra.mxu0 0.0
      %4142 = vmatprep.subr.mxu0 0.0
      %4143 = vmatpush2.msra.mxu0 0.0
      %4144 = vmatprep.subr.mxu0 0.0
      %4145 = vmatpush2.msra.mxu0 0.0
      %4146 = vmatprep.subr.mxu0 0.0
      %4147 = vmatpush2.msra.mxu0 0.0
      %4148 = vmatprep.subr.mxu0 0.0
      %4149 = vmatpush2.msra.mxu0 0.0
      %4150 = vmatprep.subr.mxu0 0.0
      %4151 = vmatpush2.msra.mxu0 0.0
      %4152 = vmatprep.subr.mxu0 0.0
      %4153 = vmatpush2.msra.mxu0 0.0
      %4154 = vmatprep.subr.mxu0 0.0
      %4155 = vmatpush2.msra.mxu0 0.0
      %4156 = vmatprep.subr.mxu0 0.0
      %4157 = vmatpush2.msra.mxu0 0.0
      %4158 = vmatprep.subr.mxu0 0.0
      %4159 = vmatpush2.msra.mxu0 0.0
      %4160 = vmatprep.subr.mxu0 0.0
      %4161 = vmatpush2.msra.mxu0 0.0
      %4162 = vmatprep.subr.mxu0 0.0
      %4163 = vmatpush2.msra.mxu0 0.0
      %4164 = vmatprep.subr.mxu0 0.0
      %4165 = vmatpush2.msra.mxu0 0.0
      %4166 = vmatprep.subr.mxu0 0.0
      %4167 = vmatpush2.msra.mxu0 0.0
      %4168 = vmatprep.subr.mxu0 0.0
      %4169 = vmatpush2.msra.mxu0 0.0
      %4170 = vmatprep.mubr.f32.mxu0 0.0
      %4171 = vmatmul.mubr.f32.gmra.mxu0 %v4025
      %v4172 = vpop.f32.mrf.mxu0
      %v4173 = vadd.f32 0.0, %v4172
      %v4174 = vpop.f32.mrf.mxu0
      %v4175 = vadd.f32 0.0, %v4174
      %4176 = vdwg.mxu0
      %v4177 = vadd.f32 %v4003, %v4102
      %v4178 = vadd.f32 %v4004, %v4104
      %v4179 = vadd.f32 %v4005, %v4173
      %v4180 = vadd.f32 %v4006, %v4175
      %s4181 = scalar_lea.vmem %s3, 176
      %v4182 = vld [vmem:[%s4181] sm:$0xff]
      %4183 = vrot.lane.b32.xlu0 %v365, 28
      %v4184 = vpop.permute.xlu0 %4183
      %4185 = vrot.lane.b32.xlu0 %v372, 28
      %v4186 = vpop.permute.xlu0 %4185
      %4187 = vrot.lane.b32.xlu0 %v366, 28
      %v4188 = vpop.permute.xlu0 %4187
      %4189 = vrot.lane.b32.xlu0 %v373, 28
      %v4190 = vpop.permute.xlu0 %4189
      %4191 = vrot.lane.b32.xlu0 %v367, 28
      %v4192 = vpop.permute.xlu0 %4191
      %vm4193 = vcmask 228352
      %v4194 = vsel %vm4193, %v4184, %v4186
      %v4195 = vsel %vm4193, %v4186, %v4188
      %v4196 = vsel %vm4193, %v4188, %v4190
      %v4197 = vsel %vm4193, %v4190, %v4192
      %v4199 = vsel %vm393, %v4182, 0
      %v4201 = vsel %vm397, %v4194, 0
      %v4203 = vsel %vm397, %v4195, 0
      %v4205 = vsel %vm397, %v4196, 0
      %v4207 = vsel %vm397, %v4197, 0
      %4209 = vmatprep.subr.mxu0 0.0
      %4210 = vmatpush1.msra.mxu0 0.0
      %4211 = vmatprep.subr.mxu0 0.0
      %4212 = vmatpush1.msra.mxu0 0.0
      %4213 = vmatprep.subr.mxu0 0.0
      %4214 = vmatpush1.msra.mxu0 0.0
      %4215 = vmatprep.subr.mxu0 0.0
      %4216 = vmatpush1.msra.mxu0 0.0
      %4217 = vmatprep.subr.mxu0 0.0
      %4218 = vmatpush1.msra.mxu0 0.0
      %4219 = vmatprep.subr.mxu0 0.0
      %4220 = vmatpush1.msra.mxu0 0.0
      %4221 = vmatprep.subr.mxu0 0.0
      %4222 = vmatpush1.msra.mxu0 0.0
      %4223 = vmatprep.subr.mxu0 0.0
      %4224 = vmatpush1.msra.mxu0 0.0
      %4225 = vmatprep.subr.mxu0 0.0
      %4226 = vmatpush1.msra.mxu0 0.0
      %4227 = vmatprep.subr.mxu0 0.0
      %4228 = vmatpush1.msra.mxu0 0.0
      %4229 = vmatprep.subr.mxu0 0.0
      %4230 = vmatpush1.msra.mxu0 0.0
      %4231 = vmatprep.subr.mxu0 0.0
      %4232 = vmatpush1.msra.mxu0 0.0
      %4233 = vmatprep.subr.mxu0 0.0
      %4234 = vmatpush1.msra.mxu0 0.0
      %4235 = vmatprep.subr.mxu0 0.0
      %4236 = vmatpush1.msra.mxu0 0.0
      %4237 = vmatprep.subr.mxu0 0.0
      %4238 = vmatpush1.msra.mxu0 0.0
      %4239 = vmatprep.subr.mxu0 %v4203
      %4240 = vmatpush1.msra.mxu0 %v4201
      %4241 = vmatprep.subr.mxu0 0.0
      %4242 = vmatpush2.msra.mxu0 0.0
      %4243 = vmatprep.subr.mxu0 0.0
      %4244 = vmatpush2.msra.mxu0 0.0
      %4245 = vmatprep.subr.mxu0 0.0
      %4246 = vmatpush2.msra.mxu0 0.0
      %4247 = vmatprep.subr.mxu0 0.0
      %4248 = vmatpush2.msra.mxu0 0.0
      %4249 = vmatprep.subr.mxu0 0.0
      %4250 = vmatpush2.msra.mxu0 0.0
      %4251 = vmatprep.subr.mxu0 0.0
      %4252 = vmatpush2.msra.mxu0 0.0
      %4253 = vmatprep.subr.mxu0 0.0
      %4254 = vmatpush2.msra.mxu0 0.0
      %4255 = vmatprep.subr.mxu0 0.0
      %4256 = vmatpush2.msra.mxu0 0.0
      %4257 = vmatprep.subr.mxu0 0.0
      %4258 = vmatpush2.msra.mxu0 0.0
      %4259 = vmatprep.subr.mxu0 0.0
      %4260 = vmatpush2.msra.mxu0 0.0
      %4261 = vmatprep.subr.mxu0 0.0
      %4262 = vmatpush2.msra.mxu0 0.0
      %4263 = vmatprep.subr.mxu0 0.0
      %4264 = vmatpush2.msra.mxu0 0.0
      %4265 = vmatprep.subr.mxu0 0.0
      %4266 = vmatpush2.msra.mxu0 0.0
      %4267 = vmatprep.subr.mxu0 0.0
      %4268 = vmatpush2.msra.mxu0 0.0
      %4269 = vmatprep.subr.mxu0 0.0
      %4270 = vmatpush2.msra.mxu0 0.0
      %4271 = vmatprep.subr.mxu0 0.0
      %4272 = vmatpush2.msra.mxu0 0.0
      %4273 = vmatprep.mubr.f32.mxu0 0.0
      %4274 = vmatmul.mubr.f32.gmra.mxu0 %v4199
      %v4275 = vpop.f32.mrf.mxu0
      %v4276 = vadd.f32 0.0, %v4275
      %v4277 = vpop.f32.mrf.mxu0
      %v4278 = vadd.f32 0.0, %v4277
      %4279 = vdwg.mxu0
      %4280 = vmatprep.subr.mxu0 0.0
      %4281 = vmatpush1.msra.mxu0 0.0
      %4282 = vmatprep.subr.mxu0 0.0
      %4283 = vmatpush1.msra.mxu0 0.0
      %4284 = vmatprep.subr.mxu0 0.0
      %4285 = vmatpush1.msra.mxu0 0.0
      %4286 = vmatprep.subr.mxu0 0.0
      %4287 = vmatpush1.msra.mxu0 0.0
      %4288 = vmatprep.subr.mxu0 0.0
      %4289 = vmatpush1.msra.mxu0 0.0
      %4290 = vmatprep.subr.mxu0 0.0
      %4291 = vmatpush1.msra.mxu0 0.0
      %4292 = vmatprep.subr.mxu0 0.0
      %4293 = vmatpush1.msra.mxu0 0.0
      %4294 = vmatprep.subr.mxu0 0.0
      %4295 = vmatpush1.msra.mxu0 0.0
      %4296 = vmatprep.subr.mxu0 0.0
      %4297 = vmatpush1.msra.mxu0 0.0
      %4298 = vmatprep.subr.mxu0 0.0
      %4299 = vmatpush1.msra.mxu0 0.0
      %4300 = vmatprep.subr.mxu0 0.0
      %4301 = vmatpush1.msra.mxu0 0.0
      %4302 = vmatprep.subr.mxu0 0.0
      %4303 = vmatpush1.msra.mxu0 0.0
      %4304 = vmatprep.subr.mxu0 0.0
      %4305 = vmatpush1.msra.mxu0 0.0
      %4306 = vmatprep.subr.mxu0 0.0
      %4307 = vmatpush1.msra.mxu0 0.0
      %4308 = vmatprep.subr.mxu0 0.0
      %4309 = vmatpush1.msra.mxu0 0.0
      %4310 = vmatprep.subr.mxu0 %v4207
      %4311 = vmatpush1.msra.mxu0 %v4205
      %4312 = vmatprep.subr.mxu0 0.0
      %4313 = vmatpush2.msra.mxu0 0.0
      %4314 = vmatprep.subr.mxu0 0.0
      %4315 = vmatpush2.msra.mxu0 0.0
      %4316 = vmatprep.subr.mxu0 0.0
      %4317 = vmatpush2.msra.mxu0 0.0
      %4318 = vmatprep.subr.mxu0 0.0
      %4319 = vmatpush2.msra.mxu0 0.0
      %4320 = vmatprep.subr.mxu0 0.0
      %4321 = vmatpush2.msra.mxu0 0.0
      %4322 = vmatprep.subr.mxu0 0.0
      %4323 = vmatpush2.msra.mxu0 0.0
      %4324 = vmatprep.subr.mxu0 0.0
      %4325 = vmatpush2.msra.mxu0 0.0
      %4326 = vmatprep.subr.mxu0 0.0
      %4327 = vmatpush2.msra.mxu0 0.0
      %4328 = vmatprep.subr.mxu0 0.0
      %4329 = vmatpush2.msra.mxu0 0.0
      %4330 = vmatprep.subr.mxu0 0.0
      %4331 = vmatpush2.msra.mxu0 0.0
      %4332 = vmatprep.subr.mxu0 0.0
      %4333 = vmatpush2.msra.mxu0 0.0
      %4334 = vmatprep.subr.mxu0 0.0
      %4335 = vmatpush2.msra.mxu0 0.0
      %4336 = vmatprep.subr.mxu0 0.0
      %4337 = vmatpush2.msra.mxu0 0.0
      %4338 = vmatprep.subr.mxu0 0.0
      %4339 = vmatpush2.msra.mxu0 0.0
      %4340 = vmatprep.subr.mxu0 0.0
      %4341 = vmatpush2.msra.mxu0 0.0
      %4342 = vmatprep.subr.mxu0 0.0
      %4343 = vmatpush2.msra.mxu0 0.0
      %4344 = vmatprep.mubr.f32.mxu0 0.0
      %4345 = vmatmul.mubr.f32.gmra.mxu0 %v4199
      %v4346 = vpop.f32.mrf.mxu0
      %v4347 = vadd.f32 0.0, %v4346
      %v4348 = vpop.f32.mrf.mxu0
      %v4349 = vadd.f32 0.0, %v4348
      %4350 = vdwg.mxu0
      %v4351 = vadd.f32 %v4177, %v4276
      %v4352 = vadd.f32 %v4178, %v4278
      %v4353 = vadd.f32 %v4179, %v4347
      %v4354 = vadd.f32 %v4180, %v4349
      %s4355 = scalar_lea.vmem %s3, 184
      %v4356 = vld [vmem:[%s4355] sm:$0xff]
      %4357 = vrot.lane.b32.xlu0 %v365, 27
      %v4358 = vpop.permute.xlu0 %4357
      %4359 = vrot.lane.b32.xlu0 %v372, 27
      %v4360 = vpop.permute.xlu0 %4359
      %4361 = vrot.lane.b32.xlu0 %v366, 27
      %v4362 = vpop.permute.xlu0 %4361
      %4363 = vrot.lane.b32.xlu0 %v373, 27
      %v4364 = vpop.permute.xlu0 %4363
      %4365 = vrot.lane.b32.xlu0 %v367, 27
      %v4366 = vpop.permute.xlu0 %4365
      %vm4367 = vcmask 220160
      %v4368 = vsel %vm4367, %v4358, %v4360
      %v4369 = vsel %vm4367, %v4360, %v4362
      %v4370 = vsel %vm4367, %v4362, %v4364
      %v4371 = vsel %vm4367, %v4364, %v4366
      %v4373 = vsel %vm393, %v4356, 0
      %v4375 = vsel %vm397, %v4368, 0
      %v4377 = vsel %vm397, %v4369, 0
      %v4379 = vsel %vm397, %v4370, 0
      %v4381 = vsel %vm397, %v4371, 0
      %4383 = vmatprep.subr.mxu0 0.0
      %4384 = vmatpush1.msra.mxu0 0.0
      %4385 = vmatprep.subr.mxu0 0.0
      %4386 = vmatpush1.msra.mxu0 0.0
      %4387 = vmatprep.subr.mxu0 0.0
      %4388 = vmatpush1.msra.mxu0 0.0
      %4389 = vmatprep.subr.mxu0 0.0
      %4390 = vmatpush1.msra.mxu0 0.0
      %4391 = vmatprep.subr.mxu0 0.0
      %4392 = vmatpush1.msra.mxu0 0.0
      %4393 = vmatprep.subr.mxu0 0.0
      %4394 = vmatpush1.msra.mxu0 0.0
      %4395 = vmatprep.subr.mxu0 0.0
      %4396 = vmatpush1.msra.mxu0 0.0
      %4397 = vmatprep.subr.mxu0 0.0
      %4398 = vmatpush1.msra.mxu0 0.0
      %4399 = vmatprep.subr.mxu0 0.0
      %4400 = vmatpush1.msra.mxu0 0.0
      %4401 = vmatprep.subr.mxu0 0.0
      %4402 = vmatpush1.msra.mxu0 0.0
      %4403 = vmatprep.subr.mxu0 0.0
      %4404 = vmatpush1.msra.mxu0 0.0
      %4405 = vmatprep.subr.mxu0 0.0
      %4406 = vmatpush1.msra.mxu0 0.0
      %4407 = vmatprep.subr.mxu0 0.0
      %4408 = vmatpush1.msra.mxu0 0.0
      %4409 = vmatprep.subr.mxu0 0.0
      %4410 = vmatpush1.msra.mxu0 0.0
      %4411 = vmatprep.subr.mxu0 0.0
      %4412 = vmatpush1.msra.mxu0 0.0
      %4413 = vmatprep.subr.mxu0 %v4377
      %4414 = vmatpush1.msra.mxu0 %v4375
      %4415 = vmatprep.subr.mxu0 0.0
      %4416 = vmatpush2.msra.mxu0 0.0
      %4417 = vmatprep.subr.mxu0 0.0
      %4418 = vmatpush2.msra.mxu0 0.0
      %4419 = vmatprep.subr.mxu0 0.0
      %4420 = vmatpush2.msra.mxu0 0.0
      %4421 = vmatprep.subr.mxu0 0.0
      %4422 = vmatpush2.msra.mxu0 0.0
      %4423 = vmatprep.subr.mxu0 0.0
      %4424 = vmatpush2.msra.mxu0 0.0
      %4425 = vmatprep.subr.mxu0 0.0
      %4426 = vmatpush2.msra.mxu0 0.0
      %4427 = vmatprep.subr.mxu0 0.0
      %4428 = vmatpush2.msra.mxu0 0.0
      %4429 = vmatprep.subr.mxu0 0.0
      %4430 = vmatpush2.msra.mxu0 0.0
      %4431 = vmatprep.subr.mxu0 0.0
      %4432 = vmatpush2.msra.mxu0 0.0
      %4433 = vmatprep.subr.mxu0 0.0
      %4434 = vmatpush2.msra.mxu0 0.0
      %4435 = vmatprep.subr.mxu0 0.0
      %4436 = vmatpush2.msra.mxu0 0.0
      %4437 = vmatprep.subr.mxu0 0.0
      %4438 = vmatpush2.msra.mxu0 0.0
      %4439 = vmatprep.subr.mxu0 0.0
      %4440 = vmatpush2.msra.mxu0 0.0
      %4441 = vmatprep.subr.mxu0 0.0
      %4442 = vmatpush2.msra.mxu0 0.0
      %4443 = vmatprep.subr.mxu0 0.0
      %4444 = vmatpush2.msra.mxu0 0.0
      %4445 = vmatprep.subr.mxu0 0.0
      %4446 = vmatpush2.msra.mxu0 0.0
      %4447 = vmatprep.mubr.f32.mxu0 0.0
      %4448 = vmatmul.mubr.f32.gmra.mxu0 %v4373
      %v4449 = vpop.f32.mrf.mxu0
      %v4450 = vadd.f32 0.0, %v4449
      %v4451 = vpop.f32.mrf.mxu0
      %v4452 = vadd.f32 0.0, %v4451
      %4453 = vdwg.mxu0
      %4454 = vmatprep.subr.mxu0 0.0
      %4455 = vmatpush1.msra.mxu0 0.0
      %4456 = vmatprep.subr.mxu0 0.0
      %4457 = vmatpush1.msra.mxu0 0.0
      %4458 = vmatprep.subr.mxu0 0.0
      %4459 = vmatpush1.msra.mxu0 0.0
      %4460 = vmatprep.subr.mxu0 0.0
      %4461 = vmatpush1.msra.mxu0 0.0
      %4462 = vmatprep.subr.mxu0 0.0
      %4463 = vmatpush1.msra.mxu0 0.0
      %4464 = vmatprep.subr.mxu0 0.0
      %4465 = vmatpush1.msra.mxu0 0.0
      %4466 = vmatprep.subr.mxu0 0.0
      %4467 = vmatpush1.msra.mxu0 0.0
      %4468 = vmatprep.subr.mxu0 0.0
      %4469 = vmatpush1.msra.mxu0 0.0
      %4470 = vmatprep.subr.mxu0 0.0
      %4471 = vmatpush1.msra.mxu0 0.0
      %4472 = vmatprep.subr.mxu0 0.0
      %4473 = vmatpush1.msra.mxu0 0.0
      %4474 = vmatprep.subr.mxu0 0.0
      %4475 = vmatpush1.msra.mxu0 0.0
      %4476 = vmatprep.subr.mxu0 0.0
      %4477 = vmatpush1.msra.mxu0 0.0
      %4478 = vmatprep.subr.mxu0 0.0
      %4479 = vmatpush1.msra.mxu0 0.0
      %4480 = vmatprep.subr.mxu0 0.0
      %4481 = vmatpush1.msra.mxu0 0.0
      %4482 = vmatprep.subr.mxu0 0.0
      %4483 = vmatpush1.msra.mxu0 0.0
      %4484 = vmatprep.subr.mxu0 %v4381
      %4485 = vmatpush1.msra.mxu0 %v4379
      %4486 = vmatprep.subr.mxu0 0.0
      %4487 = vmatpush2.msra.mxu0 0.0
      %4488 = vmatprep.subr.mxu0 0.0
      %4489 = vmatpush2.msra.mxu0 0.0
      %4490 = vmatprep.subr.mxu0 0.0
      %4491 = vmatpush2.msra.mxu0 0.0
      %4492 = vmatprep.subr.mxu0 0.0
      %4493 = vmatpush2.msra.mxu0 0.0
      %4494 = vmatprep.subr.mxu0 0.0
      %4495 = vmatpush2.msra.mxu0 0.0
      %4496 = vmatprep.subr.mxu0 0.0
      %4497 = vmatpush2.msra.mxu0 0.0
      %4498 = vmatprep.subr.mxu0 0.0
      %4499 = vmatpush2.msra.mxu0 0.0
      %4500 = vmatprep.subr.mxu0 0.0
      %4501 = vmatpush2.msra.mxu0 0.0
      %4502 = vmatprep.subr.mxu0 0.0
      %4503 = vmatpush2.msra.mxu0 0.0
      %4504 = vmatprep.subr.mxu0 0.0
      %4505 = vmatpush2.msra.mxu0 0.0
      %4506 = vmatprep.subr.mxu0 0.0
      %4507 = vmatpush2.msra.mxu0 0.0
      %4508 = vmatprep.subr.mxu0 0.0
      %4509 = vmatpush2.msra.mxu0 0.0
      %4510 = vmatprep.subr.mxu0 0.0
      %4511 = vmatpush2.msra.mxu0 0.0
      %4512 = vmatprep.subr.mxu0 0.0
      %4513 = vmatpush2.msra.mxu0 0.0
      %4514 = vmatprep.subr.mxu0 0.0
      %4515 = vmatpush2.msra.mxu0 0.0
      %4516 = vmatprep.subr.mxu0 0.0
      %4517 = vmatpush2.msra.mxu0 0.0
      %4518 = vmatprep.mubr.f32.mxu0 0.0
      %4519 = vmatmul.mubr.f32.gmra.mxu0 %v4373
      %v4520 = vpop.f32.mrf.mxu0
      %v4521 = vadd.f32 0.0, %v4520
      %v4522 = vpop.f32.mrf.mxu0
      %v4523 = vadd.f32 0.0, %v4522
      %4524 = vdwg.mxu0
      %v4525 = vadd.f32 %v4351, %v4450
      %v4526 = vadd.f32 %v4352, %v4452
      %v4527 = vadd.f32 %v4353, %v4521
      %v4528 = vadd.f32 %v4354, %v4523
      %s4529 = scalar_lea.vmem %s3, 192
      %v4530 = vld [vmem:[%s4529] sm:$0xff]
      %4531 = vrot.lane.b32.xlu0 %v365, 19
      %v4532 = vpop.permute.xlu0 %4531
      %4533 = vrot.lane.b32.xlu0 %v372, 19
      %v4534 = vpop.permute.xlu0 %4533
      %4535 = vrot.lane.b32.xlu0 %v366, 19
      %v4536 = vpop.permute.xlu0 %4535
      %4537 = vrot.lane.b32.xlu0 %v373, 19
      %v4538 = vpop.permute.xlu0 %4537
      %4539 = vrot.lane.b32.xlu0 %v367, 19
      %v4540 = vpop.permute.xlu0 %4539
      %vm4541 = vcmask 154624
      %v4542 = vsel %vm4541, %v4532, %v4534
      %v4543 = vsel %vm4541, %v4534, %v4536
      %v4544 = vsel %vm4541, %v4536, %v4538
      %v4545 = vsel %vm4541, %v4538, %v4540
      %v4547 = vsel %vm393, %v4530, 0
      %v4549 = vsel %vm397, %v4542, 0
      %v4551 = vsel %vm397, %v4543, 0
      %v4553 = vsel %vm397, %v4544, 0
      %v4555 = vsel %vm397, %v4545, 0
      %4557 = vmatprep.subr.mxu0 0.0
      %4558 = vmatpush1.msra.mxu0 0.0
      %4559 = vmatprep.subr.mxu0 0.0
      %4560 = vmatpush1.msra.mxu0 0.0
      %4561 = vmatprep.subr.mxu0 0.0
      %4562 = vmatpush1.msra.mxu0 0.0
      %4563 = vmatprep.subr.mxu0 0.0
      %4564 = vmatpush1.msra.mxu0 0.0
      %4565 = vmatprep.subr.mxu0 0.0
      %4566 = vmatpush1.msra.mxu0 0.0
      %4567 = vmatprep.subr.mxu0 0.0
      %4568 = vmatpush1.msra.mxu0 0.0
      %4569 = vmatprep.subr.mxu0 0.0
      %4570 = vmatpush1.msra.mxu0 0.0
      %4571 = vmatprep.subr.mxu0 0.0
      %4572 = vmatpush1.msra.mxu0 0.0
      %4573 = vmatprep.subr.mxu0 0.0
      %4574 = vmatpush1.msra.mxu0 0.0
      %4575 = vmatprep.subr.mxu0 0.0
      %4576 = vmatpush1.msra.mxu0 0.0
      %4577 = vmatprep.subr.mxu0 0.0
      %4578 = vmatpush1.msra.mxu0 0.0
      %4579 = vmatprep.subr.mxu0 0.0
      %4580 = vmatpush1.msra.mxu0 0.0
      %4581 = vmatprep.subr.mxu0 0.0
      %4582 = vmatpush1.msra.mxu0 0.0
      %4583 = vmatprep.subr.mxu0 0.0
      %4584 = vmatpush1.msra.mxu0 0.0
      %4585 = vmatprep.subr.mxu0 0.0
      %4586 = vmatpush1.msra.mxu0 0.0
      %4587 = vmatprep.subr.mxu0 %v4551
      %4588 = vmatpush1.msra.mxu0 %v4549
      %4589 = vmatprep.subr.mxu0 0.0
      %4590 = vmatpush2.msra.mxu0 0.0
      %4591 = vmatprep.subr.mxu0 0.0
      %4592 = vmatpush2.msra.mxu0 0.0
      %4593 = vmatprep.subr.mxu0 0.0
      %4594 = vmatpush2.msra.mxu0 0.0
      %4595 = vmatprep.subr.mxu0 0.0
      %4596 = vmatpush2.msra.mxu0 0.0
      %4597 = vmatprep.subr.mxu0 0.0
      %4598 = vmatpush2.msra.mxu0 0.0
      %4599 = vmatprep.subr.mxu0 0.0
      %4600 = vmatpush2.msra.mxu0 0.0
      %4601 = vmatprep.subr.mxu0 0.0
      %4602 = vmatpush2.msra.mxu0 0.0
      %4603 = vmatprep.subr.mxu0 0.0
      %4604 = vmatpush2.msra.mxu0 0.0
      %4605 = vmatprep.subr.mxu0 0.0
      %4606 = vmatpush2.msra.mxu0 0.0
      %4607 = vmatprep.subr.mxu0 0.0
      %4608 = vmatpush2.msra.mxu0 0.0
      %4609 = vmatprep.subr.mxu0 0.0
      %4610 = vmatpush2.msra.mxu0 0.0
      %4611 = vmatprep.subr.mxu0 0.0
      %4612 = vmatpush2.msra.mxu0 0.0
      %4613 = vmatprep.subr.mxu0 0.0
      %4614 = vmatpush2.msra.mxu0 0.0
      %4615 = vmatprep.subr.mxu0 0.0
      %4616 = vmatpush2.msra.mxu0 0.0
      %4617 = vmatprep.subr.mxu0 0.0
      %4618 = vmatpush2.msra.mxu0 0.0
      %4619 = vmatprep.subr.mxu0 0.0
      %4620 = vmatpush2.msra.mxu0 0.0
      %4621 = vmatprep.mubr.f32.mxu0 0.0
      %4622 = vmatmul.mubr.f32.gmra.mxu0 %v4547
      %v4623 = vpop.f32.mrf.mxu0
      %v4624 = vadd.f32 0.0, %v4623
      %v4625 = vpop.f32.mrf.mxu0
      %v4626 = vadd.f32 0.0, %v4625
      %4627 = vdwg.mxu0
      %4628 = vmatprep.subr.mxu0 0.0
      %4629 = vmatpush1.msra.mxu0 0.0
      %4630 = vmatprep.subr.mxu0 0.0
      %4631 = vmatpush1.msra.mxu0 0.0
      %4632 = vmatprep.subr.mxu0 0.0
      %4633 = vmatpush1.msra.mxu0 0.0
      %4634 = vmatprep.subr.mxu0 0.0
      %4635 = vmatpush1.msra.mxu0 0.0
      %4636 = vmatprep.subr.mxu0 0.0
      %4637 = vmatpush1.msra.mxu0 0.0
      %4638 = vmatprep.subr.mxu0 0.0
      %4639 = vmatpush1.msra.mxu0 0.0
      %4640 = vmatprep.subr.mxu0 0.0
      %4641 = vmatpush1.msra.mxu0 0.0
      %4642 = vmatprep.subr.mxu0 0.0
      %4643 = vmatpush1.msra.mxu0 0.0
      %4644 = vmatprep.subr.mxu0 0.0
      %4645 = vmatpush1.msra.mxu0 0.0
      %4646 = vmatprep.subr.mxu0 0.0
      %4647 = vmatpush1.msra.mxu0 0.0
      %4648 = vmatprep.subr.mxu0 0.0
      %4649 = vmatpush1.msra.mxu0 0.0
      %4650 = vmatprep.subr.mxu0 0.0
      %4651 = vmatpush1.msra.mxu0 0.0
      %4652 = vmatprep.subr.mxu0 0.0
      %4653 = vmatpush1.msra.mxu0 0.0
      %4654 = vmatprep.subr.mxu0 0.0
      %4655 = vmatpush1.msra.mxu0 0.0
      %4656 = vmatprep.subr.mxu0 0.0
      %4657 = vmatpush1.msra.mxu0 0.0
      %4658 = vmatprep.subr.mxu0 %v4555
      %4659 = vmatpush1.msra.mxu0 %v4553
      %4660 = vmatprep.subr.mxu0 0.0
      %4661 = vmatpush2.msra.mxu0 0.0
      %4662 = vmatprep.subr.mxu0 0.0
      %4663 = vmatpush2.msra.mxu0 0.0
      %4664 = vmatprep.subr.mxu0 0.0
      %4665 = vmatpush2.msra.mxu0 0.0
      %4666 = vmatprep.subr.mxu0 0.0
      %4667 = vmatpush2.msra.mxu0 0.0
      %4668 = vmatprep.subr.mxu0 0.0
      %4669 = vmatpush2.msra.mxu0 0.0
      %4670 = vmatprep.subr.mxu0 0.0
      %4671 = vmatpush2.msra.mxu0 0.0
      %4672 = vmatprep.subr.mxu0 0.0
      %4673 = vmatpush2.msra.mxu0 0.0
      %4674 = vmatprep.subr.mxu0 0.0
      %4675 = vmatpush2.msra.mxu0 0.0
      %4676 = vmatprep.subr.mxu0 0.0
      %4677 = vmatpush2.msra.mxu0 0.0
      %4678 = vmatprep.subr.mxu0 0.0
      %4679 = vmatpush2.msra.mxu0 0.0
      %4680 = vmatprep.subr.mxu0 0.0
      %4681 = vmatpush2.msra.mxu0 0.0
      %4682 = vmatprep.subr.mxu0 0.0
      %4683 = vmatpush2.msra.mxu0 0.0
      %4684 = vmatprep.subr.mxu0 0.0
      %4685 = vmatpush2.msra.mxu0 0.0
      %4686 = vmatprep.subr.mxu0 0.0
      %4687 = vmatpush2.msra.mxu0 0.0
      %4688 = vmatprep.subr.mxu0 0.0
      %4689 = vmatpush2.msra.mxu0 0.0
      %4690 = vmatprep.subr.mxu0 0.0
      %4691 = vmatpush2.msra.mxu0 0.0
      %4692 = vmatprep.mubr.f32.mxu0 0.0
      %4693 = vmatmul.mubr.f32.gmra.mxu0 %v4547
      %v4694 = vpop.f32.mrf.mxu0
      %v4695 = vadd.f32 0.0, %v4694
      %v4696 = vpop.f32.mrf.mxu0
      %v4697 = vadd.f32 0.0, %v4696
      %4698 = vdwg.mxu0
      %v4699 = vadd.f32 %v4525, %v4624
      %v4700 = vadd.f32 %v4526, %v4626
      %v4701 = vadd.f32 %v4527, %v4695
      %v4702 = vadd.f32 %v4528, %v4697
      %s4703 = scalar_lea.vmem %s3, 200
      %v4704 = vld [vmem:[%s4703] sm:$0xff]
      %4705 = vrot.lane.b32.xlu0 %v365, 18
      %v4706 = vpop.permute.xlu0 %4705
      %4707 = vrot.lane.b32.xlu0 %v372, 18
      %v4708 = vpop.permute.xlu0 %4707
      %4709 = vrot.lane.b32.xlu0 %v366, 18
      %v4710 = vpop.permute.xlu0 %4709
      %4711 = vrot.lane.b32.xlu0 %v373, 18
      %v4712 = vpop.permute.xlu0 %4711
      %4713 = vrot.lane.b32.xlu0 %v367, 18
      %v4714 = vpop.permute.xlu0 %4713
      %vm4715 = vcmask 146432
      %v4716 = vsel %vm4715, %v4706, %v4708
      %v4717 = vsel %vm4715, %v4708, %v4710
      %v4718 = vsel %vm4715, %v4710, %v4712
      %v4719 = vsel %vm4715, %v4712, %v4714
      %v4721 = vsel %vm393, %v4704, 0
      %v4723 = vsel %vm397, %v4716, 0
      %v4725 = vsel %vm397, %v4717, 0
      %v4727 = vsel %vm397, %v4718, 0
      %v4729 = vsel %vm397, %v4719, 0
      %4731 = vmatprep.subr.mxu0 0.0
      %4732 = vmatpush1.msra.mxu0 0.0
      %4733 = vmatprep.subr.mxu0 0.0
      %4734 = vmatpush1.msra.mxu0 0.0
      %4735 = vmatprep.subr.mxu0 0.0
      %4736 = vmatpush1.msra.mxu0 0.0
      %4737 = vmatprep.subr.mxu0 0.0
      %4738 = vmatpush1.msra.mxu0 0.0
      %4739 = vmatprep.subr.mxu0 0.0
      %4740 = vmatpush1.msra.mxu0 0.0
      %4741 = vmatprep.subr.mxu0 0.0
      %4742 = vmatpush1.msra.mxu0 0.0
      %4743 = vmatprep.subr.mxu0 0.0
      %4744 = vmatpush1.msra.mxu0 0.0
      %4745 = vmatprep.subr.mxu0 0.0
      %4746 = vmatpush1.msra.mxu0 0.0
      %4747 = vmatprep.subr.mxu0 0.0
      %4748 = vmatpush1.msra.mxu0 0.0
      %4749 = vmatprep.subr.mxu0 0.0
      %4750 = vmatpush1.msra.mxu0 0.0
      %4751 = vmatprep.subr.mxu0 0.0
      %4752 = vmatpush1.msra.mxu0 0.0
      %4753 = vmatprep.subr.mxu0 0.0
      %4754 = vmatpush1.msra.mxu0 0.0
      %4755 = vmatprep.subr.mxu0 0.0
      %4756 = vmatpush1.msra.mxu0 0.0
      %4757 = vmatprep.subr.mxu0 0.0
      %4758 = vmatpush1.msra.mxu0 0.0
      %4759 = vmatprep.subr.mxu0 0.0
      %4760 = vmatpush1.msra.mxu0 0.0
      %4761 = vmatprep.subr.mxu0 %v4725
      %4762 = vmatpush1.msra.mxu0 %v4723
      %4763 = vmatprep.subr.mxu0 0.0
      %4764 = vmatpush2.msra.mxu0 0.0
      %4765 = vmatprep.subr.mxu0 0.0
      %4766 = vmatpush2.msra.mxu0 0.0
      %4767 = vmatprep.subr.mxu0 0.0
      %4768 = vmatpush2.msra.mxu0 0.0
      %4769 = vmatprep.subr.mxu0 0.0
      %4770 = vmatpush2.msra.mxu0 0.0
      %4771 = vmatprep.subr.mxu0 0.0
      %4772 = vmatpush2.msra.mxu0 0.0
      %4773 = vmatprep.subr.mxu0 0.0
      %4774 = vmatpush2.msra.mxu0 0.0
      %4775 = vmatprep.subr.mxu0 0.0
      %4776 = vmatpush2.msra.mxu0 0.0
      %4777 = vmatprep.subr.mxu0 0.0
      %4778 = vmatpush2.msra.mxu0 0.0
      %4779 = vmatprep.subr.mxu0 0.0
      %4780 = vmatpush2.msra.mxu0 0.0
      %4781 = vmatprep.subr.mxu0 0.0
      %4782 = vmatpush2.msra.mxu0 0.0
      %4783 = vmatprep.subr.mxu0 0.0
      %4784 = vmatpush2.msra.mxu0 0.0
      %4785 = vmatprep.subr.mxu0 0.0
      %4786 = vmatpush2.msra.mxu0 0.0
      %4787 = vmatprep.subr.mxu0 0.0
      %4788 = vmatpush2.msra.mxu0 0.0
      %4789 = vmatprep.subr.mxu0 0.0
      %4790 = vmatpush2.msra.mxu0 0.0
      %4791 = vmatprep.subr.mxu0 0.0
      %4792 = vmatpush2.msra.mxu0 0.0
      %4793 = vmatprep.subr.mxu0 0.0
      %4794 = vmatpush2.msra.mxu0 0.0
      %4795 = vmatprep.mubr.f32.mxu0 0.0
      %4796 = vmatmul.mubr.f32.gmra.mxu0 %v4721
      %v4797 = vpop.f32.mrf.mxu0
      %v4798 = vadd.f32 0.0, %v4797
      %v4799 = vpop.f32.mrf.mxu0
      %v4800 = vadd.f32 0.0, %v4799
      %4801 = vdwg.mxu0
      %4802 = vmatprep.subr.mxu0 0.0
      %4803 = vmatpush1.msra.mxu0 0.0
      %4804 = vmatprep.subr.mxu0 0.0
      %4805 = vmatpush1.msra.mxu0 0.0
      %4806 = vmatprep.subr.mxu0 0.0
      %4807 = vmatpush1.msra.mxu0 0.0
      %4808 = vmatprep.subr.mxu0 0.0
      %4809 = vmatpush1.msra.mxu0 0.0
      %4810 = vmatprep.subr.mxu0 0.0
      %4811 = vmatpush1.msra.mxu0 0.0
      %4812 = vmatprep.subr.mxu0 0.0
      %4813 = vmatpush1.msra.mxu0 0.0
      %4814 = vmatprep.subr.mxu0 0.0
      %4815 = vmatpush1.msra.mxu0 0.0
      %4816 = vmatprep.subr.mxu0 0.0
      %4817 = vmatpush1.msra.mxu0 0.0
      %4818 = vmatprep.subr.mxu0 0.0
      %4819 = vmatpush1.msra.mxu0 0.0
      %4820 = vmatprep.subr.mxu0 0.0
      %4821 = vmatpush1.msra.mxu0 0.0
      %4822 = vmatprep.subr.mxu0 0.0
      %4823 = vmatpush1.msra.mxu0 0.0
      %4824 = vmatprep.subr.mxu0 0.0
      %4825 = vmatpush1.msra.mxu0 0.0
      %4826 = vmatprep.subr.mxu0 0.0
      %4827 = vmatpush1.msra.mxu0 0.0
      %4828 = vmatprep.subr.mxu0 0.0
      %4829 = vmatpush1.msra.mxu0 0.0
      %4830 = vmatprep.subr.mxu0 0.0
      %4831 = vmatpush1.msra.mxu0 0.0
      %4832 = vmatprep.subr.mxu0 %v4729
      %4833 = vmatpush1.msra.mxu0 %v4727
      %4834 = vmatprep.subr.mxu0 0.0
      %4835 = vmatpush2.msra.mxu0 0.0
      %4836 = vmatprep.subr.mxu0 0.0
      %4837 = vmatpush2.msra.mxu0 0.0
      %4838 = vmatprep.subr.mxu0 0.0
      %4839 = vmatpush2.msra.mxu0 0.0
      %4840 = vmatprep.subr.mxu0 0.0
      %4841 = vmatpush2.msra.mxu0 0.0
      %4842 = vmatprep.subr.mxu0 0.0
      %4843 = vmatpush2.msra.mxu0 0.0
      %4844 = vmatprep.subr.mxu0 0.0
      %4845 = vmatpush2.msra.mxu0 0.0
      %4846 = vmatprep.subr.mxu0 0.0
      %4847 = vmatpush2.msra.mxu0 0.0
      %4848 = vmatprep.subr.mxu0 0.0
      %4849 = vmatpush2.msra.mxu0 0.0
      %4850 = vmatprep.subr.mxu0 0.0
      %4851 = vmatpush2.msra.mxu0 0.0
      %4852 = vmatprep.subr.mxu0 0.0
      %4853 = vmatpush2.msra.mxu0 0.0
      %4854 = vmatprep.subr.mxu0 0.0
      %4855 = vmatpush2.msra.mxu0 0.0
      %4856 = vmatprep.subr.mxu0 0.0
      %4857 = vmatpush2.msra.mxu0 0.0
      %4858 = vmatprep.subr.mxu0 0.0
      %4859 = vmatpush2.msra.mxu0 0.0
      %4860 = vmatprep.subr.mxu0 0.0
      %4861 = vmatpush2.msra.mxu0 0.0
      %4862 = vmatprep.subr.mxu0 0.0
      %4863 = vmatpush2.msra.mxu0 0.0
      %4864 = vmatprep.subr.mxu0 0.0
      %4865 = vmatpush2.msra.mxu0 0.0
      %4866 = vmatprep.mubr.f32.mxu0 0.0
      %4867 = vmatmul.mubr.f32.gmra.mxu0 %v4721
      %v4868 = vpop.f32.mrf.mxu0
      %v4869 = vadd.f32 0.0, %v4868
      %v4870 = vpop.f32.mrf.mxu0
      %v4871 = vadd.f32 0.0, %v4870
      %4872 = vdwg.mxu0
      %v4873 = vadd.f32 %v4699, %v4798
      %v4874 = vadd.f32 %v4700, %v4800
      %v4875 = vadd.f32 %v4701, %v4869
      %v4876 = vadd.f32 %v4702, %v4871
      %s4877 = scalar_lea.vmem %s3, 208
      %v4878 = vld [vmem:[%s4877] sm:$0xff]
      %4879 = vrot.lane.b32.xlu0 %v365, 17
      %v4880 = vpop.permute.xlu0 %4879
      %4881 = vrot.lane.b32.xlu0 %v372, 17
      %v4882 = vpop.permute.xlu0 %4881
      %4883 = vrot.lane.b32.xlu0 %v366, 17
      %v4884 = vpop.permute.xlu0 %4883
      %4885 = vrot.lane.b32.xlu0 %v373, 17
      %v4886 = vpop.permute.xlu0 %4885
      %4887 = vrot.lane.b32.xlu0 %v367, 17
      %v4888 = vpop.permute.xlu0 %4887
      %vm4889 = vcmask 138240
      %v4890 = vsel %vm4889, %v4880, %v4882
      %v4891 = vsel %vm4889, %v4882, %v4884
      %v4892 = vsel %vm4889, %v4884, %v4886
      %v4893 = vsel %vm4889, %v4886, %v4888
      %v4895 = vsel %vm393, %v4878, 0
      %v4897 = vsel %vm397, %v4890, 0
      %v4899 = vsel %vm397, %v4891, 0
      %v4901 = vsel %vm397, %v4892, 0
      %v4903 = vsel %vm397, %v4893, 0
      %4905 = vmatprep.subr.mxu0 0.0
      %4906 = vmatpush1.msra.mxu0 0.0
      %4907 = vmatprep.subr.mxu0 0.0
      %4908 = vmatpush1.msra.mxu0 0.0
      %4909 = vmatprep.subr.mxu0 0.0
      %4910 = vmatpush1.msra.mxu0 0.0
      %4911 = vmatprep.subr.mxu0 0.0
      %4912 = vmatpush1.msra.mxu0 0.0
      %4913 = vmatprep.subr.mxu0 0.0
      %4914 = vmatpush1.msra.mxu0 0.0
      %4915 = vmatprep.subr.mxu0 0.0
      %4916 = vmatpush1.msra.mxu0 0.0
      %4917 = vmatprep.subr.mxu0 0.0
      %4918 = vmatpush1.msra.mxu0 0.0
      %4919 = vmatprep.subr.mxu0 0.0
      %4920 = vmatpush1.msra.mxu0 0.0
      %4921 = vmatprep.subr.mxu0 0.0
      %4922 = vmatpush1.msra.mxu0 0.0
      %4923 = vmatprep.subr.mxu0 0.0
      %4924 = vmatpush1.msra.mxu0 0.0
      %4925 = vmatprep.subr.mxu0 0.0
      %4926 = vmatpush1.msra.mxu0 0.0
      %4927 = vmatprep.subr.mxu0 0.0
      %4928 = vmatpush1.msra.mxu0 0.0
      %4929 = vmatprep.subr.mxu0 0.0
      %4930 = vmatpush1.msra.mxu0 0.0
      %4931 = vmatprep.subr.mxu0 0.0
      %4932 = vmatpush1.msra.mxu0 0.0
      %4933 = vmatprep.subr.mxu0 0.0
      %4934 = vmatpush1.msra.mxu0 0.0
      %4935 = vmatprep.subr.mxu0 %v4899
      %4936 = vmatpush1.msra.mxu0 %v4897
      %4937 = vmatprep.subr.mxu0 0.0
      %4938 = vmatpush2.msra.mxu0 0.0
      %4939 = vmatprep.subr.mxu0 0.0
      %4940 = vmatpush2.msra.mxu0 0.0
      %4941 = vmatprep.subr.mxu0 0.0
      %4942 = vmatpush2.msra.mxu0 0.0
      %4943 = vmatprep.subr.mxu0 0.0
      %4944 = vmatpush2.msra.mxu0 0.0
      %4945 = vmatprep.subr.mxu0 0.0
      %4946 = vmatpush2.msra.mxu0 0.0
      %4947 = vmatprep.subr.mxu0 0.0
      %4948 = vmatpush2.msra.mxu0 0.0
      %4949 = vmatprep.subr.mxu0 0.0
      %4950 = vmatpush2.msra.mxu0 0.0
      %4951 = vmatprep.subr.mxu0 0.0
      %4952 = vmatpush2.msra.mxu0 0.0
      %4953 = vmatprep.subr.mxu0 0.0
      %4954 = vmatpush2.msra.mxu0 0.0
      %4955 = vmatprep.subr.mxu0 0.0
      %4956 = vmatpush2.msra.mxu0 0.0
      %4957 = vmatprep.subr.mxu0 0.0
      %4958 = vmatpush2.msra.mxu0 0.0
      %4959 = vmatprep.subr.mxu0 0.0
      %4960 = vmatpush2.msra.mxu0 0.0
      %4961 = vmatprep.subr.mxu0 0.0
      %4962 = vmatpush2.msra.mxu0 0.0
      %4963 = vmatprep.subr.mxu0 0.0
      %4964 = vmatpush2.msra.mxu0 0.0
      %4965 = vmatprep.subr.mxu0 0.0
      %4966 = vmatpush2.msra.mxu0 0.0
      %4967 = vmatprep.subr.mxu0 0.0
      %4968 = vmatpush2.msra.mxu0 0.0
      %4969 = vmatprep.mubr.f32.mxu0 0.0
      %4970 = vmatmul.mubr.f32.gmra.mxu0 %v4895
      %v4971 = vpop.f32.mrf.mxu0
      %v4972 = vadd.f32 0.0, %v4971
      %v4973 = vpop.f32.mrf.mxu0
      %v4974 = vadd.f32 0.0, %v4973
      %4975 = vdwg.mxu0
      %4976 = vmatprep.subr.mxu0 0.0
      %4977 = vmatpush1.msra.mxu0 0.0
      %4978 = vmatprep.subr.mxu0 0.0
      %4979 = vmatpush1.msra.mxu0 0.0
      %4980 = vmatprep.subr.mxu0 0.0
      %4981 = vmatpush1.msra.mxu0 0.0
      %4982 = vmatprep.subr.mxu0 0.0
      %4983 = vmatpush1.msra.mxu0 0.0
      %4984 = vmatprep.subr.mxu0 0.0
      %4985 = vmatpush1.msra.mxu0 0.0
      %4986 = vmatprep.subr.mxu0 0.0
      %4987 = vmatpush1.msra.mxu0 0.0
      %4988 = vmatprep.subr.mxu0 0.0
      %4989 = vmatpush1.msra.mxu0 0.0
      %4990 = vmatprep.subr.mxu0 0.0
      %4991 = vmatpush1.msra.mxu0 0.0
      %4992 = vmatprep.subr.mxu0 0.0
      %4993 = vmatpush1.msra.mxu0 0.0
      %4994 = vmatprep.subr.mxu0 0.0
      %4995 = vmatpush1.msra.mxu0 0.0
      %4996 = vmatprep.subr.mxu0 0.0
      %4997 = vmatpush1.msra.mxu0 0.0
      %4998 = vmatprep.subr.mxu0 0.0
      %4999 = vmatpush1.msra.mxu0 0.0
      %5000 = vmatprep.subr.mxu0 0.0
      %5001 = vmatpush1.msra.mxu0 0.0
      %5002 = vmatprep.subr.mxu0 0.0
      %5003 = vmatpush1.msra.mxu0 0.0
      %5004 = vmatprep.subr.mxu0 0.0
      %5005 = vmatpush1.msra.mxu0 0.0
      %5006 = vmatprep.subr.mxu0 %v4903
      %5007 = vmatpush1.msra.mxu0 %v4901
      %5008 = vmatprep.subr.mxu0 0.0
      %5009 = vmatpush2.msra.mxu0 0.0
      %5010 = vmatprep.subr.mxu0 0.0
      %5011 = vmatpush2.msra.mxu0 0.0
      %5012 = vmatprep.subr.mxu0 0.0
      %5013 = vmatpush2.msra.mxu0 0.0
      %5014 = vmatprep.subr.mxu0 0.0
      %5015 = vmatpush2.msra.mxu0 0.0
      %5016 = vmatprep.subr.mxu0 0.0
      %5017 = vmatpush2.msra.mxu0 0.0
      %5018 = vmatprep.subr.mxu0 0.0
      %5019 = vmatpush2.msra.mxu0 0.0
      %5020 = vmatprep.subr.mxu0 0.0
      %5021 = vmatpush2.msra.mxu0 0.0
      %5022 = vmatprep.subr.mxu0 0.0
      %5023 = vmatpush2.msra.mxu0 0.0
      %5024 = vmatprep.subr.mxu0 0.0
      %5025 = vmatpush2.msra.mxu0 0.0
      %5026 = vmatprep.subr.mxu0 0.0
      %5027 = vmatpush2.msra.mxu0 0.0
      %5028 = vmatprep.subr.mxu0 0.0
      %5029 = vmatpush2.msra.mxu0 0.0
      %5030 = vmatprep.subr.mxu0 0.0
      %5031 = vmatpush2.msra.mxu0 0.0
      %5032 = vmatprep.subr.mxu0 0.0
      %5033 = vmatpush2.msra.mxu0 0.0
      %5034 = vmatprep.subr.mxu0 0.0
      %5035 = vmatpush2.msra.mxu0 0.0
      %5036 = vmatprep.subr.mxu0 0.0
      %5037 = vmatpush2.msra.mxu0 0.0
      %5038 = vmatprep.subr.mxu0 0.0
      %5039 = vmatpush2.msra.mxu0 0.0
      %5040 = vmatprep.mubr.f32.mxu0 0.0
      %5041 = vmatmul.mubr.f32.gmra.mxu0 %v4895
      %v5042 = vpop.f32.mrf.mxu0
      %v5043 = vadd.f32 0.0, %v5042
      %v5044 = vpop.f32.mrf.mxu0
      %v5045 = vadd.f32 0.0, %v5044
      %5046 = vdwg.mxu0
      %v5047 = vadd.f32 %v4873, %v4972
      %v5048 = vadd.f32 %v4874, %v4974
      %v5049 = vadd.f32 %v4875, %v5043
      %v5050 = vadd.f32 %v4876, %v5045
      %v5051 = vld [vmem:[%s350] sm:$0xf]
      %v5053 = vlaneseq
      %v5054 = vshrl.u32 %v5053, 7
      %v5055 = vsub.s32 0, %v5054
      %v5056 = vrot.slane %v5051, %v5055
      %v5057 = vlaneseq
      %v5058 = vshrl.u32 %v5057, 7
      %v5059 = vsub.s32 1, %v5058
      %v5060 = vrot.slane %v5051, %v5059
      %v5061 = vlaneseq
      %v5062 = vshrl.u32 %v5061, 7
      %v5063 = vsub.s32 2, %v5062
      %v5064 = vrot.slane %v5051, %v5063
      %v5065 = vlaneseq
      %v5066 = vshrl.u32 %v5065, 7
      %v5067 = vsub.s32 3, %v5066
      %v5068 = vrot.slane %v5051, %v5067
      %v5073 = vmul.f32 %v5047, %v5056
      %v5074 = vmul.f32 %v5048, %v5060
      %v5075 = vmul.f32 %v5049, %v5064
      %v5076 = vmul.f32 %v5050, %v5068
      %v5077 = vld [vmem:[%s6] sm:$0xff]
      %v5078 = vadd.f32 %v5073, %v5074
      %v5079 = vadd.f32 %v5078, %v5075
      %v5080 = vadd.f32 %v5079, %v5076
      %5081 = vadd.xlane.f32.xlu0 %v5080
      %v5082 = vpop.xlane.xlu0 %5081
      %v5083 = vadd.f32 %v5077, %v5082
      %5084 = vst.msk [vmem:[%s6] sm:$0xff] %vm2468, %v5083
      %v5085 = vld [vmem:[%s6] sm:$0xff]
      %v5086 = vmul.f32 %v5073, %v5047
      %v5087 = vmul.f32 %v5074, %v5048
      %v5088 = vmul.f32 %v5075, %v5049
      %v5089 = vmul.f32 %v5076, %v5050
      %v5090 = vadd.f32 %v5086, %v5087
      %v5091 = vadd.f32 %v5090, %v5088
      %v5092 = vadd.f32 %v5091, %v5089
      %5093 = vadd.xlane.f32.xlu0 %v5092
      %v5094 = vpop.xlane.xlu0 %5093
      %v5095 = vadd.f32 %v5085, %v5094
      %vm5096 = vcmask 15368
      %5097 = vst.msk [vmem:[%s6] sm:$0xff] %vm5096, %v5095
      %5098 = vst [vmem:[%s356] sm:$0xff] %v5047
      %5099 = vst [vmem:[%s356 + $0x8] sm:$0xff] %v5048
      %5100 = vst [vmem:[%s356 + $0x10] sm:$0xff] %v5049
      %5101 = vst [vmem:[%s356 + $0x18] sm:$0xff] %v5050
      %s5102 = smul.u32 4, %s18
      %p5103 = scmp.lt.s32.totalorder %s5102, 15
      %s5104 = scalar_select %p5103, %s5102, 15
      %s5105 = smul.addr %s5104, 8
      %s5106 = scalar_lea.vmem %s5, %s5105
      // Predicated region
      $region45: #{basic3d_block.3} parent=39 // pred_check
        %p5107 = pneg %p173
      $region46: #{basic3d_block.3} parent=39 // pred_check_branch
        %5109 = sbr.rel (%p5107) target = $region48
      $region47: #{basic3d_block.3} parent=39 // pred_region
        %s5110 = smul.u32 4, %s18
      $region48: #{basic3d_block.3} parent=39 // pred_fallthru
        _
      // Predicated region
      $region49: #{basic3d_block.3} parent=39 // pred_check
        %p5111 = pneg %p194
      $region50: #{basic3d_block.3} parent=39 // pred_check_branch
        %5113 = sbr.rel (%p5111) target = $region52
      $region51: #{basic3d_block.3} parent=39 // pred_region
        _
      $region52: #{basic3d_block.3} parent=39 // pred_fallthru
        _
      // Predicated region
      $region53: #{basic3d_block.3} parent=39 // pred_check
        %p5114 = pneg %p194
      $region54: #{basic3d_block.3} parent=39 // pred_check_branch
        %5116 = sbr.rel (%p5114) target = $region56
      $region55: #{basic3d_block.3} parent=39 // pred_region
        _
      $region56: #{basic3d_block.3} parent=39 // pred_fallthru
        _
    $region40: #{basic3d_block.3} parent=5 // pred_fallthru
      _
    %p5117 = scmp.le.s32.totalorder 2, %s13
    // Predicated region
    $region57: #{basic3d_block.3} parent=5 // pred_check
      %p5118 = pneg %p5117
    $region58: #{basic3d_block.3} parent=5 // pred_check_branch
      %5120 = sbr.rel (%p5118) target = $region60
    $region59: #{basic3d_block.3} parent=5 // pred_region
      %s5121 = ssub.s32 %s13, 2
      // Predicated region
      $region61: #{basic3d_block.3} parent=59 // pred_check
        %p5122 = pneg %p179
      $region62: #{basic3d_block.3} parent=59 // pred_check_branch
        %5124 = sbr.rel (%p5122) target = $region64
      $region63: #{basic3d_block.3} parent=59 // pred_region
        %s5125 = smul.u32 4, %s19
        %p5126 = scmp.lt.s32.totalorder %s5125, 15
        %s5127 = scalar_select %p5126, %s5125, 15
        %s5128 = smul.addr %s5127, 8
        %s5129 = scalar_lea.vmem %s5, %s5128
      $region64: #{basic3d_block.3} parent=59 // pred_fallthru
        _
    $region60: #{basic3d_block.3} parent=5 // pred_fallthru
      _
  $region6: #{basic3d_block.3} parent=0 // loop_footer
    %s17 = sadd.s32 1, %s13
  $region7: #{basic3d_block.3} parent=0 // loop_footer_branch
    %12 = sbr.rel target = $region3
  $region8: #{basic3d_block.3} parent=0 // loop_exit
    _

// kernel: basic3d_block.4
$region0: #{basic3d_block.4}
  #allocation0 [shape = 'u32[]', space=smem, size = 0x4, offset = 0x4, fixed_abs, tag = 'smem constant byte address 0x4 - core index']
  #allocation1 [shape = 'u32[144,128]{1,0:T(1,128)}', space=vmem, size = 0x12000, scoped, tag = 'internal scratch']
  %s0 = inlined_call_operand.vmem [shape: f32[8,2048], index: 0, kind: input, shape index: {}, may-alias: {0,1,2}]
  %s1 = inlined_call_operand.vmem [shape: f32[8,2048], index: 1, kind: input, shape index: {}, may-alias: {0,1,2}]
  %s2 = inlined_call_operand.vmem [shape: f32[8,2048], index: 2, kind: input, shape index: {}, may-alias: {0,1,2}]
  %s3 = inlined_call_operand.vmem [shape: f32[1,2048], index: 3, kind: input, shape index: {}, may-alias: {3,4,5}]
  %s4 = inlined_call_operand.vmem [shape: f32[1,2048], index: 4, kind: input, shape index: {}, may-alias: {3,4,5}]
  %s5 = inlined_call_operand.vmem [shape: f32[1,2048], index: 5, kind: input, shape index: {}, may-alias: {3,4,5}]
  %s6 = inlined_call_operand.vmem [shape: f32[8,2], index: 6, kind: input, shape index: {}]
  %s7 = inlined_call_operand.vmem [shape: f32[27,8,8], index: 7, kind: input, shape index: {}]
  %s8 = inlined_call_operand.vmem [shape: f32[8,2048], index: 8, kind: output, shape index: {0}]
  %s9 = inlined_call_operand.vmem [shape: f32[8,2], index: 9, kind: output, shape index: {1}]
  %10 = xla_tuple %s8, %s9
  %s11 = sld [smem:[#allocation0]]
  $region77: #{basic3d_block.4} parent=0
    _
  %s13 = ssub.s32 1, %s11
  %s14 = scalar_select 0, %s13, %s11
  loop: start=0, step=1, limit=6
  $region2: #{basic3d_block.4} parent=0 // loop_pre_header
    _
  $region3: #{basic3d_block.4} parent=0 // loop_header
    %s16 = sphi 0, %s20
    %p17 = scmp.ge.s32.totalorder %s16, 6
    %s32 = sphi 0, %s34
    %s35 = sphi 0, %s32
    %s36 = sphi 0, %s35
    %s52 = sphi 0, %s36
    %s58 = sphi 0, %s60
    %s61 = sphi 0, %s58
    %s62 = sphi 0, %s61
    %s78 = sphi 0, %s62
    %s90 = sphi 0, %s92
    %s93 = sphi 0, %s90
    %s94 = sphi 0, %s93
    %s110 = sphi 0, %s94
    %s122 = sphi 0, %s124
    %s125 = sphi 0, %s122
    %s126 = sphi 0, %s125
    %s142 = sphi 0, %s126
    %s148 = sphi 0, %s150
    %s151 = sphi 0, %s148
    %s152 = sphi 0, %s151
    %s168 = sphi 0, %s152
    %s180 = sphi 0, %s182
    %s183 = sphi 0, %s180
    %s184 = sphi 0, %s183
    %s200 = sphi 0, %s184
    %s204 = sphi 0, %s204
    %s206 = sphi 0, %s204
    %s207 = sphi 0, %s206
    %s221 = sphi 0, %s207
    %s225 = sphi 0, %s225
    %s227 = sphi 0, %s225
    %s228 = sphi 0, %s227
    %s242 = sphi 0, %s228
    %s248 = sphi 0, %s250
    %s251 = sphi 0, %s248
    %s252 = sphi 0, %s251
    %s268 = sphi 0, %s252
    %s272 = sphi 0, %s272
    %s274 = sphi 0, %s272
    %s275 = sphi 0, %s274
    %s289 = sphi 0, %s275
  $region4: #{basic3d_block.4} parent=0 // loop_header_branch
    %19 = sbr.rel (%p17) target = $region8
  $region5: #{basic3d_block.4} parent=0 // loop_body
    %s21 = ssub.s32 %s16, 1
    %s22 = ssub.s32 %s16, 2
    %s23 = sadd.s32 %s16, 1
    %s24 = ssub.s32 %s16, 1
    %p25 = scmp.gt.s32.totalorder %s24, 0
    %s26 = scalar_select %p25, %s24, 0
    %s27 = ssub.s32 %s23, 1
    %p28 = scmp.gt.s32.totalorder %s27, 0
    %s29 = scalar_select %p28, %s27, 0
    %s30 = ssub.s32 %s26, %s29
    %p31 = scmp.eq.s32.totalorder %s30, 0
    %s33 = sadd.s32 %s32, 1
    %s34 = scalar_select %p31, %s32, %s33
    %p37 = pneg %p31
    %p38 = scmp.eq.s32.totalorder %s16, 3
    %p39 = por %p37, %p38
    %p40 = scmp.ne.s32.totalorder %s32, %s35
    %p41 = scmp.eq.s32.totalorder %s16, 0
    %p42 = por %p40, %p41
    %p43 = scmp.ne.s32.totalorder %s32, %s35
    %p44 = scmp.eq.s32.totalorder %s21, 3
    %p45 = por %p43, %p44
    %p46 = scmp.ne.s32.totalorder %s35, %s36
    %p47 = scmp.eq.s32.totalorder %s21, 0
    %p48 = por %p46, %p47
    %p49 = scmp.ne.s32.totalorder %s35, %s36
    %p50 = scmp.eq.s32.totalorder %s22, 3
    %p51 = por %p49, %p50
    %p53 = scmp.ne.s32.totalorder %s36, %s52
    %p54 = scmp.eq.s32.totalorder %s22, 0
    %p55 = por %p53, %p54
    %s56 = ssub.s32 %s16, %s23
    %p57 = scmp.eq.s32.totalorder %s56, 0
    %s59 = sadd.s32 %s58, 1
    %s60 = scalar_select %p57, %s58, %s59
    %p63 = pneg %p57
    %p64 = scmp.eq.s32.totalorder %s16, 3
    %p65 = por %p63, %p64
    %p66 = scmp.ne.s32.totalorder %s58, %s61
    %p67 = scmp.eq.s32.totalorder %s16, 0
    %p68 = por %p66, %p67
    %p69 = scmp.ne.s32.totalorder %s58, %s61
    %p70 = scmp.eq.s32.totalorder %s21, 3
    %p71 = por %p69, %p70
    %p72 = scmp.ne.s32.totalorder %s61, %s62
    %p73 = scmp.eq.s32.totalorder %s21, 0
    %p74 = por %p72, %p73
    %p75 = scmp.ne.s32.totalorder %s61, %s62
    %p76 = scmp.eq.s32.totalorder %s22, 3
    %p77 = por %p75, %p76
    %p79 = scmp.ne.s32.totalorder %s62, %s78
    %p80 = scmp.eq.s32.totalorder %s22, 0
    %p81 = por %p79, %p80
    %s82 = sadd.s32 %s16, 1
    %p83 = scmp.lt.s32.totalorder %s82, 3
    %s84 = scalar_select %p83, %s82, 3
    %s85 = sadd.s32 %s23, 1
    %p86 = scmp.lt.s32.totalorder %s85, 3
    %s87 = scalar_select %p86, %s85, 3
    %s88 = ssub.s32 %s84, %s87
    %p89 = scmp.eq.s32.totalorder %s88, 0
    %s91 = sadd.s32 %s90, 1
    %s92 = scalar_select %p89, %s90, %s91
    %p95 = pneg %p89
    %p96 = scmp.eq.s32.totalorder %s16, 3
    %p97 = por %p95, %p96
    %p98 = scmp.ne.s32.totalorder %s90, %s93
    %p99 = scmp.eq.s32.totalorder %s16, 0
    %p100 = por %p98, %p99
    %p101 = scmp.ne.s32.totalorder %s90, %s93
    %p102 = scmp.eq.s32.totalorder %s21, 3
    %p103 = por %p101, %p102
    %p104 = scmp.ne.s32.totalorder %s93, %s94
    %p105 = scmp.eq.s32.totalorder %s21, 0
    %p106 = por %p104, %p105
    %p107 = scmp.ne.s32.totalorder %s93, %s94
    %p108 = scmp.eq.s32.totalorder %s22, 3
    %p109 = por %p107, %p108
    %p111 = scmp.ne.s32.totalorder %s94, %s110
    %p112 = scmp.eq.s32.totalorder %s22, 0
    %p113 = por %p111, %p112
    %s114 = ssub.s32 %s16, 1
    %p115 = scmp.gt.s32.totalorder %s114, 0
    %s116 = scalar_select %p115, %s114, 0
    %s117 = ssub.s32 %s23, 1
    %p118 = scmp.gt.s32.totalorder %s117, 0
    %s119 = scalar_select %p118, %s117, 0
    %s120 = ssub.s32 %s116, %s119
    %p121 = scmp.eq.s32.totalorder %s120, 0
    %s123 = sadd.s32 %s122, 1
    %s124 = scalar_select %p121, %s122, %s123
    %p127 = pneg %p121
    %p128 = scmp.eq.s32.totalorder %s16, 3
    %p129 = por %p127, %p128
    %p130 = scmp.ne.s32.totalorder %s122, %s125
    %p131 = scmp.eq.s32.totalorder %s16, 0
    %p132 = por %p130, %p131
    %p133 = scmp.ne.s32.totalorder %s122, %s125
    %p134 = scmp.eq.s32.totalorder %s21, 3
    %p135 = por %p133, %p134
    %p136 = scmp.ne.s32.totalorder %s125, %s126
    %p137 = scmp.eq.s32.totalorder %s21, 0
    %p138 = por %p136, %p137
    %p139 = scmp.ne.s32.totalorder %s125, %s126
    %p140 = scmp.eq.s32.totalorder %s22, 3
    %p141 = por %p139, %p140
    %p143 = scmp.ne.s32.totalorder %s126, %s142
    %p144 = scmp.eq.s32.totalorder %s22, 0
    %p145 = por %p143, %p144
    %s146 = ssub.s32 %s16, %s23
    %p147 = scmp.eq.s32.totalorder %s146, 0
    %s149 = sadd.s32 %s148, 1
    %s150 = scalar_select %p147, %s148, %s149
    %p153 = pneg %p147
    %p154 = scmp.eq.s32.totalorder %s16, 3
    %p155 = por %p153, %p154
    %p156 = scmp.ne.s32.totalorder %s148, %s151
    %p157 = scmp.eq.s32.totalorder %s16, 0
    %p158 = por %p156, %p157
    %p159 = scmp.ne.s32.totalorder %s148, %s151
    %p160 = scmp.eq.s32.totalorder %s21, 3
    %p161 = por %p159, %p160
    %p162 = scmp.ne.s32.totalorder %s151, %s152
    %p163 = scmp.eq.s32.totalorder %s21, 0
    %p164 = por %p162, %p163
    %p165 = scmp.ne.s32.totalorder %s151, %s152
    %p166 = scmp.eq.s32.totalorder %s22, 3
    %p167 = por %p165, %p166
    %p169 = scmp.ne.s32.totalorder %s152, %s168
    %p170 = scmp.eq.s32.totalorder %s22, 0
    %p171 = por %p169, %p170
    %s172 = sadd.s32 %s16, 1
    %p173 = scmp.lt.s32.totalorder %s172, 3
    %s174 = scalar_select %p173, %s172, 3
    %s175 = sadd.s32 %s23, 1
    %p176 = scmp.lt.s32.totalorder %s175, 3
    %s177 = scalar_select %p176, %s175, 3
    %s178 = ssub.s32 %s174, %s177
    %p179 = scmp.eq.s32.totalorder %s178, 0
    %s181 = sadd.s32 %s180, 1
    %s182 = scalar_select %p179, %s180, %s181
    %p185 = pneg %p179
    %p186 = scmp.eq.s32.totalorder %s16, 3
    %p187 = por %p185, %p186
    %p188 = scmp.ne.s32.totalorder %s180, %s183
    %p189 = scmp.eq.s32.totalorder %s16, 0
    %p190 = por %p188, %p189
    %p191 = scmp.ne.s32.totalorder %s180, %s183
    %p192 = scmp.eq.s32.totalorder %s21, 3
    %p193 = por %p191, %p192
    %p194 = scmp.ne.s32.totalorder %s183, %s184
    %p195 = scmp.eq.s32.totalorder %s21, 0
    %p196 = por %p194, %p195
    %p197 = scmp.ne.s32.totalorder %s183, %s184
    %p198 = scmp.eq.s32.totalorder %s22, 3
    %p199 = por %p197, %p198
    %p201 = scmp.ne.s32.totalorder %s184, %s200
    %p202 = scmp.eq.s32.totalorder %s22, 0
    %p203 = por %p201, %p202
    %s205 = sadd.s32 %s204, 1
    %p208 = scmp.eq.s32.totalorder %s16, 3
    %p209 = scmp.ne.s32.totalorder %s204, %s206
    %p210 = scmp.eq.s32.totalorder %s16, 0
    %p211 = por %p209, %p210
    %p212 = scmp.ne.s32.totalorder %s204, %s206
    %p213 = scmp.eq.s32.totalorder %s21, 3
    %p214 = por %p212, %p213
    %p215 = scmp.ne.s32.totalorder %s206, %s207
    %p216 = scmp.eq.s32.totalorder %s21, 0
    %p217 = por %p215, %p216
    %p218 = scmp.ne.s32.totalorder %s206, %s207
    %p219 = scmp.eq.s32.totalorder %s22, 3
    %p220 = por %p218, %p219
    %p222 = scmp.ne.s32.totalorder %s207, %s221
    %p223 = scmp.eq.s32.totalorder %s22, 0
    %p224 = por %p222, %p223
    %s226 = sadd.s32 %s225, 1
    %p229 = scmp.eq.s32.totalorder %s16, 3
    %p230 = scmp.ne.s32.totalorder %s225, %s227
    %p231 = scmp.eq.s32.totalorder %s16, 0
    %p232 = por %p230, %p231
    %p233 = scmp.ne.s32.totalorder %s225, %s227
    %p234 = scmp.eq.s32.totalorder %s21, 3
    %p235 = por %p233, %p234
    %p236 = scmp.ne.s32.totalorder %s227, %s228
    %p237 = scmp.eq.s32.totalorder %s21, 0
    %p238 = por %p236, %p237
    %p239 = scmp.ne.s32.totalorder %s227, %s228
    %p240 = scmp.eq.s32.totalorder %s22, 3
    %p241 = por %p239, %p240
    %p243 = scmp.ne.s32.totalorder %s228, %s242
    %p244 = scmp.eq.s32.totalorder %s22, 0
    %p245 = por %p243, %p244
    %s246 = ssub.s32 %s16, %s23
    %p247 = scmp.eq.s32.totalorder %s246, 0
    %s249 = sadd.s32 %s248, 1
    %s250 = scalar_select %p247, %s248, %s249
    %p253 = pneg %p247
    %p254 = scmp.eq.s32.totalorder %s16, 3
    %p255 = por %p253, %p254
    %p256 = scmp.ne.s32.totalorder %s248, %s251
    %p257 = scmp.eq.s32.totalorder %s16, 0
    %p258 = por %p256, %p257
    %p259 = scmp.ne.s32.totalorder %s248, %s251
    %p260 = scmp.eq.s32.totalorder %s21, 3
    %p261 = por %p259, %p260
    %p262 = scmp.ne.s32.totalorder %s251, %s252
    %p263 = scmp.eq.s32.totalorder %s21, 0
    %p264 = por %p262, %p263
    %p265 = scmp.ne.s32.totalorder %s251, %s252
    %p266 = scmp.eq.s32.totalorder %s22, 3
    %p267 = por %p265, %p266
    %p269 = scmp.ne.s32.totalorder %s252, %s268
    %p270 = scmp.eq.s32.totalorder %s22, 0
    %p271 = por %p269, %p270
    %s273 = sadd.s32 %s272, 1
    %p276 = scmp.eq.s32.totalorder %s16, 3
    %p277 = scmp.ne.s32.totalorder %s272, %s274
    %p278 = scmp.eq.s32.totalorder %s16, 0
    %p279 = por %p277, %p278
    %p280 = scmp.ne.s32.totalorder %s272, %s274
    %p281 = scmp.eq.s32.totalorder %s21, 3
    %p282 = por %p280, %p281
    %p283 = scmp.ne.s32.totalorder %s274, %s275
    %p284 = scmp.eq.s32.totalorder %s21, 0
    %p285 = por %p283, %p284
    %p286 = scmp.ne.s32.totalorder %s274, %s275
    %p287 = scmp.eq.s32.totalorder %s22, 3
    %p288 = por %p286, %p287
    %p290 = scmp.ne.s32.totalorder %s275, %s289
    %p291 = scmp.eq.s32.totalorder %s22, 0
    %p292 = por %p290, %p291
    %p293 = scmp.le.s32.totalorder 1, %s16
    %p294 = scmp.lt.s32.totalorder %s16, 5
    %p295 = pnand %p293, %p294
    %p296 = pneg %p295
    // Predicated region
    $region9: #{basic3d_block.4} parent=5 // pred_check
      _
    $region10: #{basic3d_block.4} parent=5 // pred_check_branch
      %298 = sbr.rel (%p295) target = $region12
    $region11: #{basic3d_block.4} parent=5 // pred_region
      %s299 = ssub.s32 %s16, 1
      // Predicated region
      $region13: #{basic3d_block.4} parent=11 // pred_check
        %p300 = pneg %p217
      $region14: #{basic3d_block.4} parent=11 // pred_check_branch
        %302 = sbr.rel (%p300) target = $region16
      $region15: #{basic3d_block.4} parent=11 // pred_region
        _
      $region16: #{basic3d_block.4} parent=11 // pred_fallthru
        _
      // Predicated region
      $region17: #{basic3d_block.4} parent=11 // pred_check
        %p303 = pneg %p238
      $region18: #{basic3d_block.4} parent=11 // pred_check_branch
        %305 = sbr.rel (%p303) target = $region20
      $region19: #{basic3d_block.4} parent=11 // pred_region
        _
      $region20: #{basic3d_block.4} parent=11 // pred_fallthru
        _
    $region12: #{basic3d_block.4} parent=5 // pred_fallthru
      _
    %p306 = scmp.lt.s32.totalorder %s16, 4
    // Predicated region
    $region21: #{basic3d_block.4} parent=5 // pred_check
      %p307 = pneg %p306
    $region22: #{basic3d_block.4} parent=5 // pred_check_branch
      %309 = sbr.rel (%p307) target = $region24
    $region23: #{basic3d_block.4} parent=5 // pred_region
      // Predicated region
      $region25: #{basic3d_block.4} parent=23 // pred_check
        %p310 = pneg %p42
      $region26: #{basic3d_block.4} parent=23 // pred_check_branch
        %312 = sbr.rel (%p310) target = $region28
      $region27: #{basic3d_block.4} parent=23 // pred_region
        %s313 = ssub.s32 %s16, 1
        %p314 = scmp.gt.s32.totalorder %s313, 0
        %s315 = scalar_select %p314, %s313, 0
        %s316 = smul.u32 4, %s315
        %p317 = scmp.lt.s32.totalorder %s316, 15
        %s318 = scalar_select %p317, %s316, 15
        %s319 = smul.addr %s318, 8
        %s320 = scalar_lea.vmem %s0, %s319
        %s321 = ssub.s32 %s16, 1
        %p322 = scmp.gt.s32.totalorder %s321, 0
        %s323 = scalar_select %p322, %s321, 0
        %s324 = smul.u32 4, %s323
      $region28: #{basic3d_block.4} parent=23 // pred_fallthru
        _
      // Predicated region
      $region29: #{basic3d_block.4} parent=23 // pred_check
        %p325 = pneg %p68
      $region30: #{basic3d_block.4} parent=23 // pred_check_branch
        %327 = sbr.rel (%p325) target = $region32
      $region31: #{basic3d_block.4} parent=23 // pred_region
        %s328 = smul.u32 4, %s16
        %p329 = scmp.lt.s32.totalorder %s328, 15
        %s330 = scalar_select %p329, %s328, 15
        %s331 = smul.addr %s330, 8
        %s332 = scalar_lea.vmem %s1, %s331
        %s333 = smul.u32 4, %s16
      $region32: #{basic3d_block.4} parent=23 // pred_fallthru
        _
      // Predicated region
      $region33: #{basic3d_block.4} parent=23 // pred_check
        %p334 = pneg %p100
      $region34: #{basic3d_block.4} parent=23 // pred_check_branch
        %336 = sbr.rel (%p334) target = $region36
      $region35: #{basic3d_block.4} parent=23 // pred_region
        %s337 = sadd.s32 %s16, 1
        %p338 = scmp.lt.s32.totalorder %s337, 3
        %s339 = scalar_select %p338, %s337, 3
        %s340 = smul.u32 4, %s339
        %p341 = scmp.lt.s32.totalorder %s340, 15
        %s342 = scalar_select %p341, %s340, 15
        %s343 = smul.addr %s342, 8
        %s344 = scalar_lea.vmem %s2, %s343
        %s345 = sadd.s32 %s16, 1
        %p346 = scmp.lt.s32.totalorder %s345, 3
        %s347 = scalar_select %p346, %s345, 3
        %s348 = smul.u32 4, %s347
      $region36: #{basic3d_block.4} parent=23 // pred_fallthru
        _
      // Predicated region
      $region37: #{basic3d_block.4} parent=23 // pred_check
        %p349 = pneg %p132
      $region38: #{basic3d_block.4} parent=23 // pred_check_branch
        %351 = sbr.rel (%p349) target = $region40
      $region39: #{basic3d_block.4} parent=23 // pred_region
        %s352 = ssub.s32 %s16, 1
        %p353 = scmp.gt.s32.totalorder %s352, 0
        %s354 = scalar_select %p353, %s352, 0
        %s355 = smul.u32 4, %s354
        %p356 = scmp.lt.s32.totalorder %s355, 15
        %s357 = scalar_select %p356, %s355, 15
        %s358 = scalar_lea.vmem %s3, %s357
        %s359 = ssub.s32 %s16, 1
        %p360 = scmp.gt.s32.totalorder %s359, 0
        %s361 = scalar_select %p360, %s359, 0
        %s362 = smul.u32 4, %s361
      $region40: #{basic3d_block.4} parent=23 // pred_fallthru
        _
      // Predicated region
      $region41: #{basic3d_block.4} parent=23 // pred_check
        %p363 = pneg %p158
      $region42: #{basic3d_block.4} parent=23 // pred_check_branch
        %365 = sbr.rel (%p363) target = $region44
      $region43: #{basic3d_block.4} parent=23 // pred_region
        %s366 = smul.u32 4, %s16
        %p367 = scmp.lt.s32.totalorder %s366, 15
        %s368 = scalar_select %p367, %s366, 15
        %s369 = scalar_lea.vmem %s4, %s368
        %s370 = smul.u32 4, %s16
      $region44: #{basic3d_block.4} parent=23 // pred_fallthru
        _
      // Predicated region
      $region45: #{basic3d_block.4} parent=23 // pred_check
        %p371 = pneg %p190
      $region46: #{basic3d_block.4} parent=23 // pred_check_branch
        %373 = sbr.rel (%p371) target = $region48
      $region47: #{basic3d_block.4} parent=23 // pred_region
        %s374 = sadd.s32 %s16, 1
        %p375 = scmp.lt.s32.totalorder %s374, 3
        %s376 = scalar_select %p375, %s374, 3
        %s377 = smul.u32 4, %s376
        %p378 = scmp.lt.s32.totalorder %s377, 15
        %s379 = scalar_select %p378, %s377, 15
        %s380 = scalar_lea.vmem %s5, %s379
        %s381 = sadd.s32 %s16, 1
        %p382 = scmp.lt.s32.totalorder %s381, 3
        %s383 = scalar_select %p382, %s381, 3
        %s384 = smul.u32 4, %s383
      $region48: #{basic3d_block.4} parent=23 // pred_fallthru
        _
    $region24: #{basic3d_block.4} parent=5 // pred_fallthru
      _
    %p385 = scmp.le.s32.totalorder 1, %s16
    %p386 = scmp.lt.s32.totalorder %s16, 5
    %p387 = pnand %p385, %p386
    %p388 = pneg %p387
    // Predicated region
    $region49: #{basic3d_block.4} parent=5 // pred_check
      _
    $region50: #{basic3d_block.4} parent=5 // pred_check_branch
      %390 = sbr.rel (%p387) target = $region52
    $region51: #{basic3d_block.4} parent=5 // pred_region
      %s391 = ssub.s32 %s16, 1
      %s392 = ssub.s32 %s21, 1
      %p393 = scmp.gt.s32.totalorder %s392, 0
      %s394 = scalar_select %p393, %s392, 0
      %s395 = smul.u32 4, %s394
      %p396 = scmp.lt.s32.totalorder %s395, 15
      %s397 = scalar_select %p396, %s395, 15
      %s398 = smul.addr %s397, 8
      %s399 = scalar_lea.vmem %s0, %s398
      %p400 = pneg %p48
      %p401 = pneg %p45
      %s402 = smul.u32 4, %s21
      %p403 = scmp.lt.s32.totalorder %s402, 15
      %s404 = scalar_select %p403, %s402, 15
      %s405 = smul.addr %s404, 8
      %s406 = scalar_lea.vmem %s1, %s405
      %p407 = pneg %p74
      %p408 = pneg %p71
      %s409 = sadd.s32 %s21, 1
      %p410 = scmp.lt.s32.totalorder %s409, 3
      %s411 = scalar_select %p410, %s409, 3
      %s412 = smul.u32 4, %s411
      %p413 = scmp.lt.s32.totalorder %s412, 15
      %s414 = scalar_select %p413, %s412, 15
      %s415 = smul.addr %s414, 8
      %s416 = scalar_lea.vmem %s2, %s415
      %p417 = pneg %p106
      %p418 = pneg %p103
      %s419 = ssub.s32 %s21, 1
      %p420 = scmp.gt.s32.totalorder %s419, 0
      %s421 = scalar_select %p420, %s419, 0
      %s422 = smul.u32 4, %s421
      %p423 = scmp.lt.s32.totalorder %s422, 15
      %s424 = scalar_select %p423, %s422, 15
      %s425 = scalar_lea.vmem %s3, %s424
      %p426 = pneg %p138
      %p427 = pneg %p135
      %s428 = smul.u32 4, %s21
      %p429 = scmp.lt.s32.totalorder %s428, 15
      %s430 = scalar_select %p429, %s428, 15
      %s431 = scalar_lea.vmem %s4, %s430
      %p432 = pneg %p164
      %p433 = pneg %p161
      %s434 = sadd.s32 %s21, 1
      %p435 = scmp.lt.s32.totalorder %s434, 3
      %s436 = scalar_select %p435, %s434, 3
      %s437 = smul.u32 4, %s436
      %p438 = scmp.lt.s32.totalorder %s437, 15
      %s439 = scalar_select %p438, %s437, 15
      %s440 = scalar_lea.vmem %s5, %s439
      %p441 = pneg %p196
      %p442 = pneg %p193
      %p443 = pneg %p217
      %p444 = pneg %p214
      %p445 = pneg %p238
      %p446 = pneg %p235
      %p447 = pneg %p264
      %p448 = pneg %p261
      %s449 = smul.u32 4, %s21
      %p450 = scmp.lt.s32.totalorder %s449, 15
      %s451 = scalar_select %p450, %s449, 15
      %s452 = smul.addr %s451, 8
      %s453 = scalar_lea.vmem %s8, %s452
      %p454 = pneg %p285
      %p455 = pneg %p282
      %s456 = ssub.s32 %s21, 1
      %p457 = scmp.gt.s32.totalorder %s456, 0
      %s458 = scalar_select %p457, %s456, 0
      %s459 = smul.u32 4, %s458
      %p460 = scmp.lt.s32.totalorder %s459, 15
      %s461 = scalar_select %p460, %s459, 15
      %s462 = smul.addr %s461, 8
      %s463 = scalar_lea.vmem %s0, %s462
      %s464 = ssub.s32 %s21, 1
      %p465 = scmp.gt.s32.totalorder %s464, 0
      %s466 = scalar_select %p465, %s464, 0
      %s467 = smul.u32 4, %s466
      %s468 = smul.u32 4, %s21
      %p469 = scmp.lt.s32.totalorder %s468, 15
      %s470 = scalar_select %p469, %s468, 15
      %s471 = smul.addr %s470, 8
      %s472 = scalar_lea.vmem %s1, %s471
      %s473 = smul.u32 4, %s21
      %s474 = sadd.s32 %s21, 1
      %p475 = scmp.lt.s32.totalorder %s474, 3
      %s476 = scalar_select %p475, %s474, 3
      %s477 = smul.u32 4, %s476
      %p478 = scmp.lt.s32.totalorder %s477, 15
      %s479 = scalar_select %p478, %s477, 15
      %s480 = smul.addr %s479, 8
      %s481 = scalar_lea.vmem %s2, %s480
      %s482 = sadd.s32 %s21, 1
      %p483 = scmp.lt.s32.totalorder %s482, 3
      %s484 = scalar_select %p483, %s482, 3
      %s485 = smul.u32 4, %s484
      %s486 = ssub.s32 %s21, 1
      %p487 = scmp.gt.s32.totalorder %s486, 0
      %s488 = scalar_select %p487, %s486, 0
      %s489 = smul.u32 4, %s488
      %p490 = scmp.lt.s32.totalorder %s489, 15
      %s491 = scalar_select %p490, %s489, 15
      %s492 = scalar_lea.vmem %s3, %s491
      %s493 = ssub.s32 %s21, 1
      %p494 = scmp.gt.s32.totalorder %s493, 0
      %s495 = scalar_select %p494, %s493, 0
      %s496 = smul.u32 4, %s495
      %s497 = smul.u32 4, %s21
      %p498 = scmp.lt.s32.totalorder %s497, 15
      %s499 = scalar_select %p498, %s497, 15
      %s500 = scalar_lea.vmem %s4, %s499
      %s501 = smul.u32 4, %s21
      %s502 = sadd.s32 %s21, 1
      %p503 = scmp.lt.s32.totalorder %s502, 3
      %s504 = scalar_select %p503, %s502, 3
      %s505 = smul.u32 4, %s504
      %p506 = scmp.lt.s32.totalorder %s505, 15
      %s507 = scalar_select %p506, %s505, 15
      %s508 = scalar_lea.vmem %s5, %s507
      %s509 = sadd.s32 %s21, 1
      %p510 = scmp.lt.s32.totalorder %s509, 3
      %s511 = scalar_select %p510, %s509, 3
      %s512 = smul.u32 4, %s511
      %s513 = smul.u32 4, %s21
      %p514 = scmp.lt.s32.totalorder %s513, 15
      %s515 = scalar_select %p514, %s513, 15
      %s516 = smul.addr %s515, 8
      %s517 = scalar_lea.vmem %s8, %s516
      %s518 = smul.u32 4, %s21
      %p519 = scmp.eq.s32.totalorder %s21, 0
      // Predicated region
      $region53: #{basic3d_block.4} parent=51 // pred_check
        %p520 = pneg %p519
      $region54: #{basic3d_block.4} parent=51 // pred_check_branch
        %522 = sbr.rel (%p520) target = $region56
      $region55: #{basic3d_block.4} parent=51 // pred_region
        %vm523 = vcmask 15360
        %524 = vst.msk [vmem:[%s9] sm:$0xff] %vm523, 0.0
      $region56: #{basic3d_block.4} parent=51 // pred_fallthru
        _
      %v525 = vld [vmem:[%s6] sm:$0xff]
      %v526 = vld [vmem:[%s463 + $0x18] sm:$0xff]
      %528 = vset.pattern.permute.xlu0 0
      %529 = vperm.xlu0 %528, %v525
      %v530 = vpop.permute.xlu0 %529
      %v532 = vmul.f32 %v526, %v530
      %533 = vset.pattern.permute.xlu0 1
      %534 = vperm.xlu0 %533, %v525
      %v535 = vpop.permute.xlu0 %534
      %v537 = vadd.f32 %v532, %v535
      %v538 = vmax.f32 %v537, 0.0
      %v539 = vld [vmem:[%s492] sm:$0xf]
      %v541 = vlaneseq
      %v542 = vshrl.u32 %v541, 7
      %v543 = vsub.s32 3, %v542
      %v544 = vrot.slane %v539, %v543
      %v546 = vmul.f32 %v538, %v544
      %v547 = vld [vmem:[%s472] sm:$0xff]
      %v548 = vld [vmem:[%s472 + $0x8] sm:$0xff]
      %v549 = vld [vmem:[%s472 + $0x10] sm:$0xff]
      %v550 = vld [vmem:[%s472 + $0x18] sm:$0xff]
      %v551 = vmul.f32 %v547, %v530
      %v552 = vmul.f32 %v548, %v530
      %v553 = vmul.f32 %v549, %v530
      %v554 = vmul.f32 %v550, %v530
      %v555 = vadd.f32 %v551, %v535
      %v556 = vadd.f32 %v552, %v535
      %v557 = vadd.f32 %v553, %v535
      %v558 = vadd.f32 %v554, %v535
      %v559 = vmax.f32 %v555, 0.0
      %v560 = vmax.f32 %v556, 0.0
      %v561 = vmax.f32 %v557, 0.0
      %v562 = vmax.f32 %v558, 0.0
      %v563 = vld [vmem:[%s500] sm:$0xf]
      %v565 = vlaneseq
      %v566 = vshrl.u32 %v565, 7
      %v567 = vsub.s32 0, %v566
      %v568 = vrot.slane %v563, %v567
      %v569 = vlaneseq
      %v570 = vshrl.u32 %v569, 7
      %v571 = vsub.s32 1, %v570
      %v572 = vrot.slane %v563, %v571
      %v573 = vlaneseq
      %v574 = vshrl.u32 %v573, 7
      %v575 = vsub.s32 2, %v574
      %v576 = vrot.slane %v563, %v575
      %v577 = vlaneseq
      %v578 = vshrl.u32 %v577, 7
      %v579 = vsub.s32 3, %v578
      %v580 = vrot.slane %v563, %v579
      %v585 = vmul.f32 %v559, %v568
      %v586 = vmul.f32 %v560, %v572
      %v587 = vmul.f32 %v561, %v576
      %v588 = vmul.f32 %v562, %v580
      %v589 = vld [vmem:[%s481] sm:$0xff]
      %v590 = vmul.f32 %v589, %v530
      %v591 = vadd.f32 %v590, %v535
      %v592 = vmax.f32 %v591, 0.0
      %v593 = vld [vmem:[%s508] sm:$0xf]
      %v595 = vlaneseq
      %v596 = vshrl.u32 %v595, 7
      %v597 = vsub.s32 0, %v596
      %v598 = vrot.slane %v593, %v597
      %v600 = vmul.f32 %v592, %v598
      %v601 = vld [vmem:[%s7] sm:$0xff]
      %s602 = scalar_lea.vmem %s7, 8
      %v603 = vld [vmem:[%s602] sm:$0xff]
      %609 = vrot.lane.b32.xlu0 %v546, 110
      %v610 = vpop.permute.xlu0 %609
      %611 = vrot.lane.b32.xlu0 %v585, 110
      %v612 = vpop.permute.xlu0 %611
      %613 = vrot.lane.b32.xlu0 %v586, 110
      %v614 = vpop.permute.xlu0 %613
      %615 = vrot.lane.b32.xlu0 %v587, 110
      %v616 = vpop.permute.xlu0 %615
      %617 = vrot.lane.b32.xlu0 %v588, 110
      %v618 = vpop.permute.xlu0 %617
      %vm619 = vcmask 900096
      %v620 = vsel %vm619, %v610, %v612
      %v621 = vsel %vm619, %v612, %v614
      %v622 = vsel %vm619, %v614, %v616
      %v623 = vsel %vm619, %v616, %v618
      %vm628 = vcmask 64512
      %v630 = vsel %vm628, %v603, 0
      %632 = vmatprep.subr.mxu0 0.0
      %633 = vmatpush1.msra.mxu0 0.0
      %634 = vmatprep.subr.mxu0 0.0
      %635 = vmatpush1.msra.mxu0 0.0
      %636 = vmatprep.subr.mxu0 0.0
      %637 = vmatpush1.msra.mxu0 0.0
      %638 = vmatprep.subr.mxu0 0.0
      %639 = vmatpush1.msra.mxu0 0.0
      %640 = vmatprep.subr.mxu0 0.0
      %641 = vmatpush1.msra.mxu0 0.0
      %642 = vmatprep.subr.mxu0 0.0
      %643 = vmatpush1.msra.mxu0 0.0
      %644 = vmatprep.subr.mxu0 0.0
      %645 = vmatpush1.msra.mxu0 0.0
      %646 = vmatprep.subr.mxu0 0.0
      %647 = vmatpush1.msra.mxu0 0.0
      %648 = vmatprep.subr.mxu0 0.0
      %649 = vmatpush1.msra.mxu0 0.0
      %650 = vmatprep.subr.mxu0 0.0
      %651 = vmatpush1.msra.mxu0 0.0
      %652 = vmatprep.subr.mxu0 0.0
      %653 = vmatpush1.msra.mxu0 0.0
      %654 = vmatprep.subr.mxu0 0.0
      %655 = vmatpush1.msra.mxu0 0.0
      %656 = vmatprep.subr.mxu0 0.0
      %657 = vmatpush1.msra.mxu0 0.0
      %658 = vmatprep.subr.mxu0 0.0
      %659 = vmatpush1.msra.mxu0 0.0
      %660 = vmatprep.subr.mxu0 0.0
      %661 = vmatpush1.msra.mxu0 0.0
      %662 = vmatprep.subr.mxu0 %v621
      %663 = vmatpush1.msra.mxu0 %v620
      %664 = vmatprep.subr.mxu0 0.0
      %665 = vmatpush2.msra.mxu0 0.0
      %666 = vmatprep.subr.mxu0 0.0
      %667 = vmatpush2.msra.mxu0 0.0
      %668 = vmatprep.subr.mxu0 0.0
      %669 = vmatpush2.msra.mxu0 0.0
      %670 = vmatprep.subr.mxu0 0.0
      %671 = vmatpush2.msra.mxu0 0.0
      %672 = vmatprep.subr.mxu0 0.0
      %673 = vmatpush2.msra.mxu0 0.0
      %674 = vmatprep.subr.mxu0 0.0
      %675 = vmatpush2.msra.mxu0 0.0
      %676 = vmatprep.subr.mxu0 0.0
      %677 = vmatpush2.msra.mxu0 0.0
      %678 = vmatprep.subr.mxu0 0.0
      %679 = vmatpush2.msra.mxu0 0.0
      %680 = vmatprep.subr.mxu0 0.0
      %681 = vmatpush2.msra.mxu0 0.0
      %682 = vmatprep.subr.mxu0 0.0
      %683 = vmatpush2.msra.mxu0 0.0
      %684 = vmatprep.subr.mxu0 0.0
      %685 = vmatpush2.msra.mxu0 0.0
      %686 = vmatprep.subr.mxu0 0.0
      %687 = vmatpush2.msra.mxu0 0.0
      %688 = vmatprep.subr.mxu0 0.0
      %689 = vmatpush2.msra.mxu0 0.0
      %690 = vmatprep.subr.mxu0 0.0
      %691 = vmatpush2.msra.mxu0 0.0
      %692 = vmatprep.subr.mxu0 0.0
      %693 = vmatpush2.msra.mxu0 0.0
      %694 = vmatprep.subr.mxu0 0.0
      %695 = vmatpush2.msra.mxu0 0.0
      %696 = vmatprep.mubr.f32.mxu0 0.0
      %697 = vmatmul.mubr.f32.gmra.mxu0 %v630
      %v698 = vpop.f32.mrf.mxu0
      %v699 = vadd.f32 0.0, %v698
      %v700 = vpop.f32.mrf.mxu0
      %v701 = vadd.f32 0.0, %v700
      %702 = vdwg.mxu0
      %703 = vmatprep.subr.mxu0 0.0
      %704 = vmatpush1.msra.mxu0 0.0
      %705 = vmatprep.subr.mxu0 0.0
      %706 = vmatpush1.msra.mxu0 0.0
      %707 = vmatprep.subr.mxu0 0.0
      %708 = vmatpush1.msra.mxu0 0.0
      %709 = vmatprep.subr.mxu0 0.0
      %710 = vmatpush1.msra.mxu0 0.0
      %711 = vmatprep.subr.mxu0 0.0
      %712 = vmatpush1.msra.mxu0 0.0
      %713 = vmatprep.subr.mxu0 0.0
      %714 = vmatpush1.msra.mxu0 0.0
      %715 = vmatprep.subr.mxu0 0.0
      %716 = vmatpush1.msra.mxu0 0.0
      %717 = vmatprep.subr.mxu0 0.0
      %718 = vmatpush1.msra.mxu0 0.0
      %719 = vmatprep.subr.mxu0 0.0
      %720 = vmatpush1.msra.mxu0 0.0
      %721 = vmatprep.subr.mxu0 0.0
      %722 = vmatpush1.msra.mxu0 0.0
      %723 = vmatprep.subr.mxu0 0.0
      %724 = vmatpush1.msra.mxu0 0.0
      %725 = vmatprep.subr.mxu0 0.0
      %726 = vmatpush1.msra.mxu0 0.0
      %727 = vmatprep.subr.mxu0 0.0
      %728 = vmatpush1.msra.mxu0 0.0
      %729 = vmatprep.subr.mxu0 0.0
      %730 = vmatpush1.msra.mxu0 0.0
      %731 = vmatprep.subr.mxu0 0.0
      %732 = vmatpush1.msra.mxu0 0.0
      %733 = vmatprep.subr.mxu0 %v623
      %734 = vmatpush1.msra.mxu0 %v622
      %735 = vmatprep.subr.mxu0 0.0
      %736 = vmatpush2.msra.mxu0 0.0
      %737 = vmatprep.subr.mxu0 0.0
      %738 = vmatpush2.msra.mxu0 0.0
      %739 = vmatprep.subr.mxu0 0.0
      %740 = vmatpush2.msra.mxu0 0.0
      %741 = vmatprep.subr.mxu0 0.0
      %742 = vmatpush2.msra.mxu0 0.0
      %743 = vmatprep.subr.mxu0 0.0
      %744 = vmatpush2.msra.mxu0 0.0
      %745 = vmatprep.subr.mxu0 0.0
      %746 = vmatpush2.msra.mxu0 0.0
      %747 = vmatprep.subr.mxu0 0.0
      %748 = vmatpush2.msra.mxu0 0.0
      %749 = vmatprep.subr.mxu0 0.0
      %750 = vmatpush2.msra.mxu0 0.0
      %751 = vmatprep.subr.mxu0 0.0
      %752 = vmatpush2.msra.mxu0 0.0
      %753 = vmatprep.subr.mxu0 0.0
      %754 = vmatpush2.msra.mxu0 0.0
      %755 = vmatprep.subr.mxu0 0.0
      %756 = vmatpush2.msra.mxu0 0.0
      %757 = vmatprep.subr.mxu0 0.0
      %758 = vmatpush2.msra.mxu0 0.0
      %759 = vmatprep.subr.mxu0 0.0
      %760 = vmatpush2.msra.mxu0 0.0
      %761 = vmatprep.subr.mxu0 0.0
      %762 = vmatpush2.msra.mxu0 0.0
      %763 = vmatprep.subr.mxu0 0.0
      %764 = vmatpush2.msra.mxu0 0.0
      %765 = vmatprep.subr.mxu0 0.0
      %766 = vmatpush2.msra.mxu0 0.0
      %767 = vmatprep.mubr.f32.mxu0 0.0
      %768 = vmatmul.mubr.f32.gmra.mxu0 %v630
      %v769 = vpop.f32.mrf.mxu0
      %v770 = vadd.f32 0.0, %v769
      %v771 = vpop.f32.mrf.mxu0
      %v772 = vadd.f32 0.0, %v771
      %773 = vdwg.mxu0
      %774 = vrot.lane.b32.xlu0 %v546, 111
      %v775 = vpop.permute.xlu0 %774
      %776 = vrot.lane.b32.xlu0 %v585, 111
      %v777 = vpop.permute.xlu0 %776
      %778 = vrot.lane.b32.xlu0 %v586, 111
      %v779 = vpop.permute.xlu0 %778
      %780 = vrot.lane.b32.xlu0 %v587, 111
      %v781 = vpop.permute.xlu0 %780
      %782 = vrot.lane.b32.xlu0 %v588, 111
      %v783 = vpop.permute.xlu0 %782
      %vm784 = vcmask 908288
      %v785 = vsel %vm784, %v775, %v777
      %v786 = vsel %vm784, %v777, %v779
      %v787 = vsel %vm784, %v779, %v781
      %v788 = vsel %vm784, %v781, %v783
      %v794 = vsel %vm628, %v601, 0
      %796 = vmatprep.subr.mxu0 0.0
      %797 = vmatpush1.msra.mxu0 0.0
      %798 = vmatprep.subr.mxu0 0.0
      %799 = vmatpush1.msra.mxu0 0.0
      %800 = vmatprep.subr.mxu0 0.0
      %801 = vmatpush1.msra.mxu0 0.0
      %802 = vmatprep.subr.mxu0 0.0
      %803 = vmatpush1.msra.mxu0 0.0
      %804 = vmatprep.subr.mxu0 0.0
      %805 = vmatpush1.msra.mxu0 0.0
      %806 = vmatprep.subr.mxu0 0.0
      %807 = vmatpush1.msra.mxu0 0.0
      %808 = vmatprep.subr.mxu0 0.0
      %809 = vmatpush1.msra.mxu0 0.0
      %810 = vmatprep.subr.mxu0 0.0
      %811 = vmatpush1.msra.mxu0 0.0
      %812 = vmatprep.subr.mxu0 0.0
      %813 = vmatpush1.msra.mxu0 0.0
      %814 = vmatprep.subr.mxu0 0.0
      %815 = vmatpush1.msra.mxu0 0.0
      %816 = vmatprep.subr.mxu0 0.0
      %817 = vmatpush1.msra.mxu0 0.0
      %818 = vmatprep.subr.mxu0 0.0
      %819 = vmatpush1.msra.mxu0 0.0
      %820 = vmatprep.subr.mxu0 0.0
      %821 = vmatpush1.msra.mxu0 0.0
      %822 = vmatprep.subr.mxu0 0.0
      %823 = vmatpush1.msra.mxu0 0.0
      %824 = vmatprep.subr.mxu0 0.0
      %825 = vmatpush1.msra.mxu0 0.0
      %826 = vmatprep.subr.mxu0 %v786
      %827 = vmatpush1.msra.mxu0 %v785
      %828 = vmatprep.subr.mxu0 0.0
      %829 = vmatpush2.msra.mxu0 0.0
      %830 = vmatprep.subr.mxu0 0.0
      %831 = vmatpush2.msra.mxu0 0.0
      %832 = vmatprep.subr.mxu0 0.0
      %833 = vmatpush2.msra.mxu0 0.0
      %834 = vmatprep.subr.mxu0 0.0
      %835 = vmatpush2.msra.mxu0 0.0
      %836 = vmatprep.subr.mxu0 0.0
      %837 = vmatpush2.msra.mxu0 0.0
      %838 = vmatprep.subr.mxu0 0.0
      %839 = vmatpush2.msra.mxu0 0.0
      %840 = vmatprep.subr.mxu0 0.0
      %841 = vmatpush2.msra.mxu0 0.0
      %842 = vmatprep.subr.mxu0 0.0
      %843 = vmatpush2.msra.mxu0 0.0
      %844 = vmatprep.subr.mxu0 0.0
      %845 = vmatpush2.msra.mxu0 0.0
      %846 = vmatprep.subr.mxu0 0.0
      %847 = vmatpush2.msra.mxu0 0.0
      %848 = vmatprep.subr.mxu0 0.0
      %849 = vmatpush2.msra.mxu0 0.0
      %850 = vmatprep.subr.mxu0 0.0
      %851 = vmatpush2.msra.mxu0 0.0
      %852 = vmatprep.subr.mxu0 0.0
      %853 = vmatpush2.msra.mxu0 0.0
      %854 = vmatprep.subr.mxu0 0.0
      %855 = vmatpush2.msra.mxu0 0.0
      %856 = vmatprep.subr.mxu0 0.0
      %857 = vmatpush2.msra.mxu0 0.0
      %858 = vmatprep.subr.mxu0 0.0
      %859 = vmatpush2.msra.mxu0 0.0
      %860 = vmatprep.mubr.f32.mxu0 0.0
      %861 = vmatmul.mubr.f32.gmra.mxu0 %v794
      %v862 = vpop.f32.mrf.mxu0
      %v863 = vadd.f32 %v699, %v862
      %v864 = vpop.f32.mrf.mxu0
      %v865 = vadd.f32 %v701, %v864
      %866 = vdwg.mxu0
      %867 = vmatprep.subr.mxu0 0.0
      %868 = vmatpush1.msra.mxu0 0.0
      %869 = vmatprep.subr.mxu0 0.0
      %870 = vmatpush1.msra.mxu0 0.0
      %871 = vmatprep.subr.mxu0 0.0
      %872 = vmatpush1.msra.mxu0 0.0
      %873 = vmatprep.subr.mxu0 0.0
      %874 = vmatpush1.msra.mxu0 0.0
      %875 = vmatprep.subr.mxu0 0.0
      %876 = vmatpush1.msra.mxu0 0.0
      %877 = vmatprep.subr.mxu0 0.0
      %878 = vmatpush1.msra.mxu0 0.0
      %879 = vmatprep.subr.mxu0 0.0
      %880 = vmatpush1.msra.mxu0 0.0
      %881 = vmatprep.subr.mxu0 0.0
      %882 = vmatpush1.msra.mxu0 0.0
      %883 = vmatprep.subr.mxu0 0.0
      %884 = vmatpush1.msra.mxu0 0.0
      %885 = vmatprep.subr.mxu0 0.0
      %886 = vmatpush1.msra.mxu0 0.0
      %887 = vmatprep.subr.mxu0 0.0
      %888 = vmatpush1.msra.mxu0 0.0
      %889 = vmatprep.subr.mxu0 0.0
      %890 = vmatpush1.msra.mxu0 0.0
      %891 = vmatprep.subr.mxu0 0.0
      %892 = vmatpush1.msra.mxu0 0.0
      %893 = vmatprep.subr.mxu0 0.0
      %894 = vmatpush1.msra.mxu0 0.0
      %895 = vmatprep.subr.mxu0 0.0
      %896 = vmatpush1.msra.mxu0 0.0
      %897 = vmatprep.subr.mxu0 %v788
      %898 = vmatpush1.msra.mxu0 %v787
      %899 = vmatprep.subr.mxu0 0.0
      %900 = vmatpush2.msra.mxu0 0.0
      %901 = vmatprep.subr.mxu0 0.0
      %902 = vmatpush2.msra.mxu0 0.0
      %903 = vmatprep.subr.mxu0 0.0
      %904 = vmatpush2.msra.mxu0 0.0
      %905 = vmatprep.subr.mxu0 0.0
      %906 = vmatpush2.msra.mxu0 0.0
      %907 = vmatprep.subr.mxu0 0.0
      %908 = vmatpush2.msra.mxu0 0.0
      %909 = vmatprep.subr.mxu0 0.0
      %910 = vmatpush2.msra.mxu0 0.0
      %911 = vmatprep.subr.mxu0 0.0
      %912 = vmatpush2.msra.mxu0 0.0
      %913 = vmatprep.subr.mxu0 0.0
      %914 = vmatpush2.msra.mxu0 0.0
      %915 = vmatprep.subr.mxu0 0.0
      %916 = vmatpush2.msra.mxu0 0.0
      %917 = vmatprep.subr.mxu0 0.0
      %918 = vmatpush2.msra.mxu0 0.0
      %919 = vmatprep.subr.mxu0 0.0
      %920 = vmatpush2.msra.mxu0 0.0
      %921 = vmatprep.subr.mxu0 0.0
      %922 = vmatpush2.msra.mxu0 0.0
      %923 = vmatprep.subr.mxu0 0.0
      %924 = vmatpush2.msra.mxu0 0.0
      %925 = vmatprep.subr.mxu0 0.0
      %926 = vmatpush2.msra.mxu0 0.0
      %927 = vmatprep.subr.mxu0 0.0
      %928 = vmatpush2.msra.mxu0 0.0
      %929 = vmatprep.subr.mxu0 0.0
      %930 = vmatpush2.msra.mxu0 0.0
      %931 = vmatprep.mubr.f32.mxu0 0.0
      %932 = vmatmul.mubr.f32.gmra.mxu0 %v794
      %v933 = vpop.f32.mrf.mxu0
      %v934 = vadd.f32 %v770, %v933
      %v935 = vpop.f32.mrf.mxu0
      %v936 = vadd.f32 %v772, %v935
      %937 = vdwg.mxu0
      %s938 = scalar_lea.vmem %s7, 16
      %v939 = vld [vmem:[%s938] sm:$0xff]
      %940 = vrot.lane.b32.xlu0 %v546, 109
      %v941 = vpop.permute.xlu0 %940
      %942 = vrot.lane.b32.xlu0 %v585, 109
      %v943 = vpop.permute.xlu0 %942
      %944 = vrot.lane.b32.xlu0 %v586, 109
      %v945 = vpop.permute.xlu0 %944
      %946 = vrot.lane.b32.xlu0 %v587, 109
      %v947 = vpop.permute.xlu0 %946
      %948 = vrot.lane.b32.xlu0 %v588, 109
      %v949 = vpop.permute.xlu0 %948
      %vm950 = vcmask 891904
      %v951 = vsel %vm950, %v941, %v943
      %v952 = vsel %vm950, %v943, %v945
      %v953 = vsel %vm950, %v945, %v947
      %v954 = vsel %vm950, %v947, %v949
      %v960 = vsel %vm628, %v939, 0
      %962 = vmatprep.subr.mxu0 0.0
      %963 = vmatpush1.msra.mxu0 0.0
      %964 = vmatprep.subr.mxu0 0.0
      %965 = vmatpush1.msra.mxu0 0.0
      %966 = vmatprep.subr.mxu0 0.0
      %967 = vmatpush1.msra.mxu0 0.0
      %968 = vmatprep.subr.mxu0 0.0
      %969 = vmatpush1.msra.mxu0 0.0
      %970 = vmatprep.subr.mxu0 0.0
      %971 = vmatpush1.msra.mxu0 0.0
      %972 = vmatprep.subr.mxu0 0.0
      %973 = vmatpush1.msra.mxu0 0.0
      %974 = vmatprep.subr.mxu0 0.0
      %975 = vmatpush1.msra.mxu0 0.0
      %976 = vmatprep.subr.mxu0 0.0
      %977 = vmatpush1.msra.mxu0 0.0
      %978 = vmatprep.subr.mxu0 0.0
      %979 = vmatpush1.msra.mxu0 0.0
      %980 = vmatprep.subr.mxu0 0.0
      %981 = vmatpush1.msra.mxu0 0.0
      %982 = vmatprep.subr.mxu0 0.0
      %983 = vmatpush1.msra.mxu0 0.0
      %984 = vmatprep.subr.mxu0 0.0
      %985 = vmatpush1.msra.mxu0 0.0
      %986 = vmatprep.subr.mxu0 0.0
      %987 = vmatpush1.msra.mxu0 0.0
      %988 = vmatprep.subr.mxu0 0.0
      %989 = vmatpush1.msra.mxu0 0.0
      %990 = vmatprep.subr.mxu0 0.0
      %991 = vmatpush1.msra.mxu0 0.0
      %992 = vmatprep.subr.mxu0 %v952
      %993 = vmatpush1.msra.mxu0 %v951
      %994 = vmatprep.subr.mxu0 0.0
      %995 = vmatpush2.msra.mxu0 0.0
      %996 = vmatprep.subr.mxu0 0.0
      %997 = vmatpush2.msra.mxu0 0.0
      %998 = vmatprep.subr.mxu0 0.0
      %999 = vmatpush2.msra.mxu0 0.0
      %1000 = vmatprep.subr.mxu0 0.0
      %1001 = vmatpush2.msra.mxu0 0.0
      %1002 = vmatprep.subr.mxu0 0.0
      %1003 = vmatpush2.msra.mxu0 0.0
      %1004 = vmatprep.subr.mxu0 0.0
      %1005 = vmatpush2.msra.mxu0 0.0
      %1006 = vmatprep.subr.mxu0 0.0
      %1007 = vmatpush2.msra.mxu0 0.0
      %1008 = vmatprep.subr.mxu0 0.0
      %1009 = vmatpush2.msra.mxu0 0.0
      %1010 = vmatprep.subr.mxu0 0.0
      %1011 = vmatpush2.msra.mxu0 0.0
      %1012 = vmatprep.subr.mxu0 0.0
      %1013 = vmatpush2.msra.mxu0 0.0
      %1014 = vmatprep.subr.mxu0 0.0
      %1015 = vmatpush2.msra.mxu0 0.0
      %1016 = vmatprep.subr.mxu0 0.0
      %1017 = vmatpush2.msra.mxu0 0.0
      %1018 = vmatprep.subr.mxu0 0.0
      %1019 = vmatpush2.msra.mxu0 0.0
      %1020 = vmatprep.subr.mxu0 0.0
      %1021 = vmatpush2.msra.mxu0 0.0
      %1022 = vmatprep.subr.mxu0 0.0
      %1023 = vmatpush2.msra.mxu0 0.0
      %1024 = vmatprep.subr.mxu0 0.0
      %1025 = vmatpush2.msra.mxu0 0.0
      %1026 = vmatprep.mubr.f32.mxu0 0.0
      %1027 = vmatmul.mubr.f32.gmra.mxu0 %v960
      %v1028 = vpop.f32.mrf.mxu0
      %v1029 = vadd.f32 0.0, %v1028
      %v1030 = vpop.f32.mrf.mxu0
      %v1031 = vadd.f32 0.0, %v1030
      %1032 = vdwg.mxu0
      %1033 = vmatprep.subr.mxu0 0.0
      %1034 = vmatpush1.msra.mxu0 0.0
      %1035 = vmatprep.subr.mxu0 0.0
      %1036 = vmatpush1.msra.mxu0 0.0
      %1037 = vmatprep.subr.mxu0 0.0
      %1038 = vmatpush1.msra.mxu0 0.0
      %1039 = vmatprep.subr.mxu0 0.0
      %1040 = vmatpush1.msra.mxu0 0.0
      %1041 = vmatprep.subr.mxu0 0.0
      %1042 = vmatpush1.msra.mxu0 0.0
      %1043 = vmatprep.subr.mxu0 0.0
      %1044 = vmatpush1.msra.mxu0 0.0
      %1045 = vmatprep.subr.mxu0 0.0
      %1046 = vmatpush1.msra.mxu0 0.0
      %1047 = vmatprep.subr.mxu0 0.0
      %1048 = vmatpush1.msra.mxu0 0.0
      %1049 = vmatprep.subr.mxu0 0.0
      %1050 = vmatpush1.msra.mxu0 0.0
      %1051 = vmatprep.subr.mxu0 0.0
      %1052 = vmatpush1.msra.mxu0 0.0
      %1053 = vmatprep.subr.mxu0 0.0
      %1054 = vmatpush1.msra.mxu0 0.0
      %1055 = vmatprep.subr.mxu0 0.0
      %1056 = vmatpush1.msra.mxu0 0.0
      %1057 = vmatprep.subr.mxu0 0.0
      %1058 = vmatpush1.msra.mxu0 0.0
      %1059 = vmatprep.subr.mxu0 0.0
      %1060 = vmatpush1.msra.mxu0 0.0
      %1061 = vmatprep.subr.mxu0 0.0
      %1062 = vmatpush1.msra.mxu0 0.0
      %1063 = vmatprep.subr.mxu0 %v954
      %1064 = vmatpush1.msra.mxu0 %v953
      %1065 = vmatprep.subr.mxu0 0.0
      %1066 = vmatpush2.msra.mxu0 0.0
      %1067 = vmatprep.subr.mxu0 0.0
      %1068 = vmatpush2.msra.mxu0 0.0
      %1069 = vmatprep.subr.mxu0 0.0
      %1070 = vmatpush2.msra.mxu0 0.0
      %1071 = vmatprep.subr.mxu0 0.0
      %1072 = vmatpush2.msra.mxu0 0.0
      %1073 = vmatprep.subr.mxu0 0.0
      %1074 = vmatpush2.msra.mxu0 0.0
      %1075 = vmatprep.subr.mxu0 0.0
      %1076 = vmatpush2.msra.mxu0 0.0
      %1077 = vmatprep.subr.mxu0 0.0
      %1078 = vmatpush2.msra.mxu0 0.0
      %1079 = vmatprep.subr.mxu0 0.0
      %1080 = vmatpush2.msra.mxu0 0.0
      %1081 = vmatprep.subr.mxu0 0.0
      %1082 = vmatpush2.msra.mxu0 0.0
      %1083 = vmatprep.subr.mxu0 0.0
      %1084 = vmatpush2.msra.mxu0 0.0
      %1085 = vmatprep.subr.mxu0 0.0
      %1086 = vmatpush2.msra.mxu0 0.0
      %1087 = vmatprep.subr.mxu0 0.0
      %1088 = vmatpush2.msra.mxu0 0.0
      %1089 = vmatprep.subr.mxu0 0.0
      %1090 = vmatpush2.msra.mxu0 0.0
      %1091 = vmatprep.subr.mxu0 0.0
      %1092 = vmatpush2.msra.mxu0 0.0
      %1093 = vmatprep.subr.mxu0 0.0
      %1094 = vmatpush2.msra.mxu0 0.0
      %1095 = vmatprep.subr.mxu0 0.0
      %1096 = vmatpush2.msra.mxu0 0.0
      %1097 = vmatprep.mubr.f32.mxu0 0.0
      %1098 = vmatmul.mubr.f32.gmra.mxu0 %v960
      %v1099 = vpop.f32.mrf.mxu0
      %v1100 = vadd.f32 0.0, %v1099
      %v1101 = vpop.f32.mrf.mxu0
      %v1102 = vadd.f32 0.0, %v1101
      %1103 = vdwg.mxu0
      %v1104 = vadd.f32 %v863, %v1029
      %v1105 = vadd.f32 %v865, %v1031
      %v1106 = vadd.f32 %v934, %v1100
      %v1107 = vadd.f32 %v936, %v1102
      %s1108 = scalar_lea.vmem %s7, 24
      %v1109 = vld [vmem:[%s1108] sm:$0xff]
      %1110 = vrot.lane.b32.xlu0 %v546, 101
      %v1111 = vpop.permute.xlu0 %1110
      %1112 = vrot.lane.b32.xlu0 %v585, 101
      %v1113 = vpop.permute.xlu0 %1112
      %1114 = vrot.lane.b32.xlu0 %v586, 101
      %v1115 = vpop.permute.xlu0 %1114
      %1116 = vrot.lane.b32.xlu0 %v587, 101
      %v1117 = vpop.permute.xlu0 %1116
      %1118 = vrot.lane.b32.xlu0 %v588, 101
      %v1119 = vpop.permute.xlu0 %1118
      %vm1120 = vcmask 826368
      %v1121 = vsel %vm1120, %v1111, %v1113
      %v1122 = vsel %vm1120, %v1113, %v1115
      %v1123 = vsel %vm1120, %v1115, %v1117
      %v1124 = vsel %vm1120, %v1117, %v1119
      %v1130 = vsel %vm628, %v1109, 0
      %1132 = vmatprep.subr.mxu0 0.0
      %1133 = vmatpush1.msra.mxu0 0.0
      %1134 = vmatprep.subr.mxu0 0.0
      %1135 = vmatpush1.msra.mxu0 0.0
      %1136 = vmatprep.subr.mxu0 0.0
      %1137 = vmatpush1.msra.mxu0 0.0
      %1138 = vmatprep.subr.mxu0 0.0
      %1139 = vmatpush1.msra.mxu0 0.0
      %1140 = vmatprep.subr.mxu0 0.0
      %1141 = vmatpush1.msra.mxu0 0.0
      %1142 = vmatprep.subr.mxu0 0.0
      %1143 = vmatpush1.msra.mxu0 0.0
      %1144 = vmatprep.subr.mxu0 0.0
      %1145 = vmatpush1.msra.mxu0 0.0
      %1146 = vmatprep.subr.mxu0 0.0
      %1147 = vmatpush1.msra.mxu0 0.0
      %1148 = vmatprep.subr.mxu0 0.0
      %1149 = vmatpush1.msra.mxu0 0.0
      %1150 = vmatprep.subr.mxu0 0.0
      %1151 = vmatpush1.msra.mxu0 0.0
      %1152 = vmatprep.subr.mxu0 0.0
      %1153 = vmatpush1.msra.mxu0 0.0
      %1154 = vmatprep.subr.mxu0 0.0
      %1155 = vmatpush1.msra.mxu0 0.0
      %1156 = vmatprep.subr.mxu0 0.0
      %1157 = vmatpush1.msra.mxu0 0.0
      %1158 = vmatprep.subr.mxu0 0.0
      %1159 = vmatpush1.msra.mxu0 0.0
      %1160 = vmatprep.subr.mxu0 0.0
      %1161 = vmatpush1.msra.mxu0 0.0
      %1162 = vmatprep.subr.mxu0 %v1122
      %1163 = vmatpush1.msra.mxu0 %v1121
      %1164 = vmatprep.subr.mxu0 0.0
      %1165 = vmatpush2.msra.mxu0 0.0
      %1166 = vmatprep.subr.mxu0 0.0
      %1167 = vmatpush2.msra.mxu0 0.0
      %1168 = vmatprep.subr.mxu0 0.0
      %1169 = vmatpush2.msra.mxu0 0.0
      %1170 = vmatprep.subr.mxu0 0.0
      %1171 = vmatpush2.msra.mxu0 0.0
      %1172 = vmatprep.subr.mxu0 0.0
      %1173 = vmatpush2.msra.mxu0 0.0
      %1174 = vmatprep.subr.mxu0 0.0
      %1175 = vmatpush2.msra.mxu0 0.0
      %1176 = vmatprep.subr.mxu0 0.0
      %1177 = vmatpush2.msra.mxu0 0.0
      %1178 = vmatprep.subr.mxu0 0.0
      %1179 = vmatpush2.msra.mxu0 0.0
      %1180 = vmatprep.subr.mxu0 0.0
      %1181 = vmatpush2.msra.mxu0 0.0
      %1182 = vmatprep.subr.mxu0 0.0
      %1183 = vmatpush2.msra.mxu0 0.0
      %1184 = vmatprep.subr.mxu0 0.0
      %1185 = vmatpush2.msra.mxu0 0.0
      %1186 = vmatprep.subr.mxu0 0.0
      %1187 = vmatpush2.msra.mxu0 0.0
      %1188 = vmatprep.subr.mxu0 0.0
      %1189 = vmatpush2.msra.mxu0 0.0
      %1190 = vmatprep.subr.mxu0 0.0
      %1191 = vmatpush2.msra.mxu0 0.0
      %1192 = vmatprep.subr.mxu0 0.0
      %1193 = vmatpush2.msra.mxu0 0.0
      %1194 = vmatprep.subr.mxu0 0.0
      %1195 = vmatpush2.msra.mxu0 0.0
      %1196 = vmatprep.mubr.f32.mxu0 0.0
      %1197 = vmatmul.mubr.f32.gmra.mxu0 %v1130
      %v1198 = vpop.f32.mrf.mxu0
      %v1199 = vadd.f32 0.0, %v1198
      %v1200 = vpop.f32.mrf.mxu0
      %v1201 = vadd.f32 0.0, %v1200
      %1202 = vdwg.mxu0
      %1203 = vmatprep.subr.mxu0 0.0
      %1204 = vmatpush1.msra.mxu0 0.0
      %1205 = vmatprep.subr.mxu0 0.0
      %1206 = vmatpush1.msra.mxu0 0.0
      %1207 = vmatprep.subr.mxu0 0.0
      %1208 = vmatpush1.msra.mxu0 0.0
      %1209 = vmatprep.subr.mxu0 0.0
      %1210 = vmatpush1.msra.mxu0 0.0
      %1211 = vmatprep.subr.mxu0 0.0
      %1212 = vmatpush1.msra.mxu0 0.0
      %1213 = vmatprep.subr.mxu0 0.0
      %1214 = vmatpush1.msra.mxu0 0.0
      %1215 = vmatprep.subr.mxu0 0.0
      %1216 = vmatpush1.msra.mxu0 0.0
      %1217 = vmatprep.subr.mxu0 0.0
      %1218 = vmatpush1.msra.mxu0 0.0
      %1219 = vmatprep.subr.mxu0 0.0
      %1220 = vmatpush1.msra.mxu0 0.0
      %1221 = vmatprep.subr.mxu0 0.0
      %1222 = vmatpush1.msra.mxu0 0.0
      %1223 = vmatprep.subr.mxu0 0.0
      %1224 = vmatpush1.msra.mxu0 0.0
      %1225 = vmatprep.subr.mxu0 0.0
      %1226 = vmatpush1.msra.mxu0 0.0
      %1227 = vmatprep.subr.mxu0 0.0
      %1228 = vmatpush1.msra.mxu0 0.0
      %1229 = vmatprep.subr.mxu0 0.0
      %1230 = vmatpush1.msra.mxu0 0.0
      %1231 = vmatprep.subr.mxu0 0.0
      %1232 = vmatpush1.msra.mxu0 0.0
      %1233 = vmatprep.subr.mxu0 %v1124
      %1234 = vmatpush1.msra.mxu0 %v1123
      %1235 = vmatprep.subr.mxu0 0.0
      %1236 = vmatpush2.msra.mxu0 0.0
      %1237 = vmatprep.subr.mxu0 0.0
      %1238 = vmatpush2.msra.mxu0 0.0
      %1239 = vmatprep.subr.mxu0 0.0
      %1240 = vmatpush2.msra.mxu0 0.0
      %1241 = vmatprep.subr.mxu0 0.0
      %1242 = vmatpush2.msra.mxu0 0.0
      %1243 = vmatprep.subr.mxu0 0.0
      %1244 = vmatpush2.msra.mxu0 0.0
      %1245 = vmatprep.subr.mxu0 0.0
      %1246 = vmatpush2.msra.mxu0 0.0
      %1247 = vmatprep.subr.mxu0 0.0
      %1248 = vmatpush2.msra.mxu0 0.0
      %1249 = vmatprep.subr.mxu0 0.0
      %1250 = vmatpush2.msra.mxu0 0.0
      %1251 = vmatprep.subr.mxu0 0.0
      %1252 = vmatpush2.msra.mxu0 0.0
      %1253 = vmatprep.subr.mxu0 0.0
      %1254 = vmatpush2.msra.mxu0 0.0
      %1255 = vmatprep.subr.mxu0 0.0
      %1256 = vmatpush2.msra.mxu0 0.0
      %1257 = vmatprep.subr.mxu0 0.0
      %1258 = vmatpush2.msra.mxu0 0.0
      %1259 = vmatprep.subr.mxu0 0.0
      %1260 = vmatpush2.msra.mxu0 0.0
      %1261 = vmatprep.subr.mxu0 0.0
      %1262 = vmatpush2.msra.mxu0 0.0
      %1263 = vmatprep.subr.mxu0 0.0
      %1264 = vmatpush2.msra.mxu0 0.0
      %1265 = vmatprep.subr.mxu0 0.0
      %1266 = vmatpush2.msra.mxu0 0.0
      %1267 = vmatprep.mubr.f32.mxu0 0.0
      %1268 = vmatmul.mubr.f32.gmra.mxu0 %v1130
      %v1269 = vpop.f32.mrf.mxu0
      %v1270 = vadd.f32 0.0, %v1269
      %v1271 = vpop.f32.mrf.mxu0
      %v1272 = vadd.f32 0.0, %v1271
      %1273 = vdwg.mxu0
      %v1274 = vadd.f32 %v1104, %v1199
      %v1275 = vadd.f32 %v1105, %v1201
      %v1276 = vadd.f32 %v1106, %v1270
      %v1277 = vadd.f32 %v1107, %v1272
      %s1278 = scalar_lea.vmem %s7, 32
      %v1279 = vld [vmem:[%s1278] sm:$0xff]
      %1280 = vrot.lane.b32.xlu0 %v546, 100
      %v1281 = vpop.permute.xlu0 %1280
      %1282 = vrot.lane.b32.xlu0 %v585, 100
      %v1283 = vpop.permute.xlu0 %1282
      %1284 = vrot.lane.b32.xlu0 %v586, 100
      %v1285 = vpop.permute.xlu0 %1284
      %1286 = vrot.lane.b32.xlu0 %v587, 100
      %v1287 = vpop.permute.xlu0 %1286
      %1288 = vrot.lane.b32.xlu0 %v588, 100
      %v1289 = vpop.permute.xlu0 %1288
      %vm1290 = vcmask 818176
      %v1291 = vsel %vm1290, %v1281, %v1283
      %v1292 = vsel %vm1290, %v1283, %v1285
      %v1293 = vsel %vm1290, %v1285, %v1287
      %v1294 = vsel %vm1290, %v1287, %v1289
      %v1300 = vsel %vm628, %v1279, 0
      %1302 = vmatprep.subr.mxu0 0.0
      %1303 = vmatpush1.msra.mxu0 0.0
      %1304 = vmatprep.subr.mxu0 0.0
      %1305 = vmatpush1.msra.mxu0 0.0
      %1306 = vmatprep.subr.mxu0 0.0
      %1307 = vmatpush1.msra.mxu0 0.0
      %1308 = vmatprep.subr.mxu0 0.0
      %1309 = vmatpush1.msra.mxu0 0.0
      %1310 = vmatprep.subr.mxu0 0.0
      %1311 = vmatpush1.msra.mxu0 0.0
      %1312 = vmatprep.subr.mxu0 0.0
      %1313 = vmatpush1.msra.mxu0 0.0
      %1314 = vmatprep.subr.mxu0 0.0
      %1315 = vmatpush1.msra.mxu0 0.0
      %1316 = vmatprep.subr.mxu0 0.0
      %1317 = vmatpush1.msra.mxu0 0.0
      %1318 = vmatprep.subr.mxu0 0.0
      %1319 = vmatpush1.msra.mxu0 0.0
      %1320 = vmatprep.subr.mxu0 0.0
      %1321 = vmatpush1.msra.mxu0 0.0
      %1322 = vmatprep.subr.mxu0 0.0
      %1323 = vmatpush1.msra.mxu0 0.0
      %1324 = vmatprep.subr.mxu0 0.0
      %1325 = vmatpush1.msra.mxu0 0.0
      %1326 = vmatprep.subr.mxu0 0.0
      %1327 = vmatpush1.msra.mxu0 0.0
      %1328 = vmatprep.subr.mxu0 0.0
      %1329 = vmatpush1.msra.mxu0 0.0
      %1330 = vmatprep.subr.mxu0 0.0
      %1331 = vmatpush1.msra.mxu0 0.0
      %1332 = vmatprep.subr.mxu0 %v1292
      %1333 = vmatpush1.msra.mxu0 %v1291
      %1334 = vmatprep.subr.mxu0 0.0
      %1335 = vmatpush2.msra.mxu0 0.0
      %1336 = vmatprep.subr.mxu0 0.0
      %1337 = vmatpush2.msra.mxu0 0.0
      %1338 = vmatprep.subr.mxu0 0.0
      %1339 = vmatpush2.msra.mxu0 0.0
      %1340 = vmatprep.subr.mxu0 0.0
      %1341 = vmatpush2.msra.mxu0 0.0
      %1342 = vmatprep.subr.mxu0 0.0
      %1343 = vmatpush2.msra.mxu0 0.0
      %1344 = vmatprep.subr.mxu0 0.0
      %1345 = vmatpush2.msra.mxu0 0.0
      %1346 = vmatprep.subr.mxu0 0.0
      %1347 = vmatpush2.msra.mxu0 0.0
      %1348 = vmatprep.subr.mxu0 0.0
      %1349 = vmatpush2.msra.mxu0 0.0
      %1350 = vmatprep.subr.mxu0 0.0
      %1351 = vmatpush2.msra.mxu0 0.0
      %1352 = vmatprep.subr.mxu0 0.0
      %1353 = vmatpush2.msra.mxu0 0.0
      %1354 = vmatprep.subr.mxu0 0.0
      %1355 = vmatpush2.msra.mxu0 0.0
      %1356 = vmatprep.subr.mxu0 0.0
      %1357 = vmatpush2.msra.mxu0 0.0
      %1358 = vmatprep.subr.mxu0 0.0
      %1359 = vmatpush2.msra.mxu0 0.0
      %1360 = vmatprep.subr.mxu0 0.0
      %1361 = vmatpush2.msra.mxu0 0.0
      %1362 = vmatprep.subr.mxu0 0.0
      %1363 = vmatpush2.msra.mxu0 0.0
      %1364 = vmatprep.subr.mxu0 0.0
      %1365 = vmatpush2.msra.mxu0 0.0
      %1366 = vmatprep.mubr.f32.mxu0 0.0
      %1367 = vmatmul.mubr.f32.gmra.mxu0 %v1300
      %v1368 = vpop.f32.mrf.mxu0
      %v1369 = vadd.f32 0.0, %v1368
      %v1370 = vpop.f32.mrf.mxu0
      %v1371 = vadd.f32 0.0, %v1370
      %1372 = vdwg.mxu0
      %1373 = vmatprep.subr.mxu0 0.0
      %1374 = vmatpush1.msra.mxu0 0.0
      %1375 = vmatprep.subr.mxu0 0.0
      %1376 = vmatpush1.msra.mxu0 0.0
      %1377 = vmatprep.subr.mxu0 0.0
      %1378 = vmatpush1.msra.mxu0 0.0
      %1379 = vmatprep.subr.mxu0 0.0
      %1380 = vmatpush1.msra.mxu0 0.0
      %1381 = vmatprep.subr.mxu0 0.0
      %1382 = vmatpush1.msra.mxu0 0.0
      %1383 = vmatprep.subr.mxu0 0.0
      %1384 = vmatpush1.msra.mxu0 0.0
      %1385 = vmatprep.subr.mxu0 0.0
      %1386 = vmatpush1.msra.mxu0 0.0
      %1387 = vmatprep.subr.mxu0 0.0
      %1388 = vmatpush1.msra.mxu0 0.0
      %1389 = vmatprep.subr.mxu0 0.0
      %1390 = vmatpush1.msra.mxu0 0.0
      %1391 = vmatprep.subr.mxu0 0.0
      %1392 = vmatpush1.msra.mxu0 0.0
      %1393 = vmatprep.subr.mxu0 0.0
      %1394 = vmatpush1.msra.mxu0 0.0
      %1395 = vmatprep.subr.mxu0 0.0
      %1396 = vmatpush1.msra.mxu0 0.0
      %1397 = vmatprep.subr.mxu0 0.0
      %1398 = vmatpush1.msra.mxu0 0.0
      %1399 = vmatprep.subr.mxu0 0.0
      %1400 = vmatpush1.msra.mxu0 0.0
      %1401 = vmatprep.subr.mxu0 0.0
      %1402 = vmatpush1.msra.mxu0 0.0
      %1403 = vmatprep.subr.mxu0 %v1294
      %1404 = vmatpush1.msra.mxu0 %v1293
      %1405 = vmatprep.subr.mxu0 0.0
      %1406 = vmatpush2.msra.mxu0 0.0
      %1407 = vmatprep.subr.mxu0 0.0
      %1408 = vmatpush2.msra.mxu0 0.0
      %1409 = vmatprep.subr.mxu0 0.0
      %1410 = vmatpush2.msra.mxu0 0.0
      %1411 = vmatprep.subr.mxu0 0.0
      %1412 = vmatpush2.msra.mxu0 0.0
      %1413 = vmatprep.subr.mxu0 0.0
      %1414 = vmatpush2.msra.mxu0 0.0
      %1415 = vmatprep.subr.mxu0 0.0
      %1416 = vmatpush2.msra.mxu0 0.0
      %1417 = vmatprep.subr.mxu0 0.0
      %1418 = vmatpush2.msra.mxu0 0.0
      %1419 = vmatprep.subr.mxu0 0.0
      %1420 = vmatpush2.msra.mxu0 0.0
      %1421 = vmatprep.subr.mxu0 0.0
      %1422 = vmatpush2.msra.mxu0 0.0
      %1423 = vmatprep.subr.mxu0 0.0
      %1424 = vmatpush2.msra.mxu0 0.0
      %1425 = vmatprep.subr.mxu0 0.0
      %1426 = vmatpush2.msra.mxu0 0.0
      %1427 = vmatprep.subr.mxu0 0.0
      %1428 = vmatpush2.msra.mxu0 0.0
      %1429 = vmatprep.subr.mxu0 0.0
      %1430 = vmatpush2.msra.mxu0 0.0
      %1431 = vmatprep.subr.mxu0 0.0
      %1432 = vmatpush2.msra.mxu0 0.0
      %1433 = vmatprep.subr.mxu0 0.0
      %1434 = vmatpush2.msra.mxu0 0.0
      %1435 = vmatprep.subr.mxu0 0.0
      %1436 = vmatpush2.msra.mxu0 0.0
      %1437 = vmatprep.mubr.f32.mxu0 0.0
      %1438 = vmatmul.mubr.f32.gmra.mxu0 %v1300
      %v1439 = vpop.f32.mrf.mxu0
      %v1440 = vadd.f32 0.0, %v1439
      %v1441 = vpop.f32.mrf.mxu0
      %v1442 = vadd.f32 0.0, %v1441
      %1443 = vdwg.mxu0
      %v1444 = vadd.f32 %v1274, %v1369
      %v1445 = vadd.f32 %v1275, %v1371
      %v1446 = vadd.f32 %v1276, %v1440
      %v1447 = vadd.f32 %v1277, %v1442
      %s1448 = scalar_lea.vmem %s7, 40
      %v1449 = vld [vmem:[%s1448] sm:$0xff]
      %1450 = vrot.lane.b32.xlu0 %v546, 99
      %v1451 = vpop.permute.xlu0 %1450
      %1452 = vrot.lane.b32.xlu0 %v585, 99
      %v1453 = vpop.permute.xlu0 %1452
      %1454 = vrot.lane.b32.xlu0 %v586, 99
      %v1455 = vpop.permute.xlu0 %1454
      %1456 = vrot.lane.b32.xlu0 %v587, 99
      %v1457 = vpop.permute.xlu0 %1456
      %1458 = vrot.lane.b32.xlu0 %v588, 99
      %v1459 = vpop.permute.xlu0 %1458
      %vm1460 = vcmask 809984
      %v1461 = vsel %vm1460, %v1451, %v1453
      %v1462 = vsel %vm1460, %v1453, %v1455
      %v1463 = vsel %vm1460, %v1455, %v1457
      %v1464 = vsel %vm1460, %v1457, %v1459
      %v1470 = vsel %vm628, %v1449, 0
      %1472 = vmatprep.subr.mxu0 0.0
      %1473 = vmatpush1.msra.mxu0 0.0
      %1474 = vmatprep.subr.mxu0 0.0
      %1475 = vmatpush1.msra.mxu0 0.0
      %1476 = vmatprep.subr.mxu0 0.0
      %1477 = vmatpush1.msra.mxu0 0.0
      %1478 = vmatprep.subr.mxu0 0.0
      %1479 = vmatpush1.msra.mxu0 0.0
      %1480 = vmatprep.subr.mxu0 0.0
      %1481 = vmatpush1.msra.mxu0 0.0
      %1482 = vmatprep.subr.mxu0 0.0
      %1483 = vmatpush1.msra.mxu0 0.0
      %1484 = vmatprep.subr.mxu0 0.0
      %1485 = vmatpush1.msra.mxu0 0.0
      %1486 = vmatprep.subr.mxu0 0.0
      %1487 = vmatpush1.msra.mxu0 0.0
      %1488 = vmatprep.subr.mxu0 0.0
      %1489 = vmatpush1.msra.mxu0 0.0
      %1490 = vmatprep.subr.mxu0 0.0
      %1491 = vmatpush1.msra.mxu0 0.0
      %1492 = vmatprep.subr.mxu0 0.0
      %1493 = vmatpush1.msra.mxu0 0.0
      %1494 = vmatprep.subr.mxu0 0.0
      %1495 = vmatpush1.msra.mxu0 0.0
      %1496 = vmatprep.subr.mxu0 0.0
      %1497 = vmatpush1.msra.mxu0 0.0
      %1498 = vmatprep.subr.mxu0 0.0
      %1499 = vmatpush1.msra.mxu0 0.0
      %1500 = vmatprep.subr.mxu0 0.0
      %1501 = vmatpush1.msra.mxu0 0.0
      %1502 = vmatprep.subr.mxu0 %v1462
      %1503 = vmatpush1.msra.mxu0 %v1461
      %1504 = vmatprep.subr.mxu0 0.0
      %1505 = vmatpush2.msra.mxu0 0.0
      %1506 = vmatprep.subr.mxu0 0.0
      %1507 = vmatpush2.msra.mxu0 0.0
      %1508 = vmatprep.subr.mxu0 0.0
      %1509 = vmatpush2.msra.mxu0 0.0
      %1510 = vmatprep.subr.mxu0 0.0
      %1511 = vmatpush2.msra.mxu0 0.0
      %1512 = vmatprep.subr.mxu0 0.0
      %1513 = vmatpush2.msra.mxu0 0.0
      %1514 = vmatprep.subr.mxu0 0.0
      %1515 = vmatpush2.msra.mxu0 0.0
      %1516 = vmatprep.subr.mxu0 0.0
      %1517 = vmatpush2.msra.mxu0 0.0
      %1518 = vmatprep.subr.mxu0 0.0
      %1519 = vmatpush2.msra.mxu0 0.0
      %1520 = vmatprep.subr.mxu0 0.0
      %1521 = vmatpush2.msra.mxu0 0.0
      %1522 = vmatprep.subr.mxu0 0.0
      %1523 = vmatpush2.msra.mxu0 0.0
      %1524 = vmatprep.subr.mxu0 0.0
      %1525 = vmatpush2.msra.mxu0 0.0
      %1526 = vmatprep.subr.mxu0 0.0
      %1527 = vmatpush2.msra.mxu0 0.0
      %1528 = vmatprep.subr.mxu0 0.0
      %1529 = vmatpush2.msra.mxu0 0.0
      %1530 = vmatprep.subr.mxu0 0.0
      %1531 = vmatpush2.msra.mxu0 0.0
      %1532 = vmatprep.subr.mxu0 0.0
      %1533 = vmatpush2.msra.mxu0 0.0
      %1534 = vmatprep.subr.mxu0 0.0
      %1535 = vmatpush2.msra.mxu0 0.0
      %1536 = vmatprep.mubr.f32.mxu0 0.0
      %1537 = vmatmul.mubr.f32.gmra.mxu0 %v1470
      %v1538 = vpop.f32.mrf.mxu0
      %v1539 = vadd.f32 0.0, %v1538
      %v1540 = vpop.f32.mrf.mxu0
      %v1541 = vadd.f32 0.0, %v1540
      %1542 = vdwg.mxu0
      %1543 = vmatprep.subr.mxu0 0.0
      %1544 = vmatpush1.msra.mxu0 0.0
      %1545 = vmatprep.subr.mxu0 0.0
      %1546 = vmatpush1.msra.mxu0 0.0
      %1547 = vmatprep.subr.mxu0 0.0
      %1548 = vmatpush1.msra.mxu0 0.0
      %1549 = vmatprep.subr.mxu0 0.0
      %1550 = vmatpush1.msra.mxu0 0.0
      %1551 = vmatprep.subr.mxu0 0.0
      %1552 = vmatpush1.msra.mxu0 0.0
      %1553 = vmatprep.subr.mxu0 0.0
      %1554 = vmatpush1.msra.mxu0 0.0
      %1555 = vmatprep.subr.mxu0 0.0
      %1556 = vmatpush1.msra.mxu0 0.0
      %1557 = vmatprep.subr.mxu0 0.0
      %1558 = vmatpush1.msra.mxu0 0.0
      %1559 = vmatprep.subr.mxu0 0.0
      %1560 = vmatpush1.msra.mxu0 0.0
      %1561 = vmatprep.subr.mxu0 0.0
      %1562 = vmatpush1.msra.mxu0 0.0
      %1563 = vmatprep.subr.mxu0 0.0
      %1564 = vmatpush1.msra.mxu0 0.0
      %1565 = vmatprep.subr.mxu0 0.0
      %1566 = vmatpush1.msra.mxu0 0.0
      %1567 = vmatprep.subr.mxu0 0.0
      %1568 = vmatpush1.msra.mxu0 0.0
      %1569 = vmatprep.subr.mxu0 0.0
      %1570 = vmatpush1.msra.mxu0 0.0
      %1571 = vmatprep.subr.mxu0 0.0
      %1572 = vmatpush1.msra.mxu0 0.0
      %1573 = vmatprep.subr.mxu0 %v1464
      %1574 = vmatpush1.msra.mxu0 %v1463
      %1575 = vmatprep.subr.mxu0 0.0
      %1576 = vmatpush2.msra.mxu0 0.0
      %1577 = vmatprep.subr.mxu0 0.0
      %1578 = vmatpush2.msra.mxu0 0.0
      %1579 = vmatprep.subr.mxu0 0.0
      %1580 = vmatpush2.msra.mxu0 0.0
      %1581 = vmatprep.subr.mxu0 0.0
      %1582 = vmatpush2.msra.mxu0 0.0
      %1583 = vmatprep.subr.mxu0 0.0
      %1584 = vmatpush2.msra.mxu0 0.0
      %1585 = vmatprep.subr.mxu0 0.0
      %1586 = vmatpush2.msra.mxu0 0.0
      %1587 = vmatprep.subr.mxu0 0.0
      %1588 = vmatpush2.msra.mxu0 0.0
      %1589 = vmatprep.subr.mxu0 0.0
      %1590 = vmatpush2.msra.mxu0 0.0
      %1591 = vmatprep.subr.mxu0 0.0
      %1592 = vmatpush2.msra.mxu0 0.0
      %1593 = vmatprep.subr.mxu0 0.0
      %1594 = vmatpush2.msra.mxu0 0.0
      %1595 = vmatprep.subr.mxu0 0.0
      %1596 = vmatpush2.msra.mxu0 0.0
      %1597 = vmatprep.subr.mxu0 0.0
      %1598 = vmatpush2.msra.mxu0 0.0
      %1599 = vmatprep.subr.mxu0 0.0
      %1600 = vmatpush2.msra.mxu0 0.0
      %1601 = vmatprep.subr.mxu0 0.0
      %1602 = vmatpush2.msra.mxu0 0.0
      %1603 = vmatprep.subr.mxu0 0.0
      %1604 = vmatpush2.msra.mxu0 0.0
      %1605 = vmatprep.subr.mxu0 0.0
      %1606 = vmatpush2.msra.mxu0 0.0
      %1607 = vmatprep.mubr.f32.mxu0 0.0
      %1608 = vmatmul.mubr.f32.gmra.mxu0 %v1470
      %v1609 = vpop.f32.mrf.mxu0
      %v1610 = vadd.f32 0.0, %v1609
      %v1611 = vpop.f32.mrf.mxu0
      %v1612 = vadd.f32 0.0, %v1611
      %1613 = vdwg.mxu0
      %v1614 = vadd.f32 %v1444, %v1539
      %v1615 = vadd.f32 %v1445, %v1541
      %v1616 = vadd.f32 %v1446, %v1610
      %v1617 = vadd.f32 %v1447, %v1612
      %s1618 = scalar_lea.vmem %s7, 48
      %v1619 = vld [vmem:[%s1618] sm:$0xff]
      %1620 = vrot.lane.b32.xlu0 %v546, 91
      %v1621 = vpop.permute.xlu0 %1620
      %1622 = vrot.lane.b32.xlu0 %v585, 91
      %v1623 = vpop.permute.xlu0 %1622
      %1624 = vrot.lane.b32.xlu0 %v586, 91
      %v1625 = vpop.permute.xlu0 %1624
      %1626 = vrot.lane.b32.xlu0 %v587, 91
      %v1627 = vpop.permute.xlu0 %1626
      %1628 = vrot.lane.b32.xlu0 %v588, 91
      %v1629 = vpop.permute.xlu0 %1628
      %vm1630 = vcmask 744448
      %v1631 = vsel %vm1630, %v1621, %v1623
      %v1632 = vsel %vm1630, %v1623, %v1625
      %v1633 = vsel %vm1630, %v1625, %v1627
      %v1634 = vsel %vm1630, %v1627, %v1629
      %v1640 = vsel %vm628, %v1619, 0
      %1642 = vmatprep.subr.mxu0 0.0
      %1643 = vmatpush1.msra.mxu0 0.0
      %1644 = vmatprep.subr.mxu0 0.0
      %1645 = vmatpush1.msra.mxu0 0.0
      %1646 = vmatprep.subr.mxu0 0.0
      %1647 = vmatpush1.msra.mxu0 0.0
      %1648 = vmatprep.subr.mxu0 0.0
      %1649 = vmatpush1.msra.mxu0 0.0
      %1650 = vmatprep.subr.mxu0 0.0
      %1651 = vmatpush1.msra.mxu0 0.0
      %1652 = vmatprep.subr.mxu0 0.0
      %1653 = vmatpush1.msra.mxu0 0.0
      %1654 = vmatprep.subr.mxu0 0.0
      %1655 = vmatpush1.msra.mxu0 0.0
      %1656 = vmatprep.subr.mxu0 0.0
      %1657 = vmatpush1.msra.mxu0 0.0
      %1658 = vmatprep.subr.mxu0 0.0
      %1659 = vmatpush1.msra.mxu0 0.0
      %1660 = vmatprep.subr.mxu0 0.0
      %1661 = vmatpush1.msra.mxu0 0.0
      %1662 = vmatprep.subr.mxu0 0.0
      %1663 = vmatpush1.msra.mxu0 0.0
      %1664 = vmatprep.subr.mxu0 0.0
      %1665 = vmatpush1.msra.mxu0 0.0
      %1666 = vmatprep.subr.mxu0 0.0
      %1667 = vmatpush1.msra.mxu0 0.0
      %1668 = vmatprep.subr.mxu0 0.0
      %1669 = vmatpush1.msra.mxu0 0.0
      %1670 = vmatprep.subr.mxu0 0.0
      %1671 = vmatpush1.msra.mxu0 0.0
      %1672 = vmatprep.subr.mxu0 %v1632
      %1673 = vmatpush1.msra.mxu0 %v1631
      %1674 = vmatprep.subr.mxu0 0.0
      %1675 = vmatpush2.msra.mxu0 0.0
      %1676 = vmatprep.subr.mxu0 0.0
      %1677 = vmatpush2.msra.mxu0 0.0
      %1678 = vmatprep.subr.mxu0 0.0
      %1679 = vmatpush2.msra.mxu0 0.0
      %1680 = vmatprep.subr.mxu0 0.0
      %1681 = vmatpush2.msra.mxu0 0.0
      %1682 = vmatprep.subr.mxu0 0.0
      %1683 = vmatpush2.msra.mxu0 0.0
      %1684 = vmatprep.subr.mxu0 0.0
      %1685 = vmatpush2.msra.mxu0 0.0
      %1686 = vmatprep.subr.mxu0 0.0
      %1687 = vmatpush2.msra.mxu0 0.0
      %1688 = vmatprep.subr.mxu0 0.0
      %1689 = vmatpush2.msra.mxu0 0.0
      %1690 = vmatprep.subr.mxu0 0.0
      %1691 = vmatpush2.msra.mxu0 0.0
      %1692 = vmatprep.subr.mxu0 0.0
      %1693 = vmatpush2.msra.mxu0 0.0
      %1694 = vmatprep.subr.mxu0 0.0
      %1695 = vmatpush2.msra.mxu0 0.0
      %1696 = vmatprep.subr.mxu0 0.0
      %1697 = vmatpush2.msra.mxu0 0.0
      %1698 = vmatprep.subr.mxu0 0.0
      %1699 = vmatpush2.msra.mxu0 0.0
      %1700 = vmatprep.subr.mxu0 0.0
      %1701 = vmatpush2.msra.mxu0 0.0
      %1702 = vmatprep.subr.mxu0 0.0
      %1703 = vmatpush2.msra.mxu0 0.0
      %1704 = vmatprep.subr.mxu0 0.0
      %1705 = vmatpush2.msra.mxu0 0.0
      %1706 = vmatprep.mubr.f32.mxu0 0.0
      %1707 = vmatmul.mubr.f32.gmra.mxu0 %v1640
      %v1708 = vpop.f32.mrf.mxu0
      %v1709 = vadd.f32 0.0, %v1708
      %v1710 = vpop.f32.mrf.mxu0
      %v1711 = vadd.f32 0.0, %v1710
      %1712 = vdwg.mxu0
      %1713 = vmatprep.subr.mxu0 0.0
      %1714 = vmatpush1.msra.mxu0 0.0
      %1715 = vmatprep.subr.mxu0 0.0
      %1716 = vmatpush1.msra.mxu0 0.0
      %1717 = vmatprep.subr.mxu0 0.0
      %1718 = vmatpush1.msra.mxu0 0.0
      %1719 = vmatprep.subr.mxu0 0.0
      %1720 = vmatpush1.msra.mxu0 0.0
      %1721 = vmatprep.subr.mxu0 0.0
      %1722 = vmatpush1.msra.mxu0 0.0
      %1723 = vmatprep.subr.mxu0 0.0
      %1724 = vmatpush1.msra.mxu0 0.0
      %1725 = vmatprep.subr.mxu0 0.0
      %1726 = vmatpush1.msra.mxu0 0.0
      %1727 = vmatprep.subr.mxu0 0.0
      %1728 = vmatpush1.msra.mxu0 0.0
      %1729 = vmatprep.subr.mxu0 0.0
      %1730 = vmatpush1.msra.mxu0 0.0
      %1731 = vmatprep.subr.mxu0 0.0
      %1732 = vmatpush1.msra.mxu0 0.0
      %1733 = vmatprep.subr.mxu0 0.0
      %1734 = vmatpush1.msra.mxu0 0.0
      %1735 = vmatprep.subr.mxu0 0.0
      %1736 = vmatpush1.msra.mxu0 0.0
      %1737 = vmatprep.subr.mxu0 0.0
      %1738 = vmatpush1.msra.mxu0 0.0
      %1739 = vmatprep.subr.mxu0 0.0
      %1740 = vmatpush1.msra.mxu0 0.0
      %1741 = vmatprep.subr.mxu0 0.0
      %1742 = vmatpush1.msra.mxu0 0.0
      %1743 = vmatprep.subr.mxu0 %v1634
      %1744 = vmatpush1.msra.mxu0 %v1633
      %1745 = vmatprep.subr.mxu0 0.0
      %1746 = vmatpush2.msra.mxu0 0.0
      %1747 = vmatprep.subr.mxu0 0.0
      %1748 = vmatpush2.msra.mxu0 0.0
      %1749 = vmatprep.subr.mxu0 0.0
      %1750 = vmatpush2.msra.mxu0 0.0
      %1751 = vmatprep.subr.mxu0 0.0
      %1752 = vmatpush2.msra.mxu0 0.0
      %1753 = vmatprep.subr.mxu0 0.0
      %1754 = vmatpush2.msra.mxu0 0.0
      %1755 = vmatprep.subr.mxu0 0.0
      %1756 = vmatpush2.msra.mxu0 0.0
      %1757 = vmatprep.subr.mxu0 0.0
      %1758 = vmatpush2.msra.mxu0 0.0
      %1759 = vmatprep.subr.mxu0 0.0
      %1760 = vmatpush2.msra.mxu0 0.0
      %1761 = vmatprep.subr.mxu0 0.0
      %1762 = vmatpush2.msra.mxu0 0.0
      %1763 = vmatprep.subr.mxu0 0.0
      %1764 = vmatpush2.msra.mxu0 0.0
      %1765 = vmatprep.subr.mxu0 0.0
      %1766 = vmatpush2.msra.mxu0 0.0
      %1767 = vmatprep.subr.mxu0 0.0
      %1768 = vmatpush2.msra.mxu0 0.0
      %1769 = vmatprep.subr.mxu0 0.0
      %1770 = vmatpush2.msra.mxu0 0.0
      %1771 = vmatprep.subr.mxu0 0.0
      %1772 = vmatpush2.msra.mxu0 0.0
      %1773 = vmatprep.subr.mxu0 0.0
      %1774 = vmatpush2.msra.mxu0 0.0
      %1775 = vmatprep.subr.mxu0 0.0
      %1776 = vmatpush2.msra.mxu0 0.0
      %1777 = vmatprep.mubr.f32.mxu0 0.0
      %1778 = vmatmul.mubr.f32.gmra.mxu0 %v1640
      %v1779 = vpop.f32.mrf.mxu0
      %v1780 = vadd.f32 0.0, %v1779
      %v1781 = vpop.f32.mrf.mxu0
      %v1782 = vadd.f32 0.0, %v1781
      %1783 = vdwg.mxu0
      %v1784 = vadd.f32 %v1614, %v1709
      %v1785 = vadd.f32 %v1615, %v1711
      %v1786 = vadd.f32 %v1616, %v1780
      %v1787 = vadd.f32 %v1617, %v1782
      %s1788 = scalar_lea.vmem %s7, 56
      %v1789 = vld [vmem:[%s1788] sm:$0xff]
      %1790 = vrot.lane.b32.xlu0 %v546, 90
      %v1791 = vpop.permute.xlu0 %1790
      %1792 = vrot.lane.b32.xlu0 %v585, 90
      %v1793 = vpop.permute.xlu0 %1792
      %1794 = vrot.lane.b32.xlu0 %v586, 90
      %v1795 = vpop.permute.xlu0 %1794
      %1796 = vrot.lane.b32.xlu0 %v587, 90
      %v1797 = vpop.permute.xlu0 %1796
      %1798 = vrot.lane.b32.xlu0 %v588, 90
      %v1799 = vpop.permute.xlu0 %1798
      %vm1800 = vcmask 736256
      %v1801 = vsel %vm1800, %v1791, %v1793
      %v1802 = vsel %vm1800, %v1793, %v1795
      %v1803 = vsel %vm1800, %v1795, %v1797
      %v1804 = vsel %vm1800, %v1797, %v1799
      %v1810 = vsel %vm628, %v1789, 0
      %1812 = vmatprep.subr.mxu0 0.0
      %1813 = vmatpush1.msra.mxu0 0.0
      %1814 = vmatprep.subr.mxu0 0.0
      %1815 = vmatpush1.msra.mxu0 0.0
      %1816 = vmatprep.subr.mxu0 0.0
      %1817 = vmatpush1.msra.mxu0 0.0
      %1818 = vmatprep.subr.mxu0 0.0
      %1819 = vmatpush1.msra.mxu0 0.0
      %1820 = vmatprep.subr.mxu0 0.0
      %1821 = vmatpush1.msra.mxu0 0.0
      %1822 = vmatprep.subr.mxu0 0.0
      %1823 = vmatpush1.msra.mxu0 0.0
      %1824 = vmatprep.subr.mxu0 0.0
      %1825 = vmatpush1.msra.mxu0 0.0
      %1826 = vmatprep.subr.mxu0 0.0
      %1827 = vmatpush1.msra.mxu0 0.0
      %1828 = vmatprep.subr.mxu0 0.0
      %1829 = vmatpush1.msra.mxu0 0.0
      %1830 = vmatprep.subr.mxu0 0.0
      %1831 = vmatpush1.msra.mxu0 0.0
      %1832 = vmatprep.subr.mxu0 0.0
      %1833 = vmatpush1.msra.mxu0 0.0
      %1834 = vmatprep.subr.mxu0 0.0
      %1835 = vmatpush1.msra.mxu0 0.0
      %1836 = vmatprep.subr.mxu0 0.0
      %1837 = vmatpush1.msra.mxu0 0.0
      %1838 = vmatprep.subr.mxu0 0.0
      %1839 = vmatpush1.msra.mxu0 0.0
      %1840 = vmatprep.subr.mxu0 0.0
      %1841 = vmatpush1.msra.mxu0 0.0
      %1842 = vmatprep.subr.mxu0 %v1802
      %1843 = vmatpush1.msra.mxu0 %v1801
      %1844 = vmatprep.subr.mxu0 0.0
      %1845 = vmatpush2.msra.mxu0 0.0
      %1846 = vmatprep.subr.mxu0 0.0
      %1847 = vmatpush2.msra.mxu0 0.0
      %1848 = vmatprep.subr.mxu0 0.0
      %1849 = vmatpush2.msra.mxu0 0.0
      %1850 = vmatprep.subr.mxu0 0.0
      %1851 = vmatpush2.msra.mxu0 0.0
      %1852 = vmatprep.subr.mxu0 0.0
      %1853 = vmatpush2.msra.mxu0 0.0
      %1854 = vmatprep.subr.mxu0 0.0
      %1855 = vmatpush2.msra.mxu0 0.0
      %1856 = vmatprep.subr.mxu0 0.0
      %1857 = vmatpush2.msra.mxu0 0.0
      %1858 = vmatprep.subr.mxu0 0.0
      %1859 = vmatpush2.msra.mxu0 0.0
      %1860 = vmatprep.subr.mxu0 0.0
      %1861 = vmatpush2.msra.mxu0 0.0
      %1862 = vmatprep.subr.mxu0 0.0
      %1863 = vmatpush2.msra.mxu0 0.0
      %1864 = vmatprep.subr.mxu0 0.0
      %1865 = vmatpush2.msra.mxu0 0.0
      %1866 = vmatprep.subr.mxu0 0.0
      %1867 = vmatpush2.msra.mxu0 0.0
      %1868 = vmatprep.subr.mxu0 0.0
      %1869 = vmatpush2.msra.mxu0 0.0
      %1870 = vmatprep.subr.mxu0 0.0
      %1871 = vmatpush2.msra.mxu0 0.0
      %1872 = vmatprep.subr.mxu0 0.0
      %1873 = vmatpush2.msra.mxu0 0.0
      %1874 = vmatprep.subr.mxu0 0.0
      %1875 = vmatpush2.msra.mxu0 0.0
      %1876 = vmatprep.mubr.f32.mxu0 0.0
      %1877 = vmatmul.mubr.f32.gmra.mxu0 %v1810
      %v1878 = vpop.f32.mrf.mxu0
      %v1879 = vadd.f32 0.0, %v1878
      %v1880 = vpop.f32.mrf.mxu0
      %v1881 = vadd.f32 0.0, %v1880
      %1882 = vdwg.mxu0
      %1883 = vmatprep.subr.mxu0 0.0
      %1884 = vmatpush1.msra.mxu0 0.0
      %1885 = vmatprep.subr.mxu0 0.0
      %1886 = vmatpush1.msra.mxu0 0.0
      %1887 = vmatprep.subr.mxu0 0.0
      %1888 = vmatpush1.msra.mxu0 0.0
      %1889 = vmatprep.subr.mxu0 0.0
      %1890 = vmatpush1.msra.mxu0 0.0
      %1891 = vmatprep.subr.mxu0 0.0
      %1892 = vmatpush1.msra.mxu0 0.0
      %1893 = vmatprep.subr.mxu0 0.0
      %1894 = vmatpush1.msra.mxu0 0.0
      %1895 = vmatprep.subr.mxu0 0.0
      %1896 = vmatpush1.msra.mxu0 0.0
      %1897 = vmatprep.subr.mxu0 0.0
      %1898 = vmatpush1.msra.mxu0 0.0
      %1899 = vmatprep.subr.mxu0 0.0
      %1900 = vmatpush1.msra.mxu0 0.0
      %1901 = vmatprep.subr.mxu0 0.0
      %1902 = vmatpush1.msra.mxu0 0.0
      %1903 = vmatprep.subr.mxu0 0.0
      %1904 = vmatpush1.msra.mxu0 0.0
      %1905 = vmatprep.subr.mxu0 0.0
      %1906 = vmatpush1.msra.mxu0 0.0
      %1907 = vmatprep.subr.mxu0 0.0
      %1908 = vmatpush1.msra.mxu0 0.0
      %1909 = vmatprep.subr.mxu0 0.0
      %1910 = vmatpush1.msra.mxu0 0.0
      %1911 = vmatprep.subr.mxu0 0.0
      %1912 = vmatpush1.msra.mxu0 0.0
      %1913 = vmatprep.subr.mxu0 %v1804
      %1914 = vmatpush1.msra.mxu0 %v1803
      %1915 = vmatprep.subr.mxu0 0.0
      %1916 = vmatpush2.msra.mxu0 0.0
      %1917 = vmatprep.subr.mxu0 0.0
      %1918 = vmatpush2.msra.mxu0 0.0
      %1919 = vmatprep.subr.mxu0 0.0
      %1920 = vmatpush2.msra.mxu0 0.0
      %1921 = vmatprep.subr.mxu0 0.0
      %1922 = vmatpush2.msra.mxu0 0.0
      %1923 = vmatprep.subr.mxu0 0.0
      %1924 = vmatpush2.msra.mxu0 0.0
      %1925 = vmatprep.subr.mxu0 0.0
      %1926 = vmatpush2.msra.mxu0 0.0
      %1927 = vmatprep.subr.mxu0 0.0
      %1928 = vmatpush2.msra.mxu0 0.0
      %1929 = vmatprep.subr.mxu0 0.0
      %1930 = vmatpush2.msra.mxu0 0.0
      %1931 = vmatprep.subr.mxu0 0.0
      %1932 = vmatpush2.msra.mxu0 0.0
      %1933 = vmatprep.subr.mxu0 0.0
      %1934 = vmatpush2.msra.mxu0 0.0
      %1935 = vmatprep.subr.mxu0 0.0
      %1936 = vmatpush2.msra.mxu0 0.0
      %1937 = vmatprep.subr.mxu0 0.0
      %1938 = vmatpush2.msra.mxu0 0.0
      %1939 = vmatprep.subr.mxu0 0.0
      %1940 = vmatpush2.msra.mxu0 0.0
      %1941 = vmatprep.subr.mxu0 0.0
      %1942 = vmatpush2.msra.mxu0 0.0
      %1943 = vmatprep.subr.mxu0 0.0
      %1944 = vmatpush2.msra.mxu0 0.0
      %1945 = vmatprep.subr.mxu0 0.0
      %1946 = vmatpush2.msra.mxu0 0.0
      %1947 = vmatprep.mubr.f32.mxu0 0.0
      %1948 = vmatmul.mubr.f32.gmra.mxu0 %v1810
      %v1949 = vpop.f32.mrf.mxu0
      %v1950 = vadd.f32 0.0, %v1949
      %v1951 = vpop.f32.mrf.mxu0
      %v1952 = vadd.f32 0.0, %v1951
      %1953 = vdwg.mxu0
      %v1954 = vadd.f32 %v1784, %v1879
      %v1955 = vadd.f32 %v1785, %v1881
      %v1956 = vadd.f32 %v1786, %v1950
      %v1957 = vadd.f32 %v1787, %v1952
      %s1958 = scalar_lea.vmem %s7, 64
      %v1959 = vld [vmem:[%s1958] sm:$0xff]
      %1960 = vrot.lane.b32.xlu0 %v546, 89
      %v1961 = vpop.permute.xlu0 %1960
      %1962 = vrot.lane.b32.xlu0 %v585, 89
      %v1963 = vpop.permute.xlu0 %1962
      %1964 = vrot.lane.b32.xlu0 %v586, 89
      %v1965 = vpop.permute.xlu0 %1964
      %1966 = vrot.lane.b32.xlu0 %v587, 89
      %v1967 = vpop.permute.xlu0 %1966
      %1968 = vrot.lane.b32.xlu0 %v588, 89
      %v1969 = vpop.permute.xlu0 %1968
      %vm1970 = vcmask 728064
      %v1971 = vsel %vm1970, %v1961, %v1963
      %v1972 = vsel %vm1970, %v1963, %v1965
      %v1973 = vsel %vm1970, %v1965, %v1967
      %v1974 = vsel %vm1970, %v1967, %v1969
      %v1980 = vsel %vm628, %v1959, 0
      %1982 = vmatprep.subr.mxu0 0.0
      %1983 = vmatpush1.msra.mxu0 0.0
      %1984 = vmatprep.subr.mxu0 0.0
      %1985 = vmatpush1.msra.mxu0 0.0
      %1986 = vmatprep.subr.mxu0 0.0
      %1987 = vmatpush1.msra.mxu0 0.0
      %1988 = vmatprep.subr.mxu0 0.0
      %1989 = vmatpush1.msra.mxu0 0.0
      %1990 = vmatprep.subr.mxu0 0.0
      %1991 = vmatpush1.msra.mxu0 0.0
      %1992 = vmatprep.subr.mxu0 0.0
      %1993 = vmatpush1.msra.mxu0 0.0
      %1994 = vmatprep.subr.mxu0 0.0
      %1995 = vmatpush1.msra.mxu0 0.0
      %1996 = vmatprep.subr.mxu0 0.0
      %1997 = vmatpush1.msra.mxu0 0.0
      %1998 = vmatprep.subr.mxu0 0.0
      %1999 = vmatpush1.msra.mxu0 0.0
      %2000 = vmatprep.subr.mxu0 0.0
      %2001 = vmatpush1.msra.mxu0 0.0
      %2002 = vmatprep.subr.mxu0 0.0
      %2003 = vmatpush1.msra.mxu0 0.0
      %2004 = vmatprep.subr.mxu0 0.0
      %2005 = vmatpush1.msra.mxu0 0.0
      %2006 = vmatprep.subr.mxu0 0.0
      %2007 = vmatpush1.msra.mxu0 0.0
      %2008 = vmatprep.subr.mxu0 0.0
      %2009 = vmatpush1.msra.mxu0 0.0
      %2010 = vmatprep.subr.mxu0 0.0
      %2011 = vmatpush1.msra.mxu0 0.0
      %2012 = vmatprep.subr.mxu0 %v1972
      %2013 = vmatpush1.msra.mxu0 %v1971
      %2014 = vmatprep.subr.mxu0 0.0
      %2015 = vmatpush2.msra.mxu0 0.0
      %2016 = vmatprep.subr.mxu0 0.0
      %2017 = vmatpush2.msra.mxu0 0.0
      %2018 = vmatprep.subr.mxu0 0.0
      %2019 = vmatpush2.msra.mxu0 0.0
      %2020 = vmatprep.subr.mxu0 0.0
      %2021 = vmatpush2.msra.mxu0 0.0
      %2022 = vmatprep.subr.mxu0 0.0
      %2023 = vmatpush2.msra.mxu0 0.0
      %2024 = vmatprep.subr.mxu0 0.0
      %2025 = vmatpush2.msra.mxu0 0.0
      %2026 = vmatprep.subr.mxu0 0.0
      %2027 = vmatpush2.msra.mxu0 0.0
      %2028 = vmatprep.subr.mxu0 0.0
      %2029 = vmatpush2.msra.mxu0 0.0
      %2030 = vmatprep.subr.mxu0 0.0
      %2031 = vmatpush2.msra.mxu0 0.0
      %2032 = vmatprep.subr.mxu0 0.0
      %2033 = vmatpush2.msra.mxu0 0.0
      %2034 = vmatprep.subr.mxu0 0.0
      %2035 = vmatpush2.msra.mxu0 0.0
      %2036 = vmatprep.subr.mxu0 0.0
      %2037 = vmatpush2.msra.mxu0 0.0
      %2038 = vmatprep.subr.mxu0 0.0
      %2039 = vmatpush2.msra.mxu0 0.0
      %2040 = vmatprep.subr.mxu0 0.0
      %2041 = vmatpush2.msra.mxu0 0.0
      %2042 = vmatprep.subr.mxu0 0.0
      %2043 = vmatpush2.msra.mxu0 0.0
      %2044 = vmatprep.subr.mxu0 0.0
      %2045 = vmatpush2.msra.mxu0 0.0
      %2046 = vmatprep.mubr.f32.mxu0 0.0
      %2047 = vmatmul.mubr.f32.gmra.mxu0 %v1980
      %v2048 = vpop.f32.mrf.mxu0
      %v2049 = vadd.f32 0.0, %v2048
      %v2050 = vpop.f32.mrf.mxu0
      %v2051 = vadd.f32 0.0, %v2050
      %2052 = vdwg.mxu0
      %2053 = vmatprep.subr.mxu0 0.0
      %2054 = vmatpush1.msra.mxu0 0.0
      %2055 = vmatprep.subr.mxu0 0.0
      %2056 = vmatpush1.msra.mxu0 0.0
      %2057 = vmatprep.subr.mxu0 0.0
      %2058 = vmatpush1.msra.mxu0 0.0
      %2059 = vmatprep.subr.mxu0 0.0
      %2060 = vmatpush1.msra.mxu0 0.0
      %2061 = vmatprep.subr.mxu0 0.0
      %2062 = vmatpush1.msra.mxu0 0.0
      %2063 = vmatprep.subr.mxu0 0.0
      %2064 = vmatpush1.msra.mxu0 0.0
      %2065 = vmatprep.subr.mxu0 0.0
      %2066 = vmatpush1.msra.mxu0 0.0
      %2067 = vmatprep.subr.mxu0 0.0
      %2068 = vmatpush1.msra.mxu0 0.0
      %2069 = vmatprep.subr.mxu0 0.0
      %2070 = vmatpush1.msra.mxu0 0.0
      %2071 = vmatprep.subr.mxu0 0.0
      %2072 = vmatpush1.msra.mxu0 0.0
      %2073 = vmatprep.subr.mxu0 0.0
      %2074 = vmatpush1.msra.mxu0 0.0
      %2075 = vmatprep.subr.mxu0 0.0
      %2076 = vmatpush1.msra.mxu0 0.0
      %2077 = vmatprep.subr.mxu0 0.0
      %2078 = vmatpush1.msra.mxu0 0.0
      %2079 = vmatprep.subr.mxu0 0.0
      %2080 = vmatpush1.msra.mxu0 0.0
      %2081 = vmatprep.subr.mxu0 0.0
      %2082 = vmatpush1.msra.mxu0 0.0
      %2083 = vmatprep.subr.mxu0 %v1974
      %2084 = vmatpush1.msra.mxu0 %v1973
      %2085 = vmatprep.subr.mxu0 0.0
      %2086 = vmatpush2.msra.mxu0 0.0
      %2087 = vmatprep.subr.mxu0 0.0
      %2088 = vmatpush2.msra.mxu0 0.0
      %2089 = vmatprep.subr.mxu0 0.0
      %2090 = vmatpush2.msra.mxu0 0.0
      %2091 = vmatprep.subr.mxu0 0.0
      %2092 = vmatpush2.msra.mxu0 0.0
      %2093 = vmatprep.subr.mxu0 0.0
      %2094 = vmatpush2.msra.mxu0 0.0
      %2095 = vmatprep.subr.mxu0 0.0
      %2096 = vmatpush2.msra.mxu0 0.0
      %2097 = vmatprep.subr.mxu0 0.0
      %2098 = vmatpush2.msra.mxu0 0.0
      %2099 = vmatprep.subr.mxu0 0.0
      %2100 = vmatpush2.msra.mxu0 0.0
      %2101 = vmatprep.subr.mxu0 0.0
      %2102 = vmatpush2.msra.mxu0 0.0
      %2103 = vmatprep.subr.mxu0 0.0
      %2104 = vmatpush2.msra.mxu0 0.0
      %2105 = vmatprep.subr.mxu0 0.0
      %2106 = vmatpush2.msra.mxu0 0.0
      %2107 = vmatprep.subr.mxu0 0.0
      %2108 = vmatpush2.msra.mxu0 0.0
      %2109 = vmatprep.subr.mxu0 0.0
      %2110 = vmatpush2.msra.mxu0 0.0
      %2111 = vmatprep.subr.mxu0 0.0
      %2112 = vmatpush2.msra.mxu0 0.0
      %2113 = vmatprep.subr.mxu0 0.0
      %2114 = vmatpush2.msra.mxu0 0.0
      %2115 = vmatprep.subr.mxu0 0.0
      %2116 = vmatpush2.msra.mxu0 0.0
      %2117 = vmatprep.mubr.f32.mxu0 0.0
      %2118 = vmatmul.mubr.f32.gmra.mxu0 %v1980
      %v2119 = vpop.f32.mrf.mxu0
      %v2120 = vadd.f32 0.0, %v2119
      %v2121 = vpop.f32.mrf.mxu0
      %v2122 = vadd.f32 0.0, %v2121
      %2123 = vdwg.mxu0
      %v2124 = vadd.f32 %v1954, %v2049
      %v2125 = vadd.f32 %v1955, %v2051
      %v2126 = vadd.f32 %v1956, %v2120
      %v2127 = vadd.f32 %v1957, %v2122
      %s2128 = scalar_lea.vmem %s7, 72
      %v2129 = vld [vmem:[%s2128] sm:$0xff]
      %2130 = vrot.lane.b32.xlu0 %v546, 11
      %v2131 = vpop.permute.xlu0 %2130
      %2132 = vrot.lane.b32.xlu0 %v585, 11
      %v2133 = vpop.permute.xlu0 %2132
      %2134 = vrot.lane.b32.xlu0 %v586, 11
      %v2135 = vpop.permute.xlu0 %2134
      %2136 = vrot.lane.b32.xlu0 %v587, 11
      %v2137 = vpop.permute.xlu0 %2136
      %2138 = vrot.lane.b32.xlu0 %v588, 11
      %v2139 = vpop.permute.xlu0 %2138
      %vm2140 = vcmask 89088
      %v2141 = vsel %vm2140, %v2131, %v2133
      %v2142 = vsel %vm2140, %v2133, %v2135
      %v2143 = vsel %vm2140, %v2135, %v2137
      %v2144 = vsel %vm2140, %v2137, %v2139
      %v2150 = vsel %vm628, %v2129, 0
      %2152 = vmatprep.subr.mxu0 0.0
      %2153 = vmatpush1.msra.mxu0 0.0
      %2154 = vmatprep.subr.mxu0 0.0
      %2155 = vmatpush1.msra.mxu0 0.0
      %2156 = vmatprep.subr.mxu0 0.0
      %2157 = vmatpush1.msra.mxu0 0.0
      %2158 = vmatprep.subr.mxu0 0.0
      %2159 = vmatpush1.msra.mxu0 0.0
      %2160 = vmatprep.subr.mxu0 0.0
      %2161 = vmatpush1.msra.mxu0 0.0
      %2162 = vmatprep.subr.mxu0 0.0
      %2163 = vmatpush1.msra.mxu0 0.0
      %2164 = vmatprep.subr.mxu0 0.0
      %2165 = vmatpush1.msra.mxu0 0.0
      %2166 = vmatprep.subr.mxu0 0.0
      %2167 = vmatpush1.msra.mxu0 0.0
      %2168 = vmatprep.subr.mxu0 0.0
      %2169 = vmatpush1.msra.mxu0 0.0
      %2170 = vmatprep.subr.mxu0 0.0
      %2171 = vmatpush1.msra.mxu0 0.0
      %2172 = vmatprep.subr.mxu0 0.0
      %2173 = vmatpush1.msra.mxu0 0.0
      %2174 = vmatprep.subr.mxu0 0.0
      %2175 = vmatpush1.msra.mxu0 0.0
      %2176 = vmatprep.subr.mxu0 0.0
      %2177 = vmatpush1.msra.mxu0 0.0
      %2178 = vmatprep.subr.mxu0 0.0
      %2179 = vmatpush1.msra.mxu0 0.0
      %2180 = vmatprep.subr.mxu0 0.0
      %2181 = vmatpush1.msra.mxu0 0.0
      %2182 = vmatprep.subr.mxu0 %v2142
      %2183 = vmatpush1.msra.mxu0 %v2141
      %2184 = vmatprep.subr.mxu0 0.0
      %2185 = vmatpush2.msra.mxu0 0.0
      %2186 = vmatprep.subr.mxu0 0.0
      %2187 = vmatpush2.msra.mxu0 0.0
      %2188 = vmatprep.subr.mxu0 0.0
      %2189 = vmatpush2.msra.mxu0 0.0
      %2190 = vmatprep.subr.mxu0 0.0
      %2191 = vmatpush2.msra.mxu0 0.0
      %2192 = vmatprep.subr.mxu0 0.0
      %2193 = vmatpush2.msra.mxu0 0.0
      %2194 = vmatprep.subr.mxu0 0.0
      %2195 = vmatpush2.msra.mxu0 0.0
      %2196 = vmatprep.subr.mxu0 0.0
      %2197 = vmatpush2.msra.mxu0 0.0
      %2198 = vmatprep.subr.mxu0 0.0
      %2199 = vmatpush2.msra.mxu0 0.0
      %2200 = vmatprep.subr.mxu0 0.0
      %2201 = vmatpush2.msra.mxu0 0.0
      %2202 = vmatprep.subr.mxu0 0.0
      %2203 = vmatpush2.msra.mxu0 0.0
      %2204 = vmatprep.subr.mxu0 0.0
      %2205 = vmatpush2.msra.mxu0 0.0
      %2206 = vmatprep.subr.mxu0 0.0
      %2207 = vmatpush2.msra.mxu0 0.0
      %2208 = vmatprep.subr.mxu0 0.0
      %2209 = vmatpush2.msra.mxu0 0.0
      %2210 = vmatprep.subr.mxu0 0.0
      %2211 = vmatpush2.msra.mxu0 0.0
      %2212 = vmatprep.subr.mxu0 0.0
      %2213 = vmatpush2.msra.mxu0 0.0
      %2214 = vmatprep.subr.mxu0 0.0
      %2215 = vmatpush2.msra.mxu0 0.0
      %2216 = vmatprep.mubr.f32.mxu0 0.0
      %2217 = vmatmul.mubr.f32.gmra.mxu0 %v2150
      %v2218 = vpop.f32.mrf.mxu0
      %v2219 = vadd.f32 0.0, %v2218
      %v2220 = vpop.f32.mrf.mxu0
      %v2221 = vadd.f32 0.0, %v2220
      %2222 = vdwg.mxu0
      %2223 = vmatprep.subr.mxu0 0.0
      %2224 = vmatpush1.msra.mxu0 0.0
      %2225 = vmatprep.subr.mxu0 0.0
      %2226 = vmatpush1.msra.mxu0 0.0
      %2227 = vmatprep.subr.mxu0 0.0
      %2228 = vmatpush1.msra.mxu0 0.0
      %2229 = vmatprep.subr.mxu0 0.0
      %2230 = vmatpush1.msra.mxu0 0.0
      %2231 = vmatprep.subr.mxu0 0.0
      %2232 = vmatpush1.msra.mxu0 0.0
      %2233 = vmatprep.subr.mxu0 0.0
      %2234 = vmatpush1.msra.mxu0 0.0
      %2235 = vmatprep.subr.mxu0 0.0
      %2236 = vmatpush1.msra.mxu0 0.0
      %2237 = vmatprep.subr.mxu0 0.0
      %2238 = vmatpush1.msra.mxu0 0.0
      %2239 = vmatprep.subr.mxu0 0.0
      %2240 = vmatpush1.msra.mxu0 0.0
      %2241 = vmatprep.subr.mxu0 0.0
      %2242 = vmatpush1.msra.mxu0 0.0
      %2243 = vmatprep.subr.mxu0 0.0
      %2244 = vmatpush1.msra.mxu0 0.0
      %2245 = vmatprep.subr.mxu0 0.0
      %2246 = vmatpush1.msra.mxu0 0.0
      %2247 = vmatprep.subr.mxu0 0.0
      %2248 = vmatpush1.msra.mxu0 0.0
      %2249 = vmatprep.subr.mxu0 0.0
      %2250 = vmatpush1.msra.mxu0 0.0
      %2251 = vmatprep.subr.mxu0 0.0
      %2252 = vmatpush1.msra.mxu0 0.0
      %2253 = vmatprep.subr.mxu0 %v2144
      %2254 = vmatpush1.msra.mxu0 %v2143
      %2255 = vmatprep.subr.mxu0 0.0
      %2256 = vmatpush2.msra.mxu0 0.0
      %2257 = vmatprep.subr.mxu0 0.0
      %2258 = vmatpush2.msra.mxu0 0.0
      %2259 = vmatprep.subr.mxu0 0.0
      %2260 = vmatpush2.msra.mxu0 0.0
      %2261 = vmatprep.subr.mxu0 0.0
      %2262 = vmatpush2.msra.mxu0 0.0
      %2263 = vmatprep.subr.mxu0 0.0
      %2264 = vmatpush2.msra.mxu0 0.0
      %2265 = vmatprep.subr.mxu0 0.0
      %2266 = vmatpush2.msra.mxu0 0.0
      %2267 = vmatprep.subr.mxu0 0.0
      %2268 = vmatpush2.msra.mxu0 0.0
      %2269 = vmatprep.subr.mxu0 0.0
      %2270 = vmatpush2.msra.mxu0 0.0
      %2271 = vmatprep.subr.mxu0 0.0
      %2272 = vmatpush2.msra.mxu0 0.0
      %2273 = vmatprep.subr.mxu0 0.0
      %2274 = vmatpush2.msra.mxu0 0.0
      %2275 = vmatprep.subr.mxu0 0.0
      %2276 = vmatpush2.msra.mxu0 0.0
      %2277 = vmatprep.subr.mxu0 0.0
      %2278 = vmatpush2.msra.mxu0 0.0
      %2279 = vmatprep.subr.mxu0 0.0
      %2280 = vmatpush2.msra.mxu0 0.0
      %2281 = vmatprep.subr.mxu0 0.0
      %2282 = vmatpush2.msra.mxu0 0.0
      %2283 = vmatprep.subr.mxu0 0.0
      %2284 = vmatpush2.msra.mxu0 0.0
      %2285 = vmatprep.subr.mxu0 0.0
      %2286 = vmatpush2.msra.mxu0 0.0
      %2287 = vmatprep.mubr.f32.mxu0 0.0
      %2288 = vmatmul.mubr.f32.gmra.mxu0 %v2150
      %v2289 = vpop.f32.mrf.mxu0
      %v2290 = vadd.f32 0.0, %v2289
      %v2291 = vpop.f32.mrf.mxu0
      %v2292 = vadd.f32 0.0, %v2291
      %2293 = vdwg.mxu0
      %v2294 = vadd.f32 %v2124, %v2219
      %v2295 = vadd.f32 %v2125, %v2221
      %v2296 = vadd.f32 %v2126, %v2290
      %v2297 = vadd.f32 %v2127, %v2292
      %s2298 = scalar_lea.vmem %s7, 80
      %v2299 = vld [vmem:[%s2298] sm:$0xff]
      %2300 = vrot.lane.b32.xlu0 %v546, 10
      %v2301 = vpop.permute.xlu0 %2300
      %2302 = vrot.lane.b32.xlu0 %v585, 10
      %v2303 = vpop.permute.xlu0 %2302
      %2304 = vrot.lane.b32.xlu0 %v586, 10
      %v2305 = vpop.permute.xlu0 %2304
      %2306 = vrot.lane.b32.xlu0 %v587, 10
      %v2307 = vpop.permute.xlu0 %2306
      %2308 = vrot.lane.b32.xlu0 %v588, 10
      %v2309 = vpop.permute.xlu0 %2308
      %vm2310 = vcmask 80896
      %v2311 = vsel %vm2310, %v2301, %v2303
      %v2312 = vsel %vm2310, %v2303, %v2305
      %v2313 = vsel %vm2310, %v2305, %v2307
      %v2314 = vsel %vm2310, %v2307, %v2309
      %v2320 = vsel %vm628, %v2299, 0
      %2322 = vmatprep.subr.mxu0 0.0
      %2323 = vmatpush1.msra.mxu0 0.0
      %2324 = vmatprep.subr.mxu0 0.0
      %2325 = vmatpush1.msra.mxu0 0.0
      %2326 = vmatprep.subr.mxu0 0.0
      %2327 = vmatpush1.msra.mxu0 0.0
      %2328 = vmatprep.subr.mxu0 0.0
      %2329 = vmatpush1.msra.mxu0 0.0
      %2330 = vmatprep.subr.mxu0 0.0
      %2331 = vmatpush1.msra.mxu0 0.0
      %2332 = vmatprep.subr.mxu0 0.0
      %2333 = vmatpush1.msra.mxu0 0.0
      %2334 = vmatprep.subr.mxu0 0.0
      %2335 = vmatpush1.msra.mxu0 0.0
      %2336 = vmatprep.subr.mxu0 0.0
      %2337 = vmatpush1.msra.mxu0 0.0
      %2338 = vmatprep.subr.mxu0 0.0
      %2339 = vmatpush1.msra.mxu0 0.0
      %2340 = vmatprep.subr.mxu0 0.0
      %2341 = vmatpush1.msra.mxu0 0.0
      %2342 = vmatprep.subr.mxu0 0.0
      %2343 = vmatpush1.msra.mxu0 0.0
      %2344 = vmatprep.subr.mxu0 0.0
      %2345 = vmatpush1.msra.mxu0 0.0
      %2346 = vmatprep.subr.mxu0 0.0
      %2347 = vmatpush1.msra.mxu0 0.0
      %2348 = vmatprep.subr.mxu0 0.0
      %2349 = vmatpush1.msra.mxu0 0.0
      %2350 = vmatprep.subr.mxu0 0.0
      %2351 = vmatpush1.msra.mxu0 0.0
      %2352 = vmatprep.subr.mxu0 %v2312
      %2353 = vmatpush1.msra.mxu0 %v2311
      %2354 = vmatprep.subr.mxu0 0.0
      %2355 = vmatpush2.msra.mxu0 0.0
      %2356 = vmatprep.subr.mxu0 0.0
      %2357 = vmatpush2.msra.mxu0 0.0
      %2358 = vmatprep.subr.mxu0 0.0
      %2359 = vmatpush2.msra.mxu0 0.0
      %2360 = vmatprep.subr.mxu0 0.0
      %2361 = vmatpush2.msra.mxu0 0.0
      %2362 = vmatprep.subr.mxu0 0.0
      %2363 = vmatpush2.msra.mxu0 0.0
      %2364 = vmatprep.subr.mxu0 0.0
      %2365 = vmatpush2.msra.mxu0 0.0
      %2366 = vmatprep.subr.mxu0 0.0
      %2367 = vmatpush2.msra.mxu0 0.0
      %2368 = vmatprep.subr.mxu0 0.0
      %2369 = vmatpush2.msra.mxu0 0.0
      %2370 = vmatprep.subr.mxu0 0.0
      %2371 = vmatpush2.msra.mxu0 0.0
      %2372 = vmatprep.subr.mxu0 0.0
      %2373 = vmatpush2.msra.mxu0 0.0
      %2374 = vmatprep.subr.mxu0 0.0
      %2375 = vmatpush2.msra.mxu0 0.0
      %2376 = vmatprep.subr.mxu0 0.0
      %2377 = vmatpush2.msra.mxu0 0.0
      %2378 = vmatprep.subr.mxu0 0.0
      %2379 = vmatpush2.msra.mxu0 0.0
      %2380 = vmatprep.subr.mxu0 0.0
      %2381 = vmatpush2.msra.mxu0 0.0
      %2382 = vmatprep.subr.mxu0 0.0
      %2383 = vmatpush2.msra.mxu0 0.0
      %2384 = vmatprep.subr.mxu0 0.0
      %2385 = vmatpush2.msra.mxu0 0.0
      %2386 = vmatprep.mubr.f32.mxu0 0.0
      %2387 = vmatmul.mubr.f32.gmra.mxu0 %v2320
      %v2388 = vpop.f32.mrf.mxu0
      %v2389 = vadd.f32 0.0, %v2388
      %v2390 = vpop.f32.mrf.mxu0
      %v2391 = vadd.f32 0.0, %v2390
      %2392 = vdwg.mxu0
      %2393 = vmatprep.subr.mxu0 0.0
      %2394 = vmatpush1.msra.mxu0 0.0
      %2395 = vmatprep.subr.mxu0 0.0
      %2396 = vmatpush1.msra.mxu0 0.0
      %2397 = vmatprep.subr.mxu0 0.0
      %2398 = vmatpush1.msra.mxu0 0.0
      %2399 = vmatprep.subr.mxu0 0.0
      %2400 = vmatpush1.msra.mxu0 0.0
      %2401 = vmatprep.subr.mxu0 0.0
      %2402 = vmatpush1.msra.mxu0 0.0
      %2403 = vmatprep.subr.mxu0 0.0
      %2404 = vmatpush1.msra.mxu0 0.0
      %2405 = vmatprep.subr.mxu0 0.0
      %2406 = vmatpush1.msra.mxu0 0.0
      %2407 = vmatprep.subr.mxu0 0.0
      %2408 = vmatpush1.msra.mxu0 0.0
      %2409 = vmatprep.subr.mxu0 0.0
      %2410 = vmatpush1.msra.mxu0 0.0
      %2411 = vmatprep.subr.mxu0 0.0
      %2412 = vmatpush1.msra.mxu0 0.0
      %2413 = vmatprep.subr.mxu0 0.0
      %2414 = vmatpush1.msra.mxu0 0.0
      %2415 = vmatprep.subr.mxu0 0.0
      %2416 = vmatpush1.msra.mxu0 0.0
      %2417 = vmatprep.subr.mxu0 0.0
      %2418 = vmatpush1.msra.mxu0 0.0
      %2419 = vmatprep.subr.mxu0 0.0
      %2420 = vmatpush1.msra.mxu0 0.0
      %2421 = vmatprep.subr.mxu0 0.0
      %2422 = vmatpush1.msra.mxu0 0.0
      %2423 = vmatprep.subr.mxu0 %v2314
      %2424 = vmatpush1.msra.mxu0 %v2313
      %2425 = vmatprep.subr.mxu0 0.0
      %2426 = vmatpush2.msra.mxu0 0.0
      %2427 = vmatprep.subr.mxu0 0.0
      %2428 = vmatpush2.msra.mxu0 0.0
      %2429 = vmatprep.subr.mxu0 0.0
      %2430 = vmatpush2.msra.mxu0 0.0
      %2431 = vmatprep.subr.mxu0 0.0
      %2432 = vmatpush2.msra.mxu0 0.0
      %2433 = vmatprep.subr.mxu0 0.0
      %2434 = vmatpush2.msra.mxu0 0.0
      %2435 = vmatprep.subr.mxu0 0.0
      %2436 = vmatpush2.msra.mxu0 0.0
      %2437 = vmatprep.subr.mxu0 0.0
      %2438 = vmatpush2.msra.mxu0 0.0
      %2439 = vmatprep.subr.mxu0 0.0
      %2440 = vmatpush2.msra.mxu0 0.0
      %2441 = vmatprep.subr.mxu0 0.0
      %2442 = vmatpush2.msra.mxu0 0.0
      %2443 = vmatprep.subr.mxu0 0.0
      %2444 = vmatpush2.msra.mxu0 0.0
      %2445 = vmatprep.subr.mxu0 0.0
      %2446 = vmatpush2.msra.mxu0 0.0
      %2447 = vmatprep.subr.mxu0 0.0
      %2448 = vmatpush2.msra.mxu0 0.0
      %2449 = vmatprep.subr.mxu0 0.0
      %2450 = vmatpush2.msra.mxu0 0.0
      %2451 = vmatprep.subr.mxu0 0.0
      %2452 = vmatpush2.msra.mxu0 0.0
      %2453 = vmatprep.subr.mxu0 0.0
      %2454 = vmatpush2.msra.mxu0 0.0
      %2455 = vmatprep.subr.mxu0 0.0
      %2456 = vmatpush2.msra.mxu0 0.0
      %2457 = vmatprep.mubr.f32.mxu0 0.0
      %2458 = vmatmul.mubr.f32.gmra.mxu0 %v2320
      %v2459 = vpop.f32.mrf.mxu0
      %v2460 = vadd.f32 0.0, %v2459
      %v2461 = vpop.f32.mrf.mxu0
      %v2462 = vadd.f32 0.0, %v2461
      %2463 = vdwg.mxu0
      %v2464 = vadd.f32 %v2294, %v2389
      %v2465 = vadd.f32 %v2295, %v2391
      %v2466 = vadd.f32 %v2296, %v2460
      %v2467 = vadd.f32 %v2297, %v2462
      %s2468 = scalar_lea.vmem %s7, 88
      %v2469 = vld [vmem:[%s2468] sm:$0xff]
      %2470 = vrot.lane.b32.xlu0 %v546, 9
      %v2471 = vpop.permute.xlu0 %2470
      %2472 = vrot.lane.b32.xlu0 %v585, 9
      %v2473 = vpop.permute.xlu0 %2472
      %2474 = vrot.lane.b32.xlu0 %v586, 9
      %v2475 = vpop.permute.xlu0 %2474
      %2476 = vrot.lane.b32.xlu0 %v587, 9
      %v2477 = vpop.permute.xlu0 %2476
      %2478 = vrot.lane.b32.xlu0 %v588, 9
      %v2479 = vpop.permute.xlu0 %2478
      %vm2480 = vcmask 72704
      %v2481 = vsel %vm2480, %v2471, %v2473
      %v2482 = vsel %vm2480, %v2473, %v2475
      %v2483 = vsel %vm2480, %v2475, %v2477
      %v2484 = vsel %vm2480, %v2477, %v2479
      %v2490 = vsel %vm628, %v2469, 0
      %2492 = vmatprep.subr.mxu0 0.0
      %2493 = vmatpush1.msra.mxu0 0.0
      %2494 = vmatprep.subr.mxu0 0.0
      %2495 = vmatpush1.msra.mxu0 0.0
      %2496 = vmatprep.subr.mxu0 0.0
      %2497 = vmatpush1.msra.mxu0 0.0
      %2498 = vmatprep.subr.mxu0 0.0
      %2499 = vmatpush1.msra.mxu0 0.0
      %2500 = vmatprep.subr.mxu0 0.0
      %2501 = vmatpush1.msra.mxu0 0.0
      %2502 = vmatprep.subr.mxu0 0.0
      %2503 = vmatpush1.msra.mxu0 0.0
      %2504 = vmatprep.subr.mxu0 0.0
      %2505 = vmatpush1.msra.mxu0 0.0
      %2506 = vmatprep.subr.mxu0 0.0
      %2507 = vmatpush1.msra.mxu0 0.0
      %2508 = vmatprep.subr.mxu0 0.0
      %2509 = vmatpush1.msra.mxu0 0.0
      %2510 = vmatprep.subr.mxu0 0.0
      %2511 = vmatpush1.msra.mxu0 0.0
      %2512 = vmatprep.subr.mxu0 0.0
      %2513 = vmatpush1.msra.mxu0 0.0
      %2514 = vmatprep.subr.mxu0 0.0
      %2515 = vmatpush1.msra.mxu0 0.0
      %2516 = vmatprep.subr.mxu0 0.0
      %2517 = vmatpush1.msra.mxu0 0.0
      %2518 = vmatprep.subr.mxu0 0.0
      %2519 = vmatpush1.msra.mxu0 0.0
      %2520 = vmatprep.subr.mxu0 0.0
      %2521 = vmatpush1.msra.mxu0 0.0
      %2522 = vmatprep.subr.mxu0 %v2482
      %2523 = vmatpush1.msra.mxu0 %v2481
      %2524 = vmatprep.subr.mxu0 0.0
      %2525 = vmatpush2.msra.mxu0 0.0
      %2526 = vmatprep.subr.mxu0 0.0
      %2527 = vmatpush2.msra.mxu0 0.0
      %2528 = vmatprep.subr.mxu0 0.0
      %2529 = vmatpush2.msra.mxu0 0.0
      %2530 = vmatprep.subr.mxu0 0.0
      %2531 = vmatpush2.msra.mxu0 0.0
      %2532 = vmatprep.subr.mxu0 0.0
      %2533 = vmatpush2.msra.mxu0 0.0
      %2534 = vmatprep.subr.mxu0 0.0
      %2535 = vmatpush2.msra.mxu0 0.0
      %2536 = vmatprep.subr.mxu0 0.0
      %2537 = vmatpush2.msra.mxu0 0.0
      %2538 = vmatprep.subr.mxu0 0.0
      %2539 = vmatpush2.msra.mxu0 0.0
      %2540 = vmatprep.subr.mxu0 0.0
      %2541 = vmatpush2.msra.mxu0 0.0
      %2542 = vmatprep.subr.mxu0 0.0
      %2543 = vmatpush2.msra.mxu0 0.0
      %2544 = vmatprep.subr.mxu0 0.0
      %2545 = vmatpush2.msra.mxu0 0.0
      %2546 = vmatprep.subr.mxu0 0.0
      %2547 = vmatpush2.msra.mxu0 0.0
      %2548 = vmatprep.subr.mxu0 0.0
      %2549 = vmatpush2.msra.mxu0 0.0
      %2550 = vmatprep.subr.mxu0 0.0
      %2551 = vmatpush2.msra.mxu0 0.0
      %2552 = vmatprep.subr.mxu0 0.0
      %2553 = vmatpush2.msra.mxu0 0.0
      %2554 = vmatprep.subr.mxu0 0.0
      %2555 = vmatpush2.msra.mxu0 0.0
      %2556 = vmatprep.mubr.f32.mxu0 0.0
      %2557 = vmatmul.mubr.f32.gmra.mxu0 %v2490
      %v2558 = vpop.f32.mrf.mxu0
      %v2559 = vadd.f32 0.0, %v2558
      %v2560 = vpop.f32.mrf.mxu0
      %v2561 = vadd.f32 0.0, %v2560
      %2562 = vdwg.mxu0
      %2563 = vmatprep.subr.mxu0 0.0
      %2564 = vmatpush1.msra.mxu0 0.0
      %2565 = vmatprep.subr.mxu0 0.0
      %2566 = vmatpush1.msra.mxu0 0.0
      %2567 = vmatprep.subr.mxu0 0.0
      %2568 = vmatpush1.msra.mxu0 0.0
      %2569 = vmatprep.subr.mxu0 0.0
      %2570 = vmatpush1.msra.mxu0 0.0
      %2571 = vmatprep.subr.mxu0 0.0
      %2572 = vmatpush1.msra.mxu0 0.0
      %2573 = vmatprep.subr.mxu0 0.0
      %2574 = vmatpush1.msra.mxu0 0.0
      %2575 = vmatprep.subr.mxu0 0.0
      %2576 = vmatpush1.msra.mxu0 0.0
      %2577 = vmatprep.subr.mxu0 0.0
      %2578 = vmatpush1.msra.mxu0 0.0
      %2579 = vmatprep.subr.mxu0 0.0
      %2580 = vmatpush1.msra.mxu0 0.0
      %2581 = vmatprep.subr.mxu0 0.0
      %2582 = vmatpush1.msra.mxu0 0.0
      %2583 = vmatprep.subr.mxu0 0.0
      %2584 = vmatpush1.msra.mxu0 0.0
      %2585 = vmatprep.subr.mxu0 0.0
      %2586 = vmatpush1.msra.mxu0 0.0
      %2587 = vmatprep.subr.mxu0 0.0
      %2588 = vmatpush1.msra.mxu0 0.0
      %2589 = vmatprep.subr.mxu0 0.0
      %2590 = vmatpush1.msra.mxu0 0.0
      %2591 = vmatprep.subr.mxu0 0.0
      %2592 = vmatpush1.msra.mxu0 0.0
      %2593 = vmatprep.subr.mxu0 %v2484
      %2594 = vmatpush1.msra.mxu0 %v2483
      %2595 = vmatprep.subr.mxu0 0.0
      %2596 = vmatpush2.msra.mxu0 0.0
      %2597 = vmatprep.subr.mxu0 0.0
      %2598 = vmatpush2.msra.mxu0 0.0
      %2599 = vmatprep.subr.mxu0 0.0
      %2600 = vmatpush2.msra.mxu0 0.0
      %2601 = vmatprep.subr.mxu0 0.0
      %2602 = vmatpush2.msra.mxu0 0.0
      %2603 = vmatprep.subr.mxu0 0.0
      %2604 = vmatpush2.msra.mxu0 0.0
      %2605 = vmatprep.subr.mxu0 0.0
      %2606 = vmatpush2.msra.mxu0 0.0
      %2607 = vmatprep.subr.mxu0 0.0
      %2608 = vmatpush2.msra.mxu0 0.0
      %2609 = vmatprep.subr.mxu0 0.0
      %2610 = vmatpush2.msra.mxu0 0.0
      %2611 = vmatprep.subr.mxu0 0.0
      %2612 = vmatpush2.msra.mxu0 0.0
      %2613 = vmatprep.subr.mxu0 0.0
      %2614 = vmatpush2.msra.mxu0 0.0
      %2615 = vmatprep.subr.mxu0 0.0
      %2616 = vmatpush2.msra.mxu0 0.0
      %2617 = vmatprep.subr.mxu0 0.0
      %2618 = vmatpush2.msra.mxu0 0.0
      %2619 = vmatprep.subr.mxu0 0.0
      %2620 = vmatpush2.msra.mxu0 0.0
      %2621 = vmatprep.subr.mxu0 0.0
      %2622 = vmatpush2.msra.mxu0 0.0
      %2623 = vmatprep.subr.mxu0 0.0
      %2624 = vmatpush2.msra.mxu0 0.0
      %2625 = vmatprep.subr.mxu0 0.0
      %2626 = vmatpush2.msra.mxu0 0.0
      %2627 = vmatprep.mubr.f32.mxu0 0.0
      %2628 = vmatmul.mubr.f32.gmra.mxu0 %v2490
      %v2629 = vpop.f32.mrf.mxu0
      %v2630 = vadd.f32 0.0, %v2629
      %v2631 = vpop.f32.mrf.mxu0
      %v2632 = vadd.f32 0.0, %v2631
      %2633 = vdwg.mxu0
      %v2634 = vadd.f32 %v2464, %v2559
      %v2635 = vadd.f32 %v2465, %v2561
      %v2636 = vadd.f32 %v2466, %v2630
      %v2637 = vadd.f32 %v2467, %v2632
      %s2638 = scalar_lea.vmem %s7, 96
      %v2639 = vld [vmem:[%s2638] sm:$0xff]
      %2640 = vrot.lane.b32.xlu0 %v546, 1
      %v2641 = vpop.permute.xlu0 %2640
      %2642 = vrot.lane.b32.xlu0 %v585, 1
      %v2643 = vpop.permute.xlu0 %2642
      %2644 = vrot.lane.b32.xlu0 %v586, 1
      %v2645 = vpop.permute.xlu0 %2644
      %2646 = vrot.lane.b32.xlu0 %v587, 1
      %v2647 = vpop.permute.xlu0 %2646
      %2648 = vrot.lane.b32.xlu0 %v588, 1
      %v2649 = vpop.permute.xlu0 %2648
      %vm2650 = vcmask 7168
      %v2651 = vsel %vm2650, %v2641, %v2643
      %v2652 = vsel %vm2650, %v2643, %v2645
      %v2653 = vsel %vm2650, %v2645, %v2647
      %v2654 = vsel %vm2650, %v2647, %v2649
      %v2660 = vsel %vm628, %v2639, 0
      %2662 = vmatprep.subr.mxu0 0.0
      %2663 = vmatpush1.msra.mxu0 0.0
      %2664 = vmatprep.subr.mxu0 0.0
      %2665 = vmatpush1.msra.mxu0 0.0
      %2666 = vmatprep.subr.mxu0 0.0
      %2667 = vmatpush1.msra.mxu0 0.0
      %2668 = vmatprep.subr.mxu0 0.0
      %2669 = vmatpush1.msra.mxu0 0.0
      %2670 = vmatprep.subr.mxu0 0.0
      %2671 = vmatpush1.msra.mxu0 0.0
      %2672 = vmatprep.subr.mxu0 0.0
      %2673 = vmatpush1.msra.mxu0 0.0
      %2674 = vmatprep.subr.mxu0 0.0
      %2675 = vmatpush1.msra.mxu0 0.0
      %2676 = vmatprep.subr.mxu0 0.0
      %2677 = vmatpush1.msra.mxu0 0.0
      %2678 = vmatprep.subr.mxu0 0.0
      %2679 = vmatpush1.msra.mxu0 0.0
      %2680 = vmatprep.subr.mxu0 0.0
      %2681 = vmatpush1.msra.mxu0 0.0
      %2682 = vmatprep.subr.mxu0 0.0
      %2683 = vmatpush1.msra.mxu0 0.0
      %2684 = vmatprep.subr.mxu0 0.0
      %2685 = vmatpush1.msra.mxu0 0.0
      %2686 = vmatprep.subr.mxu0 0.0
      %2687 = vmatpush1.msra.mxu0 0.0
      %2688 = vmatprep.subr.mxu0 0.0
      %2689 = vmatpush1.msra.mxu0 0.0
      %2690 = vmatprep.subr.mxu0 0.0
      %2691 = vmatpush1.msra.mxu0 0.0
      %2692 = vmatprep.subr.mxu0 %v2652
      %2693 = vmatpush1.msra.mxu0 %v2651
      %2694 = vmatprep.subr.mxu0 0.0
      %2695 = vmatpush2.msra.mxu0 0.0
      %2696 = vmatprep.subr.mxu0 0.0
      %2697 = vmatpush2.msra.mxu0 0.0
      %2698 = vmatprep.subr.mxu0 0.0
      %2699 = vmatpush2.msra.mxu0 0.0
      %2700 = vmatprep.subr.mxu0 0.0
      %2701 = vmatpush2.msra.mxu0 0.0
      %2702 = vmatprep.subr.mxu0 0.0
      %2703 = vmatpush2.msra.mxu0 0.0
      %2704 = vmatprep.subr.mxu0 0.0
      %2705 = vmatpush2.msra.mxu0 0.0
      %2706 = vmatprep.subr.mxu0 0.0
      %2707 = vmatpush2.msra.mxu0 0.0
      %2708 = vmatprep.subr.mxu0 0.0
      %2709 = vmatpush2.msra.mxu0 0.0
      %2710 = vmatprep.subr.mxu0 0.0
      %2711 = vmatpush2.msra.mxu0 0.0
      %2712 = vmatprep.subr.mxu0 0.0
      %2713 = vmatpush2.msra.mxu0 0.0
      %2714 = vmatprep.subr.mxu0 0.0
      %2715 = vmatpush2.msra.mxu0 0.0
      %2716 = vmatprep.subr.mxu0 0.0
      %2717 = vmatpush2.msra.mxu0 0.0
      %2718 = vmatprep.subr.mxu0 0.0
      %2719 = vmatpush2.msra.mxu0 0.0
      %2720 = vmatprep.subr.mxu0 0.0
      %2721 = vmatpush2.msra.mxu0 0.0
      %2722 = vmatprep.subr.mxu0 0.0
      %2723 = vmatpush2.msra.mxu0 0.0
      %2724 = vmatprep.subr.mxu0 0.0
      %2725 = vmatpush2.msra.mxu0 0.0
      %2726 = vmatprep.mubr.f32.mxu0 0.0
      %2727 = vmatmul.mubr.f32.gmra.mxu0 %v2660
      %v2728 = vpop.f32.mrf.mxu0
      %v2729 = vadd.f32 0.0, %v2728
      %v2730 = vpop.f32.mrf.mxu0
      %v2731 = vadd.f32 0.0, %v2730
      %2732 = vdwg.mxu0
      %2733 = vmatprep.subr.mxu0 0.0
      %2734 = vmatpush1.msra.mxu0 0.0
      %2735 = vmatprep.subr.mxu0 0.0
      %2736 = vmatpush1.msra.mxu0 0.0
      %2737 = vmatprep.subr.mxu0 0.0
      %2738 = vmatpush1.msra.mxu0 0.0
      %2739 = vmatprep.subr.mxu0 0.0
      %2740 = vmatpush1.msra.mxu0 0.0
      %2741 = vmatprep.subr.mxu0 0.0
      %2742 = vmatpush1.msra.mxu0 0.0
      %2743 = vmatprep.subr.mxu0 0.0
      %2744 = vmatpush1.msra.mxu0 0.0
      %2745 = vmatprep.subr.mxu0 0.0
      %2746 = vmatpush1.msra.mxu0 0.0
      %2747 = vmatprep.subr.mxu0 0.0
      %2748 = vmatpush1.msra.mxu0 0.0
      %2749 = vmatprep.subr.mxu0 0.0
      %2750 = vmatpush1.msra.mxu0 0.0
      %2751 = vmatprep.subr.mxu0 0.0
      %2752 = vmatpush1.msra.mxu0 0.0
      %2753 = vmatprep.subr.mxu0 0.0
      %2754 = vmatpush1.msra.mxu0 0.0
      %2755 = vmatprep.subr.mxu0 0.0
      %2756 = vmatpush1.msra.mxu0 0.0
      %2757 = vmatprep.subr.mxu0 0.0
      %2758 = vmatpush1.msra.mxu0 0.0
      %2759 = vmatprep.subr.mxu0 0.0
      %2760 = vmatpush1.msra.mxu0 0.0
      %2761 = vmatprep.subr.mxu0 0.0
      %2762 = vmatpush1.msra.mxu0 0.0
      %2763 = vmatprep.subr.mxu0 %v2654
      %2764 = vmatpush1.msra.mxu0 %v2653
      %2765 = vmatprep.subr.mxu0 0.0
      %2766 = vmatpush2.msra.mxu0 0.0
      %2767 = vmatprep.subr.mxu0 0.0
      %2768 = vmatpush2.msra.mxu0 0.0
      %2769 = vmatprep.subr.mxu0 0.0
      %2770 = vmatpush2.msra.mxu0 0.0
      %2771 = vmatprep.subr.mxu0 0.0
      %2772 = vmatpush2.msra.mxu0 0.0
      %2773 = vmatprep.subr.mxu0 0.0
      %2774 = vmatpush2.msra.mxu0 0.0
      %2775 = vmatprep.subr.mxu0 0.0
      %2776 = vmatpush2.msra.mxu0 0.0
      %2777 = vmatprep.subr.mxu0 0.0
      %2778 = vmatpush2.msra.mxu0 0.0
      %2779 = vmatprep.subr.mxu0 0.0
      %2780 = vmatpush2.msra.mxu0 0.0
      %2781 = vmatprep.subr.mxu0 0.0
      %2782 = vmatpush2.msra.mxu0 0.0
      %2783 = vmatprep.subr.mxu0 0.0
      %2784 = vmatpush2.msra.mxu0 0.0
      %2785 = vmatprep.subr.mxu0 0.0
      %2786 = vmatpush2.msra.mxu0 0.0
      %2787 = vmatprep.subr.mxu0 0.0
      %2788 = vmatpush2.msra.mxu0 0.0
      %2789 = vmatprep.subr.mxu0 0.0
      %2790 = vmatpush2.msra.mxu0 0.0
      %2791 = vmatprep.subr.mxu0 0.0
      %2792 = vmatpush2.msra.mxu0 0.0
      %2793 = vmatprep.subr.mxu0 0.0
      %2794 = vmatpush2.msra.mxu0 0.0
      %2795 = vmatprep.subr.mxu0 0.0
      %2796 = vmatpush2.msra.mxu0 0.0
      %2797 = vmatprep.mubr.f32.mxu0 0.0
      %2798 = vmatmul.mubr.f32.gmra.mxu0 %v2660
      %v2799 = vpop.f32.mrf.mxu0
      %v2800 = vadd.f32 0.0, %v2799
      %v2801 = vpop.f32.mrf.mxu0
      %v2802 = vadd.f32 0.0, %v2801
      %2803 = vdwg.mxu0
      %v2804 = vadd.f32 %v2634, %v2729
      %v2805 = vadd.f32 %v2635, %v2731
      %v2806 = vadd.f32 %v2636, %v2800
      %v2807 = vadd.f32 %v2637, %v2802
      %s2808 = scalar_lea.vmem %s7, 104
      %v2809 = vld [vmem:[%s2808] sm:$0xff]
      %v2811 = vsel %vm628, %v2809, 0
      %2813 = vmatprep.subr.mxu0 0.0
      %2814 = vmatpush1.msra.mxu0 0.0
      %2815 = vmatprep.subr.mxu0 0.0
      %2816 = vmatpush1.msra.mxu0 0.0
      %2817 = vmatprep.subr.mxu0 0.0
      %2818 = vmatpush1.msra.mxu0 0.0
      %2819 = vmatprep.subr.mxu0 0.0
      %2820 = vmatpush1.msra.mxu0 0.0
      %2821 = vmatprep.subr.mxu0 0.0
      %2822 = vmatpush1.msra.mxu0 0.0
      %2823 = vmatprep.subr.mxu0 0.0
      %2824 = vmatpush1.msra.mxu0 0.0
      %2825 = vmatprep.subr.mxu0 0.0
      %2826 = vmatpush1.msra.mxu0 0.0
      %2827 = vmatprep.subr.mxu0 0.0
      %2828 = vmatpush1.msra.mxu0 0.0
      %2829 = vmatprep.subr.mxu0 0.0
      %2830 = vmatpush1.msra.mxu0 0.0
      %2831 = vmatprep.subr.mxu0 0.0
      %2832 = vmatpush1.msra.mxu0 0.0
      %2833 = vmatprep.subr.mxu0 0.0
      %2834 = vmatpush1.msra.mxu0 0.0
      %2835 = vmatprep.subr.mxu0 0.0
      %2836 = vmatpush1.msra.mxu0 0.0
      %2837 = vmatprep.subr.mxu0 0.0
      %2838 = vmatpush1.msra.mxu0 0.0
      %2839 = vmatprep.subr.mxu0 0.0
      %2840 = vmatpush1.msra.mxu0 0.0
      %2841 = vmatprep.subr.mxu0 0.0
      %2842 = vmatpush1.msra.mxu0 0.0
      %2843 = vmatprep.subr.mxu0 %v586
      %2844 = vmatpush1.msra.mxu0 %v585
      %2845 = vmatprep.subr.mxu0 0.0
      %2846 = vmatpush2.msra.mxu0 0.0
      %2847 = vmatprep.subr.mxu0 0.0
      %2848 = vmatpush2.msra.mxu0 0.0
      %2849 = vmatprep.subr.mxu0 0.0
      %2850 = vmatpush2.msra.mxu0 0.0
      %2851 = vmatprep.subr.mxu0 0.0
      %2852 = vmatpush2.msra.mxu0 0.0
      %2853 = vmatprep.subr.mxu0 0.0
      %2854 = vmatpush2.msra.mxu0 0.0
      %2855 = vmatprep.subr.mxu0 0.0
      %2856 = vmatpush2.msra.mxu0 0.0
      %2857 = vmatprep.subr.mxu0 0.0
      %2858 = vmatpush2.msra.mxu0 0.0
      %2859 = vmatprep.subr.mxu0 0.0
      %2860 = vmatpush2.msra.mxu0 0.0
      %2861 = vmatprep.subr.mxu0 0.0
      %2862 = vmatpush2.msra.mxu0 0.0
      %2863 = vmatprep.subr.mxu0 0.0
      %2864 = vmatpush2.msra.mxu0 0.0
      %2865 = vmatprep.subr.mxu0 0.0
      %2866 = vmatpush2.msra.mxu0 0.0
      %2867 = vmatprep.subr.mxu0 0.0
      %2868 = vmatpush2.msra.mxu0 0.0
      %2869 = vmatprep.subr.mxu0 0.0
      %2870 = vmatpush2.msra.mxu0 0.0
      %2871 = vmatprep.subr.mxu0 0.0
      %2872 = vmatpush2.msra.mxu0 0.0
      %2873 = vmatprep.subr.mxu0 0.0
      %2874 = vmatpush2.msra.mxu0 0.0
      %2875 = vmatprep.subr.mxu0 0.0
      %2876 = vmatpush2.msra.mxu0 0.0
      %2877 = vmatprep.mubr.f32.mxu0 0.0
      %2878 = vmatmul.mubr.f32.gmra.mxu0 %v2811
      %v2879 = vpop.f32.mrf.mxu0
      %v2880 = vadd.f32 0.0, %v2879
      %v2881 = vpop.f32.mrf.mxu0
      %v2882 = vadd.f32 0.0, %v2881
      %2883 = vdwg.mxu0
      %2884 = vmatprep.subr.mxu0 0.0
      %2885 = vmatpush1.msra.mxu0 0.0
      %2886 = vmatprep.subr.mxu0 0.0
      %2887 = vmatpush1.msra.mxu0 0.0
      %2888 = vmatprep.subr.mxu0 0.0
      %2889 = vmatpush1.msra.mxu0 0.0
      %2890 = vmatprep.subr.mxu0 0.0
      %2891 = vmatpush1.msra.mxu0 0.0
      %2892 = vmatprep.subr.mxu0 0.0
      %2893 = vmatpush1.msra.mxu0 0.0
      %2894 = vmatprep.subr.mxu0 0.0
      %2895 = vmatpush1.msra.mxu0 0.0
      %2896 = vmatprep.subr.mxu0 0.0
      %2897 = vmatpush1.msra.mxu0 0.0
      %2898 = vmatprep.subr.mxu0 0.0
      %2899 = vmatpush1.msra.mxu0 0.0
      %2900 = vmatprep.subr.mxu0 0.0
      %2901 = vmatpush1.msra.mxu0 0.0
      %2902 = vmatprep.subr.mxu0 0.0
      %2903 = vmatpush1.msra.mxu0 0.0
      %2904 = vmatprep.subr.mxu0 0.0
      %2905 = vmatpush1.msra.mxu0 0.0
      %2906 = vmatprep.subr.mxu0 0.0
      %2907 = vmatpush1.msra.mxu0 0.0
      %2908 = vmatprep.subr.mxu0 0.0
      %2909 = vmatpush1.msra.mxu0 0.0
      %2910 = vmatprep.subr.mxu0 0.0
      %2911 = vmatpush1.msra.mxu0 0.0
      %2912 = vmatprep.subr.mxu0 0.0
      %2913 = vmatpush1.msra.mxu0 0.0
      %2914 = vmatprep.subr.mxu0 %v588
      %2915 = vmatpush1.msra.mxu0 %v587
      %2916 = vmatprep.subr.mxu0 0.0
      %2917 = vmatpush2.msra.mxu0 0.0
      %2918 = vmatprep.subr.mxu0 0.0
      %2919 = vmatpush2.msra.mxu0 0.0
      %2920 = vmatprep.subr.mxu0 0.0
      %2921 = vmatpush2.msra.mxu0 0.0
      %2922 = vmatprep.subr.mxu0 0.0
      %2923 = vmatpush2.msra.mxu0 0.0
      %2924 = vmatprep.subr.mxu0 0.0
      %2925 = vmatpush2.msra.mxu0 0.0
      %2926 = vmatprep.subr.mxu0 0.0
      %2927 = vmatpush2.msra.mxu0 0.0
      %2928 = vmatprep.subr.mxu0 0.0
      %2929 = vmatpush2.msra.mxu0 0.0
      %2930 = vmatprep.subr.mxu0 0.0
      %2931 = vmatpush2.msra.mxu0 0.0
      %2932 = vmatprep.subr.mxu0 0.0
      %2933 = vmatpush2.msra.mxu0 0.0
      %2934 = vmatprep.subr.mxu0 0.0
      %2935 = vmatpush2.msra.mxu0 0.0
      %2936 = vmatprep.subr.mxu0 0.0
      %2937 = vmatpush2.msra.mxu0 0.0
      %2938 = vmatprep.subr.mxu0 0.0
      %2939 = vmatpush2.msra.mxu0 0.0
      %2940 = vmatprep.subr.mxu0 0.0
      %2941 = vmatpush2.msra.mxu0 0.0
      %2942 = vmatprep.subr.mxu0 0.0
      %2943 = vmatpush2.msra.mxu0 0.0
      %2944 = vmatprep.subr.mxu0 0.0
      %2945 = vmatpush2.msra.mxu0 0.0
      %2946 = vmatprep.subr.mxu0 0.0
      %2947 = vmatpush2.msra.mxu0 0.0
      %2948 = vmatprep.mubr.f32.mxu0 0.0
      %2949 = vmatmul.mubr.f32.gmra.mxu0 %v2811
      %v2950 = vpop.f32.mrf.mxu0
      %v2951 = vadd.f32 0.0, %v2950
      %v2952 = vpop.f32.mrf.mxu0
      %v2953 = vadd.f32 0.0, %v2952
      %2954 = vdwg.mxu0
      %v2955 = vadd.f32 %v2804, %v2880
      %v2956 = vadd.f32 %v2805, %v2882
      %v2957 = vadd.f32 %v2806, %v2951
      %v2958 = vadd.f32 %v2807, %v2953
      %s2959 = scalar_lea.vmem %s7, 112
      %v2960 = vld [vmem:[%s2959] sm:$0xff]
      %2962 = vrot.lane.b32.xlu0 %v585, 127
      %v2963 = vpop.permute.xlu0 %2962
      %2964 = vrot.lane.b32.xlu0 %v586, 127
      %v2965 = vpop.permute.xlu0 %2964
      %2966 = vrot.lane.b32.xlu0 %v587, 127
      %v2967 = vpop.permute.xlu0 %2966
      %2968 = vrot.lane.b32.xlu0 %v588, 127
      %v2969 = vpop.permute.xlu0 %2968
      %2970 = vrot.lane.b32.xlu0 %v600, 127
      %v2971 = vpop.permute.xlu0 %2970
      %vm2972 = vcmask 1039360
      %v2973 = vsel %vm2972, %v2963, %v2965
      %v2974 = vsel %vm2972, %v2965, %v2967
      %v2975 = vsel %vm2972, %v2967, %v2969
      %v2976 = vsel %vm2972, %v2969, %v2971
      %v2982 = vsel %vm628, %v2960, 0
      %2984 = vmatprep.subr.mxu0 0.0
      %2985 = vmatpush1.msra.mxu0 0.0
      %2986 = vmatprep.subr.mxu0 0.0
      %2987 = vmatpush1.msra.mxu0 0.0
      %2988 = vmatprep.subr.mxu0 0.0
      %2989 = vmatpush1.msra.mxu0 0.0
      %2990 = vmatprep.subr.mxu0 0.0
      %2991 = vmatpush1.msra.mxu0 0.0
      %2992 = vmatprep.subr.mxu0 0.0
      %2993 = vmatpush1.msra.mxu0 0.0
      %2994 = vmatprep.subr.mxu0 0.0
      %2995 = vmatpush1.msra.mxu0 0.0
      %2996 = vmatprep.subr.mxu0 0.0
      %2997 = vmatpush1.msra.mxu0 0.0
      %2998 = vmatprep.subr.mxu0 0.0
      %2999 = vmatpush1.msra.mxu0 0.0
      %3000 = vmatprep.subr.mxu0 0.0
      %3001 = vmatpush1.msra.mxu0 0.0
      %3002 = vmatprep.subr.mxu0 0.0
      %3003 = vmatpush1.msra.mxu0 0.0
      %3004 = vmatprep.subr.mxu0 0.0
      %3005 = vmatpush1.msra.mxu0 0.0
      %3006 = vmatprep.subr.mxu0 0.0
      %3007 = vmatpush1.msra.mxu0 0.0
      %3008 = vmatprep.subr.mxu0 0.0
      %3009 = vmatpush1.msra.mxu0 0.0
      %3010 = vmatprep.subr.mxu0 0.0
      %3011 = vmatpush1.msra.mxu0 0.0
      %3012 = vmatprep.subr.mxu0 0.0
      %3013 = vmatpush1.msra.mxu0 0.0
      %3014 = vmatprep.subr.mxu0 %v2974
      %3015 = vmatpush1.msra.mxu0 %v2973
      %3016 = vmatprep.subr.mxu0 0.0
      %3017 = vmatpush2.msra.mxu0 0.0
      %3018 = vmatprep.subr.mxu0 0.0
      %3019 = vmatpush2.msra.mxu0 0.0
      %3020 = vmatprep.subr.mxu0 0.0
      %3021 = vmatpush2.msra.mxu0 0.0
      %3022 = vmatprep.subr.mxu0 0.0
      %3023 = vmatpush2.msra.mxu0 0.0
      %3024 = vmatprep.subr.mxu0 0.0
      %3025 = vmatpush2.msra.mxu0 0.0
      %3026 = vmatprep.subr.mxu0 0.0
      %3027 = vmatpush2.msra.mxu0 0.0
      %3028 = vmatprep.subr.mxu0 0.0
      %3029 = vmatpush2.msra.mxu0 0.0
      %3030 = vmatprep.subr.mxu0 0.0
      %3031 = vmatpush2.msra.mxu0 0.0
      %3032 = vmatprep.subr.mxu0 0.0
      %3033 = vmatpush2.msra.mxu0 0.0
      %3034 = vmatprep.subr.mxu0 0.0
      %3035 = vmatpush2.msra.mxu0 0.0
      %3036 = vmatprep.subr.mxu0 0.0
      %3037 = vmatpush2.msra.mxu0 0.0
      %3038 = vmatprep.subr.mxu0 0.0
      %3039 = vmatpush2.msra.mxu0 0.0
      %3040 = vmatprep.subr.mxu0 0.0
      %3041 = vmatpush2.msra.mxu0 0.0
      %3042 = vmatprep.subr.mxu0 0.0
      %3043 = vmatpush2.msra.mxu0 0.0
      %3044 = vmatprep.subr.mxu0 0.0
      %3045 = vmatpush2.msra.mxu0 0.0
      %3046 = vmatprep.subr.mxu0 0.0
      %3047 = vmatpush2.msra.mxu0 0.0
      %3048 = vmatprep.mubr.f32.mxu0 0.0
      %3049 = vmatmul.mubr.f32.gmra.mxu0 %v2982
      %v3050 = vpop.f32.mrf.mxu0
      %v3051 = vadd.f32 0.0, %v3050
      %v3052 = vpop.f32.mrf.mxu0
      %v3053 = vadd.f32 0.0, %v3052
      %3054 = vdwg.mxu0
      %3055 = vmatprep.subr.mxu0 0.0
      %3056 = vmatpush1.msra.mxu0 0.0
      %3057 = vmatprep.subr.mxu0 0.0
      %3058 = vmatpush1.msra.mxu0 0.0
      %3059 = vmatprep.subr.mxu0 0.0
      %3060 = vmatpush1.msra.mxu0 0.0
      %3061 = vmatprep.subr.mxu0 0.0
      %3062 = vmatpush1.msra.mxu0 0.0
      %3063 = vmatprep.subr.mxu0 0.0
      %3064 = vmatpush1.msra.mxu0 0.0
      %3065 = vmatprep.subr.mxu0 0.0
      %3066 = vmatpush1.msra.mxu0 0.0
      %3067 = vmatprep.subr.mxu0 0.0
      %3068 = vmatpush1.msra.mxu0 0.0
      %3069 = vmatprep.subr.mxu0 0.0
      %3070 = vmatpush1.msra.mxu0 0.0
      %3071 = vmatprep.subr.mxu0 0.0
      %3072 = vmatpush1.msra.mxu0 0.0
      %3073 = vmatprep.subr.mxu0 0.0
      %3074 = vmatpush1.msra.mxu0 0.0
      %3075 = vmatprep.subr.mxu0 0.0
      %3076 = vmatpush1.msra.mxu0 0.0
      %3077 = vmatprep.subr.mxu0 0.0
      %3078 = vmatpush1.msra.mxu0 0.0
      %3079 = vmatprep.subr.mxu0 0.0
      %3080 = vmatpush1.msra.mxu0 0.0
      %3081 = vmatprep.subr.mxu0 0.0
      %3082 = vmatpush1.msra.mxu0 0.0
      %3083 = vmatprep.subr.mxu0 0.0
      %3084 = vmatpush1.msra.mxu0 0.0
      %3085 = vmatprep.subr.mxu0 %v2976
      %3086 = vmatpush1.msra.mxu0 %v2975
      %3087 = vmatprep.subr.mxu0 0.0
      %3088 = vmatpush2.msra.mxu0 0.0
      %3089 = vmatprep.subr.mxu0 0.0
      %3090 = vmatpush2.msra.mxu0 0.0
      %3091 = vmatprep.subr.mxu0 0.0
      %3092 = vmatpush2.msra.mxu0 0.0
      %3093 = vmatprep.subr.mxu0 0.0
      %3094 = vmatpush2.msra.mxu0 0.0
      %3095 = vmatprep.subr.mxu0 0.0
      %3096 = vmatpush2.msra.mxu0 0.0
      %3097 = vmatprep.subr.mxu0 0.0
      %3098 = vmatpush2.msra.mxu0 0.0
      %3099 = vmatprep.subr.mxu0 0.0
      %3100 = vmatpush2.msra.mxu0 0.0
      %3101 = vmatprep.subr.mxu0 0.0
      %3102 = vmatpush2.msra.mxu0 0.0
      %3103 = vmatprep.subr.mxu0 0.0
      %3104 = vmatpush2.msra.mxu0 0.0
      %3105 = vmatprep.subr.mxu0 0.0
      %3106 = vmatpush2.msra.mxu0 0.0
      %3107 = vmatprep.subr.mxu0 0.0
      %3108 = vmatpush2.msra.mxu0 0.0
      %3109 = vmatprep.subr.mxu0 0.0
      %3110 = vmatpush2.msra.mxu0 0.0
      %3111 = vmatprep.subr.mxu0 0.0
      %3112 = vmatpush2.msra.mxu0 0.0
      %3113 = vmatprep.subr.mxu0 0.0
      %3114 = vmatpush2.msra.mxu0 0.0
      %3115 = vmatprep.subr.mxu0 0.0
      %3116 = vmatpush2.msra.mxu0 0.0
      %3117 = vmatprep.subr.mxu0 0.0
      %3118 = vmatpush2.msra.mxu0 0.0
      %3119 = vmatprep.mubr.f32.mxu0 0.0
      %3120 = vmatmul.mubr.f32.gmra.mxu0 %v2982
      %v3121 = vpop.f32.mrf.mxu0
      %v3122 = vadd.f32 0.0, %v3121
      %v3123 = vpop.f32.mrf.mxu0
      %v3124 = vadd.f32 0.0, %v3123
      %3125 = vdwg.mxu0
      %v3126 = vadd.f32 %v2955, %v3051
      %v3127 = vadd.f32 %v2956, %v3053
      %v3128 = vadd.f32 %v2957, %v3122
      %v3129 = vadd.f32 %v2958, %v3124
      %s3130 = scalar_lea.vmem %s7, 120
      %v3131 = vld [vmem:[%s3130] sm:$0xff]
      %3132 = vrot.lane.b32.xlu0 %v585, 119
      %v3133 = vpop.permute.xlu0 %3132
      %3134 = vrot.lane.b32.xlu0 %v586, 119
      %v3135 = vpop.permute.xlu0 %3134
      %3136 = vrot.lane.b32.xlu0 %v587, 119
      %v3137 = vpop.permute.xlu0 %3136
      %3138 = vrot.lane.b32.xlu0 %v588, 119
      %v3139 = vpop.permute.xlu0 %3138
      %3140 = vrot.lane.b32.xlu0 %v600, 119
      %v3141 = vpop.permute.xlu0 %3140
      %vm3142 = vcmask 973824
      %v3143 = vsel %vm3142, %v3133, %v3135
      %v3144 = vsel %vm3142, %v3135, %v3137
      %v3145 = vsel %vm3142, %v3137, %v3139
      %v3146 = vsel %vm3142, %v3139, %v3141
      %v3152 = vsel %vm628, %v3131, 0
      %3154 = vmatprep.subr.mxu0 0.0
      %3155 = vmatpush1.msra.mxu0 0.0
      %3156 = vmatprep.subr.mxu0 0.0
      %3157 = vmatpush1.msra.mxu0 0.0
      %3158 = vmatprep.subr.mxu0 0.0
      %3159 = vmatpush1.msra.mxu0 0.0
      %3160 = vmatprep.subr.mxu0 0.0
      %3161 = vmatpush1.msra.mxu0 0.0
      %3162 = vmatprep.subr.mxu0 0.0
      %3163 = vmatpush1.msra.mxu0 0.0
      %3164 = vmatprep.subr.mxu0 0.0
      %3165 = vmatpush1.msra.mxu0 0.0
      %3166 = vmatprep.subr.mxu0 0.0
      %3167 = vmatpush1.msra.mxu0 0.0
      %3168 = vmatprep.subr.mxu0 0.0
      %3169 = vmatpush1.msra.mxu0 0.0
      %3170 = vmatprep.subr.mxu0 0.0
      %3171 = vmatpush1.msra.mxu0 0.0
      %3172 = vmatprep.subr.mxu0 0.0
      %3173 = vmatpush1.msra.mxu0 0.0
      %3174 = vmatprep.subr.mxu0 0.0
      %3175 = vmatpush1.msra.mxu0 0.0
      %3176 = vmatprep.subr.mxu0 0.0
      %3177 = vmatpush1.msra.mxu0 0.0
      %3178 = vmatprep.subr.mxu0 0.0
      %3179 = vmatpush1.msra.mxu0 0.0
      %3180 = vmatprep.subr.mxu0 0.0
      %3181 = vmatpush1.msra.mxu0 0.0
      %3182 = vmatprep.subr.mxu0 0.0
      %3183 = vmatpush1.msra.mxu0 0.0
      %3184 = vmatprep.subr.mxu0 %v3144
      %3185 = vmatpush1.msra.mxu0 %v3143
      %3186 = vmatprep.subr.mxu0 0.0
      %3187 = vmatpush2.msra.mxu0 0.0
      %3188 = vmatprep.subr.mxu0 0.0
      %3189 = vmatpush2.msra.mxu0 0.0
      %3190 = vmatprep.subr.mxu0 0.0
      %3191 = vmatpush2.msra.mxu0 0.0
      %3192 = vmatprep.subr.mxu0 0.0
      %3193 = vmatpush2.msra.mxu0 0.0
      %3194 = vmatprep.subr.mxu0 0.0
      %3195 = vmatpush2.msra.mxu0 0.0
      %3196 = vmatprep.subr.mxu0 0.0
      %3197 = vmatpush2.msra.mxu0 0.0
      %3198 = vmatprep.subr.mxu0 0.0
      %3199 = vmatpush2.msra.mxu0 0.0
      %3200 = vmatprep.subr.mxu0 0.0
      %3201 = vmatpush2.msra.mxu0 0.0
      %3202 = vmatprep.subr.mxu0 0.0
      %3203 = vmatpush2.msra.mxu0 0.0
      %3204 = vmatprep.subr.mxu0 0.0
      %3205 = vmatpush2.msra.mxu0 0.0
      %3206 = vmatprep.subr.mxu0 0.0
      %3207 = vmatpush2.msra.mxu0 0.0
      %3208 = vmatprep.subr.mxu0 0.0
      %3209 = vmatpush2.msra.mxu0 0.0
      %3210 = vmatprep.subr.mxu0 0.0
      %3211 = vmatpush2.msra.mxu0 0.0
      %3212 = vmatprep.subr.mxu0 0.0
      %3213 = vmatpush2.msra.mxu0 0.0
      %3214 = vmatprep.subr.mxu0 0.0
      %3215 = vmatpush2.msra.mxu0 0.0
      %3216 = vmatprep.subr.mxu0 0.0
      %3217 = vmatpush2.msra.mxu0 0.0
      %3218 = vmatprep.mubr.f32.mxu0 0.0
      %3219 = vmatmul.mubr.f32.gmra.mxu0 %v3152
      %v3220 = vpop.f32.mrf.mxu0
      %v3221 = vadd.f32 0.0, %v3220
      %v3222 = vpop.f32.mrf.mxu0
      %v3223 = vadd.f32 0.0, %v3222
      %3224 = vdwg.mxu0
      %3225 = vmatprep.subr.mxu0 0.0
      %3226 = vmatpush1.msra.mxu0 0.0
      %3227 = vmatprep.subr.mxu0 0.0
      %3228 = vmatpush1.msra.mxu0 0.0
      %3229 = vmatprep.subr.mxu0 0.0
      %3230 = vmatpush1.msra.mxu0 0.0
      %3231 = vmatprep.subr.mxu0 0.0
      %3232 = vmatpush1.msra.mxu0 0.0
      %3233 = vmatprep.subr.mxu0 0.0
      %3234 = vmatpush1.msra.mxu0 0.0
      %3235 = vmatprep.subr.mxu0 0.0
      %3236 = vmatpush1.msra.mxu0 0.0
      %3237 = vmatprep.subr.mxu0 0.0
      %3238 = vmatpush1.msra.mxu0 0.0
      %3239 = vmatprep.subr.mxu0 0.0
      %3240 = vmatpush1.msra.mxu0 0.0
      %3241 = vmatprep.subr.mxu0 0.0
      %3242 = vmatpush1.msra.mxu0 0.0
      %3243 = vmatprep.subr.mxu0 0.0
      %3244 = vmatpush1.msra.mxu0 0.0
      %3245 = vmatprep.subr.mxu0 0.0
      %3246 = vmatpush1.msra.mxu0 0.0
      %3247 = vmatprep.subr.mxu0 0.0
      %3248 = vmatpush1.msra.mxu0 0.0
      %3249 = vmatprep.subr.mxu0 0.0
      %3250 = vmatpush1.msra.mxu0 0.0
      %3251 = vmatprep.subr.mxu0 0.0
      %3252 = vmatpush1.msra.mxu0 0.0
      %3253 = vmatprep.subr.mxu0 0.0
      %3254 = vmatpush1.msra.mxu0 0.0
      %3255 = vmatprep.subr.mxu0 %v3146
      %3256 = vmatpush1.msra.mxu0 %v3145
      %3257 = vmatprep.subr.mxu0 0.0
      %3258 = vmatpush2.msra.mxu0 0.0
      %3259 = vmatprep.subr.mxu0 0.0
      %3260 = vmatpush2.msra.mxu0 0.0
      %3261 = vmatprep.subr.mxu0 0.0
      %3262 = vmatpush2.msra.mxu0 0.0
      %3263 = vmatprep.subr.mxu0 0.0
      %3264 = vmatpush2.msra.mxu0 0.0
      %3265 = vmatprep.subr.mxu0 0.0
      %3266 = vmatpush2.msra.mxu0 0.0
      %3267 = vmatprep.subr.mxu0 0.0
      %3268 = vmatpush2.msra.mxu0 0.0
      %3269 = vmatprep.subr.mxu0 0.0
      %3270 = vmatpush2.msra.mxu0 0.0
      %3271 = vmatprep.subr.mxu0 0.0
      %3272 = vmatpush2.msra.mxu0 0.0
      %3273 = vmatprep.subr.mxu0 0.0
      %3274 = vmatpush2.msra.mxu0 0.0
      %3275 = vmatprep.subr.mxu0 0.0
      %3276 = vmatpush2.msra.mxu0 0.0
      %3277 = vmatprep.subr.mxu0 0.0
      %3278 = vmatpush2.msra.mxu0 0.0
      %3279 = vmatprep.subr.mxu0 0.0
      %3280 = vmatpush2.msra.mxu0 0.0
      %3281 = vmatprep.subr.mxu0 0.0
      %3282 = vmatpush2.msra.mxu0 0.0
      %3283 = vmatprep.subr.mxu0 0.0
      %3284 = vmatpush2.msra.mxu0 0.0
      %3285 = vmatprep.subr.mxu0 0.0
      %3286 = vmatpush2.msra.mxu0 0.0
      %3287 = vmatprep.subr.mxu0 0.0
      %3288 = vmatpush2.msra.mxu0 0.0
      %3289 = vmatprep.mubr.f32.mxu0 0.0
      %3290 = vmatmul.mubr.f32.gmra.mxu0 %v3152
      %v3291 = vpop.f32.mrf.mxu0
      %v3292 = vadd.f32 0.0, %v3291
      %v3293 = vpop.f32.mrf.mxu0
      %v3294 = vadd.f32 0.0, %v3293
      %3295 = vdwg.mxu0
      %v3296 = vadd.f32 %v3126, %v3221
      %v3297 = vadd.f32 %v3127, %v3223
      %v3298 = vadd.f32 %v3128, %v3292
      %v3299 = vadd.f32 %v3129, %v3294
      %s3300 = scalar_lea.vmem %s7, 128
      %v3301 = vld [vmem:[%s3300] sm:$0xff]
      %3302 = vrot.lane.b32.xlu0 %v585, 118
      %v3303 = vpop.permute.xlu0 %3302
      %3304 = vrot.lane.b32.xlu0 %v586, 118
      %v3305 = vpop.permute.xlu0 %3304
      %3306 = vrot.lane.b32.xlu0 %v587, 118
      %v3307 = vpop.permute.xlu0 %3306
      %3308 = vrot.lane.b32.xlu0 %v588, 118
      %v3309 = vpop.permute.xlu0 %3308
      %3310 = vrot.lane.b32.xlu0 %v600, 118
      %v3311 = vpop.permute.xlu0 %3310
      %vm3312 = vcmask 965632
      %v3313 = vsel %vm3312, %v3303, %v3305
      %v3314 = vsel %vm3312, %v3305, %v3307
      %v3315 = vsel %vm3312, %v3307, %v3309
      %v3316 = vsel %vm3312, %v3309, %v3311
      %v3322 = vsel %vm628, %v3301, 0
      %3324 = vmatprep.subr.mxu0 0.0
      %3325 = vmatpush1.msra.mxu0 0.0
      %3326 = vmatprep.subr.mxu0 0.0
      %3327 = vmatpush1.msra.mxu0 0.0
      %3328 = vmatprep.subr.mxu0 0.0
      %3329 = vmatpush1.msra.mxu0 0.0
      %3330 = vmatprep.subr.mxu0 0.0
      %3331 = vmatpush1.msra.mxu0 0.0
      %3332 = vmatprep.subr.mxu0 0.0
      %3333 = vmatpush1.msra.mxu0 0.0
      %3334 = vmatprep.subr.mxu0 0.0
      %3335 = vmatpush1.msra.mxu0 0.0
      %3336 = vmatprep.subr.mxu0 0.0
      %3337 = vmatpush1.msra.mxu0 0.0
      %3338 = vmatprep.subr.mxu0 0.0
      %3339 = vmatpush1.msra.mxu0 0.0
      %3340 = vmatprep.subr.mxu0 0.0
      %3341 = vmatpush1.msra.mxu0 0.0
      %3342 = vmatprep.subr.mxu0 0.0
      %3343 = vmatpush1.msra.mxu0 0.0
      %3344 = vmatprep.subr.mxu0 0.0
      %3345 = vmatpush1.msra.mxu0 0.0
      %3346 = vmatprep.subr.mxu0 0.0
      %3347 = vmatpush1.msra.mxu0 0.0
      %3348 = vmatprep.subr.mxu0 0.0
      %3349 = vmatpush1.msra.mxu0 0.0
      %3350 = vmatprep.subr.mxu0 0.0
      %3351 = vmatpush1.msra.mxu0 0.0
      %3352 = vmatprep.subr.mxu0 0.0
      %3353 = vmatpush1.msra.mxu0 0.0
      %3354 = vmatprep.subr.mxu0 %v3314
      %3355 = vmatpush1.msra.mxu0 %v3313
      %3356 = vmatprep.subr.mxu0 0.0
      %3357 = vmatpush2.msra.mxu0 0.0
      %3358 = vmatprep.subr.mxu0 0.0
      %3359 = vmatpush2.msra.mxu0 0.0
      %3360 = vmatprep.subr.mxu0 0.0
      %3361 = vmatpush2.msra.mxu0 0.0
      %3362 = vmatprep.subr.mxu0 0.0
      %3363 = vmatpush2.msra.mxu0 0.0
      %3364 = vmatprep.subr.mxu0 0.0
      %3365 = vmatpush2.msra.mxu0 0.0
      %3366 = vmatprep.subr.mxu0 0.0
      %3367 = vmatpush2.msra.mxu0 0.0
      %3368 = vmatprep.subr.mxu0 0.0
      %3369 = vmatpush2.msra.mxu0 0.0
      %3370 = vmatprep.subr.mxu0 0.0
      %3371 = vmatpush2.msra.mxu0 0.0
      %3372 = vmatprep.subr.mxu0 0.0
      %3373 = vmatpush2.msra.mxu0 0.0
      %3374 = vmatprep.subr.mxu0 0.0
      %3375 = vmatpush2.msra.mxu0 0.0
      %3376 = vmatprep.subr.mxu0 0.0
      %3377 = vmatpush2.msra.mxu0 0.0
      %3378 = vmatprep.subr.mxu0 0.0
      %3379 = vmatpush2.msra.mxu0 0.0
      %3380 = vmatprep.subr.mxu0 0.0
      %3381 = vmatpush2.msra.mxu0 0.0
      %3382 = vmatprep.subr.mxu0 0.0
      %3383 = vmatpush2.msra.mxu0 0.0
      %3384 = vmatprep.subr.mxu0 0.0
      %3385 = vmatpush2.msra.mxu0 0.0
      %3386 = vmatprep.subr.mxu0 0.0
      %3387 = vmatpush2.msra.mxu0 0.0
      %3388 = vmatprep.mubr.f32.mxu0 0.0
      %3389 = vmatmul.mubr.f32.gmra.mxu0 %v3322
      %v3390 = vpop.f32.mrf.mxu0
      %v3391 = vadd.f32 0.0, %v3390
      %v3392 = vpop.f32.mrf.mxu0
      %v3393 = vadd.f32 0.0, %v3392
      %3394 = vdwg.mxu0
      %3395 = vmatprep.subr.mxu0 0.0
      %3396 = vmatpush1.msra.mxu0 0.0
      %3397 = vmatprep.subr.mxu0 0.0
      %3398 = vmatpush1.msra.mxu0 0.0
      %3399 = vmatprep.subr.mxu0 0.0
      %3400 = vmatpush1.msra.mxu0 0.0
      %3401 = vmatprep.subr.mxu0 0.0
      %3402 = vmatpush1.msra.mxu0 0.0
      %3403 = vmatprep.subr.mxu0 0.0
      %3404 = vmatpush1.msra.mxu0 0.0
      %3405 = vmatprep.subr.mxu0 0.0
      %3406 = vmatpush1.msra.mxu0 0.0
      %3407 = vmatprep.subr.mxu0 0.0
      %3408 = vmatpush1.msra.mxu0 0.0
      %3409 = vmatprep.subr.mxu0 0.0
      %3410 = vmatpush1.msra.mxu0 0.0
      %3411 = vmatprep.subr.mxu0 0.0
      %3412 = vmatpush1.msra.mxu0 0.0
      %3413 = vmatprep.subr.mxu0 0.0
      %3414 = vmatpush1.msra.mxu0 0.0
      %3415 = vmatprep.subr.mxu0 0.0
      %3416 = vmatpush1.msra.mxu0 0.0
      %3417 = vmatprep.subr.mxu0 0.0
      %3418 = vmatpush1.msra.mxu0 0.0
      %3419 = vmatprep.subr.mxu0 0.0
      %3420 = vmatpush1.msra.mxu0 0.0
      %3421 = vmatprep.subr.mxu0 0.0
      %3422 = vmatpush1.msra.mxu0 0.0
      %3423 = vmatprep.subr.mxu0 0.0
      %3424 = vmatpush1.msra.mxu0 0.0
      %3425 = vmatprep.subr.mxu0 %v3316
      %3426 = vmatpush1.msra.mxu0 %v3315
      %3427 = vmatprep.subr.mxu0 0.0
      %3428 = vmatpush2.msra.mxu0 0.0
      %3429 = vmatprep.subr.mxu0 0.0
      %3430 = vmatpush2.msra.mxu0 0.0
      %3431 = vmatprep.subr.mxu0 0.0
      %3432 = vmatpush2.msra.mxu0 0.0
      %3433 = vmatprep.subr.mxu0 0.0
      %3434 = vmatpush2.msra.mxu0 0.0
      %3435 = vmatprep.subr.mxu0 0.0
      %3436 = vmatpush2.msra.mxu0 0.0
      %3437 = vmatprep.subr.mxu0 0.0
      %3438 = vmatpush2.msra.mxu0 0.0
      %3439 = vmatprep.subr.mxu0 0.0
      %3440 = vmatpush2.msra.mxu0 0.0
      %3441 = vmatprep.subr.mxu0 0.0
      %3442 = vmatpush2.msra.mxu0 0.0
      %3443 = vmatprep.subr.mxu0 0.0
      %3444 = vmatpush2.msra.mxu0 0.0
      %3445 = vmatprep.subr.mxu0 0.0
      %3446 = vmatpush2.msra.mxu0 0.0
      %3447 = vmatprep.subr.mxu0 0.0
      %3448 = vmatpush2.msra.mxu0 0.0
      %3449 = vmatprep.subr.mxu0 0.0
      %3450 = vmatpush2.msra.mxu0 0.0
      %3451 = vmatprep.subr.mxu0 0.0
      %3452 = vmatpush2.msra.mxu0 0.0
      %3453 = vmatprep.subr.mxu0 0.0
      %3454 = vmatpush2.msra.mxu0 0.0
      %3455 = vmatprep.subr.mxu0 0.0
      %3456 = vmatpush2.msra.mxu0 0.0
      %3457 = vmatprep.subr.mxu0 0.0
      %3458 = vmatpush2.msra.mxu0 0.0
      %3459 = vmatprep.mubr.f32.mxu0 0.0
      %3460 = vmatmul.mubr.f32.gmra.mxu0 %v3322
      %v3461 = vpop.f32.mrf.mxu0
      %v3462 = vadd.f32 0.0, %v3461
      %v3463 = vpop.f32.mrf.mxu0
      %v3464 = vadd.f32 0.0, %v3463
      %3465 = vdwg.mxu0
      %v3466 = vadd.f32 %v3296, %v3391
      %v3467 = vadd.f32 %v3297, %v3393
      %v3468 = vadd.f32 %v3298, %v3462
      %v3469 = vadd.f32 %v3299, %v3464
      %s3470 = scalar_lea.vmem %s7, 136
      %v3471 = vld [vmem:[%s3470] sm:$0xff]
      %3472 = vrot.lane.b32.xlu0 %v585, 117
      %v3473 = vpop.permute.xlu0 %3472
      %3474 = vrot.lane.b32.xlu0 %v586, 117
      %v3475 = vpop.permute.xlu0 %3474
      %3476 = vrot.lane.b32.xlu0 %v587, 117
      %v3477 = vpop.permute.xlu0 %3476
      %3478 = vrot.lane.b32.xlu0 %v588, 117
      %v3479 = vpop.permute.xlu0 %3478
      %3480 = vrot.lane.b32.xlu0 %v600, 117
      %v3481 = vpop.permute.xlu0 %3480
      %vm3482 = vcmask 957440
      %v3483 = vsel %vm3482, %v3473, %v3475
      %v3484 = vsel %vm3482, %v3475, %v3477
      %v3485 = vsel %vm3482, %v3477, %v3479
      %v3486 = vsel %vm3482, %v3479, %v3481
      %v3492 = vsel %vm628, %v3471, 0
      %3494 = vmatprep.subr.mxu0 0.0
      %3495 = vmatpush1.msra.mxu0 0.0
      %3496 = vmatprep.subr.mxu0 0.0
      %3497 = vmatpush1.msra.mxu0 0.0
      %3498 = vmatprep.subr.mxu0 0.0
      %3499 = vmatpush1.msra.mxu0 0.0
      %3500 = vmatprep.subr.mxu0 0.0
      %3501 = vmatpush1.msra.mxu0 0.0
      %3502 = vmatprep.subr.mxu0 0.0
      %3503 = vmatpush1.msra.mxu0 0.0
      %3504 = vmatprep.subr.mxu0 0.0
      %3505 = vmatpush1.msra.mxu0 0.0
      %3506 = vmatprep.subr.mxu0 0.0
      %3507 = vmatpush1.msra.mxu0 0.0
      %3508 = vmatprep.subr.mxu0 0.0
      %3509 = vmatpush1.msra.mxu0 0.0
      %3510 = vmatprep.subr.mxu0 0.0
      %3511 = vmatpush1.msra.mxu0 0.0
      %3512 = vmatprep.subr.mxu0 0.0
      %3513 = vmatpush1.msra.mxu0 0.0
      %3514 = vmatprep.subr.mxu0 0.0
      %3515 = vmatpush1.msra.mxu0 0.0
      %3516 = vmatprep.subr.mxu0 0.0
      %3517 = vmatpush1.msra.mxu0 0.0
      %3518 = vmatprep.subr.mxu0 0.0
      %3519 = vmatpush1.msra.mxu0 0.0
      %3520 = vmatprep.subr.mxu0 0.0
      %3521 = vmatpush1.msra.mxu0 0.0
      %3522 = vmatprep.subr.mxu0 0.0
      %3523 = vmatpush1.msra.mxu0 0.0
      %3524 = vmatprep.subr.mxu0 %v3484
      %3525 = vmatpush1.msra.mxu0 %v3483
      %3526 = vmatprep.subr.mxu0 0.0
      %3527 = vmatpush2.msra.mxu0 0.0
      %3528 = vmatprep.subr.mxu0 0.0
      %3529 = vmatpush2.msra.mxu0 0.0
      %3530 = vmatprep.subr.mxu0 0.0
      %3531 = vmatpush2.msra.mxu0 0.0
      %3532 = vmatprep.subr.mxu0 0.0
      %3533 = vmatpush2.msra.mxu0 0.0
      %3534 = vmatprep.subr.mxu0 0.0
      %3535 = vmatpush2.msra.mxu0 0.0
      %3536 = vmatprep.subr.mxu0 0.0
      %3537 = vmatpush2.msra.mxu0 0.0
      %3538 = vmatprep.subr.mxu0 0.0
      %3539 = vmatpush2.msra.mxu0 0.0
      %3540 = vmatprep.subr.mxu0 0.0
      %3541 = vmatpush2.msra.mxu0 0.0
      %3542 = vmatprep.subr.mxu0 0.0
      %3543 = vmatpush2.msra.mxu0 0.0
      %3544 = vmatprep.subr.mxu0 0.0
      %3545 = vmatpush2.msra.mxu0 0.0
      %3546 = vmatprep.subr.mxu0 0.0
      %3547 = vmatpush2.msra.mxu0 0.0
      %3548 = vmatprep.subr.mxu0 0.0
      %3549 = vmatpush2.msra.mxu0 0.0
      %3550 = vmatprep.subr.mxu0 0.0
      %3551 = vmatpush2.msra.mxu0 0.0
      %3552 = vmatprep.subr.mxu0 0.0
      %3553 = vmatpush2.msra.mxu0 0.0
      %3554 = vmatprep.subr.mxu0 0.0
      %3555 = vmatpush2.msra.mxu0 0.0
      %3556 = vmatprep.subr.mxu0 0.0
      %3557 = vmatpush2.msra.mxu0 0.0
      %3558 = vmatprep.mubr.f32.mxu0 0.0
      %3559 = vmatmul.mubr.f32.gmra.mxu0 %v3492
      %v3560 = vpop.f32.mrf.mxu0
      %v3561 = vadd.f32 0.0, %v3560
      %v3562 = vpop.f32.mrf.mxu0
      %v3563 = vadd.f32 0.0, %v3562
      %3564 = vdwg.mxu0
      %3565 = vmatprep.subr.mxu0 0.0
      %3566 = vmatpush1.msra.mxu0 0.0
      %3567 = vmatprep.subr.mxu0 0.0
      %3568 = vmatpush1.msra.mxu0 0.0
      %3569 = vmatprep.subr.mxu0 0.0
      %3570 = vmatpush1.msra.mxu0 0.0
      %3571 = vmatprep.subr.mxu0 0.0
      %3572 = vmatpush1.msra.mxu0 0.0
      %3573 = vmatprep.subr.mxu0 0.0
      %3574 = vmatpush1.msra.mxu0 0.0
      %3575 = vmatprep.subr.mxu0 0.0
      %3576 = vmatpush1.msra.mxu0 0.0
      %3577 = vmatprep.subr.mxu0 0.0
      %3578 = vmatpush1.msra.mxu0 0.0
      %3579 = vmatprep.subr.mxu0 0.0
      %3580 = vmatpush1.msra.mxu0 0.0
      %3581 = vmatprep.subr.mxu0 0.0
      %3582 = vmatpush1.msra.mxu0 0.0
      %3583 = vmatprep.subr.mxu0 0.0
      %3584 = vmatpush1.msra.mxu0 0.0
      %3585 = vmatprep.subr.mxu0 0.0
      %3586 = vmatpush1.msra.mxu0 0.0
      %3587 = vmatprep.subr.mxu0 0.0
      %3588 = vmatpush1.msra.mxu0 0.0
      %3589 = vmatprep.subr.mxu0 0.0
      %3590 = vmatpush1.msra.mxu0 0.0
      %3591 = vmatprep.subr.mxu0 0.0
      %3592 = vmatpush1.msra.mxu0 0.0
      %3593 = vmatprep.subr.mxu0 0.0
      %3594 = vmatpush1.msra.mxu0 0.0
      %3595 = vmatprep.subr.mxu0 %v3486
      %3596 = vmatpush1.msra.mxu0 %v3485
      %3597 = vmatprep.subr.mxu0 0.0
      %3598 = vmatpush2.msra.mxu0 0.0
      %3599 = vmatprep.subr.mxu0 0.0
      %3600 = vmatpush2.msra.mxu0 0.0
      %3601 = vmatprep.subr.mxu0 0.0
      %3602 = vmatpush2.msra.mxu0 0.0
      %3603 = vmatprep.subr.mxu0 0.0
      %3604 = vmatpush2.msra.mxu0 0.0
      %3605 = vmatprep.subr.mxu0 0.0
      %3606 = vmatpush2.msra.mxu0 0.0
      %3607 = vmatprep.subr.mxu0 0.0
      %3608 = vmatpush2.msra.mxu0 0.0
      %3609 = vmatprep.subr.mxu0 0.0
      %3610 = vmatpush2.msra.mxu0 0.0
      %3611 = vmatprep.subr.mxu0 0.0
      %3612 = vmatpush2.msra.mxu0 0.0
      %3613 = vmatprep.subr.mxu0 0.0
      %3614 = vmatpush2.msra.mxu0 0.0
      %3615 = vmatprep.subr.mxu0 0.0
      %3616 = vmatpush2.msra.mxu0 0.0
      %3617 = vmatprep.subr.mxu0 0.0
      %3618 = vmatpush2.msra.mxu0 0.0
      %3619 = vmatprep.subr.mxu0 0.0
      %3620 = vmatpush2.msra.mxu0 0.0
      %3621 = vmatprep.subr.mxu0 0.0
      %3622 = vmatpush2.msra.mxu0 0.0
      %3623 = vmatprep.subr.mxu0 0.0
      %3624 = vmatpush2.msra.mxu0 0.0
      %3625 = vmatprep.subr.mxu0 0.0
      %3626 = vmatpush2.msra.mxu0 0.0
      %3627 = vmatprep.subr.mxu0 0.0
      %3628 = vmatpush2.msra.mxu0 0.0
      %3629 = vmatprep.mubr.f32.mxu0 0.0
      %3630 = vmatmul.mubr.f32.gmra.mxu0 %v3492
      %v3631 = vpop.f32.mrf.mxu0
      %v3632 = vadd.f32 0.0, %v3631
      %v3633 = vpop.f32.mrf.mxu0
      %v3634 = vadd.f32 0.0, %v3633
      %3635 = vdwg.mxu0
      %v3636 = vadd.f32 %v3466, %v3561
      %v3637 = vadd.f32 %v3467, %v3563
      %v3638 = vadd.f32 %v3468, %v3632
      %v3639 = vadd.f32 %v3469, %v3634
      %s3640 = scalar_lea.vmem %s7, 144
      %v3641 = vld [vmem:[%s3640] sm:$0xff]
      %3642 = vrot.lane.b32.xlu0 %v585, 39
      %v3643 = vpop.permute.xlu0 %3642
      %3644 = vrot.lane.b32.xlu0 %v586, 39
      %v3645 = vpop.permute.xlu0 %3644
      %3646 = vrot.lane.b32.xlu0 %v587, 39
      %v3647 = vpop.permute.xlu0 %3646
      %3648 = vrot.lane.b32.xlu0 %v588, 39
      %v3649 = vpop.permute.xlu0 %3648
      %3650 = vrot.lane.b32.xlu0 %v600, 39
      %v3651 = vpop.permute.xlu0 %3650
      %vm3652 = vcmask 318464
      %v3653 = vsel %vm3652, %v3643, %v3645
      %v3654 = vsel %vm3652, %v3645, %v3647
      %v3655 = vsel %vm3652, %v3647, %v3649
      %v3656 = vsel %vm3652, %v3649, %v3651
      %v3662 = vsel %vm628, %v3641, 0
      %3664 = vmatprep.subr.mxu0 0.0
      %3665 = vmatpush1.msra.mxu0 0.0
      %3666 = vmatprep.subr.mxu0 0.0
      %3667 = vmatpush1.msra.mxu0 0.0
      %3668 = vmatprep.subr.mxu0 0.0
      %3669 = vmatpush1.msra.mxu0 0.0
      %3670 = vmatprep.subr.mxu0 0.0
      %3671 = vmatpush1.msra.mxu0 0.0
      %3672 = vmatprep.subr.mxu0 0.0
      %3673 = vmatpush1.msra.mxu0 0.0
      %3674 = vmatprep.subr.mxu0 0.0
      %3675 = vmatpush1.msra.mxu0 0.0
      %3676 = vmatprep.subr.mxu0 0.0
      %3677 = vmatpush1.msra.mxu0 0.0
      %3678 = vmatprep.subr.mxu0 0.0
      %3679 = vmatpush1.msra.mxu0 0.0
      %3680 = vmatprep.subr.mxu0 0.0
      %3681 = vmatpush1.msra.mxu0 0.0
      %3682 = vmatprep.subr.mxu0 0.0
      %3683 = vmatpush1.msra.mxu0 0.0
      %3684 = vmatprep.subr.mxu0 0.0
      %3685 = vmatpush1.msra.mxu0 0.0
      %3686 = vmatprep.subr.mxu0 0.0
      %3687 = vmatpush1.msra.mxu0 0.0
      %3688 = vmatprep.subr.mxu0 0.0
      %3689 = vmatpush1.msra.mxu0 0.0
      %3690 = vmatprep.subr.mxu0 0.0
      %3691 = vmatpush1.msra.mxu0 0.0
      %3692 = vmatprep.subr.mxu0 0.0
      %3693 = vmatpush1.msra.mxu0 0.0
      %3694 = vmatprep.subr.mxu0 %v3654
      %3695 = vmatpush1.msra.mxu0 %v3653
      %3696 = vmatprep.subr.mxu0 0.0
      %3697 = vmatpush2.msra.mxu0 0.0
      %3698 = vmatprep.subr.mxu0 0.0
      %3699 = vmatpush2.msra.mxu0 0.0
      %3700 = vmatprep.subr.mxu0 0.0
      %3701 = vmatpush2.msra.mxu0 0.0
      %3702 = vmatprep.subr.mxu0 0.0
      %3703 = vmatpush2.msra.mxu0 0.0
      %3704 = vmatprep.subr.mxu0 0.0
      %3705 = vmatpush2.msra.mxu0 0.0
      %3706 = vmatprep.subr.mxu0 0.0
      %3707 = vmatpush2.msra.mxu0 0.0
      %3708 = vmatprep.subr.mxu0 0.0
      %3709 = vmatpush2.msra.mxu0 0.0
      %3710 = vmatprep.subr.mxu0 0.0
      %3711 = vmatpush2.msra.mxu0 0.0
      %3712 = vmatprep.subr.mxu0 0.0
      %3713 = vmatpush2.msra.mxu0 0.0
      %3714 = vmatprep.subr.mxu0 0.0
      %3715 = vmatpush2.msra.mxu0 0.0
      %3716 = vmatprep.subr.mxu0 0.0
      %3717 = vmatpush2.msra.mxu0 0.0
      %3718 = vmatprep.subr.mxu0 0.0
      %3719 = vmatpush2.msra.mxu0 0.0
      %3720 = vmatprep.subr.mxu0 0.0
      %3721 = vmatpush2.msra.mxu0 0.0
      %3722 = vmatprep.subr.mxu0 0.0
      %3723 = vmatpush2.msra.mxu0 0.0
      %3724 = vmatprep.subr.mxu0 0.0
      %3725 = vmatpush2.msra.mxu0 0.0
      %3726 = vmatprep.subr.mxu0 0.0
      %3727 = vmatpush2.msra.mxu0 0.0
      %3728 = vmatprep.mubr.f32.mxu0 0.0
      %3729 = vmatmul.mubr.f32.gmra.mxu0 %v3662
      %v3730 = vpop.f32.mrf.mxu0
      %v3731 = vadd.f32 0.0, %v3730
      %v3732 = vpop.f32.mrf.mxu0
      %v3733 = vadd.f32 0.0, %v3732
      %3734 = vdwg.mxu0
      %3735 = vmatprep.subr.mxu0 0.0
      %3736 = vmatpush1.msra.mxu0 0.0
      %3737 = vmatprep.subr.mxu0 0.0
      %3738 = vmatpush1.msra.mxu0 0.0
      %3739 = vmatprep.subr.mxu0 0.0
      %3740 = vmatpush1.msra.mxu0 0.0
      %3741 = vmatprep.subr.mxu0 0.0
      %3742 = vmatpush1.msra.mxu0 0.0
      %3743 = vmatprep.subr.mxu0 0.0
      %3744 = vmatpush1.msra.mxu0 0.0
      %3745 = vmatprep.subr.mxu0 0.0
      %3746 = vmatpush1.msra.mxu0 0.0
      %3747 = vmatprep.subr.mxu0 0.0
      %3748 = vmatpush1.msra.mxu0 0.0
      %3749 = vmatprep.subr.mxu0 0.0
      %3750 = vmatpush1.msra.mxu0 0.0
      %3751 = vmatprep.subr.mxu0 0.0
      %3752 = vmatpush1.msra.mxu0 0.0
      %3753 = vmatprep.subr.mxu0 0.0
      %3754 = vmatpush1.msra.mxu0 0.0
      %3755 = vmatprep.subr.mxu0 0.0
      %3756 = vmatpush1.msra.mxu0 0.0
      %3757 = vmatprep.subr.mxu0 0.0
      %3758 = vmatpush1.msra.mxu0 0.0
      %3759 = vmatprep.subr.mxu0 0.0
      %3760 = vmatpush1.msra.mxu0 0.0
      %3761 = vmatprep.subr.mxu0 0.0
      %3762 = vmatpush1.msra.mxu0 0.0
      %3763 = vmatprep.subr.mxu0 0.0
      %3764 = vmatpush1.msra.mxu0 0.0
      %3765 = vmatprep.subr.mxu0 %v3656
      %3766 = vmatpush1.msra.mxu0 %v3655
      %3767 = vmatprep.subr.mxu0 0.0
      %3768 = vmatpush2.msra.mxu0 0.0
      %3769 = vmatprep.subr.mxu0 0.0
      %3770 = vmatpush2.msra.mxu0 0.0
      %3771 = vmatprep.subr.mxu0 0.0
      %3772 = vmatpush2.msra.mxu0 0.0
      %3773 = vmatprep.subr.mxu0 0.0
      %3774 = vmatpush2.msra.mxu0 0.0
      %3775 = vmatprep.subr.mxu0 0.0
      %3776 = vmatpush2.msra.mxu0 0.0
      %3777 = vmatprep.subr.mxu0 0.0
      %3778 = vmatpush2.msra.mxu0 0.0
      %3779 = vmatprep.subr.mxu0 0.0
      %3780 = vmatpush2.msra.mxu0 0.0
      %3781 = vmatprep.subr.mxu0 0.0
      %3782 = vmatpush2.msra.mxu0 0.0
      %3783 = vmatprep.subr.mxu0 0.0
      %3784 = vmatpush2.msra.mxu0 0.0
      %3785 = vmatprep.subr.mxu0 0.0
      %3786 = vmatpush2.msra.mxu0 0.0
      %3787 = vmatprep.subr.mxu0 0.0
      %3788 = vmatpush2.msra.mxu0 0.0
      %3789 = vmatprep.subr.mxu0 0.0
      %3790 = vmatpush2.msra.mxu0 0.0
      %3791 = vmatprep.subr.mxu0 0.0
      %3792 = vmatpush2.msra.mxu0 0.0
      %3793 = vmatprep.subr.mxu0 0.0
      %3794 = vmatpush2.msra.mxu0 0.0
      %3795 = vmatprep.subr.mxu0 0.0
      %3796 = vmatpush2.msra.mxu0 0.0
      %3797 = vmatprep.subr.mxu0 0.0
      %3798 = vmatpush2.msra.mxu0 0.0
      %3799 = vmatprep.mubr.f32.mxu0 0.0
      %3800 = vmatmul.mubr.f32.gmra.mxu0 %v3662
      %v3801 = vpop.f32.mrf.mxu0
      %v3802 = vadd.f32 0.0, %v3801
      %v3803 = vpop.f32.mrf.mxu0
      %v3804 = vadd.f32 0.0, %v3803
      %3805 = vdwg.mxu0
      %v3806 = vadd.f32 %v3636, %v3731
      %v3807 = vadd.f32 %v3637, %v3733
      %v3808 = vadd.f32 %v3638, %v3802
      %v3809 = vadd.f32 %v3639, %v3804
      %s3810 = scalar_lea.vmem %s7, 152
      %v3811 = vld [vmem:[%s3810] sm:$0xff]
      %3812 = vrot.lane.b32.xlu0 %v585, 38
      %v3813 = vpop.permute.xlu0 %3812
      %3814 = vrot.lane.b32.xlu0 %v586, 38
      %v3815 = vpop.permute.xlu0 %3814
      %3816 = vrot.lane.b32.xlu0 %v587, 38
      %v3817 = vpop.permute.xlu0 %3816
      %3818 = vrot.lane.b32.xlu0 %v588, 38
      %v3819 = vpop.permute.xlu0 %3818
      %3820 = vrot.lane.b32.xlu0 %v600, 38
      %v3821 = vpop.permute.xlu0 %3820
      %vm3822 = vcmask 310272
      %v3823 = vsel %vm3822, %v3813, %v3815
      %v3824 = vsel %vm3822, %v3815, %v3817
      %v3825 = vsel %vm3822, %v3817, %v3819
      %v3826 = vsel %vm3822, %v3819, %v3821
      %v3832 = vsel %vm628, %v3811, 0
      %3834 = vmatprep.subr.mxu0 0.0
      %3835 = vmatpush1.msra.mxu0 0.0
      %3836 = vmatprep.subr.mxu0 0.0
      %3837 = vmatpush1.msra.mxu0 0.0
      %3838 = vmatprep.subr.mxu0 0.0
      %3839 = vmatpush1.msra.mxu0 0.0
      %3840 = vmatprep.subr.mxu0 0.0
      %3841 = vmatpush1.msra.mxu0 0.0
      %3842 = vmatprep.subr.mxu0 0.0
      %3843 = vmatpush1.msra.mxu0 0.0
      %3844 = vmatprep.subr.mxu0 0.0
      %3845 = vmatpush1.msra.mxu0 0.0
      %3846 = vmatprep.subr.mxu0 0.0
      %3847 = vmatpush1.msra.mxu0 0.0
      %3848 = vmatprep.subr.mxu0 0.0
      %3849 = vmatpush1.msra.mxu0 0.0
      %3850 = vmatprep.subr.mxu0 0.0
      %3851 = vmatpush1.msra.mxu0 0.0
      %3852 = vmatprep.subr.mxu0 0.0
      %3853 = vmatpush1.msra.mxu0 0.0
      %3854 = vmatprep.subr.mxu0 0.0
      %3855 = vmatpush1.msra.mxu0 0.0
      %3856 = vmatprep.subr.mxu0 0.0
      %3857 = vmatpush1.msra.mxu0 0.0
      %3858 = vmatprep.subr.mxu0 0.0
      %3859 = vmatpush1.msra.mxu0 0.0
      %3860 = vmatprep.subr.mxu0 0.0
      %3861 = vmatpush1.msra.mxu0 0.0
      %3862 = vmatprep.subr.mxu0 0.0
      %3863 = vmatpush1.msra.mxu0 0.0
      %3864 = vmatprep.subr.mxu0 %v3824
      %3865 = vmatpush1.msra.mxu0 %v3823
      %3866 = vmatprep.subr.mxu0 0.0
      %3867 = vmatpush2.msra.mxu0 0.0
      %3868 = vmatprep.subr.mxu0 0.0
      %3869 = vmatpush2.msra.mxu0 0.0
      %3870 = vmatprep.subr.mxu0 0.0
      %3871 = vmatpush2.msra.mxu0 0.0
      %3872 = vmatprep.subr.mxu0 0.0
      %3873 = vmatpush2.msra.mxu0 0.0
      %3874 = vmatprep.subr.mxu0 0.0
      %3875 = vmatpush2.msra.mxu0 0.0
      %3876 = vmatprep.subr.mxu0 0.0
      %3877 = vmatpush2.msra.mxu0 0.0
      %3878 = vmatprep.subr.mxu0 0.0
      %3879 = vmatpush2.msra.mxu0 0.0
      %3880 = vmatprep.subr.mxu0 0.0
      %3881 = vmatpush2.msra.mxu0 0.0
      %3882 = vmatprep.subr.mxu0 0.0
      %3883 = vmatpush2.msra.mxu0 0.0
      %3884 = vmatprep.subr.mxu0 0.0
      %3885 = vmatpush2.msra.mxu0 0.0
      %3886 = vmatprep.subr.mxu0 0.0
      %3887 = vmatpush2.msra.mxu0 0.0
      %3888 = vmatprep.subr.mxu0 0.0
      %3889 = vmatpush2.msra.mxu0 0.0
      %3890 = vmatprep.subr.mxu0 0.0
      %3891 = vmatpush2.msra.mxu0 0.0
      %3892 = vmatprep.subr.mxu0 0.0
      %3893 = vmatpush2.msra.mxu0 0.0
      %3894 = vmatprep.subr.mxu0 0.0
      %3895 = vmatpush2.msra.mxu0 0.0
      %3896 = vmatprep.subr.mxu0 0.0
      %3897 = vmatpush2.msra.mxu0 0.0
      %3898 = vmatprep.mubr.f32.mxu0 0.0
      %3899 = vmatmul.mubr.f32.gmra.mxu0 %v3832
      %v3900 = vpop.f32.mrf.mxu0
      %v3901 = vadd.f32 0.0, %v3900
      %v3902 = vpop.f32.mrf.mxu0
      %v3903 = vadd.f32 0.0, %v3902
      %3904 = vdwg.mxu0
      %3905 = vmatprep.subr.mxu0 0.0
      %3906 = vmatpush1.msra.mxu0 0.0
      %3907 = vmatprep.subr.mxu0 0.0
      %3908 = vmatpush1.msra.mxu0 0.0
      %3909 = vmatprep.subr.mxu0 0.0
      %3910 = vmatpush1.msra.mxu0 0.0
      %3911 = vmatprep.subr.mxu0 0.0
      %3912 = vmatpush1.msra.mxu0 0.0
      %3913 = vmatprep.subr.mxu0 0.0
      %3914 = vmatpush1.msra.mxu0 0.0
      %3915 = vmatprep.subr.mxu0 0.0
      %3916 = vmatpush1.msra.mxu0 0.0
      %3917 = vmatprep.subr.mxu0 0.0
      %3918 = vmatpush1.msra.mxu0 0.0
      %3919 = vmatprep.subr.mxu0 0.0
      %3920 = vmatpush1.msra.mxu0 0.0
      %3921 = vmatprep.subr.mxu0 0.0
      %3922 = vmatpush1.msra.mxu0 0.0
      %3923 = vmatprep.subr.mxu0 0.0
      %3924 = vmatpush1.msra.mxu0 0.0
      %3925 = vmatprep.subr.mxu0 0.0
      %3926 = vmatpush1.msra.mxu0 0.0
      %3927 = vmatprep.subr.mxu0 0.0
      %3928 = vmatpush1.msra.mxu0 0.0
      %3929 = vmatprep.subr.mxu0 0.0
      %3930 = vmatpush1.msra.mxu0 0.0
      %3931 = vmatprep.subr.mxu0 0.0
      %3932 = vmatpush1.msra.mxu0 0.0
      %3933 = vmatprep.subr.mxu0 0.0
      %3934 = vmatpush1.msra.mxu0 0.0
      %3935 = vmatprep.subr.mxu0 %v3826
      %3936 = vmatpush1.msra.mxu0 %v3825
      %3937 = vmatprep.subr.mxu0 0.0
      %3938 = vmatpush2.msra.mxu0 0.0
      %3939 = vmatprep.subr.mxu0 0.0
      %3940 = vmatpush2.msra.mxu0 0.0
      %3941 = vmatprep.subr.mxu0 0.0
      %3942 = vmatpush2.msra.mxu0 0.0
      %3943 = vmatprep.subr.mxu0 0.0
      %3944 = vmatpush2.msra.mxu0 0.0
      %3945 = vmatprep.subr.mxu0 0.0
      %3946 = vmatpush2.msra.mxu0 0.0
      %3947 = vmatprep.subr.mxu0 0.0
      %3948 = vmatpush2.msra.mxu0 0.0
      %3949 = vmatprep.subr.mxu0 0.0
      %3950 = vmatpush2.msra.mxu0 0.0
      %3951 = vmatprep.subr.mxu0 0.0
      %3952 = vmatpush2.msra.mxu0 0.0
      %3953 = vmatprep.subr.mxu0 0.0
      %3954 = vmatpush2.msra.mxu0 0.0
      %3955 = vmatprep.subr.mxu0 0.0
      %3956 = vmatpush2.msra.mxu0 0.0
      %3957 = vmatprep.subr.mxu0 0.0
      %3958 = vmatpush2.msra.mxu0 0.0
      %3959 = vmatprep.subr.mxu0 0.0
      %3960 = vmatpush2.msra.mxu0 0.0
      %3961 = vmatprep.subr.mxu0 0.0
      %3962 = vmatpush2.msra.mxu0 0.0
      %3963 = vmatprep.subr.mxu0 0.0
      %3964 = vmatpush2.msra.mxu0 0.0
      %3965 = vmatprep.subr.mxu0 0.0
      %3966 = vmatpush2.msra.mxu0 0.0
      %3967 = vmatprep.subr.mxu0 0.0
      %3968 = vmatpush2.msra.mxu0 0.0
      %3969 = vmatprep.mubr.f32.mxu0 0.0
      %3970 = vmatmul.mubr.f32.gmra.mxu0 %v3832
      %v3971 = vpop.f32.mrf.mxu0
      %v3972 = vadd.f32 0.0, %v3971
      %v3973 = vpop.f32.mrf.mxu0
      %v3974 = vadd.f32 0.0, %v3973
      %3975 = vdwg.mxu0
      %v3976 = vadd.f32 %v3806, %v3901
      %v3977 = vadd.f32 %v3807, %v3903
      %v3978 = vadd.f32 %v3808, %v3972
      %v3979 = vadd.f32 %v3809, %v3974
      %s3980 = scalar_lea.vmem %s7, 160
      %v3981 = vld [vmem:[%s3980] sm:$0xff]
      %3982 = vrot.lane.b32.xlu0 %v585, 37
      %v3983 = vpop.permute.xlu0 %3982
      %3984 = vrot.lane.b32.xlu0 %v586, 37
      %v3985 = vpop.permute.xlu0 %3984
      %3986 = vrot.lane.b32.xlu0 %v587, 37
      %v3987 = vpop.permute.xlu0 %3986
      %3988 = vrot.lane.b32.xlu0 %v588, 37
      %v3989 = vpop.permute.xlu0 %3988
      %3990 = vrot.lane.b32.xlu0 %v600, 37
      %v3991 = vpop.permute.xlu0 %3990
      %vm3992 = vcmask 302080
      %v3993 = vsel %vm3992, %v3983, %v3985
      %v3994 = vsel %vm3992, %v3985, %v3987
      %v3995 = vsel %vm3992, %v3987, %v3989
      %v3996 = vsel %vm3992, %v3989, %v3991
      %v4002 = vsel %vm628, %v3981, 0
      %4004 = vmatprep.subr.mxu0 0.0
      %4005 = vmatpush1.msra.mxu0 0.0
      %4006 = vmatprep.subr.mxu0 0.0
      %4007 = vmatpush1.msra.mxu0 0.0
      %4008 = vmatprep.subr.mxu0 0.0
      %4009 = vmatpush1.msra.mxu0 0.0
      %4010 = vmatprep.subr.mxu0 0.0
      %4011 = vmatpush1.msra.mxu0 0.0
      %4012 = vmatprep.subr.mxu0 0.0
      %4013 = vmatpush1.msra.mxu0 0.0
      %4014 = vmatprep.subr.mxu0 0.0
      %4015 = vmatpush1.msra.mxu0 0.0
      %4016 = vmatprep.subr.mxu0 0.0
      %4017 = vmatpush1.msra.mxu0 0.0
      %4018 = vmatprep.subr.mxu0 0.0
      %4019 = vmatpush1.msra.mxu0 0.0
      %4020 = vmatprep.subr.mxu0 0.0
      %4021 = vmatpush1.msra.mxu0 0.0
      %4022 = vmatprep.subr.mxu0 0.0
      %4023 = vmatpush1.msra.mxu0 0.0
      %4024 = vmatprep.subr.mxu0 0.0
      %4025 = vmatpush1.msra.mxu0 0.0
      %4026 = vmatprep.subr.mxu0 0.0
      %4027 = vmatpush1.msra.mxu0 0.0
      %4028 = vmatprep.subr.mxu0 0.0
      %4029 = vmatpush1.msra.mxu0 0.0
      %4030 = vmatprep.subr.mxu0 0.0
      %4031 = vmatpush1.msra.mxu0 0.0
      %4032 = vmatprep.subr.mxu0 0.0
      %4033 = vmatpush1.msra.mxu0 0.0
      %4034 = vmatprep.subr.mxu0 %v3994
      %4035 = vmatpush1.msra.mxu0 %v3993
      %4036 = vmatprep.subr.mxu0 0.0
      %4037 = vmatpush2.msra.mxu0 0.0
      %4038 = vmatprep.subr.mxu0 0.0
      %4039 = vmatpush2.msra.mxu0 0.0
      %4040 = vmatprep.subr.mxu0 0.0
      %4041 = vmatpush2.msra.mxu0 0.0
      %4042 = vmatprep.subr.mxu0 0.0
      %4043 = vmatpush2.msra.mxu0 0.0
      %4044 = vmatprep.subr.mxu0 0.0
      %4045 = vmatpush2.msra.mxu0 0.0
      %4046 = vmatprep.subr.mxu0 0.0
      %4047 = vmatpush2.msra.mxu0 0.0
      %4048 = vmatprep.subr.mxu0 0.0
      %4049 = vmatpush2.msra.mxu0 0.0
      %4050 = vmatprep.subr.mxu0 0.0
      %4051 = vmatpush2.msra.mxu0 0.0
      %4052 = vmatprep.subr.mxu0 0.0
      %4053 = vmatpush2.msra.mxu0 0.0
      %4054 = vmatprep.subr.mxu0 0.0
      %4055 = vmatpush2.msra.mxu0 0.0
      %4056 = vmatprep.subr.mxu0 0.0
      %4057 = vmatpush2.msra.mxu0 0.0
      %4058 = vmatprep.subr.mxu0 0.0
      %4059 = vmatpush2.msra.mxu0 0.0
      %4060 = vmatprep.subr.mxu0 0.0
      %4061 = vmatpush2.msra.mxu0 0.0
      %4062 = vmatprep.subr.mxu0 0.0
      %4063 = vmatpush2.msra.mxu0 0.0
      %4064 = vmatprep.subr.mxu0 0.0
      %4065 = vmatpush2.msra.mxu0 0.0
      %4066 = vmatprep.subr.mxu0 0.0
      %4067 = vmatpush2.msra.mxu0 0.0
      %4068 = vmatprep.mubr.f32.mxu0 0.0
      %4069 = vmatmul.mubr.f32.gmra.mxu0 %v4002
      %v4070 = vpop.f32.mrf.mxu0
      %v4071 = vadd.f32 0.0, %v4070
      %v4072 = vpop.f32.mrf.mxu0
      %v4073 = vadd.f32 0.0, %v4072
      %4074 = vdwg.mxu0
      %4075 = vmatprep.subr.mxu0 0.0
      %4076 = vmatpush1.msra.mxu0 0.0
      %4077 = vmatprep.subr.mxu0 0.0
      %4078 = vmatpush1.msra.mxu0 0.0
      %4079 = vmatprep.subr.mxu0 0.0
      %4080 = vmatpush1.msra.mxu0 0.0
      %4081 = vmatprep.subr.mxu0 0.0
      %4082 = vmatpush1.msra.mxu0 0.0
      %4083 = vmatprep.subr.mxu0 0.0
      %4084 = vmatpush1.msra.mxu0 0.0
      %4085 = vmatprep.subr.mxu0 0.0
      %4086 = vmatpush1.msra.mxu0 0.0
      %4087 = vmatprep.subr.mxu0 0.0
      %4088 = vmatpush1.msra.mxu0 0.0
      %4089 = vmatprep.subr.mxu0 0.0
      %4090 = vmatpush1.msra.mxu0 0.0
      %4091 = vmatprep.subr.mxu0 0.0
      %4092 = vmatpush1.msra.mxu0 0.0
      %4093 = vmatprep.subr.mxu0 0.0
      %4094 = vmatpush1.msra.mxu0 0.0
      %4095 = vmatprep.subr.mxu0 0.0
      %4096 = vmatpush1.msra.mxu0 0.0
      %4097 = vmatprep.subr.mxu0 0.0
      %4098 = vmatpush1.msra.mxu0 0.0
      %4099 = vmatprep.subr.mxu0 0.0
      %4100 = vmatpush1.msra.mxu0 0.0
      %4101 = vmatprep.subr.mxu0 0.0
      %4102 = vmatpush1.msra.mxu0 0.0
      %4103 = vmatprep.subr.mxu0 0.0
      %4104 = vmatpush1.msra.mxu0 0.0
      %4105 = vmatprep.subr.mxu0 %v3996
      %4106 = vmatpush1.msra.mxu0 %v3995
      %4107 = vmatprep.subr.mxu0 0.0
      %4108 = vmatpush2.msra.mxu0 0.0
      %4109 = vmatprep.subr.mxu0 0.0
      %4110 = vmatpush2.msra.mxu0 0.0
      %4111 = vmatprep.subr.mxu0 0.0
      %4112 = vmatpush2.msra.mxu0 0.0
      %4113 = vmatprep.subr.mxu0 0.0
      %4114 = vmatpush2.msra.mxu0 0.0
      %4115 = vmatprep.subr.mxu0 0.0
      %4116 = vmatpush2.msra.mxu0 0.0
      %4117 = vmatprep.subr.mxu0 0.0
      %4118 = vmatpush2.msra.mxu0 0.0
      %4119 = vmatprep.subr.mxu0 0.0
      %4120 = vmatpush2.msra.mxu0 0.0
      %4121 = vmatprep.subr.mxu0 0.0
      %4122 = vmatpush2.msra.mxu0 0.0
      %4123 = vmatprep.subr.mxu0 0.0
      %4124 = vmatpush2.msra.mxu0 0.0
      %4125 = vmatprep.subr.mxu0 0.0
      %4126 = vmatpush2.msra.mxu0 0.0
      %4127 = vmatprep.subr.mxu0 0.0
      %4128 = vmatpush2.msra.mxu0 0.0
      %4129 = vmatprep.subr.mxu0 0.0
      %4130 = vmatpush2.msra.mxu0 0.0
      %4131 = vmatprep.subr.mxu0 0.0
      %4132 = vmatpush2.msra.mxu0 0.0
      %4133 = vmatprep.subr.mxu0 0.0
      %4134 = vmatpush2.msra.mxu0 0.0
      %4135 = vmatprep.subr.mxu0 0.0
      %4136 = vmatpush2.msra.mxu0 0.0
      %4137 = vmatprep.subr.mxu0 0.0
      %4138 = vmatpush2.msra.mxu0 0.0
      %4139 = vmatprep.mubr.f32.mxu0 0.0
      %4140 = vmatmul.mubr.f32.gmra.mxu0 %v4002
      %v4141 = vpop.f32.mrf.mxu0
      %v4142 = vadd.f32 0.0, %v4141
      %v4143 = vpop.f32.mrf.mxu0
      %v4144 = vadd.f32 0.0, %v4143
      %4145 = vdwg.mxu0
      %v4146 = vadd.f32 %v3976, %v4071
      %v4147 = vadd.f32 %v3977, %v4073
      %v4148 = vadd.f32 %v3978, %v4142
      %v4149 = vadd.f32 %v3979, %v4144
      %s4150 = scalar_lea.vmem %s7, 168
      %v4151 = vld [vmem:[%s4150] sm:$0xff]
      %4152 = vrot.lane.b32.xlu0 %v585, 29
      %v4153 = vpop.permute.xlu0 %4152
      %4154 = vrot.lane.b32.xlu0 %v586, 29
      %v4155 = vpop.permute.xlu0 %4154
      %4156 = vrot.lane.b32.xlu0 %v587, 29
      %v4157 = vpop.permute.xlu0 %4156
      %4158 = vrot.lane.b32.xlu0 %v588, 29
      %v4159 = vpop.permute.xlu0 %4158
      %4160 = vrot.lane.b32.xlu0 %v600, 29
      %v4161 = vpop.permute.xlu0 %4160
      %vm4162 = vcmask 236544
      %v4163 = vsel %vm4162, %v4153, %v4155
      %v4164 = vsel %vm4162, %v4155, %v4157
      %v4165 = vsel %vm4162, %v4157, %v4159
      %v4166 = vsel %vm4162, %v4159, %v4161
      %v4172 = vsel %vm628, %v4151, 0
      %4174 = vmatprep.subr.mxu0 0.0
      %4175 = vmatpush1.msra.mxu0 0.0
      %4176 = vmatprep.subr.mxu0 0.0
      %4177 = vmatpush1.msra.mxu0 0.0
      %4178 = vmatprep.subr.mxu0 0.0
      %4179 = vmatpush1.msra.mxu0 0.0
      %4180 = vmatprep.subr.mxu0 0.0
      %4181 = vmatpush1.msra.mxu0 0.0
      %4182 = vmatprep.subr.mxu0 0.0
      %4183 = vmatpush1.msra.mxu0 0.0
      %4184 = vmatprep.subr.mxu0 0.0
      %4185 = vmatpush1.msra.mxu0 0.0
      %4186 = vmatprep.subr.mxu0 0.0
      %4187 = vmatpush1.msra.mxu0 0.0
      %4188 = vmatprep.subr.mxu0 0.0
      %4189 = vmatpush1.msra.mxu0 0.0
      %4190 = vmatprep.subr.mxu0 0.0
      %4191 = vmatpush1.msra.mxu0 0.0
      %4192 = vmatprep.subr.mxu0 0.0
      %4193 = vmatpush1.msra.mxu0 0.0
      %4194 = vmatprep.subr.mxu0 0.0
      %4195 = vmatpush1.msra.mxu0 0.0
      %4196 = vmatprep.subr.mxu0 0.0
      %4197 = vmatpush1.msra.mxu0 0.0
      %4198 = vmatprep.subr.mxu0 0.0
      %4199 = vmatpush1.msra.mxu0 0.0
      %4200 = vmatprep.subr.mxu0 0.0
      %4201 = vmatpush1.msra.mxu0 0.0
      %4202 = vmatprep.subr.mxu0 0.0
      %4203 = vmatpush1.msra.mxu0 0.0
      %4204 = vmatprep.subr.mxu0 %v4164
      %4205 = vmatpush1.msra.mxu0 %v4163
      %4206 = vmatprep.subr.mxu0 0.0
      %4207 = vmatpush2.msra.mxu0 0.0
      %4208 = vmatprep.subr.mxu0 0.0
      %4209 = vmatpush2.msra.mxu0 0.0
      %4210 = vmatprep.subr.mxu0 0.0
      %4211 = vmatpush2.msra.mxu0 0.0
      %4212 = vmatprep.subr.mxu0 0.0
      %4213 = vmatpush2.msra.mxu0 0.0
      %4214 = vmatprep.subr.mxu0 0.0
      %4215 = vmatpush2.msra.mxu0 0.0
      %4216 = vmatprep.subr.mxu0 0.0
      %4217 = vmatpush2.msra.mxu0 0.0
      %4218 = vmatprep.subr.mxu0 0.0
      %4219 = vmatpush2.msra.mxu0 0.0
      %4220 = vmatprep.subr.mxu0 0.0
      %4221 = vmatpush2.msra.mxu0 0.0
      %4222 = vmatprep.subr.mxu0 0.0
      %4223 = vmatpush2.msra.mxu0 0.0
      %4224 = vmatprep.subr.mxu0 0.0
      %4225 = vmatpush2.msra.mxu0 0.0
      %4226 = vmatprep.subr.mxu0 0.0
      %4227 = vmatpush2.msra.mxu0 0.0
      %4228 = vmatprep.subr.mxu0 0.0
      %4229 = vmatpush2.msra.mxu0 0.0
      %4230 = vmatprep.subr.mxu0 0.0
      %4231 = vmatpush2.msra.mxu0 0.0
      %4232 = vmatprep.subr.mxu0 0.0
      %4233 = vmatpush2.msra.mxu0 0.0
      %4234 = vmatprep.subr.mxu0 0.0
      %4235 = vmatpush2.msra.mxu0 0.0
      %4236 = vmatprep.subr.mxu0 0.0
      %4237 = vmatpush2.msra.mxu0 0.0
      %4238 = vmatprep.mubr.f32.mxu0 0.0
      %4239 = vmatmul.mubr.f32.gmra.mxu0 %v4172
      %v4240 = vpop.f32.mrf.mxu0
      %v4241 = vadd.f32 0.0, %v4240
      %v4242 = vpop.f32.mrf.mxu0
      %v4243 = vadd.f32 0.0, %v4242
      %4244 = vdwg.mxu0
      %4245 = vmatprep.subr.mxu0 0.0
      %4246 = vmatpush1.msra.mxu0 0.0
      %4247 = vmatprep.subr.mxu0 0.0
      %4248 = vmatpush1.msra.mxu0 0.0
      %4249 = vmatprep.subr.mxu0 0.0
      %4250 = vmatpush1.msra.mxu0 0.0
      %4251 = vmatprep.subr.mxu0 0.0
      %4252 = vmatpush1.msra.mxu0 0.0
      %4253 = vmatprep.subr.mxu0 0.0
      %4254 = vmatpush1.msra.mxu0 0.0
      %4255 = vmatprep.subr.mxu0 0.0
      %4256 = vmatpush1.msra.mxu0 0.0
      %4257 = vmatprep.subr.mxu0 0.0
      %4258 = vmatpush1.msra.mxu0 0.0
      %4259 = vmatprep.subr.mxu0 0.0
      %4260 = vmatpush1.msra.mxu0 0.0
      %4261 = vmatprep.subr.mxu0 0.0
      %4262 = vmatpush1.msra.mxu0 0.0
      %4263 = vmatprep.subr.mxu0 0.0
      %4264 = vmatpush1.msra.mxu0 0.0
      %4265 = vmatprep.subr.mxu0 0.0
      %4266 = vmatpush1.msra.mxu0 0.0
      %4267 = vmatprep.subr.mxu0 0.0
      %4268 = vmatpush1.msra.mxu0 0.0
      %4269 = vmatprep.subr.mxu0 0.0
      %4270 = vmatpush1.msra.mxu0 0.0
      %4271 = vmatprep.subr.mxu0 0.0
      %4272 = vmatpush1.msra.mxu0 0.0
      %4273 = vmatprep.subr.mxu0 0.0
      %4274 = vmatpush1.msra.mxu0 0.0
      %4275 = vmatprep.subr.mxu0 %v4166
      %4276 = vmatpush1.msra.mxu0 %v4165
      %4277 = vmatprep.subr.mxu0 0.0
      %4278 = vmatpush2.msra.mxu0 0.0
      %4279 = vmatprep.subr.mxu0 0.0
      %4280 = vmatpush2.msra.mxu0 0.0
      %4281 = vmatprep.subr.mxu0 0.0
      %4282 = vmatpush2.msra.mxu0 0.0
      %4283 = vmatprep.subr.mxu0 0.0
      %4284 = vmatpush2.msra.mxu0 0.0
      %4285 = vmatprep.subr.mxu0 0.0
      %4286 = vmatpush2.msra.mxu0 0.0
      %4287 = vmatprep.subr.mxu0 0.0
      %4288 = vmatpush2.msra.mxu0 0.0
      %4289 = vmatprep.subr.mxu0 0.0
      %4290 = vmatpush2.msra.mxu0 0.0
      %4291 = vmatprep.subr.mxu0 0.0
      %4292 = vmatpush2.msra.mxu0 0.0
      %4293 = vmatprep.subr.mxu0 0.0
      %4294 = vmatpush2.msra.mxu0 0.0
      %4295 = vmatprep.subr.mxu0 0.0
      %4296 = vmatpush2.msra.mxu0 0.0
      %4297 = vmatprep.subr.mxu0 0.0
      %4298 = vmatpush2.msra.mxu0 0.0
      %4299 = vmatprep.subr.mxu0 0.0
      %4300 = vmatpush2.msra.mxu0 0.0
      %4301 = vmatprep.subr.mxu0 0.0
      %4302 = vmatpush2.msra.mxu0 0.0
      %4303 = vmatprep.subr.mxu0 0.0
      %4304 = vmatpush2.msra.mxu0 0.0
      %4305 = vmatprep.subr.mxu0 0.0
      %4306 = vmatpush2.msra.mxu0 0.0
      %4307 = vmatprep.subr.mxu0 0.0
      %4308 = vmatpush2.msra.mxu0 0.0
      %4309 = vmatprep.mubr.f32.mxu0 0.0
      %4310 = vmatmul.mubr.f32.gmra.mxu0 %v4172
      %v4311 = vpop.f32.mrf.mxu0
      %v4312 = vadd.f32 0.0, %v4311
      %v4313 = vpop.f32.mrf.mxu0
      %v4314 = vadd.f32 0.0, %v4313
      %4315 = vdwg.mxu0
      %v4316 = vadd.f32 %v4146, %v4241
      %v4317 = vadd.f32 %v4147, %v4243
      %v4318 = vadd.f32 %v4148, %v4312
      %v4319 = vadd.f32 %v4149, %v4314
      %s4320 = scalar_lea.vmem %s7, 176
      %v4321 = vld [vmem:[%s4320] sm:$0xff]
      %4322 = vrot.lane.b32.xlu0 %v585, 28
      %v4323 = vpop.permute.xlu0 %4322
      %4324 = vrot.lane.b32.xlu0 %v586, 28
      %v4325 = vpop.permute.xlu0 %4324
      %4326 = vrot.lane.b32.xlu0 %v587, 28
      %v4327 = vpop.permute.xlu0 %4326
      %4328 = vrot.lane.b32.xlu0 %v588, 28
      %v4329 = vpop.permute.xlu0 %4328
      %4330 = vrot.lane.b32.xlu0 %v600, 28
      %v4331 = vpop.permute.xlu0 %4330
      %vm4332 = vcmask 228352
      %v4333 = vsel %vm4332, %v4323, %v4325
      %v4334 = vsel %vm4332, %v4325, %v4327
      %v4335 = vsel %vm4332, %v4327, %v4329
      %v4336 = vsel %vm4332, %v4329, %v4331
      %v4342 = vsel %vm628, %v4321, 0
      %4344 = vmatprep.subr.mxu0 0.0
      %4345 = vmatpush1.msra.mxu0 0.0
      %4346 = vmatprep.subr.mxu0 0.0
      %4347 = vmatpush1.msra.mxu0 0.0
      %4348 = vmatprep.subr.mxu0 0.0
      %4349 = vmatpush1.msra.mxu0 0.0
      %4350 = vmatprep.subr.mxu0 0.0
      %4351 = vmatpush1.msra.mxu0 0.0
      %4352 = vmatprep.subr.mxu0 0.0
      %4353 = vmatpush1.msra.mxu0 0.0
      %4354 = vmatprep.subr.mxu0 0.0
      %4355 = vmatpush1.msra.mxu0 0.0
      %4356 = vmatprep.subr.mxu0 0.0
      %4357 = vmatpush1.msra.mxu0 0.0
      %4358 = vmatprep.subr.mxu0 0.0
      %4359 = vmatpush1.msra.mxu0 0.0
      %4360 = vmatprep.subr.mxu0 0.0
      %4361 = vmatpush1.msra.mxu0 0.0
      %4362 = vmatprep.subr.mxu0 0.0
      %4363 = vmatpush1.msra.mxu0 0.0
      %4364 = vmatprep.subr.mxu0 0.0
      %4365 = vmatpush1.msra.mxu0 0.0
      %4366 = vmatprep.subr.mxu0 0.0
      %4367 = vmatpush1.msra.mxu0 0.0
      %4368 = vmatprep.subr.mxu0 0.0
      %4369 = vmatpush1.msra.mxu0 0.0
      %4370 = vmatprep.subr.mxu0 0.0
      %4371 = vmatpush1.msra.mxu0 0.0
      %4372 = vmatprep.subr.mxu0 0.0
      %4373 = vmatpush1.msra.mxu0 0.0
      %4374 = vmatprep.subr.mxu0 %v4334
      %4375 = vmatpush1.msra.mxu0 %v4333
      %4376 = vmatprep.subr.mxu0 0.0
      %4377 = vmatpush2.msra.mxu0 0.0
      %4378 = vmatprep.subr.mxu0 0.0
      %4379 = vmatpush2.msra.mxu0 0.0
      %4380 = vmatprep.subr.mxu0 0.0
      %4381 = vmatpush2.msra.mxu0 0.0
      %4382 = vmatprep.subr.mxu0 0.0
      %4383 = vmatpush2.msra.mxu0 0.0
      %4384 = vmatprep.subr.mxu0 0.0
      %4385 = vmatpush2.msra.mxu0 0.0
      %4386 = vmatprep.subr.mxu0 0.0
      %4387 = vmatpush2.msra.mxu0 0.0
      %4388 = vmatprep.subr.mxu0 0.0
      %4389 = vmatpush2.msra.mxu0 0.0
      %4390 = vmatprep.subr.mxu0 0.0
      %4391 = vmatpush2.msra.mxu0 0.0
      %4392 = vmatprep.subr.mxu0 0.0
      %4393 = vmatpush2.msra.mxu0 0.0
      %4394 = vmatprep.subr.mxu0 0.0
      %4395 = vmatpush2.msra.mxu0 0.0
      %4396 = vmatprep.subr.mxu0 0.0
      %4397 = vmatpush2.msra.mxu0 0.0
      %4398 = vmatprep.subr.mxu0 0.0
      %4399 = vmatpush2.msra.mxu0 0.0
      %4400 = vmatprep.subr.mxu0 0.0
      %4401 = vmatpush2.msra.mxu0 0.0
      %4402 = vmatprep.subr.mxu0 0.0
      %4403 = vmatpush2.msra.mxu0 0.0
      %4404 = vmatprep.subr.mxu0 0.0
      %4405 = vmatpush2.msra.mxu0 0.0
      %4406 = vmatprep.subr.mxu0 0.0
      %4407 = vmatpush2.msra.mxu0 0.0
      %4408 = vmatprep.mubr.f32.mxu0 0.0
      %4409 = vmatmul.mubr.f32.gmra.mxu0 %v4342
      %v4410 = vpop.f32.mrf.mxu0
      %v4411 = vadd.f32 0.0, %v4410
      %v4412 = vpop.f32.mrf.mxu0
      %v4413 = vadd.f32 0.0, %v4412
      %4414 = vdwg.mxu0
      %4415 = vmatprep.subr.mxu0 0.0
      %4416 = vmatpush1.msra.mxu0 0.0
      %4417 = vmatprep.subr.mxu0 0.0
      %4418 = vmatpush1.msra.mxu0 0.0
      %4419 = vmatprep.subr.mxu0 0.0
      %4420 = vmatpush1.msra.mxu0 0.0
      %4421 = vmatprep.subr.mxu0 0.0
      %4422 = vmatpush1.msra.mxu0 0.0
      %4423 = vmatprep.subr.mxu0 0.0
      %4424 = vmatpush1.msra.mxu0 0.0
      %4425 = vmatprep.subr.mxu0 0.0
      %4426 = vmatpush1.msra.mxu0 0.0
      %4427 = vmatprep.subr.mxu0 0.0
      %4428 = vmatpush1.msra.mxu0 0.0
      %4429 = vmatprep.subr.mxu0 0.0
      %4430 = vmatpush1.msra.mxu0 0.0
      %4431 = vmatprep.subr.mxu0 0.0
      %4432 = vmatpush1.msra.mxu0 0.0
      %4433 = vmatprep.subr.mxu0 0.0
      %4434 = vmatpush1.msra.mxu0 0.0
      %4435 = vmatprep.subr.mxu0 0.0
      %4436 = vmatpush1.msra.mxu0 0.0
      %4437 = vmatprep.subr.mxu0 0.0
      %4438 = vmatpush1.msra.mxu0 0.0
      %4439 = vmatprep.subr.mxu0 0.0
      %4440 = vmatpush1.msra.mxu0 0.0
      %4441 = vmatprep.subr.mxu0 0.0
      %4442 = vmatpush1.msra.mxu0 0.0
      %4443 = vmatprep.subr.mxu0 0.0
      %4444 = vmatpush1.msra.mxu0 0.0
      %4445 = vmatprep.subr.mxu0 %v4336
      %4446 = vmatpush1.msra.mxu0 %v4335
      %4447 = vmatprep.subr.mxu0 0.0
      %4448 = vmatpush2.msra.mxu0 0.0
      %4449 = vmatprep.subr.mxu0 0.0
      %4450 = vmatpush2.msra.mxu0 0.0
      %4451 = vmatprep.subr.mxu0 0.0
      %4452 = vmatpush2.msra.mxu0 0.0
      %4453 = vmatprep.subr.mxu0 0.0
      %4454 = vmatpush2.msra.mxu0 0.0
      %4455 = vmatprep.subr.mxu0 0.0
      %4456 = vmatpush2.msra.mxu0 0.0
      %4457 = vmatprep.subr.mxu0 0.0
      %4458 = vmatpush2.msra.mxu0 0.0
      %4459 = vmatprep.subr.mxu0 0.0
      %4460 = vmatpush2.msra.mxu0 0.0
      %4461 = vmatprep.subr.mxu0 0.0
      %4462 = vmatpush2.msra.mxu0 0.0
      %4463 = vmatprep.subr.mxu0 0.0
      %4464 = vmatpush2.msra.mxu0 0.0
      %4465 = vmatprep.subr.mxu0 0.0
      %4466 = vmatpush2.msra.mxu0 0.0
      %4467 = vmatprep.subr.mxu0 0.0
      %4468 = vmatpush2.msra.mxu0 0.0
      %4469 = vmatprep.subr.mxu0 0.0
      %4470 = vmatpush2.msra.mxu0 0.0
      %4471 = vmatprep.subr.mxu0 0.0
      %4472 = vmatpush2.msra.mxu0 0.0
      %4473 = vmatprep.subr.mxu0 0.0
      %4474 = vmatpush2.msra.mxu0 0.0
      %4475 = vmatprep.subr.mxu0 0.0
      %4476 = vmatpush2.msra.mxu0 0.0
      %4477 = vmatprep.subr.mxu0 0.0
      %4478 = vmatpush2.msra.mxu0 0.0
      %4479 = vmatprep.mubr.f32.mxu0 0.0
      %4480 = vmatmul.mubr.f32.gmra.mxu0 %v4342
      %v4481 = vpop.f32.mrf.mxu0
      %v4482 = vadd.f32 0.0, %v4481
      %v4483 = vpop.f32.mrf.mxu0
      %v4484 = vadd.f32 0.0, %v4483
      %4485 = vdwg.mxu0
      %v4486 = vadd.f32 %v4316, %v4411
      %v4487 = vadd.f32 %v4317, %v4413
      %v4488 = vadd.f32 %v4318, %v4482
      %v4489 = vadd.f32 %v4319, %v4484
      %s4490 = scalar_lea.vmem %s7, 184
      %v4491 = vld [vmem:[%s4490] sm:$0xff]
      %4492 = vrot.lane.b32.xlu0 %v585, 27
      %v4493 = vpop.permute.xlu0 %4492
      %4494 = vrot.lane.b32.xlu0 %v586, 27
      %v4495 = vpop.permute.xlu0 %4494
      %4496 = vrot.lane.b32.xlu0 %v587, 27
      %v4497 = vpop.permute.xlu0 %4496
      %4498 = vrot.lane.b32.xlu0 %v588, 27
      %v4499 = vpop.permute.xlu0 %4498
      %4500 = vrot.lane.b32.xlu0 %v600, 27
      %v4501 = vpop.permute.xlu0 %4500
      %vm4502 = vcmask 220160
      %v4503 = vsel %vm4502, %v4493, %v4495
      %v4504 = vsel %vm4502, %v4495, %v4497
      %v4505 = vsel %vm4502, %v4497, %v4499
      %v4506 = vsel %vm4502, %v4499, %v4501
      %v4512 = vsel %vm628, %v4491, 0
      %4514 = vmatprep.subr.mxu0 0.0
      %4515 = vmatpush1.msra.mxu0 0.0
      %4516 = vmatprep.subr.mxu0 0.0
      %4517 = vmatpush1.msra.mxu0 0.0
      %4518 = vmatprep.subr.mxu0 0.0
      %4519 = vmatpush1.msra.mxu0 0.0
      %4520 = vmatprep.subr.mxu0 0.0
      %4521 = vmatpush1.msra.mxu0 0.0
      %4522 = vmatprep.subr.mxu0 0.0
      %4523 = vmatpush1.msra.mxu0 0.0
      %4524 = vmatprep.subr.mxu0 0.0
      %4525 = vmatpush1.msra.mxu0 0.0
      %4526 = vmatprep.subr.mxu0 0.0
      %4527 = vmatpush1.msra.mxu0 0.0
      %4528 = vmatprep.subr.mxu0 0.0
      %4529 = vmatpush1.msra.mxu0 0.0
      %4530 = vmatprep.subr.mxu0 0.0
      %4531 = vmatpush1.msra.mxu0 0.0
      %4532 = vmatprep.subr.mxu0 0.0
      %4533 = vmatpush1.msra.mxu0 0.0
      %4534 = vmatprep.subr.mxu0 0.0
      %4535 = vmatpush1.msra.mxu0 0.0
      %4536 = vmatprep.subr.mxu0 0.0
      %4537 = vmatpush1.msra.mxu0 0.0
      %4538 = vmatprep.subr.mxu0 0.0
      %4539 = vmatpush1.msra.mxu0 0.0
      %4540 = vmatprep.subr.mxu0 0.0
      %4541 = vmatpush1.msra.mxu0 0.0
      %4542 = vmatprep.subr.mxu0 0.0
      %4543 = vmatpush1.msra.mxu0 0.0
      %4544 = vmatprep.subr.mxu0 %v4504
      %4545 = vmatpush1.msra.mxu0 %v4503
      %4546 = vmatprep.subr.mxu0 0.0
      %4547 = vmatpush2.msra.mxu0 0.0
      %4548 = vmatprep.subr.mxu0 0.0
      %4549 = vmatpush2.msra.mxu0 0.0
      %4550 = vmatprep.subr.mxu0 0.0
      %4551 = vmatpush2.msra.mxu0 0.0
      %4552 = vmatprep.subr.mxu0 0.0
      %4553 = vmatpush2.msra.mxu0 0.0
      %4554 = vmatprep.subr.mxu0 0.0
      %4555 = vmatpush2.msra.mxu0 0.0
      %4556 = vmatprep.subr.mxu0 0.0
      %4557 = vmatpush2.msra.mxu0 0.0
      %4558 = vmatprep.subr.mxu0 0.0
      %4559 = vmatpush2.msra.mxu0 0.0
      %4560 = vmatprep.subr.mxu0 0.0
      %4561 = vmatpush2.msra.mxu0 0.0
      %4562 = vmatprep.subr.mxu0 0.0
      %4563 = vmatpush2.msra.mxu0 0.0
      %4564 = vmatprep.subr.mxu0 0.0
      %4565 = vmatpush2.msra.mxu0 0.0
      %4566 = vmatprep.subr.mxu0 0.0
      %4567 = vmatpush2.msra.mxu0 0.0
      %4568 = vmatprep.subr.mxu0 0.0
      %4569 = vmatpush2.msra.mxu0 0.0
      %4570 = vmatprep.subr.mxu0 0.0
      %4571 = vmatpush2.msra.mxu0 0.0
      %4572 = vmatprep.subr.mxu0 0.0
      %4573 = vmatpush2.msra.mxu0 0.0
      %4574 = vmatprep.subr.mxu0 0.0
      %4575 = vmatpush2.msra.mxu0 0.0
      %4576 = vmatprep.subr.mxu0 0.0
      %4577 = vmatpush2.msra.mxu0 0.0
      %4578 = vmatprep.mubr.f32.mxu0 0.0
      %4579 = vmatmul.mubr.f32.gmra.mxu0 %v4512
      %v4580 = vpop.f32.mrf.mxu0
      %v4581 = vadd.f32 0.0, %v4580
      %v4582 = vpop.f32.mrf.mxu0
      %v4583 = vadd.f32 0.0, %v4582
      %4584 = vdwg.mxu0
      %4585 = vmatprep.subr.mxu0 0.0
      %4586 = vmatpush1.msra.mxu0 0.0
      %4587 = vmatprep.subr.mxu0 0.0
      %4588 = vmatpush1.msra.mxu0 0.0
      %4589 = vmatprep.subr.mxu0 0.0
      %4590 = vmatpush1.msra.mxu0 0.0
      %4591 = vmatprep.subr.mxu0 0.0
      %4592 = vmatpush1.msra.mxu0 0.0
      %4593 = vmatprep.subr.mxu0 0.0
      %4594 = vmatpush1.msra.mxu0 0.0
      %4595 = vmatprep.subr.mxu0 0.0
      %4596 = vmatpush1.msra.mxu0 0.0
      %4597 = vmatprep.subr.mxu0 0.0
      %4598 = vmatpush1.msra.mxu0 0.0
      %4599 = vmatprep.subr.mxu0 0.0
      %4600 = vmatpush1.msra.mxu0 0.0
      %4601 = vmatprep.subr.mxu0 0.0
      %4602 = vmatpush1.msra.mxu0 0.0
      %4603 = vmatprep.subr.mxu0 0.0
      %4604 = vmatpush1.msra.mxu0 0.0
      %4605 = vmatprep.subr.mxu0 0.0
      %4606 = vmatpush1.msra.mxu0 0.0
      %4607 = vmatprep.subr.mxu0 0.0
      %4608 = vmatpush1.msra.mxu0 0.0
      %4609 = vmatprep.subr.mxu0 0.0
      %4610 = vmatpush1.msra.mxu0 0.0
      %4611 = vmatprep.subr.mxu0 0.0
      %4612 = vmatpush1.msra.mxu0 0.0
      %4613 = vmatprep.subr.mxu0 0.0
      %4614 = vmatpush1.msra.mxu0 0.0
      %4615 = vmatprep.subr.mxu0 %v4506
      %4616 = vmatpush1.msra.mxu0 %v4505
      %4617 = vmatprep.subr.mxu0 0.0
      %4618 = vmatpush2.msra.mxu0 0.0
      %4619 = vmatprep.subr.mxu0 0.0
      %4620 = vmatpush2.msra.mxu0 0.0
      %4621 = vmatprep.subr.mxu0 0.0
      %4622 = vmatpush2.msra.mxu0 0.0
      %4623 = vmatprep.subr.mxu0 0.0
      %4624 = vmatpush2.msra.mxu0 0.0
      %4625 = vmatprep.subr.mxu0 0.0
      %4626 = vmatpush2.msra.mxu0 0.0
      %4627 = vmatprep.subr.mxu0 0.0
      %4628 = vmatpush2.msra.mxu0 0.0
      %4629 = vmatprep.subr.mxu0 0.0
      %4630 = vmatpush2.msra.mxu0 0.0
      %4631 = vmatprep.subr.mxu0 0.0
      %4632 = vmatpush2.msra.mxu0 0.0
      %4633 = vmatprep.subr.mxu0 0.0
      %4634 = vmatpush2.msra.mxu0 0.0
      %4635 = vmatprep.subr.mxu0 0.0
      %4636 = vmatpush2.msra.mxu0 0.0
      %4637 = vmatprep.subr.mxu0 0.0
      %4638 = vmatpush2.msra.mxu0 0.0
      %4639 = vmatprep.subr.mxu0 0.0
      %4640 = vmatpush2.msra.mxu0 0.0
      %4641 = vmatprep.subr.mxu0 0.0
      %4642 = vmatpush2.msra.mxu0 0.0
      %4643 = vmatprep.subr.mxu0 0.0
      %4644 = vmatpush2.msra.mxu0 0.0
      %4645 = vmatprep.subr.mxu0 0.0
      %4646 = vmatpush2.msra.mxu0 0.0
      %4647 = vmatprep.subr.mxu0 0.0
      %4648 = vmatpush2.msra.mxu0 0.0
      %4649 = vmatprep.mubr.f32.mxu0 0.0
      %4650 = vmatmul.mubr.f32.gmra.mxu0 %v4512
      %v4651 = vpop.f32.mrf.mxu0
      %v4652 = vadd.f32 0.0, %v4651
      %v4653 = vpop.f32.mrf.mxu0
      %v4654 = vadd.f32 0.0, %v4653
      %4655 = vdwg.mxu0
      %v4656 = vadd.f32 %v4486, %v4581
      %v4657 = vadd.f32 %v4487, %v4583
      %v4658 = vadd.f32 %v4488, %v4652
      %v4659 = vadd.f32 %v4489, %v4654
      %s4660 = scalar_lea.vmem %s7, 192
      %v4661 = vld [vmem:[%s4660] sm:$0xff]
      %4662 = vrot.lane.b32.xlu0 %v585, 19
      %v4663 = vpop.permute.xlu0 %4662
      %4664 = vrot.lane.b32.xlu0 %v586, 19
      %v4665 = vpop.permute.xlu0 %4664
      %4666 = vrot.lane.b32.xlu0 %v587, 19
      %v4667 = vpop.permute.xlu0 %4666
      %4668 = vrot.lane.b32.xlu0 %v588, 19
      %v4669 = vpop.permute.xlu0 %4668
      %4670 = vrot.lane.b32.xlu0 %v600, 19
      %v4671 = vpop.permute.xlu0 %4670
      %vm4672 = vcmask 154624
      %v4673 = vsel %vm4672, %v4663, %v4665
      %v4674 = vsel %vm4672, %v4665, %v4667
      %v4675 = vsel %vm4672, %v4667, %v4669
      %v4676 = vsel %vm4672, %v4669, %v4671
      %v4682 = vsel %vm628, %v4661, 0
      %4684 = vmatprep.subr.mxu0 0.0
      %4685 = vmatpush1.msra.mxu0 0.0
      %4686 = vmatprep.subr.mxu0 0.0
      %4687 = vmatpush1.msra.mxu0 0.0
      %4688 = vmatprep.subr.mxu0 0.0
      %4689 = vmatpush1.msra.mxu0 0.0
      %4690 = vmatprep.subr.mxu0 0.0
      %4691 = vmatpush1.msra.mxu0 0.0
      %4692 = vmatprep.subr.mxu0 0.0
      %4693 = vmatpush1.msra.mxu0 0.0
      %4694 = vmatprep.subr.mxu0 0.0
      %4695 = vmatpush1.msra.mxu0 0.0
      %4696 = vmatprep.subr.mxu0 0.0
      %4697 = vmatpush1.msra.mxu0 0.0
      %4698 = vmatprep.subr.mxu0 0.0
      %4699 = vmatpush1.msra.mxu0 0.0
      %4700 = vmatprep.subr.mxu0 0.0
      %4701 = vmatpush1.msra.mxu0 0.0
      %4702 = vmatprep.subr.mxu0 0.0
      %4703 = vmatpush1.msra.mxu0 0.0
      %4704 = vmatprep.subr.mxu0 0.0
      %4705 = vmatpush1.msra.mxu0 0.0
      %4706 = vmatprep.subr.mxu0 0.0
      %4707 = vmatpush1.msra.mxu0 0.0
      %4708 = vmatprep.subr.mxu0 0.0
      %4709 = vmatpush1.msra.mxu0 0.0
      %4710 = vmatprep.subr.mxu0 0.0
      %4711 = vmatpush1.msra.mxu0 0.0
      %4712 = vmatprep.subr.mxu0 0.0
      %4713 = vmatpush1.msra.mxu0 0.0
      %4714 = vmatprep.subr.mxu0 %v4674
      %4715 = vmatpush1.msra.mxu0 %v4673
      %4716 = vmatprep.subr.mxu0 0.0
      %4717 = vmatpush2.msra.mxu0 0.0
      %4718 = vmatprep.subr.mxu0 0.0
      %4719 = vmatpush2.msra.mxu0 0.0
      %4720 = vmatprep.subr.mxu0 0.0
      %4721 = vmatpush2.msra.mxu0 0.0
      %4722 = vmatprep.subr.mxu0 0.0
      %4723 = vmatpush2.msra.mxu0 0.0
      %4724 = vmatprep.subr.mxu0 0.0
      %4725 = vmatpush2.msra.mxu0 0.0
      %4726 = vmatprep.subr.mxu0 0.0
      %4727 = vmatpush2.msra.mxu0 0.0
      %4728 = vmatprep.subr.mxu0 0.0
      %4729 = vmatpush2.msra.mxu0 0.0
      %4730 = vmatprep.subr.mxu0 0.0
      %4731 = vmatpush2.msra.mxu0 0.0
      %4732 = vmatprep.subr.mxu0 0.0
      %4733 = vmatpush2.msra.mxu0 0.0
      %4734 = vmatprep.subr.mxu0 0.0
      %4735 = vmatpush2.msra.mxu0 0.0
      %4736 = vmatprep.subr.mxu0 0.0
      %4737 = vmatpush2.msra.mxu0 0.0
      %4738 = vmatprep.subr.mxu0 0.0
      %4739 = vmatpush2.msra.mxu0 0.0
      %4740 = vmatprep.subr.mxu0 0.0
      %4741 = vmatpush2.msra.mxu0 0.0
      %4742 = vmatprep.subr.mxu0 0.0
      %4743 = vmatpush2.msra.mxu0 0.0
      %4744 = vmatprep.subr.mxu0 0.0
      %4745 = vmatpush2.msra.mxu0 0.0
      %4746 = vmatprep.subr.mxu0 0.0
      %4747 = vmatpush2.msra.mxu0 0.0
      %4748 = vmatprep.mubr.f32.mxu0 0.0
      %4749 = vmatmul.mubr.f32.gmra.mxu0 %v4682
      %v4750 = vpop.f32.mrf.mxu0
      %v4751 = vadd.f32 0.0, %v4750
      %v4752 = vpop.f32.mrf.mxu0
      %v4753 = vadd.f32 0.0, %v4752
      %4754 = vdwg.mxu0
      %4755 = vmatprep.subr.mxu0 0.0
      %4756 = vmatpush1.msra.mxu0 0.0
      %4757 = vmatprep.subr.mxu0 0.0
      %4758 = vmatpush1.msra.mxu0 0.0
      %4759 = vmatprep.subr.mxu0 0.0
      %4760 = vmatpush1.msra.mxu0 0.0
      %4761 = vmatprep.subr.mxu0 0.0
      %4762 = vmatpush1.msra.mxu0 0.0
      %4763 = vmatprep.subr.mxu0 0.0
      %4764 = vmatpush1.msra.mxu0 0.0
      %4765 = vmatprep.subr.mxu0 0.0
      %4766 = vmatpush1.msra.mxu0 0.0
      %4767 = vmatprep.subr.mxu0 0.0
      %4768 = vmatpush1.msra.mxu0 0.0
      %4769 = vmatprep.subr.mxu0 0.0
      %4770 = vmatpush1.msra.mxu0 0.0
      %4771 = vmatprep.subr.mxu0 0.0
      %4772 = vmatpush1.msra.mxu0 0.0
      %4773 = vmatprep.subr.mxu0 0.0
      %4774 = vmatpush1.msra.mxu0 0.0
      %4775 = vmatprep.subr.mxu0 0.0
      %4776 = vmatpush1.msra.mxu0 0.0
      %4777 = vmatprep.subr.mxu0 0.0
      %4778 = vmatpush1.msra.mxu0 0.0
      %4779 = vmatprep.subr.mxu0 0.0
      %4780 = vmatpush1.msra.mxu0 0.0
      %4781 = vmatprep.subr.mxu0 0.0
      %4782 = vmatpush1.msra.mxu0 0.0
      %4783 = vmatprep.subr.mxu0 0.0
      %4784 = vmatpush1.msra.mxu0 0.0
      %4785 = vmatprep.subr.mxu0 %v4676
      %4786 = vmatpush1.msra.mxu0 %v4675
      %4787 = vmatprep.subr.mxu0 0.0
      %4788 = vmatpush2.msra.mxu0 0.0
      %4789 = vmatprep.subr.mxu0 0.0
      %4790 = vmatpush2.msra.mxu0 0.0
      %4791 = vmatprep.subr.mxu0 0.0
      %4792 = vmatpush2.msra.mxu0 0.0
      %4793 = vmatprep.subr.mxu0 0.0
      %4794 = vmatpush2.msra.mxu0 0.0
      %4795 = vmatprep.subr.mxu0 0.0
      %4796 = vmatpush2.msra.mxu0 0.0
      %4797 = vmatprep.subr.mxu0 0.0
      %4798 = vmatpush2.msra.mxu0 0.0
      %4799 = vmatprep.subr.mxu0 0.0
      %4800 = vmatpush2.msra.mxu0 0.0
      %4801 = vmatprep.subr.mxu0 0.0
      %4802 = vmatpush2.msra.mxu0 0.0
      %4803 = vmatprep.subr.mxu0 0.0
      %4804 = vmatpush2.msra.mxu0 0.0
      %4805 = vmatprep.subr.mxu0 0.0
      %4806 = vmatpush2.msra.mxu0 0.0
      %4807 = vmatprep.subr.mxu0 0.0
      %4808 = vmatpush2.msra.mxu0 0.0
      %4809 = vmatprep.subr.mxu0 0.0
      %4810 = vmatpush2.msra.mxu0 0.0
      %4811 = vmatprep.subr.mxu0 0.0
      %4812 = vmatpush2.msra.mxu0 0.0
      %4813 = vmatprep.subr.mxu0 0.0
      %4814 = vmatpush2.msra.mxu0 0.0
      %4815 = vmatprep.subr.mxu0 0.0
      %4816 = vmatpush2.msra.mxu0 0.0
      %4817 = vmatprep.subr.mxu0 0.0
      %4818 = vmatpush2.msra.mxu0 0.0
      %4819 = vmatprep.mubr.f32.mxu0 0.0
      %4820 = vmatmul.mubr.f32.gmra.mxu0 %v4682
      %v4821 = vpop.f32.mrf.mxu0
      %v4822 = vadd.f32 0.0, %v4821
      %v4823 = vpop.f32.mrf.mxu0
      %v4824 = vadd.f32 0.0, %v4823
      %4825 = vdwg.mxu0
      %v4826 = vadd.f32 %v4656, %v4751
      %v4827 = vadd.f32 %v4657, %v4753
      %v4828 = vadd.f32 %v4658, %v4822
      %v4829 = vadd.f32 %v4659, %v4824
      %s4830 = scalar_lea.vmem %s7, 200
      %v4831 = vld [vmem:[%s4830] sm:$0xff]
      %4832 = vrot.lane.b32.xlu0 %v585, 18
      %v4833 = vpop.permute.xlu0 %4832
      %4834 = vrot.lane.b32.xlu0 %v586, 18
      %v4835 = vpop.permute.xlu0 %4834
      %4836 = vrot.lane.b32.xlu0 %v587, 18
      %v4837 = vpop.permute.xlu0 %4836
      %4838 = vrot.lane.b32.xlu0 %v588, 18
      %v4839 = vpop.permute.xlu0 %4838
      %4840 = vrot.lane.b32.xlu0 %v600, 18
      %v4841 = vpop.permute.xlu0 %4840
      %vm4842 = vcmask 146432
      %v4843 = vsel %vm4842, %v4833, %v4835
      %v4844 = vsel %vm4842, %v4835, %v4837
      %v4845 = vsel %vm4842, %v4837, %v4839
      %v4846 = vsel %vm4842, %v4839, %v4841
      %v4852 = vsel %vm628, %v4831, 0
      %4854 = vmatprep.subr.mxu0 0.0
      %4855 = vmatpush1.msra.mxu0 0.0
      %4856 = vmatprep.subr.mxu0 0.0
      %4857 = vmatpush1.msra.mxu0 0.0
      %4858 = vmatprep.subr.mxu0 0.0
      %4859 = vmatpush1.msra.mxu0 0.0
      %4860 = vmatprep.subr.mxu0 0.0
      %4861 = vmatpush1.msra.mxu0 0.0
      %4862 = vmatprep.subr.mxu0 0.0
      %4863 = vmatpush1.msra.mxu0 0.0
      %4864 = vmatprep.subr.mxu0 0.0
      %4865 = vmatpush1.msra.mxu0 0.0
      %4866 = vmatprep.subr.mxu0 0.0
      %4867 = vmatpush1.msra.mxu0 0.0
      %4868 = vmatprep.subr.mxu0 0.0
      %4869 = vmatpush1.msra.mxu0 0.0
      %4870 = vmatprep.subr.mxu0 0.0
      %4871 = vmatpush1.msra.mxu0 0.0
      %4872 = vmatprep.subr.mxu0 0.0
      %4873 = vmatpush1.msra.mxu0 0.0
      %4874 = vmatprep.subr.mxu0 0.0
      %4875 = vmatpush1.msra.mxu0 0.0
      %4876 = vmatprep.subr.mxu0 0.0
      %4877 = vmatpush1.msra.mxu0 0.0
      %4878 = vmatprep.subr.mxu0 0.0
      %4879 = vmatpush1.msra.mxu0 0.0
      %4880 = vmatprep.subr.mxu0 0.0
      %4881 = vmatpush1.msra.mxu0 0.0
      %4882 = vmatprep.subr.mxu0 0.0
      %4883 = vmatpush1.msra.mxu0 0.0
      %4884 = vmatprep.subr.mxu0 %v4844
      %4885 = vmatpush1.msra.mxu0 %v4843
      %4886 = vmatprep.subr.mxu0 0.0
      %4887 = vmatpush2.msra.mxu0 0.0
      %4888 = vmatprep.subr.mxu0 0.0
      %4889 = vmatpush2.msra.mxu0 0.0
      %4890 = vmatprep.subr.mxu0 0.0
      %4891 = vmatpush2.msra.mxu0 0.0
      %4892 = vmatprep.subr.mxu0 0.0
      %4893 = vmatpush2.msra.mxu0 0.0
      %4894 = vmatprep.subr.mxu0 0.0
      %4895 = vmatpush2.msra.mxu0 0.0
      %4896 = vmatprep.subr.mxu0 0.0
      %4897 = vmatpush2.msra.mxu0 0.0
      %4898 = vmatprep.subr.mxu0 0.0
      %4899 = vmatpush2.msra.mxu0 0.0
      %4900 = vmatprep.subr.mxu0 0.0
      %4901 = vmatpush2.msra.mxu0 0.0
      %4902 = vmatprep.subr.mxu0 0.0
      %4903 = vmatpush2.msra.mxu0 0.0
      %4904 = vmatprep.subr.mxu0 0.0
      %4905 = vmatpush2.msra.mxu0 0.0
      %4906 = vmatprep.subr.mxu0 0.0
      %4907 = vmatpush2.msra.mxu0 0.0
      %4908 = vmatprep.subr.mxu0 0.0
      %4909 = vmatpush2.msra.mxu0 0.0
      %4910 = vmatprep.subr.mxu0 0.0
      %4911 = vmatpush2.msra.mxu0 0.0
      %4912 = vmatprep.subr.mxu0 0.0
      %4913 = vmatpush2.msra.mxu0 0.0
      %4914 = vmatprep.subr.mxu0 0.0
      %4915 = vmatpush2.msra.mxu0 0.0
      %4916 = vmatprep.subr.mxu0 0.0
      %4917 = vmatpush2.msra.mxu0 0.0
      %4918 = vmatprep.mubr.f32.mxu0 0.0
      %4919 = vmatmul.mubr.f32.gmra.mxu0 %v4852
      %v4920 = vpop.f32.mrf.mxu0
      %v4921 = vadd.f32 0.0, %v4920
      %v4922 = vpop.f32.mrf.mxu0
      %v4923 = vadd.f32 0.0, %v4922
      %4924 = vdwg.mxu0
      %4925 = vmatprep.subr.mxu0 0.0
      %4926 = vmatpush1.msra.mxu0 0.0
      %4927 = vmatprep.subr.mxu0 0.0
      %4928 = vmatpush1.msra.mxu0 0.0
      %4929 = vmatprep.subr.mxu0 0.0
      %4930 = vmatpush1.msra.mxu0 0.0
      %4931 = vmatprep.subr.mxu0 0.0
      %4932 = vmatpush1.msra.mxu0 0.0
      %4933 = vmatprep.subr.mxu0 0.0
      %4934 = vmatpush1.msra.mxu0 0.0
      %4935 = vmatprep.subr.mxu0 0.0
      %4936 = vmatpush1.msra.mxu0 0.0
      %4937 = vmatprep.subr.mxu0 0.0
      %4938 = vmatpush1.msra.mxu0 0.0
      %4939 = vmatprep.subr.mxu0 0.0
      %4940 = vmatpush1.msra.mxu0 0.0
      %4941 = vmatprep.subr.mxu0 0.0
      %4942 = vmatpush1.msra.mxu0 0.0
      %4943 = vmatprep.subr.mxu0 0.0
      %4944 = vmatpush1.msra.mxu0 0.0
      %4945 = vmatprep.subr.mxu0 0.0
      %4946 = vmatpush1.msra.mxu0 0.0
      %4947 = vmatprep.subr.mxu0 0.0
      %4948 = vmatpush1.msra.mxu0 0.0
      %4949 = vmatprep.subr.mxu0 0.0
      %4950 = vmatpush1.msra.mxu0 0.0
      %4951 = vmatprep.subr.mxu0 0.0
      %4952 = vmatpush1.msra.mxu0 0.0
      %4953 = vmatprep.subr.mxu0 0.0
      %4954 = vmatpush1.msra.mxu0 0.0
      %4955 = vmatprep.subr.mxu0 %v4846
      %4956 = vmatpush1.msra.mxu0 %v4845
      %4957 = vmatprep.subr.mxu0 0.0
      %4958 = vmatpush2.msra.mxu0 0.0
      %4959 = vmatprep.subr.mxu0 0.0
      %4960 = vmatpush2.msra.mxu0 0.0
      %4961 = vmatprep.subr.mxu0 0.0
      %4962 = vmatpush2.msra.mxu0 0.0
      %4963 = vmatprep.subr.mxu0 0.0
      %4964 = vmatpush2.msra.mxu0 0.0
      %4965 = vmatprep.subr.mxu0 0.0
      %4966 = vmatpush2.msra.mxu0 0.0
      %4967 = vmatprep.subr.mxu0 0.0
      %4968 = vmatpush2.msra.mxu0 0.0
      %4969 = vmatprep.subr.mxu0 0.0
      %4970 = vmatpush2.msra.mxu0 0.0
      %4971 = vmatprep.subr.mxu0 0.0
      %4972 = vmatpush2.msra.mxu0 0.0
      %4973 = vmatprep.subr.mxu0 0.0
      %4974 = vmatpush2.msra.mxu0 0.0
      %4975 = vmatprep.subr.mxu0 0.0
      %4976 = vmatpush2.msra.mxu0 0.0
      %4977 = vmatprep.subr.mxu0 0.0
      %4978 = vmatpush2.msra.mxu0 0.0
      %4979 = vmatprep.subr.mxu0 0.0
      %4980 = vmatpush2.msra.mxu0 0.0
      %4981 = vmatprep.subr.mxu0 0.0
      %4982 = vmatpush2.msra.mxu0 0.0
      %4983 = vmatprep.subr.mxu0 0.0
      %4984 = vmatpush2.msra.mxu0 0.0
      %4985 = vmatprep.subr.mxu0 0.0
      %4986 = vmatpush2.msra.mxu0 0.0
      %4987 = vmatprep.subr.mxu0 0.0
      %4988 = vmatpush2.msra.mxu0 0.0
      %4989 = vmatprep.mubr.f32.mxu0 0.0
      %4990 = vmatmul.mubr.f32.gmra.mxu0 %v4852
      %v4991 = vpop.f32.mrf.mxu0
      %v4992 = vadd.f32 0.0, %v4991
      %v4993 = vpop.f32.mrf.mxu0
      %v4994 = vadd.f32 0.0, %v4993
      %4995 = vdwg.mxu0
      %v4996 = vadd.f32 %v4826, %v4921
      %v4997 = vadd.f32 %v4827, %v4923
      %v4998 = vadd.f32 %v4828, %v4992
      %v4999 = vadd.f32 %v4829, %v4994
      %s5000 = scalar_lea.vmem %s7, 208
      %v5001 = vld [vmem:[%s5000] sm:$0xff]
      %5002 = vrot.lane.b32.xlu0 %v585, 17
      %v5003 = vpop.permute.xlu0 %5002
      %5004 = vrot.lane.b32.xlu0 %v586, 17
      %v5005 = vpop.permute.xlu0 %5004
      %5006 = vrot.lane.b32.xlu0 %v587, 17
      %v5007 = vpop.permute.xlu0 %5006
      %5008 = vrot.lane.b32.xlu0 %v588, 17
      %v5009 = vpop.permute.xlu0 %5008
      %5010 = vrot.lane.b32.xlu0 %v600, 17
      %v5011 = vpop.permute.xlu0 %5010
      %vm5012 = vcmask 138240
      %v5013 = vsel %vm5012, %v5003, %v5005
      %v5014 = vsel %vm5012, %v5005, %v5007
      %v5015 = vsel %vm5012, %v5007, %v5009
      %v5016 = vsel %vm5012, %v5009, %v5011
      %v5022 = vsel %vm628, %v5001, 0
      %5024 = vmatprep.subr.mxu0 0.0
      %5025 = vmatpush1.msra.mxu0 0.0
      %5026 = vmatprep.subr.mxu0 0.0
      %5027 = vmatpush1.msra.mxu0 0.0
      %5028 = vmatprep.subr.mxu0 0.0
      %5029 = vmatpush1.msra.mxu0 0.0
      %5030 = vmatprep.subr.mxu0 0.0
      %5031 = vmatpush1.msra.mxu0 0.0
      %5032 = vmatprep.subr.mxu0 0.0
      %5033 = vmatpush1.msra.mxu0 0.0
      %5034 = vmatprep.subr.mxu0 0.0
      %5035 = vmatpush1.msra.mxu0 0.0
      %5036 = vmatprep.subr.mxu0 0.0
      %5037 = vmatpush1.msra.mxu0 0.0
      %5038 = vmatprep.subr.mxu0 0.0
      %5039 = vmatpush1.msra.mxu0 0.0
      %5040 = vmatprep.subr.mxu0 0.0
      %5041 = vmatpush1.msra.mxu0 0.0
      %5042 = vmatprep.subr.mxu0 0.0
      %5043 = vmatpush1.msra.mxu0 0.0
      %5044 = vmatprep.subr.mxu0 0.0
      %5045 = vmatpush1.msra.mxu0 0.0
      %5046 = vmatprep.subr.mxu0 0.0
      %5047 = vmatpush1.msra.mxu0 0.0
      %5048 = vmatprep.subr.mxu0 0.0
      %5049 = vmatpush1.msra.mxu0 0.0
      %5050 = vmatprep.subr.mxu0 0.0
      %5051 = vmatpush1.msra.mxu0 0.0
      %5052 = vmatprep.subr.mxu0 0.0
      %5053 = vmatpush1.msra.mxu0 0.0
      %5054 = vmatprep.subr.mxu0 %v5014
      %5055 = vmatpush1.msra.mxu0 %v5013
      %5056 = vmatprep.subr.mxu0 0.0
      %5057 = vmatpush2.msra.mxu0 0.0
      %5058 = vmatprep.subr.mxu0 0.0
      %5059 = vmatpush2.msra.mxu0 0.0
      %5060 = vmatprep.subr.mxu0 0.0
      %5061 = vmatpush2.msra.mxu0 0.0
      %5062 = vmatprep.subr.mxu0 0.0
      %5063 = vmatpush2.msra.mxu0 0.0
      %5064 = vmatprep.subr.mxu0 0.0
      %5065 = vmatpush2.msra.mxu0 0.0
      %5066 = vmatprep.subr.mxu0 0.0
      %5067 = vmatpush2.msra.mxu0 0.0
      %5068 = vmatprep.subr.mxu0 0.0
      %5069 = vmatpush2.msra.mxu0 0.0
      %5070 = vmatprep.subr.mxu0 0.0
      %5071 = vmatpush2.msra.mxu0 0.0
      %5072 = vmatprep.subr.mxu0 0.0
      %5073 = vmatpush2.msra.mxu0 0.0
      %5074 = vmatprep.subr.mxu0 0.0
      %5075 = vmatpush2.msra.mxu0 0.0
      %5076 = vmatprep.subr.mxu0 0.0
      %5077 = vmatpush2.msra.mxu0 0.0
      %5078 = vmatprep.subr.mxu0 0.0
      %5079 = vmatpush2.msra.mxu0 0.0
      %5080 = vmatprep.subr.mxu0 0.0
      %5081 = vmatpush2.msra.mxu0 0.0
      %5082 = vmatprep.subr.mxu0 0.0
      %5083 = vmatpush2.msra.mxu0 0.0
      %5084 = vmatprep.subr.mxu0 0.0
      %5085 = vmatpush2.msra.mxu0 0.0
      %5086 = vmatprep.subr.mxu0 0.0
      %5087 = vmatpush2.msra.mxu0 0.0
      %5088 = vmatprep.mubr.f32.mxu0 0.0
      %5089 = vmatmul.mubr.f32.gmra.mxu0 %v5022
      %v5090 = vpop.f32.mrf.mxu0
      %v5091 = vadd.f32 0.0, %v5090
      %v5092 = vpop.f32.mrf.mxu0
      %v5093 = vadd.f32 0.0, %v5092
      %5094 = vdwg.mxu0
      %5095 = vmatprep.subr.mxu0 0.0
      %5096 = vmatpush1.msra.mxu0 0.0
      %5097 = vmatprep.subr.mxu0 0.0
      %5098 = vmatpush1.msra.mxu0 0.0
      %5099 = vmatprep.subr.mxu0 0.0
      %5100 = vmatpush1.msra.mxu0 0.0
      %5101 = vmatprep.subr.mxu0 0.0
      %5102 = vmatpush1.msra.mxu0 0.0
      %5103 = vmatprep.subr.mxu0 0.0
      %5104 = vmatpush1.msra.mxu0 0.0
      %5105 = vmatprep.subr.mxu0 0.0
      %5106 = vmatpush1.msra.mxu0 0.0
      %5107 = vmatprep.subr.mxu0 0.0
      %5108 = vmatpush1.msra.mxu0 0.0
      %5109 = vmatprep.subr.mxu0 0.0
      %5110 = vmatpush1.msra.mxu0 0.0
      %5111 = vmatprep.subr.mxu0 0.0
      %5112 = vmatpush1.msra.mxu0 0.0
      %5113 = vmatprep.subr.mxu0 0.0
      %5114 = vmatpush1.msra.mxu0 0.0
      %5115 = vmatprep.subr.mxu0 0.0
      %5116 = vmatpush1.msra.mxu0 0.0
      %5117 = vmatprep.subr.mxu0 0.0
      %5118 = vmatpush1.msra.mxu0 0.0
      %5119 = vmatprep.subr.mxu0 0.0
      %5120 = vmatpush1.msra.mxu0 0.0
      %5121 = vmatprep.subr.mxu0 0.0
      %5122 = vmatpush1.msra.mxu0 0.0
      %5123 = vmatprep.subr.mxu0 0.0
      %5124 = vmatpush1.msra.mxu0 0.0
      %5125 = vmatprep.subr.mxu0 %v5016
      %5126 = vmatpush1.msra.mxu0 %v5015
      %5127 = vmatprep.subr.mxu0 0.0
      %5128 = vmatpush2.msra.mxu0 0.0
      %5129 = vmatprep.subr.mxu0 0.0
      %5130 = vmatpush2.msra.mxu0 0.0
      %5131 = vmatprep.subr.mxu0 0.0
      %5132 = vmatpush2.msra.mxu0 0.0
      %5133 = vmatprep.subr.mxu0 0.0
      %5134 = vmatpush2.msra.mxu0 0.0
      %5135 = vmatprep.subr.mxu0 0.0
      %5136 = vmatpush2.msra.mxu0 0.0
      %5137 = vmatprep.subr.mxu0 0.0
      %5138 = vmatpush2.msra.mxu0 0.0
      %5139 = vmatprep.subr.mxu0 0.0
      %5140 = vmatpush2.msra.mxu0 0.0
      %5141 = vmatprep.subr.mxu0 0.0
      %5142 = vmatpush2.msra.mxu0 0.0
      %5143 = vmatprep.subr.mxu0 0.0
      %5144 = vmatpush2.msra.mxu0 0.0
      %5145 = vmatprep.subr.mxu0 0.0
      %5146 = vmatpush2.msra.mxu0 0.0
      %5147 = vmatprep.subr.mxu0 0.0
      %5148 = vmatpush2.msra.mxu0 0.0
      %5149 = vmatprep.subr.mxu0 0.0
      %5150 = vmatpush2.msra.mxu0 0.0
      %5151 = vmatprep.subr.mxu0 0.0
      %5152 = vmatpush2.msra.mxu0 0.0
      %5153 = vmatprep.subr.mxu0 0.0
      %5154 = vmatpush2.msra.mxu0 0.0
      %5155 = vmatprep.subr.mxu0 0.0
      %5156 = vmatpush2.msra.mxu0 0.0
      %5157 = vmatprep.subr.mxu0 0.0
      %5158 = vmatpush2.msra.mxu0 0.0
      %5159 = vmatprep.mubr.f32.mxu0 0.0
      %5160 = vmatmul.mubr.f32.gmra.mxu0 %v5022
      %v5161 = vpop.f32.mrf.mxu0
      %v5162 = vadd.f32 0.0, %v5161
      %v5163 = vpop.f32.mrf.mxu0
      %v5164 = vadd.f32 0.0, %v5163
      %5165 = vdwg.mxu0
      %v5166 = vadd.f32 %v4996, %v5091
      %v5167 = vadd.f32 %v4997, %v5093
      %v5168 = vadd.f32 %v4998, %v5162
      %v5169 = vadd.f32 %v4999, %v5164
      %v5170 = vmul.f32 %v5166, %v568
      %v5171 = vmul.f32 %v5167, %v572
      %v5172 = vmul.f32 %v5168, %v576
      %v5173 = vmul.f32 %v5169, %v580
      %v5174 = vld [vmem:[%s9] sm:$0xff]
      %v5175 = vadd.f32 %v5170, %v5171
      %v5176 = vadd.f32 %v5175, %v5172
      %v5177 = vadd.f32 %v5176, %v5173
      %5178 = vadd.xlane.f32.xlu0 %v5177
      %v5179 = vpop.xlane.xlu0 %5178
      %v5180 = vadd.f32 %v5174, %v5179
      %5181 = vst.msk [vmem:[%s9] sm:$0xff] %vm2650, %v5180
      %v5182 = vld [vmem:[%s9] sm:$0xff]
      %v5183 = vmul.f32 %v5170, %v5166
      %v5184 = vmul.f32 %v5171, %v5167
      %v5185 = vmul.f32 %v5172, %v5168
      %v5186 = vmul.f32 %v5173, %v5169
      %v5187 = vadd.f32 %v5183, %v5184
      %v5188 = vadd.f32 %v5187, %v5185
      %v5189 = vadd.f32 %v5188, %v5186
      %5190 = vadd.xlane.f32.xlu0 %v5189
      %v5191 = vpop.xlane.xlu0 %5190
      %v5192 = vadd.f32 %v5182, %v5191
      %vm5193 = vcmask 15368
      %5194 = vst.msk [vmem:[%s9] sm:$0xff] %vm5193, %v5192
      %5195 = vst [vmem:[%s517] sm:$0xff] %v5166
      %5196 = vst [vmem:[%s517 + $0x8] sm:$0xff] %v5167
      %5197 = vst [vmem:[%s517 + $0x10] sm:$0xff] %v5168
      %5198 = vst [vmem:[%s517 + $0x18] sm:$0xff] %v5169
      %s5199 = smul.u32 4, %s21
      %p5200 = scmp.lt.s32.totalorder %s5199, 15
      %s5201 = scalar_select %p5200, %s5199, 15
      %s5202 = smul.addr %s5201, 8
      %s5203 = scalar_lea.vmem %s8, %s5202
      // Predicated region
      $region57: #{basic3d_block.4} parent=51 // pred_check
        %p5204 = pneg %p261
      $region58: #{basic3d_block.4} parent=51 // pred_check_branch
        %5206 = sbr.rel (%p5204) target = $region60
      $region59: #{basic3d_block.4} parent=51 // pred_region
        %s5207 = smul.u32 4, %s21
      $region60: #{basic3d_block.4} parent=51 // pred_fallthru
        _
      // Predicated region
      $region61: #{basic3d_block.4} parent=51 // pred_check
        %p5208 = pneg %p282
      $region62: #{basic3d_block.4} parent=51 // pred_check_branch
        %5210 = sbr.rel (%p5208) target = $region64
      $region63: #{basic3d_block.4} parent=51 // pred_region
        _
      $region64: #{basic3d_block.4} parent=51 // pred_fallthru
        _
      // Predicated region
      $region65: #{basic3d_block.4} parent=51 // pred_check
        %p5211 = pneg %p282
      $region66: #{basic3d_block.4} parent=51 // pred_check_branch
        %5213 = sbr.rel (%p5211) target = $region68
      $region67: #{basic3d_block.4} parent=51 // pred_region
        _
      $region68: #{basic3d_block.4} parent=51 // pred_fallthru
        _
    $region52: #{basic3d_block.4} parent=5 // pred_fallthru
      _
    %p5214 = scmp.le.s32.totalorder 2, %s16
    // Predicated region
    $region69: #{basic3d_block.4} parent=5 // pred_check
      %p5215 = pneg %p5214
    $region70: #{basic3d_block.4} parent=5 // pred_check_branch
      %5217 = sbr.rel (%p5215) target = $region72
    $region71: #{basic3d_block.4} parent=5 // pred_region
      %s5218 = ssub.s32 %s16, 2
      // Predicated region
      $region73: #{basic3d_block.4} parent=71 // pred_check
        %p5219 = pneg %p267
      $region74: #{basic3d_block.4} parent=71 // pred_check_branch
        %5221 = sbr.rel (%p5219) target = $region76
      $region75: #{basic3d_block.4} parent=71 // pred_region
        %s5222 = smul.u32 4, %s22
        %p5223 = scmp.lt.s32.totalorder %s5222, 15
        %s5224 = scalar_select %p5223, %s5222, 15
        %s5225 = smul.addr %s5224, 8
        %s5226 = scalar_lea.vmem %s8, %s5225
      $region76: #{basic3d_block.4} parent=71 // pred_fallthru
        _
    $region72: #{basic3d_block.4} parent=5 // pred_fallthru
      _
  $region6: #{basic3d_block.4} parent=0 // loop_footer
    %s20 = sadd.s32 1, %s16
  $region7: #{basic3d_block.4} parent=0 // loop_footer_branch
    %15 = sbr.rel target = $region3
  $region8: #{basic3d_block.4} parent=0 // loop_exit
    _

</llo_original>
